<compile_context>
chip_gen: v7x
topology: tpu7x:2x2x1
jax: 0.10.0
libtpu: 0.0.40
codegen_flags: <defaults>
</compile_context>

<pallas_src>
import jax
import jax.numpy as jnp
from jax.experimental import pallas as pl
from jax.experimental.pallas import tpu as pltpu

# ------------------------- model hyper-parameters -------------------------
PATCH = 4
IN_CHANS = 3
IMG = 16
EMBED_DIM = 128
NUM_HEADS = 4
HEAD_DIM = EMBED_DIM // NUM_HEADS
MLP_DIM = 4 * EMBED_DIM
DEPTH = 2
NUM_CLASSES = 10
LN_EPS = 1e-6

NP_TOK = (IMG // PATCH) ** 2            # 16 patch tokens per image
S = NP_TOK + 1                          # 17 real tokens (patches + cls)
S_PAD = 24                              # padded sequence (multiple of 8)
PATCH_FEATS = IN_CHANS * PATCH * PATCH  # 48 features per flattened patch
HEAD_OUT_PAD = 128                      # lane-dense padded classifier output
MAX_IMGS_PER_STEP = 16                  # M = 16*24 = 384 rows per matmul


# ------------------------------ kernel helpers ------------------------------
def _layernorm(x, g, b):
    mu = jnp.mean(x, axis=-1, keepdims=True)
    xc = x - mu
    var = jnp.mean(xc * xc, axis=-1, keepdims=True)
    return xc * jax.lax.rsqrt(var + LN_EPS) * g + b


def _gelu(x):
    # Exact (erf) GELU, matching torch.nn.GELU's default.
    return 0.5 * x * (1.0 + jax.lax.erf(x * 0.7071067811865475))


# ------------------------------ fused ViT kernel -----------------------------
def _vit_fused_kernel(
        patches_ref, base_ref, patch_w_ref,
        ln1_g_ref, ln1_b_ref, qkv_w_ref, qkv_b_ref, proj_w_ref, proj_b_ref,
        ln2_g_ref, ln2_b_ref, fc1_w_ref, fc1_b_ref, fc2_w_ref, fc2_b_ref,
        lnf_g_ref, lnf_b_ref, head_w_ref, head_b_ref,
        out_ref):
    f32 = jnp.float32
    bf16 = jnp.bfloat16
    imgs = patches_ref.shape[0] // NP_TOK          # images per grid step (static)
    scale = HEAD_DIM ** -0.5

    # --- patch embedding: one (imgs*16, 48) @ (48, 128) bf16 matmul, f32 acc ---
    emb = jnp.dot(patches_ref[...], patch_w_ref[...], preferred_element_type=f32)

    # Assemble per-image padded segments (rows 0..15 patches, 16 cls, 17..23 pad)
    # and add the shared base (pos embed + conv bias / cls+pos0 / zeros).
    emb3 = emb.reshape(imgs, NP_TOK, EMBED_DIM)
    pad3 = jnp.zeros((imgs, S_PAD - NP_TOK, EMBED_DIM), f32)
    tok = jnp.concatenate([emb3, pad3], axis=1) + base_ref[...][None, :, :]
    tok = tok.reshape(imgs * S_PAD, EMBED_DIM)

    # Additive key mask: padded key columns (>= S) get a large negative bias.
    col = jax.lax.broadcasted_iota(jnp.int32, (S_PAD, S_PAD), 1)
    attn_bias = jnp.where(col < S, 0.0, -1e30).astype(f32)

    for d in range(DEPTH):                               # static unroll
        # ----- multi-head self-attention (pre-LN), fully fused -----
        h = _layernorm(tok, ln1_g_ref[d], ln1_b_ref[d])
        qkv = jnp.dot(h.astype(bf16), qkv_w_ref[d],
                      preferred_element_type=f32) + qkv_b_ref[d]
        q = qkv[:, 0:EMBED_DIM].reshape(imgs, S_PAD, EMBED_DIM)
        k = qkv[:, EMBED_DIM:2 * EMBED_DIM].reshape(imgs, S_PAD, EMBED_DIM)
        v = qkv[:, 2 * EMBED_DIM:3 * EMBED_DIM].reshape(imgs, S_PAD, EMBED_DIM)

        head_ctx = []
        for hh in range(NUM_HEADS):                      # static lane slices
            lo, hi = hh * HEAD_DIM, (hh + 1) * HEAD_DIM
            qh = q[:, :, lo:hi].astype(bf16)
            kh = k[:, :, lo:hi].astype(bf16)
            vh = v[:, :, lo:hi].astype(bf16)
            s = jnp.einsum('bqd,bkd->bqk', qh, kh, preferred_element_type=f32)
            s = s * scale + attn_bias[None, :, :]
            m = jnp.max(s, axis=-1, keepdims=True)
            p = jnp.exp(s - m)
            p = p * pl.reciprocal(jnp.sum(p, axis=-1, keepdims=True), approx=True)
            head_ctx.append(jnp.einsum('bqk,bkd->bqd', p.astype(bf16), vh,
                                       preferred_element_type=f32))
        # head-concat (cheap lane concat) then ONE K=128 output projection
        ctx = jnp.concatenate(head_ctx, axis=-1).reshape(imgs * S_PAD, EMBED_DIM)
        proj = jnp.dot(ctx.astype(bf16), proj_w_ref[d],
                       preferred_element_type=f32) + proj_b_ref[d]
        tok = tok + proj                                  # residual

        # ----- MLP (pre-LN) with fused GELU and residual -----
        h = _layernorm(tok, ln2_g_ref[d], ln2_b_ref[d])
        h = jnp.dot(h.astype(bf16), fc1_w_ref[d],
                    preferred_element_type=f32) + fc1_b_ref[d]
        h = _gelu(h)
        h = jnp.dot(h.astype(bf16), fc2_w_ref[d],
                    preferred_element_type=f32) + fc2_b_ref[d]
        tok = tok + h

    # ----- final LN + head on the cls rows only (row 16 of each segment) -----
    # Row offsets i*24+16 are all multiples of 8 (sublane-tile aligned).
    cls = jnp.concatenate(
        [tok[i * S_PAD + NP_TOK: i * S_PAD + NP_TOK + 1, :] for i in range(imgs)],
        axis=0)                                           # (imgs, 128)
    h = _layernorm(cls, lnf_g_ref[...], lnf_b_ref[...])
    logits = jnp.dot(h.astype(bf16), head_w_ref[...],
                     preferred_element_type=f32) + head_b_ref[...]
    out_ref[...] = logits[None, :, :]                     # (1, imgs, 128)


# ------------------------------ parameter init ------------------------------
def init_params(key):
    f32, bf16 = jnp.float32, jnp.bfloat16

    def nrm(k, shape, std=0.02):
        return std * jax.random.normal(k, shape, dtype=f32)

    keys = iter(jax.random.split(key, 16))
    zeros = lambda s: jnp.zeros(s, f32)
    ones = lambda s: jnp.ones(s, f32)

    # Classification head zero-padded to 128 output lanes (unmasked vst).
    head_w = zeros((EMBED_DIM, HEAD_OUT_PAD)).at[:, :NUM_CLASSES].set(
        nrm(next(keys), (EMBED_DIM, NUM_CLASSES)))

    return {
        # Patch-embed conv weight [D, C, p, p] stored as a [C*p*p, D] matmul weight.
        "patch_w": nrm(next(keys), (PATCH_FEATS, EMBED_DIM)).astype(bf16),
        "patch_b": zeros((EMBED_DIM,)),
        "cls": nrm(next(keys), (EMBED_DIM,)),
        "pos": nrm(next(keys), (S, EMBED_DIM)),            # row 0 = cls position
        # Per-block weights stacked on a leading depth axis (static indexing).
        "ln1_g": ones((DEPTH, 1, EMBED_DIM)),
        "ln1_b": zeros((DEPTH, 1, EMBED_DIM)),
        "qkv_w": jnp.stack([nrm(next(keys), (EMBED_DIM, 3 * EMBED_DIM))
                            for _ in range(DEPTH)]).astype(bf16),
        "qkv_b": zeros((DEPTH, 1, 3 * EMBED_DIM)),
        "proj_w": jnp.stack([nrm(next(keys), (EMBED_DIM, EMBED_DIM))
                             for _ in range(DEPTH)]).astype(bf16),
        "proj_b": zeros((DEPTH, 1, EMBED_DIM)),
        "ln2_g": ones((DEPTH, 1, EMBED_DIM)),
        "ln2_b": zeros((DEPTH, 1, EMBED_DIM)),
        "fc1_w": jnp.stack([nrm(next(keys), (EMBED_DIM, MLP_DIM))
                            for _ in range(DEPTH)]).astype(bf16),
        "fc1_b": zeros((DEPTH, 1, MLP_DIM)),
        "fc2_w": jnp.stack([nrm(next(keys), (MLP_DIM, EMBED_DIM))
                            for _ in range(DEPTH)]).astype(bf16),
        "fc2_b": zeros((DEPTH, 1, EMBED_DIM)),
        "lnf_g": ones((1, EMBED_DIM)),
        "lnf_b": zeros((1, EMBED_DIM)),
        "head_w": head_w.astype(bf16),
        "head_b": zeros((1, HEAD_OUT_PAD)),
    }


# --------------------------------- forward ---------------------------------
def vit_forward(x, params):
    """x: [B, C, H, W] float32 (NCHW, like the PyTorch module)."""
    B, C, H, W = x.shape
    p = PATCH

    # Images per grid step: target large M (IMGS*24 rows) but keep >= 2 grid
    # steps so v7x can shard across both TensorCores.
    imgs = max(1, min(MAX_IMGS_PER_STEP, B // 2))
    grid_n = -(-B // imgs)                                 # cdiv
    b_pad = grid_n * imgs

    # Unfold NCHW image into per-patch feature rows (c, ph, pw order, matching
    # Conv2d weight layout).  Compact (no zero padding): (B_pad*16, 48) bf16.
    patches = (x.reshape(B, C, H // p, p, W // p, p)
                 .transpose(0, 2, 4, 1, 3, 5)
                 .reshape(B, NP_TOK, C * p * p))
    if b_pad != B:
        patches = jnp.pad(patches, ((0, b_pad - B), (0, 0), (0, 0)))
    patches = patches.reshape(b_pad * NP_TOK, PATCH_FEATS).astype(jnp.bfloat16)

    # Shared per-image token base: pos embed (+ conv bias) for patch rows,
    # cls token + its pos embed at row 16, zeros for the 7 pad rows.
    pos = params["pos"]
    base = jnp.concatenate([
        pos[1:] + params["patch_b"][None, :],              # 16 patch rows
        (params["cls"] + pos[0])[None, :],                 # cls row
        jnp.zeros((S_PAD - S, EMBED_DIM), jnp.float32),    # pad rows
    ], axis=0)                                             # (24, 128)

    def full_spec(shape):
        nd = len(shape)
        return pl.BlockSpec(shape, lambda g, _nd=nd: (0,) * _nd)

    in_specs = [
        pl.BlockSpec((imgs * NP_TOK, PATCH_FEATS), lambda g: (g, 0)),  # patches
        full_spec((S_PAD, EMBED_DIM)),                     # base
        full_spec((PATCH_FEATS, EMBED_DIM)),               # patch_w
        full_spec((DEPTH, 1, EMBED_DIM)),                  # ln1_g
        full_spec((DEPTH, 1, EMBED_DIM)),                  # ln1_b
        full_spec((DEPTH, EMBED_DIM, 3 * EMBED_DIM)),      # qkv_w
        full_spec((DEPTH, 1, 3 * EMBED_DIM)),              # qkv_b
        full_spec((DEPTH, EMBED_DIM, EMBED_DIM)),          # proj_w
        full_spec((DEPTH, 1, EMBED_DIM)),                  # proj_b
        full_spec((DEPTH, 1, EMBED_DIM)),                  # ln2_g
        full_spec((DEPTH, 1, EMBED_DIM)),                  # ln2_b
        full_spec((DEPTH, EMBED_DIM, MLP_DIM)),            # fc1_w
        full_spec((DEPTH, 1, MLP_DIM)),                    # fc1_b
        full_spec((DEPTH, MLP_DIM, EMBED_DIM)),            # fc2_w
        full_spec((DEPTH, 1, EMBED_DIM)),                  # fc2_b
        full_spec((1, EMBED_DIM)),                         # lnf_g
        full_spec((1, EMBED_DIM)),                         # lnf_b
        full_spec((EMBED_DIM, HEAD_OUT_PAD)),              # head_w
        full_spec((1, HEAD_OUT_PAD)),                      # head_b
    ]

    out = pl.pallas_call(
        _vit_fused_kernel,
        grid=(grid_n,),
        in_specs=in_specs,
        out_specs=pl.BlockSpec((1, imgs, HEAD_OUT_PAD), lambda g: (g, 0, 0)),
        out_shape=jax.ShapeDtypeStruct((grid_n, imgs, HEAD_OUT_PAD), jnp.float32),
        compiler_params=pltpu.CompilerParams(
            dimension_semantics=("parallel",)),
    )(patches, base, params["patch_w"],
      params["ln1_g"], params["ln1_b"], params["qkv_w"], params["qkv_b"],
      params["proj_w"], params["proj_b"], params["ln2_g"], params["ln2_b"],
      params["fc1_w"], params["fc1_b"], params["fc2_w"], params["fc2_b"],
      params["lnf_g"], params["lnf_b"], params["head_w"], params["head_b"])

    # Head columns >= NUM_CLASSES are zero padding; batch rows >= B are padding.
    return out.reshape(b_pad, HEAD_OUT_PAD)[:B, :NUM_CLASSES]


# ----------------------- pure-JAX reference (validation) ---------------------
def vit_reference(x, params):
    """Standard (cls-first, unpadded) ViT forward mirroring the kernel's
    bf16-operand / f32-accumulate matmul precision."""
    f32, bf16 = jnp.float32, jnp.bfloat16

    def mm(a, w):
        return jnp.dot(a.astype(bf16).astype(f32), w.astype(f32))

    def ln(t, g, b):
        mu = t.mean(-1, keepdims=True)
        tc = t - mu
        var = (tc * tc).mean(-1, keepdims=True)
        return tc * jax.lax.rsqrt(var + LN_EPS) * g + b

    B = x.shape[0]
    p = PATCH
    scale = HEAD_DIM ** -0.5
    patches = (x.reshape(B, IN_CHANS, IMG // p, p, IMG // p, p)
                 .transpose(0, 2, 4, 1, 3, 5)
                 .reshape(B, NP_TOK, PATCH_FEATS))
    emb = mm(patches, params["patch_w"]) + params["patch_b"]
    cls_tok = jnp.broadcast_to(params["cls"], (B, 1, EMBED_DIM))
    tok = jnp.concatenate([cls_tok, emb], axis=1) + params["pos"][None]

    for d in range(DEPTH):
        h = ln(tok, params["ln1_g"][d], params["ln1_b"][d])
        qkv = mm(h, params["qkv_w"][d]) + params["qkv_b"][d]
        q = qkv[..., :EMBED_DIM]
        k = qkv[..., EMBED_DIM:2 * EMBED_DIM]
        v = qkv[..., 2 * EMBED_DIM:]
        split = lambda t: t.reshape(B, S, NUM_HEADS, HEAD_DIM).transpose(0, 2, 1, 3)
        q, k, v = split(q), split(k), split(v)
        s = jnp.einsum('bhqd,bhkd->bhqk',
                       q.astype(bf16).astype(f32), k.astype(bf16).astype(f32)) * scale
        a = jax.nn.softmax(s, axis=-1)
        o = jnp.einsum('bhqk,bhkd->bhqd',
                       a.astype(bf16).astype(f32), v.astype(bf16).astype(f32))
        o = o.transpose(0, 2, 1, 3).reshape(B, S, EMBED_DIM)
        tok = tok + mm(o, params["proj_w"][d]) + params["proj_b"][d]

        h = ln(tok, params["ln2_g"][d], params["ln2_b"][d])
        h = mm(h, params["fc1_w"][d]) + params["fc1_b"][d]
        h = 0.5 * h * (1.0 + jax.lax.erf(h * 0.7071067811865475))
        h = mm(h, params["fc2_w"][d]) + params["fc2_b"][d]
        tok = tok + h

    h = ln(tok[:, 0, :], params["lnf_g"], params["lnf_b"])
    logits = mm(h, params["head_w"]) + params["head_b"]
    return logits[:, :NUM_CLASSES]


# ----------------------------------- main -----------------------------------
if __name__ == "__main__":
    key = jax.random.PRNGKey(0)
    kp, kx = jax.random.split(key)
    params = init_params(kp)

    # Small batch consistent with the ViT forward (3-channel 16x16 images).
    # B=6 -> 3 images per grid step, 2 grid steps (exercises row batching).
    B = 6
    x = jax.random.normal(kx, (B, IN_CHANS, IMG, IMG), dtype=jnp.float32)

    logits = jax.jit(vit_forward)(x, params)
    logits = jax.block_until_ready(logits)

    assert logits.shape == (B, NUM_CLASSES)
    assert bool(jnp.all(jnp.isfinite(logits)))

    ref = vit_reference(x, params)
    err = float(jnp.max(jnp.abs(logits - ref)))
    assert err < 1e-2, f"max |kernel - reference| = {err}"

    print("KERNEL_OK")
</pallas_src>

<mosaic_0001>
module attributes {stable_mosaic.version = 11 : i64} {
  func.func @_vit_fused_kernel(%arg0: i32, %arg1: memref<48x48xbf16, #tpu.memory_space<vmem>>, %arg2: memref<24x128xf32, #tpu.memory_space<vmem>>, %arg3: memref<48x128xbf16, #tpu.memory_space<vmem>>, %arg4: memref<2x1x128xf32, #tpu.memory_space<vmem>>, %arg5: memref<2x1x128xf32, #tpu.memory_space<vmem>>, %arg6: memref<2x128x384xbf16, #tpu.memory_space<vmem>>, %arg7: memref<2x1x384xf32, #tpu.memory_space<vmem>>, %arg8: memref<2x128x128xbf16, #tpu.memory_space<vmem>>, %arg9: memref<2x1x128xf32, #tpu.memory_space<vmem>>, %arg10: memref<2x1x128xf32, #tpu.memory_space<vmem>>, %arg11: memref<2x1x128xf32, #tpu.memory_space<vmem>>, %arg12: memref<2x128x512xbf16, #tpu.memory_space<vmem>>, %arg13: memref<2x1x512xf32, #tpu.memory_space<vmem>>, %arg14: memref<2x512x128xbf16, #tpu.memory_space<vmem>>, %arg15: memref<2x1x128xf32, #tpu.memory_space<vmem>>, %arg16: memref<1x128xf32, #tpu.memory_space<vmem>>, %arg17: memref<1x128xf32, #tpu.memory_space<vmem>>, %arg18: memref<128x128xbf16, #tpu.memory_space<vmem>>, %arg19: memref<1x128xf32, #tpu.memory_space<vmem>>, %arg20: memref<1x3x128xf32, #tpu.memory_space<vmem>>) attributes {dimension_semantics = [#tpu.dimension_semantics<parallel>], iteration_bounds = array<i64: 2>, scalar_prefetch = 0 : i64, scratch_operands = 0 : i64, tpu.core_type = #tpu.core_type<tc>, window_params = [{transform_indices = @transform_0, window_bounds = array<i64: 48, 48>}, {pipeline_mode = #tpu.pipeline_mode<synchronous>, transform_indices = @transform_1, window_bounds = array<i64: 24, 128>}, {pipeline_mode = #tpu.pipeline_mode<synchronous>, transform_indices = @transform_2, window_bounds = array<i64: 48, 128>}, {pipeline_mode = #tpu.pipeline_mode<synchronous>, transform_indices = @transform_3, window_bounds = array<i64: 2, 1, 128>}, {pipeline_mode = #tpu.pipeline_mode<synchronous>, transform_indices = @transform_4, window_bounds = array<i64: 2, 1, 128>}, {pipeline_mode = #tpu.pipeline_mode<synchronous>, transform_indices = @transform_5, window_bounds = array<i64: 2, 128, 384>}, {pipeline_mode = #tpu.pipeline_mode<synchronous>, transform_indices = @transform_6, window_bounds = array<i64: 2, 1, 384>}, {pipeline_mode = #tpu.pipeline_mode<synchronous>, transform_indices = @transform_7, window_bounds = array<i64: 2, 128, 128>}, {pipeline_mode = #tpu.pipeline_mode<synchronous>, transform_indices = @transform_8, window_bounds = array<i64: 2, 1, 128>}, {pipeline_mode = #tpu.pipeline_mode<synchronous>, transform_indices = @transform_9, window_bounds = array<i64: 2, 1, 128>}, {pipeline_mode = #tpu.pipeline_mode<synchronous>, transform_indices = @transform_10, window_bounds = array<i64: 2, 1, 128>}, {pipeline_mode = #tpu.pipeline_mode<synchronous>, transform_indices = @transform_11, window_bounds = array<i64: 2, 128, 512>}, {pipeline_mode = #tpu.pipeline_mode<synchronous>, transform_indices = @transform_12, window_bounds = array<i64: 2, 1, 512>}, {pipeline_mode = #tpu.pipeline_mode<synchronous>, transform_indices = @transform_13, window_bounds = array<i64: 2, 512, 128>}, {pipeline_mode = #tpu.pipeline_mode<synchronous>, transform_indices = @transform_14, window_bounds = array<i64: 2, 1, 128>}, {pipeline_mode = #tpu.pipeline_mode<synchronous>, transform_indices = @transform_15, window_bounds = array<i64: 1, 128>}, {pipeline_mode = #tpu.pipeline_mode<synchronous>, transform_indices = @transform_16, window_bounds = array<i64: 1, 128>}, {pipeline_mode = #tpu.pipeline_mode<synchronous>, transform_indices = @transform_17, window_bounds = array<i64: 128, 128>}, {pipeline_mode = #tpu.pipeline_mode<synchronous>, transform_indices = @transform_18, window_bounds = array<i64: 1, 128>}, {transform_indices = @transform_19, window_bounds = array<i64: 1, 3, 128>}]} {
    %c0 = arith.constant 0 : index
    %c0_0 = arith.constant 0 : index
    %0 = vector.load %arg1[%c0, %c0_0] : memref<48x48xbf16, #tpu.memory_space<vmem>>, vector<48x48xbf16>
    %c0_1 = arith.constant 0 : index
    %c0_2 = arith.constant 0 : index
    %1 = vector.load %arg3[%c0_1, %c0_2] : memref<48x128xbf16, #tpu.memory_space<vmem>>, vector<48x128xbf16>
    %cst = arith.constant dense<0.000000e+00> : vector<48x128xf32>
    %2 = tpu.matmul %0, %1, %cst {dimension_numbers = #tpu.dot_dimension_numbers<[1], [0], [0], [1], [0, 0, 1, 1], [], []>} : vector<48x48xbf16>, vector<48x128xbf16>, vector<48x128xf32> -> vector<48x128xf32>
    %3 = vector.shape_cast %2 : vector<48x128xf32> to vector<3x16x128xf32>
    %cst_3 = arith.constant 0.000000e+00 : f32
    %4 = vector.broadcast %cst_3 : f32 to vector<3x8x128xf32>
    %5 = tpu.concatenate %3, %4 in 1 : vector<3x16x128xf32>, vector<3x8x128xf32> -> vector<3x24x128xf32>
    %c0_4 = arith.constant 0 : index
    %c0_5 = arith.constant 0 : index
    %6 = vector.load %arg2[%c0_4, %c0_5] : memref<24x128xf32, #tpu.memory_space<vmem>>, vector<24x128xf32>
    %7 = vector.shape_cast %6 : vector<24x128xf32> to vector<1x24x128xf32>
    %8 = vector.broadcast %7 : vector<1x24x128xf32> to vector<3x24x128xf32>
    %9 = arith.addf %5, %8 : vector<3x24x128xf32>
    %10 = vector.shape_cast %9 : vector<3x24x128xf32> to vector<72x128xf32>
    %11 = tpu.iota {dimensions = array<i32: 1>} : vector<24x24xi32>
    %c17_i32 = arith.constant 17 : i32
    %12 = vector.broadcast %c17_i32 : i32 to vector<24x24xi32>
    %13 = arith.cmpi slt, %11, %12 : vector<24x24xi32>
    %cst_6 = arith.constant 0.000000e+00 : f32
    %cst_7 = arith.constant -1.000000e+30 : f32
    %14 = vector.broadcast %cst_6 : f32 to vector<24x24xf32>
    %15 = vector.broadcast %cst_7 : f32 to vector<24x24xf32>
    %16 = arith.select %13, %14, %15 : vector<24x24xi1>, vector<24x24xf32>
    %c0_8 = arith.constant 0 : index
    %c0_9 = arith.constant 0 : index
    %c0_10 = arith.constant 0 : index
    %17 = vector.load %arg4[%c0_8, %c0_9, %c0_10] : memref<2x1x128xf32, #tpu.memory_space<vmem>>, vector<1x1x128xf32>
    %18 = vector.shape_cast %17 : vector<1x1x128xf32> to vector<1x128xf32>
    %c0_11 = arith.constant 0 : index
    %c0_12 = arith.constant 0 : index
    %c0_13 = arith.constant 0 : index
    %19 = vector.load %arg5[%c0_11, %c0_12, %c0_13] : memref<2x1x128xf32, #tpu.memory_space<vmem>>, vector<1x1x128xf32>
    %20 = vector.shape_cast %19 : vector<1x1x128xf32> to vector<1x128xf32>
    %cst_14 = arith.constant dense<0.000000e+00> : vector<72xf32>
    %21 = vector.multi_reduction <add>, %10, %cst_14 [1] : vector<72x128xf32> to vector<72xf32>
    %22 = vector.shape_cast %21 : vector<72xf32> to vector<72x1xf32>
    %cst_15 = arith.constant 1.280000e+02 : f32
    %23 = vector.broadcast %cst_15 : f32 to vector<72x1xf32>
    %24 = arith.divf %22, %23 : vector<72x1xf32>
    %25 = vector.broadcast %24 : vector<72x1xf32> to vector<72x128xf32>
    %26 = arith.subf %10, %25 : vector<72x128xf32>
    %27 = arith.mulf %26, %26 : vector<72x128xf32>
    %cst_16 = arith.constant dense<0.000000e+00> : vector<72xf32>
    %28 = vector.multi_reduction <add>, %27, %cst_16 [1] : vector<72x128xf32> to vector<72xf32>
    %29 = vector.shape_cast %28 : vector<72xf32> to vector<72x1xf32>
    %cst_17 = arith.constant 1.280000e+02 : f32
    %30 = vector.broadcast %cst_17 : f32 to vector<72x1xf32>
    %31 = arith.divf %29, %30 : vector<72x1xf32>
    %cst_18 = arith.constant 9.99999997E-7 : f32
    %32 = vector.broadcast %cst_18 : f32 to vector<72x1xf32>
    %33 = arith.addf %31, %32 : vector<72x1xf32>
    %34 = math.rsqrt %33 : vector<72x1xf32>
    %35 = vector.broadcast %34 : vector<72x1xf32> to vector<72x128xf32>
    %36 = arith.mulf %26, %35 : vector<72x128xf32>
    %37 = vector.broadcast %18 : vector<1x128xf32> to vector<72x128xf32>
    %38 = arith.mulf %36, %37 : vector<72x128xf32>
    %39 = vector.broadcast %20 : vector<1x128xf32> to vector<72x128xf32>
    %40 = arith.addf %38, %39 : vector<72x128xf32>
    %41 = arith.truncf %40 : vector<72x128xf32> to vector<72x128xbf16>
    %c0_19 = arith.constant 0 : index
    %c0_20 = arith.constant 0 : index
    %c0_21 = arith.constant 0 : index
    %42 = vector.load %arg6[%c0_19, %c0_20, %c0_21] : memref<2x128x384xbf16, #tpu.memory_space<vmem>>, vector<1x128x384xbf16>
    %43 = vector.shape_cast %42 : vector<1x128x384xbf16> to vector<128x384xbf16>
    %cst_22 = arith.constant dense<0.000000e+00> : vector<72x384xf32>
    %44 = tpu.matmul %41, %43, %cst_22 {dimension_numbers = #tpu.dot_dimension_numbers<[1], [0], [0], [1], [0, 0, 1, 1], [], []>} : vector<72x128xbf16>, vector<128x384xbf16>, vector<72x384xf32> -> vector<72x384xf32>
    %c0_23 = arith.constant 0 : index
    %c0_24 = arith.constant 0 : index
    %c0_25 = arith.constant 0 : index
    %45 = vector.load %arg7[%c0_23, %c0_24, %c0_25] : memref<2x1x384xf32, #tpu.memory_space<vmem>>, vector<1x1x384xf32>
    %46 = vector.shape_cast %45 : vector<1x1x384xf32> to vector<1x384xf32>
    %47 = vector.broadcast %46 : vector<1x384xf32> to vector<72x384xf32>
    %48 = arith.addf %44, %47 : vector<72x384xf32>
    %49 = vector.extract_strided_slice %48 {offsets = [0, 0], sizes = [72, 128], strides = [1, 1]} : vector<72x384xf32> to vector<72x128xf32>
    %50 = vector.shape_cast %49 : vector<72x128xf32> to vector<3x24x128xf32>
    %51 = vector.extract_strided_slice %48 {offsets = [0, 128], sizes = [72, 128], strides = [1, 1]} : vector<72x384xf32> to vector<72x128xf32>
    %52 = vector.shape_cast %51 : vector<72x128xf32> to vector<3x24x128xf32>
    %53 = vector.extract_strided_slice %48 {offsets = [0, 256], sizes = [72, 128], strides = [1, 1]} : vector<72x384xf32> to vector<72x128xf32>
    %54 = vector.shape_cast %53 : vector<72x128xf32> to vector<3x24x128xf32>
    %55 = vector.extract_strided_slice %50 {offsets = [0, 0, 0], sizes = [3, 24, 32], strides = [1, 1, 1]} : vector<3x24x128xf32> to vector<3x24x32xf32>
    %56 = arith.truncf %55 : vector<3x24x32xf32> to vector<3x24x32xbf16>
    %57 = vector.extract_strided_slice %52 {offsets = [0, 0, 0], sizes = [3, 24, 32], strides = [1, 1, 1]} : vector<3x24x128xf32> to vector<3x24x32xf32>
    %58 = arith.truncf %57 : vector<3x24x32xf32> to vector<3x24x32xbf16>
    %59 = vector.extract_strided_slice %54 {offsets = [0, 0, 0], sizes = [3, 24, 32], strides = [1, 1, 1]} : vector<3x24x128xf32> to vector<3x24x32xf32>
    %60 = arith.truncf %59 : vector<3x24x32xf32> to vector<3x24x32xbf16>
    "tpu.trace_start"() <{level = 10 : i32, message = "bqd,bkd->bqk"}> : () -> ()
    %cst_26 = arith.constant dense<0.000000e+00> : vector<3x24x24xf32>
    %61 = tpu.matmul %56, %58, %cst_26 {dimension_numbers = #tpu.dot_dimension_numbers<[2], [2], [1], [1], [0, 0, 0, 1, 1, 1], [0], [0]>} : vector<3x24x32xbf16>, vector<3x24x32xbf16>, vector<3x24x24xf32> -> vector<3x24x24xf32>
    "tpu.trace_stop"() : () -> ()
    %cst_27 = arith.constant 0.176776692 : f32
    %62 = vector.broadcast %cst_27 : f32 to vector<3x24x24xf32>
    %63 = arith.mulf %61, %62 : vector<3x24x24xf32>
    %64 = vector.shape_cast %16 : vector<24x24xf32> to vector<1x24x24xf32>
    %65 = vector.broadcast %64 : vector<1x24x24xf32> to vector<3x24x24xf32>
    %66 = arith.addf %63, %65 : vector<3x24x24xf32>
    %cst_28 = arith.constant dense<0xFF800000> : vector<3x24xf32>
    %67 = vector.multi_reduction <maximumf>, %66, %cst_28 [2] : vector<3x24x24xf32> to vector<3x24xf32>
    %68 = vector.shape_cast %67 : vector<3x24xf32> to vector<3x24x1xf32>
    %69 = vector.broadcast %68 : vector<3x24x1xf32> to vector<3x24x24xf32>
    %70 = arith.subf %66, %69 : vector<3x24x24xf32>
    %71 = math.exp %70 : vector<3x24x24xf32>
    %cst_29 = arith.constant dense<0.000000e+00> : vector<3x24xf32>
    %72 = vector.multi_reduction <add>, %71, %cst_29 [2] : vector<3x24x24xf32> to vector<3x24xf32>
    %73 = vector.shape_cast %72 : vector<3x24xf32> to vector<3x24x1xf32>
    %74 = tpu.reciprocal %73 {approx = true} : vector<3x24x1xf32> -> vector<3x24x1xf32>
    %75 = vector.broadcast %74 : vector<3x24x1xf32> to vector<3x24x24xf32>
    %76 = arith.mulf %71, %75 : vector<3x24x24xf32>
    %77 = arith.truncf %76 : vector<3x24x24xf32> to vector<3x24x24xbf16>
    "tpu.trace_start"() <{level = 10 : i32, message = "bqk,bkd->bqd"}> : () -> ()
    %cst_30 = arith.constant dense<0.000000e+00> : vector<3x24x32xf32>
    %78 = tpu.matmul %77, %60, %cst_30 {dimension_numbers = #tpu.dot_dimension_numbers<[2], [1], [1], [2], [0, 0, 0, 1, 1, 2], [0], [0]>} : vector<3x24x24xbf16>, vector<3x24x32xbf16>, vector<3x24x32xf32> -> vector<3x24x32xf32>
    "tpu.trace_stop"() : () -> ()
    %79 = vector.extract_strided_slice %50 {offsets = [0, 0, 32], sizes = [3, 24, 32], strides = [1, 1, 1]} : vector<3x24x128xf32> to vector<3x24x32xf32>
    %80 = arith.truncf %79 : vector<3x24x32xf32> to vector<3x24x32xbf16>
    %81 = vector.extract_strided_slice %52 {offsets = [0, 0, 32], sizes = [3, 24, 32], strides = [1, 1, 1]} : vector<3x24x128xf32> to vector<3x24x32xf32>
    %82 = arith.truncf %81 : vector<3x24x32xf32> to vector<3x24x32xbf16>
    %83 = vector.extract_strided_slice %54 {offsets = [0, 0, 32], sizes = [3, 24, 32], strides = [1, 1, 1]} : vector<3x24x128xf32> to vector<3x24x32xf32>
    %84 = arith.truncf %83 : vector<3x24x32xf32> to vector<3x24x32xbf16>
    "tpu.trace_start"() <{level = 10 : i32, message = "bqd,bkd->bqk"}> : () -> ()
    %cst_31 = arith.constant dense<0.000000e+00> : vector<3x24x24xf32>
    %85 = tpu.matmul %80, %82, %cst_31 {dimension_numbers = #tpu.dot_dimension_numbers<[2], [2], [1], [1], [0, 0, 0, 1, 1, 1], [0], [0]>} : vector<3x24x32xbf16>, vector<3x24x32xbf16>, vector<3x24x24xf32> -> vector<3x24x24xf32>
    "tpu.trace_stop"() : () -> ()
    %cst_32 = arith.constant 0.176776692 : f32
    %86 = vector.broadcast %cst_32 : f32 to vector<3x24x24xf32>
    %87 = arith.mulf %85, %86 : vector<3x24x24xf32>
    %88 = vector.shape_cast %16 : vector<24x24xf32> to vector<1x24x24xf32>
    %89 = vector.broadcast %88 : vector<1x24x24xf32> to vector<3x24x24xf32>
    %90 = arith.addf %87, %89 : vector<3x24x24xf32>
    %cst_33 = arith.constant dense<0xFF800000> : vector<3x24xf32>
    %91 = vector.multi_reduction <maximumf>, %90, %cst_33 [2] : vector<3x24x24xf32> to vector<3x24xf32>
    %92 = vector.shape_cast %91 : vector<3x24xf32> to vector<3x24x1xf32>
    %93 = vector.broadcast %92 : vector<3x24x1xf32> to vector<3x24x24xf32>
    %94 = arith.subf %90, %93 : vector<3x24x24xf32>
    %95 = math.exp %94 : vector<3x24x24xf32>
    %cst_34 = arith.constant dense<0.000000e+00> : vector<3x24xf32>
    %96 = vector.multi_reduction <add>, %95, %cst_34 [2] : vector<3x24x24xf32> to vector<3x24xf32>
    %97 = vector.shape_cast %96 : vector<3x24xf32> to vector<3x24x1xf32>
    %98 = tpu.reciprocal %97 {approx = true} : vector<3x24x1xf32> -> vector<3x24x1xf32>
    %99 = vector.broadcast %98 : vector<3x24x1xf32> to vector<3x24x24xf32>
    %100 = arith.mulf %95, %99 : vector<3x24x24xf32>
    %101 = arith.truncf %100 : vector<3x24x24xf32> to vector<3x24x24xbf16>
    "tpu.trace_start"() <{level = 10 : i32, message = "bqk,bkd->bqd"}> : () -> ()
    %cst_35 = arith.constant dense<0.000000e+00> : vector<3x24x32xf32>
    %102 = tpu.matmul %101, %84, %cst_35 {dimension_numbers = #tpu.dot_dimension_numbers<[2], [1], [1], [2], [0, 0, 0, 1, 1, 2], [0], [0]>} : vector<3x24x24xbf16>, vector<3x24x32xbf16>, vector<3x24x32xf32> -> vector<3x24x32xf32>
    "tpu.trace_stop"() : () -> ()
    %103 = vector.extract_strided_slice %50 {offsets = [0, 0, 64], sizes = [3, 24, 32], strides = [1, 1, 1]} : vector<3x24x128xf32> to vector<3x24x32xf32>
    %104 = arith.truncf %103 : vector<3x24x32xf32> to vector<3x24x32xbf16>
    %105 = vector.extract_strided_slice %52 {offsets = [0, 0, 64], sizes = [3, 24, 32], strides = [1, 1, 1]} : vector<3x24x128xf32> to vector<3x24x32xf32>
    %106 = arith.truncf %105 : vector<3x24x32xf32> to vector<3x24x32xbf16>
    %107 = vector.extract_strided_slice %54 {offsets = [0, 0, 64], sizes = [3, 24, 32], strides = [1, 1, 1]} : vector<3x24x128xf32> to vector<3x24x32xf32>
    %108 = arith.truncf %107 : vector<3x24x32xf32> to vector<3x24x32xbf16>
    "tpu.trace_start"() <{level = 10 : i32, message = "bqd,bkd->bqk"}> : () -> ()
    %cst_36 = arith.constant dense<0.000000e+00> : vector<3x24x24xf32>
    %109 = tpu.matmul %104, %106, %cst_36 {dimension_numbers = #tpu.dot_dimension_numbers<[2], [2], [1], [1], [0, 0, 0, 1, 1, 1], [0], [0]>} : vector<3x24x32xbf16>, vector<3x24x32xbf16>, vector<3x24x24xf32> -> vector<3x24x24xf32>
    "tpu.trace_stop"() : () -> ()
    %cst_37 = arith.constant 0.176776692 : f32
    %110 = vector.broadcast %cst_37 : f32 to vector<3x24x24xf32>
    %111 = arith.mulf %109, %110 : vector<3x24x24xf32>
    %112 = vector.shape_cast %16 : vector<24x24xf32> to vector<1x24x24xf32>
    %113 = vector.broadcast %112 : vector<1x24x24xf32> to vector<3x24x24xf32>
    %114 = arith.addf %111, %113 : vector<3x24x24xf32>
    %cst_38 = arith.constant dense<0xFF800000> : vector<3x24xf32>
    %115 = vector.multi_reduction <maximumf>, %114, %cst_38 [2] : vector<3x24x24xf32> to vector<3x24xf32>
    %116 = vector.shape_cast %115 : vector<3x24xf32> to vector<3x24x1xf32>
    %117 = vector.broadcast %116 : vector<3x24x1xf32> to vector<3x24x24xf32>
    %118 = arith.subf %114, %117 : vector<3x24x24xf32>
    %119 = math.exp %118 : vector<3x24x24xf32>
    %cst_39 = arith.constant dense<0.000000e+00> : vector<3x24xf32>
    %120 = vector.multi_reduction <add>, %119, %cst_39 [2] : vector<3x24x24xf32> to vector<3x24xf32>
    %121 = vector.shape_cast %120 : vector<3x24xf32> to vector<3x24x1xf32>
    %122 = tpu.reciprocal %121 {approx = true} : vector<3x24x1xf32> -> vector<3x24x1xf32>
    %123 = vector.broadcast %122 : vector<3x24x1xf32> to vector<3x24x24xf32>
    %124 = arith.mulf %119, %123 : vector<3x24x24xf32>
    %125 = arith.truncf %124 : vector<3x24x24xf32> to vector<3x24x24xbf16>
    "tpu.trace_start"() <{level = 10 : i32, message = "bqk,bkd->bqd"}> : () -> ()
    %cst_40 = arith.constant dense<0.000000e+00> : vector<3x24x32xf32>
    %126 = tpu.matmul %125, %108, %cst_40 {dimension_numbers = #tpu.dot_dimension_numbers<[2], [1], [1], [2], [0, 0, 0, 1, 1, 2], [0], [0]>} : vector<3x24x24xbf16>, vector<3x24x32xbf16>, vector<3x24x32xf32> -> vector<3x24x32xf32>
    "tpu.trace_stop"() : () -> ()
    %127 = vector.extract_strided_slice %50 {offsets = [0, 0, 96], sizes = [3, 24, 32], strides = [1, 1, 1]} : vector<3x24x128xf32> to vector<3x24x32xf32>
    %128 = arith.truncf %127 : vector<3x24x32xf32> to vector<3x24x32xbf16>
    %129 = vector.extract_strided_slice %52 {offsets = [0, 0, 96], sizes = [3, 24, 32], strides = [1, 1, 1]} : vector<3x24x128xf32> to vector<3x24x32xf32>
    %130 = arith.truncf %129 : vector<3x24x32xf32> to vector<3x24x32xbf16>
    %131 = vector.extract_strided_slice %54 {offsets = [0, 0, 96], sizes = [3, 24, 32], strides = [1, 1, 1]} : vector<3x24x128xf32> to vector<3x24x32xf32>
    %132 = arith.truncf %131 : vector<3x24x32xf32> to vector<3x24x32xbf16>
    "tpu.trace_start"() <{level = 10 : i32, message = "bqd,bkd->bqk"}> : () -> ()
    %cst_41 = arith.constant dense<0.000000e+00> : vector<3x24x24xf32>
    %133 = tpu.matmul %128, %130, %cst_41 {dimension_numbers = #tpu.dot_dimension_numbers<[2], [2], [1], [1], [0, 0, 0, 1, 1, 1], [0], [0]>} : vector<3x24x32xbf16>, vector<3x24x32xbf16>, vector<3x24x24xf32> -> vector<3x24x24xf32>
    "tpu.trace_stop"() : () -> ()
    %cst_42 = arith.constant 0.176776692 : f32
    %134 = vector.broadcast %cst_42 : f32 to vector<3x24x24xf32>
    %135 = arith.mulf %133, %134 : vector<3x24x24xf32>
    %136 = vector.shape_cast %16 : vector<24x24xf32> to vector<1x24x24xf32>
    %137 = vector.broadcast %136 : vector<1x24x24xf32> to vector<3x24x24xf32>
    %138 = arith.addf %135, %137 : vector<3x24x24xf32>
    %cst_43 = arith.constant dense<0xFF800000> : vector<3x24xf32>
    %139 = vector.multi_reduction <maximumf>, %138, %cst_43 [2] : vector<3x24x24xf32> to vector<3x24xf32>
    %140 = vector.shape_cast %139 : vector<3x24xf32> to vector<3x24x1xf32>
    %141 = vector.broadcast %140 : vector<3x24x1xf32> to vector<3x24x24xf32>
    %142 = arith.subf %138, %141 : vector<3x24x24xf32>
    %143 = math.exp %142 : vector<3x24x24xf32>
    %cst_44 = arith.constant dense<0.000000e+00> : vector<3x24xf32>
    %144 = vector.multi_reduction <add>, %143, %cst_44 [2] : vector<3x24x24xf32> to vector<3x24xf32>
    %145 = vector.shape_cast %144 : vector<3x24xf32> to vector<3x24x1xf32>
    %146 = tpu.reciprocal %145 {approx = true} : vector<3x24x1xf32> -> vector<3x24x1xf32>
    %147 = vector.broadcast %146 : vector<3x24x1xf32> to vector<3x24x24xf32>
    %148 = arith.mulf %143, %147 : vector<3x24x24xf32>
    %149 = arith.truncf %148 : vector<3x24x24xf32> to vector<3x24x24xbf16>
    "tpu.trace_start"() <{level = 10 : i32, message = "bqk,bkd->bqd"}> : () -> ()
    %cst_45 = arith.constant dense<0.000000e+00> : vector<3x24x32xf32>
    %150 = tpu.matmul %149, %132, %cst_45 {dimension_numbers = #tpu.dot_dimension_numbers<[2], [1], [1], [2], [0, 0, 0, 1, 1, 2], [0], [0]>} : vector<3x24x24xbf16>, vector<3x24x32xbf16>, vector<3x24x32xf32> -> vector<3x24x32xf32>
    "tpu.trace_stop"() : () -> ()
    %151 = tpu.concatenate %78, %102, %126, %150 in 2 : vector<3x24x32xf32>, vector<3x24x32xf32>, vector<3x24x32xf32>, vector<3x24x32xf32> -> vector<3x24x128xf32>
    %152 = vector.shape_cast %151 : vector<3x24x128xf32> to vector<72x128xf32>
    %153 = arith.truncf %152 : vector<72x128xf32> to vector<72x128xbf16>
    %c0_46 = arith.constant 0 : index
    %c0_47 = arith.constant 0 : index
    %c0_48 = arith.constant 0 : index
    %154 = vector.load %arg8[%c0_46, %c0_47, %c0_48] : memref<2x128x128xbf16, #tpu.memory_space<vmem>>, vector<1x128x128xbf16>
    %155 = vector.shape_cast %154 : vector<1x128x128xbf16> to vector<128x128xbf16>
    %cst_49 = arith.constant dense<0.000000e+00> : vector<72x128xf32>
    %156 = tpu.matmul %153, %155, %cst_49 {dimension_numbers = #tpu.dot_dimension_numbers<[1], [0], [0], [1], [0, 0, 1, 1], [], []>} : vector<72x128xbf16>, vector<128x128xbf16>, vector<72x128xf32> -> vector<72x128xf32>
    %c0_50 = arith.constant 0 : index
    %c0_51 = arith.constant 0 : index
    %c0_52 = arith.constant 0 : index
    %157 = vector.load %arg9[%c0_50, %c0_51, %c0_52] : memref<2x1x128xf32, #tpu.memory_space<vmem>>, vector<1x1x128xf32>
    %158 = vector.shape_cast %157 : vector<1x1x128xf32> to vector<1x128xf32>
    %159 = vector.broadcast %158 : vector<1x128xf32> to vector<72x128xf32>
    %160 = arith.addf %156, %159 : vector<72x128xf32>
    %161 = arith.addf %10, %160 : vector<72x128xf32>
    %c0_53 = arith.constant 0 : index
    %c0_54 = arith.constant 0 : index
    %c0_55 = arith.constant 0 : index
    %162 = vector.load %arg10[%c0_53, %c0_54, %c0_55] : memref<2x1x128xf32, #tpu.memory_space<vmem>>, vector<1x1x128xf32>
    %163 = vector.shape_cast %162 : vector<1x1x128xf32> to vector<1x128xf32>
    %c0_56 = arith.constant 0 : index
    %c0_57 = arith.constant 0 : index
    %c0_58 = arith.constant 0 : index
    %164 = vector.load %arg11[%c0_56, %c0_57, %c0_58] : memref<2x1x128xf32, #tpu.memory_space<vmem>>, vector<1x1x128xf32>
    %165 = vector.shape_cast %164 : vector<1x1x128xf32> to vector<1x128xf32>
    %cst_59 = arith.constant dense<0.000000e+00> : vector<72xf32>
    %166 = vector.multi_reduction <add>, %161, %cst_59 [1] : vector<72x128xf32> to vector<72xf32>
    %167 = vector.shape_cast %166 : vector<72xf32> to vector<72x1xf32>
    %cst_60 = arith.constant 1.280000e+02 : f32
    %168 = vector.broadcast %cst_60 : f32 to vector<72x1xf32>
    %169 = arith.divf %167, %168 : vector<72x1xf32>
    %170 = vector.broadcast %169 : vector<72x1xf32> to vector<72x128xf32>
    %171 = arith.subf %161, %170 : vector<72x128xf32>
    %172 = arith.mulf %171, %171 : vector<72x128xf32>
    %cst_61 = arith.constant dense<0.000000e+00> : vector<72xf32>
    %173 = vector.multi_reduction <add>, %172, %cst_61 [1] : vector<72x128xf32> to vector<72xf32>
    %174 = vector.shape_cast %173 : vector<72xf32> to vector<72x1xf32>
    %cst_62 = arith.constant 1.280000e+02 : f32
    %175 = vector.broadcast %cst_62 : f32 to vector<72x1xf32>
    %176 = arith.divf %174, %175 : vector<72x1xf32>
    %cst_63 = arith.constant 9.99999997E-7 : f32
    %177 = vector.broadcast %cst_63 : f32 to vector<72x1xf32>
    %178 = arith.addf %176, %177 : vector<72x1xf32>
    %179 = math.rsqrt %178 : vector<72x1xf32>
    %180 = vector.broadcast %179 : vector<72x1xf32> to vector<72x128xf32>
    %181 = arith.mulf %171, %180 : vector<72x128xf32>
    %182 = vector.broadcast %163 : vector<1x128xf32> to vector<72x128xf32>
    %183 = arith.mulf %181, %182 : vector<72x128xf32>
    %184 = vector.broadcast %165 : vector<1x128xf32> to vector<72x128xf32>
    %185 = arith.addf %183, %184 : vector<72x128xf32>
    %186 = arith.truncf %185 : vector<72x128xf32> to vector<72x128xbf16>
    %c0_64 = arith.constant 0 : index
    %c0_65 = arith.constant 0 : index
    %c0_66 = arith.constant 0 : index
    %187 = vector.load %arg12[%c0_64, %c0_65, %c0_66] : memref<2x128x512xbf16, #tpu.memory_space<vmem>>, vector<1x128x512xbf16>
    %188 = vector.shape_cast %187 : vector<1x128x512xbf16> to vector<128x512xbf16>
    %cst_67 = arith.constant dense<0.000000e+00> : vector<72x512xf32>
    %189 = tpu.matmul %186, %188, %cst_67 {dimension_numbers = #tpu.dot_dimension_numbers<[1], [0], [0], [1], [0, 0, 1, 1], [], []>} : vector<72x128xbf16>, vector<128x512xbf16>, vector<72x512xf32> -> vector<72x512xf32>
    %c0_68 = arith.constant 0 : index
    %c0_69 = arith.constant 0 : index
    %c0_70 = arith.constant 0 : index
    %190 = vector.load %arg13[%c0_68, %c0_69, %c0_70] : memref<2x1x512xf32, #tpu.memory_space<vmem>>, vector<1x1x512xf32>
    %191 = vector.shape_cast %190 : vector<1x1x512xf32> to vector<1x512xf32>
    %192 = vector.broadcast %191 : vector<1x512xf32> to vector<72x512xf32>
    %193 = arith.addf %189, %192 : vector<72x512xf32>
    %cst_71 = arith.constant 5.000000e-01 : f32
    %194 = vector.broadcast %cst_71 : f32 to vector<72x512xf32>
    %195 = arith.mulf %194, %193 : vector<72x512xf32>
    %cst_72 = arith.constant 0.707106769 : f32
    %196 = vector.broadcast %cst_72 : f32 to vector<72x512xf32>
    %197 = arith.mulf %193, %196 : vector<72x512xf32>
    %198 = math.erf %197 : vector<72x512xf32>
    %cst_73 = arith.constant 1.000000e+00 : f32
    %199 = vector.broadcast %cst_73 : f32 to vector<72x512xf32>
    %200 = arith.addf %199, %198 : vector<72x512xf32>
    %201 = arith.mulf %195, %200 : vector<72x512xf32>
    %202 = arith.truncf %201 : vector<72x512xf32> to vector<72x512xbf16>
    %c0_74 = arith.constant 0 : index
    %c0_75 = arith.constant 0 : index
    %c0_76 = arith.constant 0 : index
    %203 = vector.load %arg14[%c0_74, %c0_75, %c0_76] : memref<2x512x128xbf16, #tpu.memory_space<vmem>>, vector<1x512x128xbf16>
    %204 = vector.shape_cast %203 : vector<1x512x128xbf16> to vector<512x128xbf16>
    %cst_77 = arith.constant dense<0.000000e+00> : vector<72x128xf32>
    %205 = tpu.matmul %202, %204, %cst_77 {dimension_numbers = #tpu.dot_dimension_numbers<[1], [0], [0], [1], [0, 0, 1, 1], [], []>} : vector<72x512xbf16>, vector<512x128xbf16>, vector<72x128xf32> -> vector<72x128xf32>
    %c0_78 = arith.constant 0 : index
    %c0_79 = arith.constant 0 : index
    %c0_80 = arith.constant 0 : index
    %206 = vector.load %arg15[%c0_78, %c0_79, %c0_80] : memref<2x1x128xf32, #tpu.memory_space<vmem>>, vector<1x1x128xf32>
    %207 = vector.shape_cast %206 : vector<1x1x128xf32> to vector<1x128xf32>
    %208 = vector.broadcast %207 : vector<1x128xf32> to vector<72x128xf32>
    %209 = arith.addf %205, %208 : vector<72x128xf32>
    %210 = arith.addf %161, %209 : vector<72x128xf32>
    %c1 = arith.constant 1 : index
    %c0_81 = arith.constant 0 : index
    %c0_82 = arith.constant 0 : index
    %211 = vector.load %arg4[%c1, %c0_81, %c0_82] : memref<2x1x128xf32, #tpu.memory_space<vmem>>, vector<1x1x128xf32>
    %212 = vector.shape_cast %211 : vector<1x1x128xf32> to vector<1x128xf32>
    %c1_83 = arith.constant 1 : index
    %c0_84 = arith.constant 0 : index
    %c0_85 = arith.constant 0 : index
    %213 = vector.load %arg5[%c1_83, %c0_84, %c0_85] : memref<2x1x128xf32, #tpu.memory_space<vmem>>, vector<1x1x128xf32>
    %214 = vector.shape_cast %213 : vector<1x1x128xf32> to vector<1x128xf32>
    %cst_86 = arith.constant dense<0.000000e+00> : vector<72xf32>
    %215 = vector.multi_reduction <add>, %210, %cst_86 [1] : vector<72x128xf32> to vector<72xf32>
    %216 = vector.shape_cast %215 : vector<72xf32> to vector<72x1xf32>
    %cst_87 = arith.constant 1.280000e+02 : f32
    %217 = vector.broadcast %cst_87 : f32 to vector<72x1xf32>
    %218 = arith.divf %216, %217 : vector<72x1xf32>
    %219 = vector.broadcast %218 : vector<72x1xf32> to vector<72x128xf32>
    %220 = arith.subf %210, %219 : vector<72x128xf32>
    %221 = arith.mulf %220, %220 : vector<72x128xf32>
    %cst_88 = arith.constant dense<0.000000e+00> : vector<72xf32>
    %222 = vector.multi_reduction <add>, %221, %cst_88 [1] : vector<72x128xf32> to vector<72xf32>
    %223 = vector.shape_cast %222 : vector<72xf32> to vector<72x1xf32>
    %cst_89 = arith.constant 1.280000e+02 : f32
    %224 = vector.broadcast %cst_89 : f32 to vector<72x1xf32>
    %225 = arith.divf %223, %224 : vector<72x1xf32>
    %cst_90 = arith.constant 9.99999997E-7 : f32
    %226 = vector.broadcast %cst_90 : f32 to vector<72x1xf32>
    %227 = arith.addf %225, %226 : vector<72x1xf32>
    %228 = math.rsqrt %227 : vector<72x1xf32>
    %229 = vector.broadcast %228 : vector<72x1xf32> to vector<72x128xf32>
    %230 = arith.mulf %220, %229 : vector<72x128xf32>
    %231 = vector.broadcast %212 : vector<1x128xf32> to vector<72x128xf32>
    %232 = arith.mulf %230, %231 : vector<72x128xf32>
    %233 = vector.broadcast %214 : vector<1x128xf32> to vector<72x128xf32>
    %234 = arith.addf %232, %233 : vector<72x128xf32>
    %235 = arith.truncf %234 : vector<72x128xf32> to vector<72x128xbf16>
    %c1_91 = arith.constant 1 : index
    %c0_92 = arith.constant 0 : index
    %c0_93 = arith.constant 0 : index
    %236 = vector.load %arg6[%c1_91, %c0_92, %c0_93] : memref<2x128x384xbf16, #tpu.memory_space<vmem>>, vector<1x128x384xbf16>
    %237 = vector.shape_cast %236 : vector<1x128x384xbf16> to vector<128x384xbf16>
    %cst_94 = arith.constant dense<0.000000e+00> : vector<72x384xf32>
    %238 = tpu.matmul %235, %237, %cst_94 {dimension_numbers = #tpu.dot_dimension_numbers<[1], [0], [0], [1], [0, 0, 1, 1], [], []>} : vector<72x128xbf16>, vector<128x384xbf16>, vector<72x384xf32> -> vector<72x384xf32>
    %c1_95 = arith.constant 1 : index
    %c0_96 = arith.constant 0 : index
    %c0_97 = arith.constant 0 : index
    %239 = vector.load %arg7[%c1_95, %c0_96, %c0_97] : memref<2x1x384xf32, #tpu.memory_space<vmem>>, vector<1x1x384xf32>
    %240 = vector.shape_cast %239 : vector<1x1x384xf32> to vector<1x384xf32>
    %241 = vector.broadcast %240 : vector<1x384xf32> to vector<72x384xf32>
    %242 = arith.addf %238, %241 : vector<72x384xf32>
    %243 = vector.extract_strided_slice %242 {offsets = [0, 0], sizes = [72, 128], strides = [1, 1]} : vector<72x384xf32> to vector<72x128xf32>
    %244 = vector.shape_cast %243 : vector<72x128xf32> to vector<3x24x128xf32>
    %245 = vector.extract_strided_slice %242 {offsets = [0, 128], sizes = [72, 128], strides = [1, 1]} : vector<72x384xf32> to vector<72x128xf32>
    %246 = vector.shape_cast %245 : vector<72x128xf32> to vector<3x24x128xf32>
    %247 = vector.extract_strided_slice %242 {offsets = [0, 256], sizes = [72, 128], strides = [1, 1]} : vector<72x384xf32> to vector<72x128xf32>
    %248 = vector.shape_cast %247 : vector<72x128xf32> to vector<3x24x128xf32>
    %249 = vector.extract_strided_slice %244 {offsets = [0, 0, 0], sizes = [3, 24, 32], strides = [1, 1, 1]} : vector<3x24x128xf32> to vector<3x24x32xf32>
    %250 = arith.truncf %249 : vector<3x24x32xf32> to vector<3x24x32xbf16>
    %251 = vector.extract_strided_slice %246 {offsets = [0, 0, 0], sizes = [3, 24, 32], strides = [1, 1, 1]} : vector<3x24x128xf32> to vector<3x24x32xf32>
    %252 = arith.truncf %251 : vector<3x24x32xf32> to vector<3x24x32xbf16>
    %253 = vector.extract_strided_slice %248 {offsets = [0, 0, 0], sizes = [3, 24, 32], strides = [1, 1, 1]} : vector<3x24x128xf32> to vector<3x24x32xf32>
    %254 = arith.truncf %253 : vector<3x24x32xf32> to vector<3x24x32xbf16>
    "tpu.trace_start"() <{level = 10 : i32, message = "bqd,bkd->bqk"}> : () -> ()
    %cst_98 = arith.constant dense<0.000000e+00> : vector<3x24x24xf32>
    %255 = tpu.matmul %250, %252, %cst_98 {dimension_numbers = #tpu.dot_dimension_numbers<[2], [2], [1], [1], [0, 0, 0, 1, 1, 1], [0], [0]>} : vector<3x24x32xbf16>, vector<3x24x32xbf16>, vector<3x24x24xf32> -> vector<3x24x24xf32>
    "tpu.trace_stop"() : () -> ()
    %cst_99 = arith.constant 0.176776692 : f32
    %256 = vector.broadcast %cst_99 : f32 to vector<3x24x24xf32>
    %257 = arith.mulf %255, %256 : vector<3x24x24xf32>
    %258 = vector.shape_cast %16 : vector<24x24xf32> to vector<1x24x24xf32>
    %259 = vector.broadcast %258 : vector<1x24x24xf32> to vector<3x24x24xf32>
    %260 = arith.addf %257, %259 : vector<3x24x24xf32>
    %cst_100 = arith.constant dense<0xFF800000> : vector<3x24xf32>
    %261 = vector.multi_reduction <maximumf>, %260, %cst_100 [2] : vector<3x24x24xf32> to vector<3x24xf32>
    %262 = vector.shape_cast %261 : vector<3x24xf32> to vector<3x24x1xf32>
    %263 = vector.broadcast %262 : vector<3x24x1xf32> to vector<3x24x24xf32>
    %264 = arith.subf %260, %263 : vector<3x24x24xf32>
    %265 = math.exp %264 : vector<3x24x24xf32>
    %cst_101 = arith.constant dense<0.000000e+00> : vector<3x24xf32>
    %266 = vector.multi_reduction <add>, %265, %cst_101 [2] : vector<3x24x24xf32> to vector<3x24xf32>
    %267 = vector.shape_cast %266 : vector<3x24xf32> to vector<3x24x1xf32>
    %268 = tpu.reciprocal %267 {approx = true} : vector<3x24x1xf32> -> vector<3x24x1xf32>
    %269 = vector.broadcast %268 : vector<3x24x1xf32> to vector<3x24x24xf32>
    %270 = arith.mulf %265, %269 : vector<3x24x24xf32>
    %271 = arith.truncf %270 : vector<3x24x24xf32> to vector<3x24x24xbf16>
    "tpu.trace_start"() <{level = 10 : i32, message = "bqk,bkd->bqd"}> : () -> ()
    %cst_102 = arith.constant dense<0.000000e+00> : vector<3x24x32xf32>
    %272 = tpu.matmul %271, %254, %cst_102 {dimension_numbers = #tpu.dot_dimension_numbers<[2], [1], [1], [2], [0, 0, 0, 1, 1, 2], [0], [0]>} : vector<3x24x24xbf16>, vector<3x24x32xbf16>, vector<3x24x32xf32> -> vector<3x24x32xf32>
    "tpu.trace_stop"() : () -> ()
    %273 = vector.extract_strided_slice %244 {offsets = [0, 0, 32], sizes = [3, 24, 32], strides = [1, 1, 1]} : vector<3x24x128xf32> to vector<3x24x32xf32>
    %274 = arith.truncf %273 : vector<3x24x32xf32> to vector<3x24x32xbf16>
    %275 = vector.extract_strided_slice %246 {offsets = [0, 0, 32], sizes = [3, 24, 32], strides = [1, 1, 1]} : vector<3x24x128xf32> to vector<3x24x32xf32>
    %276 = arith.truncf %275 : vector<3x24x32xf32> to vector<3x24x32xbf16>
    %277 = vector.extract_strided_slice %248 {offsets = [0, 0, 32], sizes = [3, 24, 32], strides = [1, 1, 1]} : vector<3x24x128xf32> to vector<3x24x32xf32>
    %278 = arith.truncf %277 : vector<3x24x32xf32> to vector<3x24x32xbf16>
    "tpu.trace_start"() <{level = 10 : i32, message = "bqd,bkd->bqk"}> : () -> ()
    %cst_103 = arith.constant dense<0.000000e+00> : vector<3x24x24xf32>
    %279 = tpu.matmul %274, %276, %cst_103 {dimension_numbers = #tpu.dot_dimension_numbers<[2], [2], [1], [1], [0, 0, 0, 1, 1, 1], [0], [0]>} : vector<3x24x32xbf16>, vector<3x24x32xbf16>, vector<3x24x24xf32> -> vector<3x24x24xf32>
    "tpu.trace_stop"() : () -> ()
    %cst_104 = arith.constant 0.176776692 : f32
    %280 = vector.broadcast %cst_104 : f32 to vector<3x24x24xf32>
    %281 = arith.mulf %279, %280 : vector<3x24x24xf32>
    %282 = vector.shape_cast %16 : vector<24x24xf32> to vector<1x24x24xf32>
    %283 = vector.broadcast %282 : vector<1x24x24xf32> to vector<3x24x24xf32>
    %284 = arith.addf %281, %283 : vector<3x24x24xf32>
    %cst_105 = arith.constant dense<0xFF800000> : vector<3x24xf32>
    %285 = vector.multi_reduction <maximumf>, %284, %cst_105 [2] : vector<3x24x24xf32> to vector<3x24xf32>
    %286 = vector.shape_cast %285 : vector<3x24xf32> to vector<3x24x1xf32>
    %287 = vector.broadcast %286 : vector<3x24x1xf32> to vector<3x24x24xf32>
    %288 = arith.subf %284, %287 : vector<3x24x24xf32>
    %289 = math.exp %288 : vector<3x24x24xf32>
    %cst_106 = arith.constant dense<0.000000e+00> : vector<3x24xf32>
    %290 = vector.multi_reduction <add>, %289, %cst_106 [2] : vector<3x24x24xf32> to vector<3x24xf32>
    %291 = vector.shape_cast %290 : vector<3x24xf32> to vector<3x24x1xf32>
    %292 = tpu.reciprocal %291 {approx = true} : vector<3x24x1xf32> -> vector<3x24x1xf32>
    %293 = vector.broadcast %292 : vector<3x24x1xf32> to vector<3x24x24xf32>
    %294 = arith.mulf %289, %293 : vector<3x24x24xf32>
    %295 = arith.truncf %294 : vector<3x24x24xf32> to vector<3x24x24xbf16>
    "tpu.trace_start"() <{level = 10 : i32, message = "bqk,bkd->bqd"}> : () -> ()
    %cst_107 = arith.constant dense<0.000000e+00> : vector<3x24x32xf32>
    %296 = tpu.matmul %295, %278, %cst_107 {dimension_numbers = #tpu.dot_dimension_numbers<[2], [1], [1], [2], [0, 0, 0, 1, 1, 2], [0], [0]>} : vector<3x24x24xbf16>, vector<3x24x32xbf16>, vector<3x24x32xf32> -> vector<3x24x32xf32>
    "tpu.trace_stop"() : () -> ()
    %297 = vector.extract_strided_slice %244 {offsets = [0, 0, 64], sizes = [3, 24, 32], strides = [1, 1, 1]} : vector<3x24x128xf32> to vector<3x24x32xf32>
    %298 = arith.truncf %297 : vector<3x24x32xf32> to vector<3x24x32xbf16>
    %299 = vector.extract_strided_slice %246 {offsets = [0, 0, 64], sizes = [3, 24, 32], strides = [1, 1, 1]} : vector<3x24x128xf32> to vector<3x24x32xf32>
    %300 = arith.truncf %299 : vector<3x24x32xf32> to vector<3x24x32xbf16>
    %301 = vector.extract_strided_slice %248 {offsets = [0, 0, 64], sizes = [3, 24, 32], strides = [1, 1, 1]} : vector<3x24x128xf32> to vector<3x24x32xf32>
    %302 = arith.truncf %301 : vector<3x24x32xf32> to vector<3x24x32xbf16>
    "tpu.trace_start"() <{level = 10 : i32, message = "bqd,bkd->bqk"}> : () -> ()
    %cst_108 = arith.constant dense<0.000000e+00> : vector<3x24x24xf32>
    %303 = tpu.matmul %298, %300, %cst_108 {dimension_numbers = #tpu.dot_dimension_numbers<[2], [2], [1], [1], [0, 0, 0, 1, 1, 1], [0], [0]>} : vector<3x24x32xbf16>, vector<3x24x32xbf16>, vector<3x24x24xf32> -> vector<3x24x24xf32>
    "tpu.trace_stop"() : () -> ()
    %cst_109 = arith.constant 0.176776692 : f32
    %304 = vector.broadcast %cst_109 : f32 to vector<3x24x24xf32>
    %305 = arith.mulf %303, %304 : vector<3x24x24xf32>
    %306 = vector.shape_cast %16 : vector<24x24xf32> to vector<1x24x24xf32>
    %307 = vector.broadcast %306 : vector<1x24x24xf32> to vector<3x24x24xf32>
    %308 = arith.addf %305, %307 : vector<3x24x24xf32>
    %cst_110 = arith.constant dense<0xFF800000> : vector<3x24xf32>
    %309 = vector.multi_reduction <maximumf>, %308, %cst_110 [2] : vector<3x24x24xf32> to vector<3x24xf32>
    %310 = vector.shape_cast %309 : vector<3x24xf32> to vector<3x24x1xf32>
    %311 = vector.broadcast %310 : vector<3x24x1xf32> to vector<3x24x24xf32>
    %312 = arith.subf %308, %311 : vector<3x24x24xf32>
    %313 = math.exp %312 : vector<3x24x24xf32>
    %cst_111 = arith.constant dense<0.000000e+00> : vector<3x24xf32>
    %314 = vector.multi_reduction <add>, %313, %cst_111 [2] : vector<3x24x24xf32> to vector<3x24xf32>
    %315 = vector.shape_cast %314 : vector<3x24xf32> to vector<3x24x1xf32>
    %316 = tpu.reciprocal %315 {approx = true} : vector<3x24x1xf32> -> vector<3x24x1xf32>
    %317 = vector.broadcast %316 : vector<3x24x1xf32> to vector<3x24x24xf32>
    %318 = arith.mulf %313, %317 : vector<3x24x24xf32>
    %319 = arith.truncf %318 : vector<3x24x24xf32> to vector<3x24x24xbf16>
    "tpu.trace_start"() <{level = 10 : i32, message = "bqk,bkd->bqd"}> : () -> ()
    %cst_112 = arith.constant dense<0.000000e+00> : vector<3x24x32xf32>
    %320 = tpu.matmul %319, %302, %cst_112 {dimension_numbers = #tpu.dot_dimension_numbers<[2], [1], [1], [2], [0, 0, 0, 1, 1, 2], [0], [0]>} : vector<3x24x24xbf16>, vector<3x24x32xbf16>, vector<3x24x32xf32> -> vector<3x24x32xf32>
    "tpu.trace_stop"() : () -> ()
    %321 = vector.extract_strided_slice %244 {offsets = [0, 0, 96], sizes = [3, 24, 32], strides = [1, 1, 1]} : vector<3x24x128xf32> to vector<3x24x32xf32>
    %322 = arith.truncf %321 : vector<3x24x32xf32> to vector<3x24x32xbf16>
    %323 = vector.extract_strided_slice %246 {offsets = [0, 0, 96], sizes = [3, 24, 32], strides = [1, 1, 1]} : vector<3x24x128xf32> to vector<3x24x32xf32>
    %324 = arith.truncf %323 : vector<3x24x32xf32> to vector<3x24x32xbf16>
    %325 = vector.extract_strided_slice %248 {offsets = [0, 0, 96], sizes = [3, 24, 32], strides = [1, 1, 1]} : vector<3x24x128xf32> to vector<3x24x32xf32>
    %326 = arith.truncf %325 : vector<3x24x32xf32> to vector<3x24x32xbf16>
    "tpu.trace_start"() <{level = 10 : i32, message = "bqd,bkd->bqk"}> : () -> ()
    %cst_113 = arith.constant dense<0.000000e+00> : vector<3x24x24xf32>
    %327 = tpu.matmul %322, %324, %cst_113 {dimension_numbers = #tpu.dot_dimension_numbers<[2], [2], [1], [1], [0, 0, 0, 1, 1, 1], [0], [0]>} : vector<3x24x32xbf16>, vector<3x24x32xbf16>, vector<3x24x24xf32> -> vector<3x24x24xf32>
    "tpu.trace_stop"() : () -> ()
    %cst_114 = arith.constant 0.176776692 : f32
    %328 = vector.broadcast %cst_114 : f32 to vector<3x24x24xf32>
    %329 = arith.mulf %327, %328 : vector<3x24x24xf32>
    %330 = vector.shape_cast %16 : vector<24x24xf32> to vector<1x24x24xf32>
    %331 = vector.broadcast %330 : vector<1x24x24xf32> to vector<3x24x24xf32>
    %332 = arith.addf %329, %331 : vector<3x24x24xf32>
    %cst_115 = arith.constant dense<0xFF800000> : vector<3x24xf32>
    %333 = vector.multi_reduction <maximumf>, %332, %cst_115 [2] : vector<3x24x24xf32> to vector<3x24xf32>
    %334 = vector.shape_cast %333 : vector<3x24xf32> to vector<3x24x1xf32>
    %335 = vector.broadcast %334 : vector<3x24x1xf32> to vector<3x24x24xf32>
    %336 = arith.subf %332, %335 : vector<3x24x24xf32>
    %337 = math.exp %336 : vector<3x24x24xf32>
    %cst_116 = arith.constant dense<0.000000e+00> : vector<3x24xf32>
    %338 = vector.multi_reduction <add>, %337, %cst_116 [2] : vector<3x24x24xf32> to vector<3x24xf32>
    %339 = vector.shape_cast %338 : vector<3x24xf32> to vector<3x24x1xf32>
    %340 = tpu.reciprocal %339 {approx = true} : vector<3x24x1xf32> -> vector<3x24x1xf32>
    %341 = vector.broadcast %340 : vector<3x24x1xf32> to vector<3x24x24xf32>
    %342 = arith.mulf %337, %341 : vector<3x24x24xf32>
    %343 = arith.truncf %342 : vector<3x24x24xf32> to vector<3x24x24xbf16>
    "tpu.trace_start"() <{level = 10 : i32, message = "bqk,bkd->bqd"}> : () -> ()
    %cst_117 = arith.constant dense<0.000000e+00> : vector<3x24x32xf32>
    %344 = tpu.matmul %343, %326, %cst_117 {dimension_numbers = #tpu.dot_dimension_numbers<[2], [1], [1], [2], [0, 0, 0, 1, 1, 2], [0], [0]>} : vector<3x24x24xbf16>, vector<3x24x32xbf16>, vector<3x24x32xf32> -> vector<3x24x32xf32>
    "tpu.trace_stop"() : () -> ()
    %345 = tpu.concatenate %272, %296, %320, %344 in 2 : vector<3x24x32xf32>, vector<3x24x32xf32>, vector<3x24x32xf32>, vector<3x24x32xf32> -> vector<3x24x128xf32>
    %346 = vector.shape_cast %345 : vector<3x24x128xf32> to vector<72x128xf32>
    %347 = arith.truncf %346 : vector<72x128xf32> to vector<72x128xbf16>
    %c1_118 = arith.constant 1 : index
    %c0_119 = arith.constant 0 : index
    %c0_120 = arith.constant 0 : index
    %348 = vector.load %arg8[%c1_118, %c0_119, %c0_120] : memref<2x128x128xbf16, #tpu.memory_space<vmem>>, vector<1x128x128xbf16>
    %349 = vector.shape_cast %348 : vector<1x128x128xbf16> to vector<128x128xbf16>
    %cst_121 = arith.constant dense<0.000000e+00> : vector<72x128xf32>
    %350 = tpu.matmul %347, %349, %cst_121 {dimension_numbers = #tpu.dot_dimension_numbers<[1], [0], [0], [1], [0, 0, 1, 1], [], []>} : vector<72x128xbf16>, vector<128x128xbf16>, vector<72x128xf32> -> vector<72x128xf32>
    %c1_122 = arith.constant 1 : index
    %c0_123 = arith.constant 0 : index
    %c0_124 = arith.constant 0 : index
    %351 = vector.load %arg9[%c1_122, %c0_123, %c0_124] : memref<2x1x128xf32, #tpu.memory_space<vmem>>, vector<1x1x128xf32>
    %352 = vector.shape_cast %351 : vector<1x1x128xf32> to vector<1x128xf32>
    %353 = vector.broadcast %352 : vector<1x128xf32> to vector<72x128xf32>
    %354 = arith.addf %350, %353 : vector<72x128xf32>
    %355 = arith.addf %210, %354 : vector<72x128xf32>
    %c1_125 = arith.constant 1 : index
    %c0_126 = arith.constant 0 : index
    %c0_127 = arith.constant 0 : index
    %356 = vector.load %arg10[%c1_125, %c0_126, %c0_127] : memref<2x1x128xf32, #tpu.memory_space<vmem>>, vector<1x1x128xf32>
    %357 = vector.shape_cast %356 : vector<1x1x128xf32> to vector<1x128xf32>
    %c1_128 = arith.constant 1 : index
    %c0_129 = arith.constant 0 : index
    %c0_130 = arith.constant 0 : index
    %358 = vector.load %arg11[%c1_128, %c0_129, %c0_130] : memref<2x1x128xf32, #tpu.memory_space<vmem>>, vector<1x1x128xf32>
    %359 = vector.shape_cast %358 : vector<1x1x128xf32> to vector<1x128xf32>
    %cst_131 = arith.constant dense<0.000000e+00> : vector<72xf32>
    %360 = vector.multi_reduction <add>, %355, %cst_131 [1] : vector<72x128xf32> to vector<72xf32>
    %361 = vector.shape_cast %360 : vector<72xf32> to vector<72x1xf32>
    %cst_132 = arith.constant 1.280000e+02 : f32
    %362 = vector.broadcast %cst_132 : f32 to vector<72x1xf32>
    %363 = arith.divf %361, %362 : vector<72x1xf32>
    %364 = vector.broadcast %363 : vector<72x1xf32> to vector<72x128xf32>
    %365 = arith.subf %355, %364 : vector<72x128xf32>
    %366 = arith.mulf %365, %365 : vector<72x128xf32>
    %cst_133 = arith.constant dense<0.000000e+00> : vector<72xf32>
    %367 = vector.multi_reduction <add>, %366, %cst_133 [1] : vector<72x128xf32> to vector<72xf32>
    %368 = vector.shape_cast %367 : vector<72xf32> to vector<72x1xf32>
    %cst_134 = arith.constant 1.280000e+02 : f32
    %369 = vector.broadcast %cst_134 : f32 to vector<72x1xf32>
    %370 = arith.divf %368, %369 : vector<72x1xf32>
    %cst_135 = arith.constant 9.99999997E-7 : f32
    %371 = vector.broadcast %cst_135 : f32 to vector<72x1xf32>
    %372 = arith.addf %370, %371 : vector<72x1xf32>
    %373 = math.rsqrt %372 : vector<72x1xf32>
    %374 = vector.broadcast %373 : vector<72x1xf32> to vector<72x128xf32>
    %375 = arith.mulf %365, %374 : vector<72x128xf32>
    %376 = vector.broadcast %357 : vector<1x128xf32> to vector<72x128xf32>
    %377 = arith.mulf %375, %376 : vector<72x128xf32>
    %378 = vector.broadcast %359 : vector<1x128xf32> to vector<72x128xf32>
    %379 = arith.addf %377, %378 : vector<72x128xf32>
    %380 = arith.truncf %379 : vector<72x128xf32> to vector<72x128xbf16>
    %c1_136 = arith.constant 1 : index
    %c0_137 = arith.constant 0 : index
    %c0_138 = arith.constant 0 : index
    %381 = vector.load %arg12[%c1_136, %c0_137, %c0_138] : memref<2x128x512xbf16, #tpu.memory_space<vmem>>, vector<1x128x512xbf16>
    %382 = vector.shape_cast %381 : vector<1x128x512xbf16> to vector<128x512xbf16>
    %cst_139 = arith.constant dense<0.000000e+00> : vector<72x512xf32>
    %383 = tpu.matmul %380, %382, %cst_139 {dimension_numbers = #tpu.dot_dimension_numbers<[1], [0], [0], [1], [0, 0, 1, 1], [], []>} : vector<72x128xbf16>, vector<128x512xbf16>, vector<72x512xf32> -> vector<72x512xf32>
    %c1_140 = arith.constant 1 : index
    %c0_141 = arith.constant 0 : index
    %c0_142 = arith.constant 0 : index
    %384 = vector.load %arg13[%c1_140, %c0_141, %c0_142] : memref<2x1x512xf32, #tpu.memory_space<vmem>>, vector<1x1x512xf32>
    %385 = vector.shape_cast %384 : vector<1x1x512xf32> to vector<1x512xf32>
    %386 = vector.broadcast %385 : vector<1x512xf32> to vector<72x512xf32>
    %387 = arith.addf %383, %386 : vector<72x512xf32>
    %cst_143 = arith.constant 5.000000e-01 : f32
    %388 = vector.broadcast %cst_143 : f32 to vector<72x512xf32>
    %389 = arith.mulf %388, %387 : vector<72x512xf32>
    %cst_144 = arith.constant 0.707106769 : f32
    %390 = vector.broadcast %cst_144 : f32 to vector<72x512xf32>
    %391 = arith.mulf %387, %390 : vector<72x512xf32>
    %392 = math.erf %391 : vector<72x512xf32>
    %cst_145 = arith.constant 1.000000e+00 : f32
    %393 = vector.broadcast %cst_145 : f32 to vector<72x512xf32>
    %394 = arith.addf %393, %392 : vector<72x512xf32>
    %395 = arith.mulf %389, %394 : vector<72x512xf32>
    %396 = arith.truncf %395 : vector<72x512xf32> to vector<72x512xbf16>
    %c1_146 = arith.constant 1 : index
    %c0_147 = arith.constant 0 : index
    %c0_148 = arith.constant 0 : index
    %397 = vector.load %arg14[%c1_146, %c0_147, %c0_148] : memref<2x512x128xbf16, #tpu.memory_space<vmem>>, vector<1x512x128xbf16>
    %398 = vector.shape_cast %397 : vector<1x512x128xbf16> to vector<512x128xbf16>
    %cst_149 = arith.constant dense<0.000000e+00> : vector<72x128xf32>
    %399 = tpu.matmul %396, %398, %cst_149 {dimension_numbers = #tpu.dot_dimension_numbers<[1], [0], [0], [1], [0, 0, 1, 1], [], []>} : vector<72x512xbf16>, vector<512x128xbf16>, vector<72x128xf32> -> vector<72x128xf32>
    %c1_150 = arith.constant 1 : index
    %c0_151 = arith.constant 0 : index
    %c0_152 = arith.constant 0 : index
    %400 = vector.load %arg15[%c1_150, %c0_151, %c0_152] : memref<2x1x128xf32, #tpu.memory_space<vmem>>, vector<1x1x128xf32>
    %401 = vector.shape_cast %400 : vector<1x1x128xf32> to vector<1x128xf32>
    %402 = vector.broadcast %401 : vector<1x128xf32> to vector<72x128xf32>
    %403 = arith.addf %399, %402 : vector<72x128xf32>
    %404 = arith.addf %355, %403 : vector<72x128xf32>
    %405 = vector.extract_strided_slice %404 {offsets = [16, 0], sizes = [1, 128], strides = [1, 1]} : vector<72x128xf32> to vector<1x128xf32>
    %406 = vector.extract_strided_slice %404 {offsets = [40, 0], sizes = [1, 128], strides = [1, 1]} : vector<72x128xf32> to vector<1x128xf32>
    %407 = vector.extract_strided_slice %404 {offsets = [64, 0], sizes = [1, 128], strides = [1, 1]} : vector<72x128xf32> to vector<1x128xf32>
    %408 = tpu.concatenate %405, %406, %407 in 0 : vector<1x128xf32>, vector<1x128xf32>, vector<1x128xf32> -> vector<3x128xf32>
    %c0_153 = arith.constant 0 : index
    %c0_154 = arith.constant 0 : index
    %409 = vector.load %arg16[%c0_153, %c0_154] : memref<1x128xf32, #tpu.memory_space<vmem>>, vector<1x128xf32>
    %c0_155 = arith.constant 0 : index
    %c0_156 = arith.constant 0 : index
    %410 = vector.load %arg17[%c0_155, %c0_156] : memref<1x128xf32, #tpu.memory_space<vmem>>, vector<1x128xf32>
    %cst_157 = arith.constant dense<0.000000e+00> : vector<3xf32>
    %411 = vector.multi_reduction <add>, %408, %cst_157 [1] : vector<3x128xf32> to vector<3xf32>
    %412 = vector.shape_cast %411 : vector<3xf32> to vector<3x1xf32>
    %cst_158 = arith.constant 1.280000e+02 : f32
    %413 = vector.broadcast %cst_158 : f32 to vector<3x1xf32>
    %414 = arith.divf %412, %413 : vector<3x1xf32>
    %415 = vector.broadcast %414 : vector<3x1xf32> to vector<3x128xf32>
    %416 = arith.subf %408, %415 : vector<3x128xf32>
    %417 = arith.mulf %416, %416 : vector<3x128xf32>
    %cst_159 = arith.constant dense<0.000000e+00> : vector<3xf32>
    %418 = vector.multi_reduction <add>, %417, %cst_159 [1] : vector<3x128xf32> to vector<3xf32>
    %419 = vector.shape_cast %418 : vector<3xf32> to vector<3x1xf32>
    %cst_160 = arith.constant 1.280000e+02 : f32
    %420 = vector.broadcast %cst_160 : f32 to vector<3x1xf32>
    %421 = arith.divf %419, %420 : vector<3x1xf32>
    %cst_161 = arith.constant 9.99999997E-7 : f32
    %422 = vector.broadcast %cst_161 : f32 to vector<3x1xf32>
    %423 = arith.addf %421, %422 : vector<3x1xf32>
    %424 = math.rsqrt %423 : vector<3x1xf32>
    %425 = vector.broadcast %424 : vector<3x1xf32> to vector<3x128xf32>
    %426 = arith.mulf %416, %425 : vector<3x128xf32>
    %427 = vector.broadcast %409 : vector<1x128xf32> to vector<3x128xf32>
    %428 = arith.mulf %426, %427 : vector<3x128xf32>
    %429 = vector.broadcast %410 : vector<1x128xf32> to vector<3x128xf32>
    %430 = arith.addf %428, %429 : vector<3x128xf32>
    %431 = arith.truncf %430 : vector<3x128xf32> to vector<3x128xbf16>
    %c0_162 = arith.constant 0 : index
    %c0_163 = arith.constant 0 : index
    %432 = vector.load %arg18[%c0_162, %c0_163] : memref<128x128xbf16, #tpu.memory_space<vmem>>, vector<128x128xbf16>
    %cst_164 = arith.constant dense<0.000000e+00> : vector<3x128xf32>
    %433 = tpu.matmul %431, %432, %cst_164 {dimension_numbers = #tpu.dot_dimension_numbers<[1], [0], [0], [1], [0, 0, 1, 1], [], []>} : vector<3x128xbf16>, vector<128x128xbf16>, vector<3x128xf32> -> vector<3x128xf32>
    %c0_165 = arith.constant 0 : index
    %c0_166 = arith.constant 0 : index
    %434 = vector.load %arg19[%c0_165, %c0_166] : memref<1x128xf32, #tpu.memory_space<vmem>>, vector<1x128xf32>
    %435 = vector.broadcast %434 : vector<1x128xf32> to vector<3x128xf32>
    %436 = arith.addf %433, %435 : vector<3x128xf32>
    %437 = vector.shape_cast %436 : vector<3x128xf32> to vector<1x3x128xf32>
    %c0_167 = arith.constant 0 : index
    %c0_168 = arith.constant 0 : index
    %c0_169 = arith.constant 0 : index
    %438 = vector.load %arg20[%c0_167, %c0_168, %c0_169] : memref<1x3x128xf32, #tpu.memory_space<vmem>>, vector<1x3x128xf32>
    tpu.vector_store %arg20[%c0_167, %c0_168, %c0_169], %437 {strides = array<i32>} : memref<1x3x128xf32, #tpu.memory_space<vmem>>, vector<1x3x128xf32>,
    return
  }
  func.func @transform_0(%arg0: i32) -> (i32, i32) {
    %c0_i32 = arith.constant 0 : i32
    %c0_i32_0 = arith.constant 0 : i32
    return %arg0, %c0_i32 : i32, i32
  }
  func.func @transform_1(%arg0: i32) -> (i32, i32) {
    %c0_i32 = arith.constant 0 : i32
    %c0_i32_0 = arith.constant 0 : i32
    %c0_i32_1 = arith.constant 0 : i32
    return %c0_i32, %c0_i32_0 : i32, i32
  }
  func.func @transform_2(%arg0: i32) -> (i32, i32) {
    %c0_i32 = arith.constant 0 : i32
    %c0_i32_0 = arith.constant 0 : i32
    %c0_i32_1 = arith.constant 0 : i32
    return %c0_i32, %c0_i32_0 : i32, i32
  }
  func.func @transform_3(%arg0: i32) -> (i32, i32, i32) {
    %c0_i32 = arith.constant 0 : i32
    %c0_i32_0 = arith.constant 0 : i32
    %c0_i32_1 = arith.constant 0 : i32
    %c0_i32_2 = arith.constant 0 : i32
    return %c0_i32, %c0_i32_0, %c0_i32_1 : i32, i32, i32
  }
  func.func @transform_4(%arg0: i32) -> (i32, i32, i32) {
    %c0_i32 = arith.constant 0 : i32
    %c0_i32_0 = arith.constant 0 : i32
    %c0_i32_1 = arith.constant 0 : i32
    %c0_i32_2 = arith.constant 0 : i32
    return %c0_i32, %c0_i32_0, %c0_i32_1 : i32, i32, i32
  }
  func.func @transform_5(%arg0: i32) -> (i32, i32, i32) {
    %c0_i32 = arith.constant 0 : i32
    %c0_i32_0 = arith.constant 0 : i32
    %c0_i32_1 = arith.constant 0 : i32
    %c0_i32_2 = arith.constant 0 : i32
    return %c0_i32, %c0_i32_0, %c0_i32_1 : i32, i32, i32
  }
  func.func @transform_6(%arg0: i32) -> (i32, i32, i32) {
    %c0_i32 = arith.constant 0 : i32
    %c0_i32_0 = arith.constant 0 : i32
    %c0_i32_1 = arith.constant 0 : i32
    %c0_i32_2 = arith.constant 0 : i32
    return %c0_i32, %c0_i32_0, %c0_i32_1 : i32, i32, i32
  }
  func.func @transform_7(%arg0: i32) -> (i32, i32, i32) {
    %c0_i32 = arith.constant 0 : i32
    %c0_i32_0 = arith.constant 0 : i32
    %c0_i32_1 = arith.constant 0 : i32
    %c0_i32_2 = arith.constant 0 : i32
    return %c0_i32, %c0_i32_0, %c0_i32_1 : i32, i32, i32
  }
  func.func @transform_8(%arg0: i32) -> (i32, i32, i32) {
    %c0_i32 = arith.constant 0 : i32
    %c0_i32_0 = arith.constant 0 : i32
    %c0_i32_1 = arith.constant 0 : i32
    %c0_i32_2 = arith.constant 0 : i32
    return %c0_i32, %c0_i32_0, %c0_i32_1 : i32, i32, i32
  }
  func.func @transform_9(%arg0: i32) -> (i32, i32, i32) {
    %c0_i32 = arith.constant 0 : i32
    %c0_i32_0 = arith.constant 0 : i32
    %c0_i32_1 = arith.constant 0 : i32
    %c0_i32_2 = arith.constant 0 : i32
    return %c0_i32, %c0_i32_0, %c0_i32_1 : i32, i32, i32
  }
  func.func @transform_10(%arg0: i32) -> (i32, i32, i32) {
    %c0_i32 = arith.constant 0 : i32
    %c0_i32_0 = arith.constant 0 : i32
    %c0_i32_1 = arith.constant 0 : i32
    %c0_i32_2 = arith.constant 0 : i32
    return %c0_i32, %c0_i32_0, %c0_i32_1 : i32, i32, i32
  }
  func.func @transform_11(%arg0: i32) -> (i32, i32, i32) {
    %c0_i32 = arith.constant 0 : i32
    %c0_i32_0 = arith.constant 0 : i32
    %c0_i32_1 = arith.constant 0 : i32
    %c0_i32_2 = arith.constant 0 : i32
    return %c0_i32, %c0_i32_0, %c0_i32_1 : i32, i32, i32
  }
  func.func @transform_12(%arg0: i32) -> (i32, i32, i32) {
    %c0_i32 = arith.constant 0 : i32
    %c0_i32_0 = arith.constant 0 : i32
    %c0_i32_1 = arith.constant 0 : i32
    %c0_i32_2 = arith.constant 0 : i32
    return %c0_i32, %c0_i32_0, %c0_i32_1 : i32, i32, i32
  }
  func.func @transform_13(%arg0: i32) -> (i32, i32, i32) {
    %c0_i32 = arith.constant 0 : i32
    %c0_i32_0 = arith.constant 0 : i32
    %c0_i32_1 = arith.constant 0 : i32
    %c0_i32_2 = arith.constant 0 : i32
    return %c0_i32, %c0_i32_0, %c0_i32_1 : i32, i32, i32
  }
  func.func @transform_14(%arg0: i32) -> (i32, i32, i32) {
    %c0_i32 = arith.constant 0 : i32
    %c0_i32_0 = arith.constant 0 : i32
    %c0_i32_1 = arith.constant 0 : i32
    %c0_i32_2 = arith.constant 0 : i32
    return %c0_i32, %c0_i32_0, %c0_i32_1 : i32, i32, i32
  }
  func.func @transform_15(%arg0: i32) -> (i32, i32) {
    %c0_i32 = arith.constant 0 : i32
    %c0_i32_0 = arith.constant 0 : i32
    %c0_i32_1 = arith.constant 0 : i32
    return %c0_i32, %c0_i32_0 : i32, i32
  }
  func.func @transform_16(%arg0: i32) -> (i32, i32) {
    %c0_i32 = arith.constant 0 : i32
    %c0_i32_0 = arith.constant 0 : i32
    %c0_i32_1 = arith.constant 0 : i32
    return %c0_i32, %c0_i32_0 : i32, i32
  }
  func.func @transform_17(%arg0: i32) -> (i32, i32) {
    %c0_i32 = arith.constant 0 : i32
    %c0_i32_0 = arith.constant 0 : i32
    %c0_i32_1 = arith.constant 0 : i32
    return %c0_i32, %c0_i32_0 : i32, i32
  }
  func.func @transform_18(%arg0: i32) -> (i32, i32) {
    %c0_i32 = arith.constant 0 : i32
    %c0_i32_0 = arith.constant 0 : i32
    %c0_i32_1 = arith.constant 0 : i32
    return %c0_i32, %c0_i32_0 : i32, i32
  }
  func.func @transform_19(%arg0: i32) -> (i32, i32, i32) {
    %c0_i32 = arith.constant 0 : i32
    %c0_i32_0 = arith.constant 0 : i32
    %c0_i32_1 = arith.constant 0 : i32
    return %arg0, %c0_i32, %c0_i32_0 : i32, i32, i32
  }
}

</mosaic_0001>

<llo_original>
// kernel: vit_forward.1
$region0: #{vit_forward.1}
  #allocation0 [shape = 'u32[]', space=smem, size = 0x4, offset = 0x4, fixed_abs, tag = 'smem constant byte address 0x4 - core index']
  #allocation1 [shape = 'u32[144,128]{1,0:T(1,128)}', space=vmem, size = 0x12000, scoped, tag = 'internal scratch']
  %s0 = inlined_call_operand.vmem [shape: bf16[96,48], index: 0, kind: input, shape index: {}]
  %s1 = inlined_call_operand.vmem [shape: f32[24,128], index: 1, kind: input, shape index: {}]
  %s2 = inlined_call_operand.vmem [shape: bf16[48,128], index: 2, kind: input, shape index: {}]
  %s3 = inlined_call_operand.vmem [shape: f32[2,1,128], index: 3, kind: input, shape index: {}]
  %s4 = inlined_call_operand.vmem [shape: f32[2,1,128], index: 4, kind: input, shape index: {}]
  %s5 = inlined_call_operand.vmem [shape: bf16[2,128,384], index: 5, kind: input, shape index: {}]
  %s6 = inlined_call_operand.vmem [shape: f32[2,1,384], index: 6, kind: input, shape index: {}]
  %s7 = inlined_call_operand.vmem [shape: bf16[2,128,128], index: 7, kind: input, shape index: {}]
  %s8 = inlined_call_operand.vmem [shape: f32[2,1,128], index: 8, kind: input, shape index: {}]
  %s9 = inlined_call_operand.vmem [shape: f32[2,1,128], index: 9, kind: input, shape index: {}]
  %s10 = inlined_call_operand.vmem [shape: f32[2,1,128], index: 10, kind: input, shape index: {}]
  %s11 = inlined_call_operand.vmem [shape: bf16[2,128,512], index: 11, kind: input, shape index: {}]
  %s12 = inlined_call_operand.vmem [shape: f32[2,1,512], index: 12, kind: input, shape index: {}]
  %s13 = inlined_call_operand.vmem [shape: bf16[2,512,128], index: 13, kind: input, shape index: {}]
  %s14 = inlined_call_operand.vmem [shape: f32[2,1,128], index: 14, kind: input, shape index: {}]
  %s15 = inlined_call_operand.vmem [shape: f32[1,128], index: 15, kind: input, shape index: {}]
  %s16 = inlined_call_operand.vmem [shape: f32[1,128], index: 16, kind: input, shape index: {}]
  %s17 = inlined_call_operand.vmem [shape: bf16[128,128], index: 17, kind: input, shape index: {}]
  %s18 = inlined_call_operand.vmem [shape: f32[1,128], index: 18, kind: input, shape index: {}]
  %s19 = inlined_call_operand.vmem [shape: f32[2,3,128], index: 19, kind: output, shape index: {}]
  %s20 = sld [smem:[#allocation0]]
  $region109: #{vit_forward.1} parent=0
    _
  %s22 = ssub.s32 1, %s20
  %s23 = scalar_select 0, %s22, %s20
  loop: start=0, step=1, limit=4
  $region2: #{vit_forward.1} parent=0 // loop_pre_header
    _
  $region3: #{vit_forward.1} parent=0 // loop_header
    %s25 = sphi 0, %s29
    %p26 = scmp.ge.s32.totalorder %s25, 4
    %s35 = sphi 0, %s37
    %s38 = sphi 0, %s35
    %s39 = sphi 0, %s38
    %s55 = sphi 0, %s39
    %s59 = sphi 0, %s59
    %s61 = sphi 0, %s59
    %s62 = sphi 0, %s61
    %s76 = sphi 0, %s62
    %s80 = sphi 0, %s80
    %s82 = sphi 0, %s80
    %s83 = sphi 0, %s82
    %s97 = sphi 0, %s83
    %s101 = sphi 0, %s101
    %s103 = sphi 0, %s101
    %s104 = sphi 0, %s103
    %s118 = sphi 0, %s104
    %s122 = sphi 0, %s122
    %s124 = sphi 0, %s122
    %s125 = sphi 0, %s124
    %s139 = sphi 0, %s125
    %s143 = sphi 0, %s143
    %s145 = sphi 0, %s143
    %s146 = sphi 0, %s145
    %s160 = sphi 0, %s146
    %s164 = sphi 0, %s164
    %s166 = sphi 0, %s164
    %s167 = sphi 0, %s166
    %s181 = sphi 0, %s167
    %s185 = sphi 0, %s185
    %s187 = sphi 0, %s185
    %s188 = sphi 0, %s187
    %s202 = sphi 0, %s188
    %s206 = sphi 0, %s206
    %s208 = sphi 0, %s206
    %s209 = sphi 0, %s208
    %s223 = sphi 0, %s209
    %s227 = sphi 0, %s227
    %s229 = sphi 0, %s227
    %s230 = sphi 0, %s229
    %s244 = sphi 0, %s230
    %s248 = sphi 0, %s248
    %s250 = sphi 0, %s248
    %s251 = sphi 0, %s250
    %s265 = sphi 0, %s251
    %s269 = sphi 0, %s269
    %s271 = sphi 0, %s269
    %s272 = sphi 0, %s271
    %s286 = sphi 0, %s272
    %s290 = sphi 0, %s290
    %s292 = sphi 0, %s290
    %s293 = sphi 0, %s292
    %s307 = sphi 0, %s293
    %s311 = sphi 0, %s311
    %s313 = sphi 0, %s311
    %s314 = sphi 0, %s313
    %s328 = sphi 0, %s314
    %s332 = sphi 0, %s332
    %s334 = sphi 0, %s332
    %s335 = sphi 0, %s334
    %s349 = sphi 0, %s335
    %s353 = sphi 0, %s353
    %s355 = sphi 0, %s353
    %s356 = sphi 0, %s355
    %s370 = sphi 0, %s356
    %s374 = sphi 0, %s374
    %s376 = sphi 0, %s374
    %s377 = sphi 0, %s376
    %s391 = sphi 0, %s377
    %s395 = sphi 0, %s395
    %s397 = sphi 0, %s395
    %s398 = sphi 0, %s397
    %s412 = sphi 0, %s398
    %s416 = sphi 0, %s416
    %s418 = sphi 0, %s416
    %s419 = sphi 0, %s418
    %s433 = sphi 0, %s419
    %s439 = sphi 0, %s441
    %s442 = sphi 0, %s439
    %s443 = sphi 0, %s442
    %s459 = sphi 0, %s443
  $region4: #{vit_forward.1} parent=0 // loop_header_branch
    %28 = sbr.rel (%p26) target = $region8
  $region5: #{vit_forward.1} parent=0 // loop_body
    %s30 = ssub.s32 %s25, 1
    %s31 = ssub.s32 %s25, 2
    %s32 = sadd.s32 %s25, 1
    %s33 = ssub.s32 %s25, %s32
    %p34 = scmp.eq.s32.totalorder %s33, 0
    %s36 = sadd.s32 %s35, 1
    %s37 = scalar_select %p34, %s35, %s36
    %p40 = pneg %p34
    %p41 = scmp.eq.s32.totalorder %s25, 1
    %p42 = por %p40, %p41
    %p43 = scmp.ne.s32.totalorder %s35, %s38
    %p44 = scmp.eq.s32.totalorder %s25, 0
    %p45 = por %p43, %p44
    %p46 = scmp.ne.s32.totalorder %s35, %s38
    %p47 = scmp.eq.s32.totalorder %s30, 1
    %p48 = por %p46, %p47
    %p49 = scmp.ne.s32.totalorder %s38, %s39
    %p50 = scmp.eq.s32.totalorder %s30, 0
    %p51 = por %p49, %p50
    %p52 = scmp.ne.s32.totalorder %s38, %s39
    %p53 = scmp.eq.s32.totalorder %s31, 1
    %p54 = por %p52, %p53
    %p56 = scmp.ne.s32.totalorder %s39, %s55
    %p57 = scmp.eq.s32.totalorder %s31, 0
    %p58 = por %p56, %p57
    %s60 = sadd.s32 %s59, 1
    %p63 = scmp.eq.s32.totalorder %s25, 1
    %p64 = scmp.ne.s32.totalorder %s59, %s61
    %p65 = scmp.eq.s32.totalorder %s25, 0
    %p66 = por %p64, %p65
    %p67 = scmp.ne.s32.totalorder %s59, %s61
    %p68 = scmp.eq.s32.totalorder %s30, 1
    %p69 = por %p67, %p68
    %p70 = scmp.ne.s32.totalorder %s61, %s62
    %p71 = scmp.eq.s32.totalorder %s30, 0
    %p72 = por %p70, %p71
    %p73 = scmp.ne.s32.totalorder %s61, %s62
    %p74 = scmp.eq.s32.totalorder %s31, 1
    %p75 = por %p73, %p74
    %p77 = scmp.ne.s32.totalorder %s62, %s76
    %p78 = scmp.eq.s32.totalorder %s31, 0
    %p79 = por %p77, %p78
    %s81 = sadd.s32 %s80, 1
    %p84 = scmp.eq.s32.totalorder %s25, 1
    %p85 = scmp.ne.s32.totalorder %s80, %s82
    %p86 = scmp.eq.s32.totalorder %s25, 0
    %p87 = por %p85, %p86
    %p88 = scmp.ne.s32.totalorder %s80, %s82
    %p89 = scmp.eq.s32.totalorder %s30, 1
    %p90 = por %p88, %p89
    %p91 = scmp.ne.s32.totalorder %s82, %s83
    %p92 = scmp.eq.s32.totalorder %s30, 0
    %p93 = por %p91, %p92
    %p94 = scmp.ne.s32.totalorder %s82, %s83
    %p95 = scmp.eq.s32.totalorder %s31, 1
    %p96 = por %p94, %p95
    %p98 = scmp.ne.s32.totalorder %s83, %s97
    %p99 = scmp.eq.s32.totalorder %s31, 0
    %p100 = por %p98, %p99
    %s102 = sadd.s32 %s101, 1
    %p105 = scmp.eq.s32.totalorder %s25, 1
    %p106 = scmp.ne.s32.totalorder %s101, %s103
    %p107 = scmp.eq.s32.totalorder %s25, 0
    %p108 = por %p106, %p107
    %p109 = scmp.ne.s32.totalorder %s101, %s103
    %p110 = scmp.eq.s32.totalorder %s30, 1
    %p111 = por %p109, %p110
    %p112 = scmp.ne.s32.totalorder %s103, %s104
    %p113 = scmp.eq.s32.totalorder %s30, 0
    %p114 = por %p112, %p113
    %p115 = scmp.ne.s32.totalorder %s103, %s104
    %p116 = scmp.eq.s32.totalorder %s31, 1
    %p117 = por %p115, %p116
    %p119 = scmp.ne.s32.totalorder %s104, %s118
    %p120 = scmp.eq.s32.totalorder %s31, 0
    %p121 = por %p119, %p120
    %s123 = sadd.s32 %s122, 1
    %p126 = scmp.eq.s32.totalorder %s25, 1
    %p127 = scmp.ne.s32.totalorder %s122, %s124
    %p128 = scmp.eq.s32.totalorder %s25, 0
    %p129 = por %p127, %p128
    %p130 = scmp.ne.s32.totalorder %s122, %s124
    %p131 = scmp.eq.s32.totalorder %s30, 1
    %p132 = por %p130, %p131
    %p133 = scmp.ne.s32.totalorder %s124, %s125
    %p134 = scmp.eq.s32.totalorder %s30, 0
    %p135 = por %p133, %p134
    %p136 = scmp.ne.s32.totalorder %s124, %s125
    %p137 = scmp.eq.s32.totalorder %s31, 1
    %p138 = por %p136, %p137
    %p140 = scmp.ne.s32.totalorder %s125, %s139
    %p141 = scmp.eq.s32.totalorder %s31, 0
    %p142 = por %p140, %p141
    %s144 = sadd.s32 %s143, 1
    %p147 = scmp.eq.s32.totalorder %s25, 1
    %p148 = scmp.ne.s32.totalorder %s143, %s145
    %p149 = scmp.eq.s32.totalorder %s25, 0
    %p150 = por %p148, %p149
    %p151 = scmp.ne.s32.totalorder %s143, %s145
    %p152 = scmp.eq.s32.totalorder %s30, 1
    %p153 = por %p151, %p152
    %p154 = scmp.ne.s32.totalorder %s145, %s146
    %p155 = scmp.eq.s32.totalorder %s30, 0
    %p156 = por %p154, %p155
    %p157 = scmp.ne.s32.totalorder %s145, %s146
    %p158 = scmp.eq.s32.totalorder %s31, 1
    %p159 = por %p157, %p158
    %p161 = scmp.ne.s32.totalorder %s146, %s160
    %p162 = scmp.eq.s32.totalorder %s31, 0
    %p163 = por %p161, %p162
    %s165 = sadd.s32 %s164, 1
    %p168 = scmp.eq.s32.totalorder %s25, 1
    %p169 = scmp.ne.s32.totalorder %s164, %s166
    %p170 = scmp.eq.s32.totalorder %s25, 0
    %p171 = por %p169, %p170
    %p172 = scmp.ne.s32.totalorder %s164, %s166
    %p173 = scmp.eq.s32.totalorder %s30, 1
    %p174 = por %p172, %p173
    %p175 = scmp.ne.s32.totalorder %s166, %s167
    %p176 = scmp.eq.s32.totalorder %s30, 0
    %p177 = por %p175, %p176
    %p178 = scmp.ne.s32.totalorder %s166, %s167
    %p179 = scmp.eq.s32.totalorder %s31, 1
    %p180 = por %p178, %p179
    %p182 = scmp.ne.s32.totalorder %s167, %s181
    %p183 = scmp.eq.s32.totalorder %s31, 0
    %p184 = por %p182, %p183
    %s186 = sadd.s32 %s185, 1
    %p189 = scmp.eq.s32.totalorder %s25, 1
    %p190 = scmp.ne.s32.totalorder %s185, %s187
    %p191 = scmp.eq.s32.totalorder %s25, 0
    %p192 = por %p190, %p191
    %p193 = scmp.ne.s32.totalorder %s185, %s187
    %p194 = scmp.eq.s32.totalorder %s30, 1
    %p195 = por %p193, %p194
    %p196 = scmp.ne.s32.totalorder %s187, %s188
    %p197 = scmp.eq.s32.totalorder %s30, 0
    %p198 = por %p196, %p197
    %p199 = scmp.ne.s32.totalorder %s187, %s188
    %p200 = scmp.eq.s32.totalorder %s31, 1
    %p201 = por %p199, %p200
    %p203 = scmp.ne.s32.totalorder %s188, %s202
    %p204 = scmp.eq.s32.totalorder %s31, 0
    %p205 = por %p203, %p204
    %s207 = sadd.s32 %s206, 1
    %p210 = scmp.eq.s32.totalorder %s25, 1
    %p211 = scmp.ne.s32.totalorder %s206, %s208
    %p212 = scmp.eq.s32.totalorder %s25, 0
    %p213 = por %p211, %p212
    %p214 = scmp.ne.s32.totalorder %s206, %s208
    %p215 = scmp.eq.s32.totalorder %s30, 1
    %p216 = por %p214, %p215
    %p217 = scmp.ne.s32.totalorder %s208, %s209
    %p218 = scmp.eq.s32.totalorder %s30, 0
    %p219 = por %p217, %p218
    %p220 = scmp.ne.s32.totalorder %s208, %s209
    %p221 = scmp.eq.s32.totalorder %s31, 1
    %p222 = por %p220, %p221
    %p224 = scmp.ne.s32.totalorder %s209, %s223
    %p225 = scmp.eq.s32.totalorder %s31, 0
    %p226 = por %p224, %p225
    %s228 = sadd.s32 %s227, 1
    %p231 = scmp.eq.s32.totalorder %s25, 1
    %p232 = scmp.ne.s32.totalorder %s227, %s229
    %p233 = scmp.eq.s32.totalorder %s25, 0
    %p234 = por %p232, %p233
    %p235 = scmp.ne.s32.totalorder %s227, %s229
    %p236 = scmp.eq.s32.totalorder %s30, 1
    %p237 = por %p235, %p236
    %p238 = scmp.ne.s32.totalorder %s229, %s230
    %p239 = scmp.eq.s32.totalorder %s30, 0
    %p240 = por %p238, %p239
    %p241 = scmp.ne.s32.totalorder %s229, %s230
    %p242 = scmp.eq.s32.totalorder %s31, 1
    %p243 = por %p241, %p242
    %p245 = scmp.ne.s32.totalorder %s230, %s244
    %p246 = scmp.eq.s32.totalorder %s31, 0
    %p247 = por %p245, %p246
    %s249 = sadd.s32 %s248, 1
    %p252 = scmp.eq.s32.totalorder %s25, 1
    %p253 = scmp.ne.s32.totalorder %s248, %s250
    %p254 = scmp.eq.s32.totalorder %s25, 0
    %p255 = por %p253, %p254
    %p256 = scmp.ne.s32.totalorder %s248, %s250
    %p257 = scmp.eq.s32.totalorder %s30, 1
    %p258 = por %p256, %p257
    %p259 = scmp.ne.s32.totalorder %s250, %s251
    %p260 = scmp.eq.s32.totalorder %s30, 0
    %p261 = por %p259, %p260
    %p262 = scmp.ne.s32.totalorder %s250, %s251
    %p263 = scmp.eq.s32.totalorder %s31, 1
    %p264 = por %p262, %p263
    %p266 = scmp.ne.s32.totalorder %s251, %s265
    %p267 = scmp.eq.s32.totalorder %s31, 0
    %p268 = por %p266, %p267
    %s270 = sadd.s32 %s269, 1
    %p273 = scmp.eq.s32.totalorder %s25, 1
    %p274 = scmp.ne.s32.totalorder %s269, %s271
    %p275 = scmp.eq.s32.totalorder %s25, 0
    %p276 = por %p274, %p275
    %p277 = scmp.ne.s32.totalorder %s269, %s271
    %p278 = scmp.eq.s32.totalorder %s30, 1
    %p279 = por %p277, %p278
    %p280 = scmp.ne.s32.totalorder %s271, %s272
    %p281 = scmp.eq.s32.totalorder %s30, 0
    %p282 = por %p280, %p281
    %p283 = scmp.ne.s32.totalorder %s271, %s272
    %p284 = scmp.eq.s32.totalorder %s31, 1
    %p285 = por %p283, %p284
    %p287 = scmp.ne.s32.totalorder %s272, %s286
    %p288 = scmp.eq.s32.totalorder %s31, 0
    %p289 = por %p287, %p288
    %s291 = sadd.s32 %s290, 1
    %p294 = scmp.eq.s32.totalorder %s25, 1
    %p295 = scmp.ne.s32.totalorder %s290, %s292
    %p296 = scmp.eq.s32.totalorder %s25, 0
    %p297 = por %p295, %p296
    %p298 = scmp.ne.s32.totalorder %s290, %s292
    %p299 = scmp.eq.s32.totalorder %s30, 1
    %p300 = por %p298, %p299
    %p301 = scmp.ne.s32.totalorder %s292, %s293
    %p302 = scmp.eq.s32.totalorder %s30, 0
    %p303 = por %p301, %p302
    %p304 = scmp.ne.s32.totalorder %s292, %s293
    %p305 = scmp.eq.s32.totalorder %s31, 1
    %p306 = por %p304, %p305
    %p308 = scmp.ne.s32.totalorder %s293, %s307
    %p309 = scmp.eq.s32.totalorder %s31, 0
    %p310 = por %p308, %p309
    %s312 = sadd.s32 %s311, 1
    %p315 = scmp.eq.s32.totalorder %s25, 1
    %p316 = scmp.ne.s32.totalorder %s311, %s313
    %p317 = scmp.eq.s32.totalorder %s25, 0
    %p318 = por %p316, %p317
    %p319 = scmp.ne.s32.totalorder %s311, %s313
    %p320 = scmp.eq.s32.totalorder %s30, 1
    %p321 = por %p319, %p320
    %p322 = scmp.ne.s32.totalorder %s313, %s314
    %p323 = scmp.eq.s32.totalorder %s30, 0
    %p324 = por %p322, %p323
    %p325 = scmp.ne.s32.totalorder %s313, %s314
    %p326 = scmp.eq.s32.totalorder %s31, 1
    %p327 = por %p325, %p326
    %p329 = scmp.ne.s32.totalorder %s314, %s328
    %p330 = scmp.eq.s32.totalorder %s31, 0
    %p331 = por %p329, %p330
    %s333 = sadd.s32 %s332, 1
    %p336 = scmp.eq.s32.totalorder %s25, 1
    %p337 = scmp.ne.s32.totalorder %s332, %s334
    %p338 = scmp.eq.s32.totalorder %s25, 0
    %p339 = por %p337, %p338
    %p340 = scmp.ne.s32.totalorder %s332, %s334
    %p341 = scmp.eq.s32.totalorder %s30, 1
    %p342 = por %p340, %p341
    %p343 = scmp.ne.s32.totalorder %s334, %s335
    %p344 = scmp.eq.s32.totalorder %s30, 0
    %p345 = por %p343, %p344
    %p346 = scmp.ne.s32.totalorder %s334, %s335
    %p347 = scmp.eq.s32.totalorder %s31, 1
    %p348 = por %p346, %p347
    %p350 = scmp.ne.s32.totalorder %s335, %s349
    %p351 = scmp.eq.s32.totalorder %s31, 0
    %p352 = por %p350, %p351
    %s354 = sadd.s32 %s353, 1
    %p357 = scmp.eq.s32.totalorder %s25, 1
    %p358 = scmp.ne.s32.totalorder %s353, %s355
    %p359 = scmp.eq.s32.totalorder %s25, 0
    %p360 = por %p358, %p359
    %p361 = scmp.ne.s32.totalorder %s353, %s355
    %p362 = scmp.eq.s32.totalorder %s30, 1
    %p363 = por %p361, %p362
    %p364 = scmp.ne.s32.totalorder %s355, %s356
    %p365 = scmp.eq.s32.totalorder %s30, 0
    %p366 = por %p364, %p365
    %p367 = scmp.ne.s32.totalorder %s355, %s356
    %p368 = scmp.eq.s32.totalorder %s31, 1
    %p369 = por %p367, %p368
    %p371 = scmp.ne.s32.totalorder %s356, %s370
    %p372 = scmp.eq.s32.totalorder %s31, 0
    %p373 = por %p371, %p372
    %s375 = sadd.s32 %s374, 1
    %p378 = scmp.eq.s32.totalorder %s25, 1
    %p379 = scmp.ne.s32.totalorder %s374, %s376
    %p380 = scmp.eq.s32.totalorder %s25, 0
    %p381 = por %p379, %p380
    %p382 = scmp.ne.s32.totalorder %s374, %s376
    %p383 = scmp.eq.s32.totalorder %s30, 1
    %p384 = por %p382, %p383
    %p385 = scmp.ne.s32.totalorder %s376, %s377
    %p386 = scmp.eq.s32.totalorder %s30, 0
    %p387 = por %p385, %p386
    %p388 = scmp.ne.s32.totalorder %s376, %s377
    %p389 = scmp.eq.s32.totalorder %s31, 1
    %p390 = por %p388, %p389
    %p392 = scmp.ne.s32.totalorder %s377, %s391
    %p393 = scmp.eq.s32.totalorder %s31, 0
    %p394 = por %p392, %p393
    %s396 = sadd.s32 %s395, 1
    %p399 = scmp.eq.s32.totalorder %s25, 1
    %p400 = scmp.ne.s32.totalorder %s395, %s397
    %p401 = scmp.eq.s32.totalorder %s25, 0
    %p402 = por %p400, %p401
    %p403 = scmp.ne.s32.totalorder %s395, %s397
    %p404 = scmp.eq.s32.totalorder %s30, 1
    %p405 = por %p403, %p404
    %p406 = scmp.ne.s32.totalorder %s397, %s398
    %p407 = scmp.eq.s32.totalorder %s30, 0
    %p408 = por %p406, %p407
    %p409 = scmp.ne.s32.totalorder %s397, %s398
    %p410 = scmp.eq.s32.totalorder %s31, 1
    %p411 = por %p409, %p410
    %p413 = scmp.ne.s32.totalorder %s398, %s412
    %p414 = scmp.eq.s32.totalorder %s31, 0
    %p415 = por %p413, %p414
    %s417 = sadd.s32 %s416, 1
    %p420 = scmp.eq.s32.totalorder %s25, 1
    %p421 = scmp.ne.s32.totalorder %s416, %s418
    %p422 = scmp.eq.s32.totalorder %s25, 0
    %p423 = por %p421, %p422
    %p424 = scmp.ne.s32.totalorder %s416, %s418
    %p425 = scmp.eq.s32.totalorder %s30, 1
    %p426 = por %p424, %p425
    %p427 = scmp.ne.s32.totalorder %s418, %s419
    %p428 = scmp.eq.s32.totalorder %s30, 0
    %p429 = por %p427, %p428
    %p430 = scmp.ne.s32.totalorder %s418, %s419
    %p431 = scmp.eq.s32.totalorder %s31, 1
    %p432 = por %p430, %p431
    %p434 = scmp.ne.s32.totalorder %s419, %s433
    %p435 = scmp.eq.s32.totalorder %s31, 0
    %p436 = por %p434, %p435
    %s437 = ssub.s32 %s25, %s32
    %p438 = scmp.eq.s32.totalorder %s437, 0
    %s440 = sadd.s32 %s439, 1
    %s441 = scalar_select %p438, %s439, %s440
    %p444 = pneg %p438
    %p445 = scmp.eq.s32.totalorder %s25, 1
    %p446 = por %p444, %p445
    %p447 = scmp.ne.s32.totalorder %s439, %s442
    %p448 = scmp.eq.s32.totalorder %s25, 0
    %p449 = por %p447, %p448
    %p450 = scmp.ne.s32.totalorder %s439, %s442
    %p451 = scmp.eq.s32.totalorder %s30, 1
    %p452 = por %p450, %p451
    %p453 = scmp.ne.s32.totalorder %s442, %s443
    %p454 = scmp.eq.s32.totalorder %s30, 0
    %p455 = por %p453, %p454
    %p456 = scmp.ne.s32.totalorder %s442, %s443
    %p457 = scmp.eq.s32.totalorder %s31, 1
    %p458 = por %p456, %p457
    %p460 = scmp.ne.s32.totalorder %s443, %s459
    %p461 = scmp.eq.s32.totalorder %s31, 0
    %p462 = por %p460, %p461
    %p463 = scmp.le.s32.totalorder 1, %s25
    %p464 = scmp.lt.s32.totalorder %s25, 3
    %p465 = pnand %p463, %p464
    %p466 = pneg %p465
    // Predicated region
    $region9: #{vit_forward.1} parent=5 // pred_check
      _
    $region10: #{vit_forward.1} parent=5 // pred_check_branch
      %468 = sbr.rel (%p465) target = $region12
    $region11: #{vit_forward.1} parent=5 // pred_region
      %s469 = ssub.s32 %s25, 1
      // Predicated region
      $region13: #{vit_forward.1} parent=11 // pred_check
        %p470 = pneg %p72
      $region14: #{vit_forward.1} parent=11 // pred_check_branch
        %472 = sbr.rel (%p470) target = $region16
      $region15: #{vit_forward.1} parent=11 // pred_region
        _
      $region16: #{vit_forward.1} parent=11 // pred_fallthru
        _
      // Predicated region
      $region17: #{vit_forward.1} parent=11 // pred_check
        %p473 = pneg %p93
      $region18: #{vit_forward.1} parent=11 // pred_check_branch
        %475 = sbr.rel (%p473) target = $region20
      $region19: #{vit_forward.1} parent=11 // pred_region
        _
      $region20: #{vit_forward.1} parent=11 // pred_fallthru
        _
      // Predicated region
      $region21: #{vit_forward.1} parent=11 // pred_check
        %p476 = pneg %p114
      $region22: #{vit_forward.1} parent=11 // pred_check_branch
        %478 = sbr.rel (%p476) target = $region24
      $region23: #{vit_forward.1} parent=11 // pred_region
        _
      $region24: #{vit_forward.1} parent=11 // pred_fallthru
        _
      // Predicated region
      $region25: #{vit_forward.1} parent=11 // pred_check
        %p479 = pneg %p135
      $region26: #{vit_forward.1} parent=11 // pred_check_branch
        %481 = sbr.rel (%p479) target = $region28
      $region27: #{vit_forward.1} parent=11 // pred_region
        _
      $region28: #{vit_forward.1} parent=11 // pred_fallthru
        _
      // Predicated region
      $region29: #{vit_forward.1} parent=11 // pred_check
        %p482 = pneg %p156
      $region30: #{vit_forward.1} parent=11 // pred_check_branch
        %484 = sbr.rel (%p482) target = $region32
      $region31: #{vit_forward.1} parent=11 // pred_region
        _
      $region32: #{vit_forward.1} parent=11 // pred_fallthru
        _
      // Predicated region
      $region33: #{vit_forward.1} parent=11 // pred_check
        %p485 = pneg %p177
      $region34: #{vit_forward.1} parent=11 // pred_check_branch
        %487 = sbr.rel (%p485) target = $region36
      $region35: #{vit_forward.1} parent=11 // pred_region
        _
      $region36: #{vit_forward.1} parent=11 // pred_fallthru
        _
      // Predicated region
      $region37: #{vit_forward.1} parent=11 // pred_check
        %p488 = pneg %p198
      $region38: #{vit_forward.1} parent=11 // pred_check_branch
        %490 = sbr.rel (%p488) target = $region40
      $region39: #{vit_forward.1} parent=11 // pred_region
        _
      $region40: #{vit_forward.1} parent=11 // pred_fallthru
        _
      // Predicated region
      $region41: #{vit_forward.1} parent=11 // pred_check
        %p491 = pneg %p219
      $region42: #{vit_forward.1} parent=11 // pred_check_branch
        %493 = sbr.rel (%p491) target = $region44
      $region43: #{vit_forward.1} parent=11 // pred_region
        _
      $region44: #{vit_forward.1} parent=11 // pred_fallthru
        _
      // Predicated region
      $region45: #{vit_forward.1} parent=11 // pred_check
        %p494 = pneg %p240
      $region46: #{vit_forward.1} parent=11 // pred_check_branch
        %496 = sbr.rel (%p494) target = $region48
      $region47: #{vit_forward.1} parent=11 // pred_region
        _
      $region48: #{vit_forward.1} parent=11 // pred_fallthru
        _
      // Predicated region
      $region49: #{vit_forward.1} parent=11 // pred_check
        %p497 = pneg %p261
      $region50: #{vit_forward.1} parent=11 // pred_check_branch
        %499 = sbr.rel (%p497) target = $region52
      $region51: #{vit_forward.1} parent=11 // pred_region
        _
      $region52: #{vit_forward.1} parent=11 // pred_fallthru
        _
      // Predicated region
      $region53: #{vit_forward.1} parent=11 // pred_check
        %p500 = pneg %p282
      $region54: #{vit_forward.1} parent=11 // pred_check_branch
        %502 = sbr.rel (%p500) target = $region56
      $region55: #{vit_forward.1} parent=11 // pred_region
        _
      $region56: #{vit_forward.1} parent=11 // pred_fallthru
        _
      // Predicated region
      $region57: #{vit_forward.1} parent=11 // pred_check
        %p503 = pneg %p303
      $region58: #{vit_forward.1} parent=11 // pred_check_branch
        %505 = sbr.rel (%p503) target = $region60
      $region59: #{vit_forward.1} parent=11 // pred_region
        _
      $region60: #{vit_forward.1} parent=11 // pred_fallthru
        _
      // Predicated region
      $region61: #{vit_forward.1} parent=11 // pred_check
        %p506 = pneg %p324
      $region62: #{vit_forward.1} parent=11 // pred_check_branch
        %508 = sbr.rel (%p506) target = $region64
      $region63: #{vit_forward.1} parent=11 // pred_region
        _
      $region64: #{vit_forward.1} parent=11 // pred_fallthru
        _
      // Predicated region
      $region65: #{vit_forward.1} parent=11 // pred_check
        %p509 = pneg %p345
      $region66: #{vit_forward.1} parent=11 // pred_check_branch
        %511 = sbr.rel (%p509) target = $region68
      $region67: #{vit_forward.1} parent=11 // pred_region
        _
      $region68: #{vit_forward.1} parent=11 // pred_fallthru
        _
      // Predicated region
      $region69: #{vit_forward.1} parent=11 // pred_check
        %p512 = pneg %p366
      $region70: #{vit_forward.1} parent=11 // pred_check_branch
        %514 = sbr.rel (%p512) target = $region72
      $region71: #{vit_forward.1} parent=11 // pred_region
        _
      $region72: #{vit_forward.1} parent=11 // pred_fallthru
        _
      // Predicated region
      $region73: #{vit_forward.1} parent=11 // pred_check
        %p515 = pneg %p387
      $region74: #{vit_forward.1} parent=11 // pred_check_branch
        %517 = sbr.rel (%p515) target = $region76
      $region75: #{vit_forward.1} parent=11 // pred_region
        _
      $region76: #{vit_forward.1} parent=11 // pred_fallthru
        _
      // Predicated region
      $region77: #{vit_forward.1} parent=11 // pred_check
        %p518 = pneg %p408
      $region78: #{vit_forward.1} parent=11 // pred_check_branch
        %520 = sbr.rel (%p518) target = $region80
      $region79: #{vit_forward.1} parent=11 // pred_region
        _
      $region80: #{vit_forward.1} parent=11 // pred_fallthru
        _
      // Predicated region
      $region81: #{vit_forward.1} parent=11 // pred_check
        %p521 = pneg %p429
      $region82: #{vit_forward.1} parent=11 // pred_check_branch
        %523 = sbr.rel (%p521) target = $region84
      $region83: #{vit_forward.1} parent=11 // pred_region
        _
      $region84: #{vit_forward.1} parent=11 // pred_fallthru
        _
    $region12: #{vit_forward.1} parent=5 // pred_fallthru
      _
    %p524 = scmp.lt.s32.totalorder %s25, 2
    // Predicated region
    $region85: #{vit_forward.1} parent=5 // pred_check
      %p525 = pneg %p524
    $region86: #{vit_forward.1} parent=5 // pred_check_branch
      %527 = sbr.rel (%p525) target = $region88
    $region87: #{vit_forward.1} parent=5 // pred_region
      // Predicated region
      $region89: #{vit_forward.1} parent=87 // pred_check
        %p528 = pneg %p45
      $region90: #{vit_forward.1} parent=87 // pred_check_branch
        %530 = sbr.rel (%p528) target = $region92
      $region91: #{vit_forward.1} parent=87 // pred_region
        %s531 = smul.u32 6, %s25
        %p532 = scmp.lt.s32.totalorder %s531, 11
        %s533 = scalar_select %p532, %s531, 11
        %s534 = smul.addr %s533, 4
        %s535 = scalar_lea.vmem %s0, %s534
        %s536 = smul.u32 6, %s25
      $region92: #{vit_forward.1} parent=87 // pred_fallthru
        _
    $region88: #{vit_forward.1} parent=5 // pred_fallthru
      _
    %p537 = scmp.le.s32.totalorder 1, %s25
    %p538 = scmp.lt.s32.totalorder %s25, 3
    %p539 = pnand %p537, %p538
    %p540 = pneg %p539
    // Predicated region
    $region93: #{vit_forward.1} parent=5 // pred_check
      _
    $region94: #{vit_forward.1} parent=5 // pred_check_branch
      %542 = sbr.rel (%p539) target = $region96
    $region95: #{vit_forward.1} parent=5 // pred_region
      %s543 = ssub.s32 %s25, 1
      %s544 = smul.u32 6, %s30
      %p545 = scmp.lt.s32.totalorder %s544, 11
      %s546 = scalar_select %p545, %s544, 11
      %s547 = smul.addr %s546, 4
      %s548 = scalar_lea.vmem %s0, %s547
      %p549 = pneg %p51
      %p550 = pneg %p48
      %p551 = pneg %p72
      %p552 = pneg %p69
      %p553 = pneg %p93
      %p554 = pneg %p90
      %p555 = pneg %p114
      %p556 = pneg %p111
      %p557 = pneg %p135
      %p558 = pneg %p132
      %p559 = pneg %p156
      %p560 = pneg %p153
      %p561 = pneg %p177
      %p562 = pneg %p174
      %p563 = pneg %p198
      %p564 = pneg %p195
      %p565 = pneg %p219
      %p566 = pneg %p216
      %p567 = pneg %p240
      %p568 = pneg %p237
      %p569 = pneg %p261
      %p570 = pneg %p258
      %p571 = pneg %p282
      %p572 = pneg %p279
      %p573 = pneg %p303
      %p574 = pneg %p300
      %p575 = pneg %p324
      %p576 = pneg %p321
      %p577 = pneg %p345
      %p578 = pneg %p342
      %p579 = pneg %p366
      %p580 = pneg %p363
      %p581 = pneg %p387
      %p582 = pneg %p384
      %p583 = pneg %p408
      %p584 = pneg %p405
      %p585 = pneg %p429
      %p586 = pneg %p426
      %p587 = pneg %p455
      %p588 = pneg %p452
      %p589 = scmp.lt.s32.totalorder %s30, 1
      %s590 = scalar_select %p589, %s30, 1
      %s591 = smul.addr %s590, 4
      %s592 = scalar_lea.vmem %s19, %s591
      %s593 = smul.u32 6, %s30
      %p594 = scmp.lt.s32.totalorder %s593, 11
      %s595 = scalar_select %p594, %s593, 11
      %s596 = smul.addr %s595, 4
      %s597 = scalar_lea.vmem %s0, %s596
      %s598 = smul.u32 6, %s30
      %p599 = scmp.lt.s32.totalorder %s30, 1
      %s600 = scalar_select %p599, %s30, 1
      %s601 = smul.addr %s600, 4
      %s602 = scalar_lea.vmem %s19, %s601
      %v604 = vld [vmem:[%s597] sm:$0xf]
      %v605 = vld [vmem:[%s597 + $0x4] sm:$0xf]
      %v606 = vld [vmem:[%s597 + $0x8] sm:$0xf]
      %v607 = vld [vmem:[%s597 + $0xc] sm:$0xf]
      %v608 = vld [vmem:[%s597 + $0x10] sm:$0xf]
      %v609 = vld [vmem:[%s597 + $0x14] sm:$0xf]
      %v610 = vld [vmem:[%s2] sm:$0xf]
      %v611 = vld [vmem:[%s2 + $0x4] sm:$0xf]
      %v612 = vld [vmem:[%s2 + $0x8] sm:$0xf]
      %v613 = vld [vmem:[%s2 + $0xc] sm:$0xf]
      %v614 = vld [vmem:[%s2 + $0x10] sm:$0xf]
      %v615 = vld [vmem:[%s2 + $0x14] sm:$0xf]
      %v622 = vunpack.c.l.b16 %v604
      %v623 = vunpack.c.l.b16 %v605
      %v624 = vunpack.c.l.b16 %v606
      %v625 = vunpack.c.l.b16 %v607
      %v626 = vunpack.c.l.b16 %v608
      %v627 = vunpack.c.l.b16 %v609
      %v628 = vpack.c.b16 %v623, %v622
      %v629 = vpack.c.b16 %v625, %v624
      %v630 = vpack.c.b16 %v627, %v626
      %v637 = vunpack.c.l.b16 %v610
      %v638 = vunpack.c.l.b16 %v611
      %v639 = vunpack.c.l.b16 %v612
      %v640 = vunpack.c.l.b16 %v613
      %v641 = vunpack.c.l.b16 %v614
      %v642 = vunpack.c.l.b16 %v615
      %v643 = vpack.c.b16 %v638, %v637
      %v644 = vpack.c.b16 %v640, %v639
      %v645 = vpack.c.b16 %v642, %v641
      %vm649 = vcmask 392192
      %v651 = vsel %vm649, %v628, 0
      %v654 = vsel %vm649, %v629, 0
      %v657 = vsel %vm649, %v630, 0
      %659 = vmatprep.subr.bf16.mxu0 0
      %660 = vmatpush1.bf16.msra.mxu0 %v643
      %661 = vmatprep.subr.bf16.mxu0 0
      %662 = vmatpush1.bf16.msra.mxu0 %v644
      %663 = vmatprep.subr.bf16.mxu0 0
      %664 = vmatpush1.bf16.msra.mxu0 %v645
      %665 = vmatprep.subr.bf16.mxu0 0
      %666 = vmatpush1.bf16.msra.mxu0 0
      %667 = vmatprep.subr.bf16.mxu0 0
      %668 = vmatpush1.bf16.msra.mxu0 0
      %669 = vmatprep.subr.bf16.mxu0 0
      %670 = vmatpush1.bf16.msra.mxu0 0
      %671 = vmatprep.subr.bf16.mxu0 0
      %672 = vmatpush1.bf16.msra.mxu0 0
      %673 = vmatprep.subr.bf16.mxu0 0
      %674 = vmatpush1.bf16.msra.mxu0 0
      %675 = vmatprep.subr.bf16.mxu0 0
      %676 = vmatpush1.bf16.msra.mxu0 0
      %677 = vmatprep.subr.bf16.mxu0 0
      %678 = vmatpush1.bf16.msra.mxu0 0
      %679 = vmatprep.subr.bf16.mxu0 0
      %680 = vmatpush1.bf16.msra.mxu0 0
      %681 = vmatprep.subr.bf16.mxu0 0
      %682 = vmatpush1.bf16.msra.mxu0 0
      %683 = vmatprep.subr.bf16.mxu0 0
      %684 = vmatpush1.bf16.msra.mxu0 0
      %685 = vmatprep.subr.bf16.mxu0 0
      %686 = vmatpush1.bf16.msra.mxu0 0
      %687 = vmatprep.subr.bf16.mxu0 0
      %688 = vmatpush1.bf16.msra.mxu0 0
      %689 = vmatprep.subr.bf16.mxu0 0
      %690 = vmatpush1.bf16.msra.mxu0 0
      %691 = vmatprep.mubr.bf16.mxu0 0
      %692 = vmatmul.mubr.bf16.gmra.mrb[0].mxu0 %v651
      %v693 = vpop.f32.mrb[0].mxu0
      %v694 = vadd.f32 0.0, %v693
      %v695 = vpop.f32.mrb[0].mxu0
      %v696 = vpop.f32.mrb[0].mxu0
      %v697 = vadd.f32 0.0, %v696
      %v698 = vpop.f32.mrb[0].mxu0
      %699 = vmatprep.mubr.bf16.mxu0 0
      %700 = vmatmul.mubr.bf16.gmra.mrb[0].mxu0 %v654
      %v701 = vpop.f32.mrb[0].mxu0
      %v702 = vadd.f32 0.0, %v701
      %v703 = vpop.f32.mrb[0].mxu0
      %v704 = vpop.f32.mrb[0].mxu0
      %v705 = vadd.f32 0.0, %v704
      %v706 = vpop.f32.mrb[0].mxu0
      %707 = vmatprep.mubr.bf16.mxu0 0
      %708 = vmatmul.mubr.bf16.gmra.mrb[0].mxu0 %v657
      %v709 = vpop.f32.mrb[0].mxu0
      %v710 = vadd.f32 0.0, %v709
      %v711 = vpop.f32.mrb[0].mxu0
      %v712 = vpop.f32.mrb[0].mxu0
      %v713 = vadd.f32 0.0, %v712
      %v714 = vpop.f32.mrb[0].mxu0
      %715 = vdwg.mxu0
      %v716 = vld [vmem:[%s1] sm:$0xff]
      %v717 = vld [vmem:[%s1 + $0x8] sm:$0xff]
      %v718 = vld [vmem:[%s1 + $0x10] sm:$0xff]
      %v719 = vadd.f32 %v694, %v716
      %v720 = vadd.f32 %v697, %v717
      %v721 = vadd.f32 %v718, 0.0
      %v722 = vadd.f32 %v702, %v716
      %v723 = vadd.f32 %v705, %v717
      %v724 = vadd.f32 %v710, %v716
      %v725 = vadd.f32 %v713, %v717
      %v726 = vlaneseq
      %v727 = vand.u32 %v726, 127
      %vm728 = vcmp.lt.s32.totalorder %v727, 17
      %v729 = vsel %vm728, 0.0, -1e+30
      %v730 = vld [vmem:[%s3] sm:$0x1]
      %v731 = vld [vmem:[%s4] sm:$0x1]
      %732 = vadd.xlane.f32.xlu0 %v719
      %v733 = vpop.xlane.xlu0 %732
      %734 = vadd.xlane.f32.xlu0 %v720
      %v735 = vpop.xlane.xlu0 %734
      %736 = vadd.xlane.f32.xlu0 %v721
      %v737 = vpop.xlane.xlu0 %736
      %738 = vadd.xlane.f32.xlu0 %v722
      %v739 = vpop.xlane.xlu0 %738
      %740 = vadd.xlane.f32.xlu0 %v723
      %v741 = vpop.xlane.xlu0 %740
      %742 = vadd.xlane.f32.xlu0 %v724
      %v743 = vpop.xlane.xlu0 %742
      %744 = vadd.xlane.f32.xlu0 %v725
      %v745 = vpop.xlane.xlu0 %744
      %v746 = vrcp.pop 128.0
      %v747 = vmul.f32 %v733, %v746
      %v748 = vmul.f32 %v735, %v746
      %v749 = vmul.f32 %v737, %v746
      %v750 = vmul.f32 %v739, %v746
      %v751 = vmul.f32 %v741, %v746
      %v752 = vmul.f32 %v743, %v746
      %v753 = vmul.f32 %v745, %v746
      %v754 = vsub.f32 %v719, %v747
      %v755 = vsub.f32 %v720, %v748
      %v756 = vsub.f32 %v721, %v749
      %v757 = vsub.f32 %v722, %v750
      %v758 = vsub.f32 %v723, %v751
      %v759 = vsub.f32 %v724, %v752
      %v760 = vsub.f32 %v725, %v753
      %v761 = vmul.f32 %v754, %v754
      %v762 = vmul.f32 %v755, %v755
      %v763 = vmul.f32 %v756, %v756
      %v764 = vmul.f32 %v757, %v757
      %v765 = vmul.f32 %v758, %v758
      %v766 = vmul.f32 %v759, %v759
      %v767 = vmul.f32 %v760, %v760
      %768 = vadd.xlane.f32.xlu0 %v761
      %v769 = vpop.xlane.xlu0 %768
      %770 = vadd.xlane.f32.xlu0 %v762
      %v771 = vpop.xlane.xlu0 %770
      %772 = vadd.xlane.f32.xlu0 %v763
      %v773 = vpop.xlane.xlu0 %772
      %774 = vadd.xlane.f32.xlu0 %v764
      %v775 = vpop.xlane.xlu0 %774
      %776 = vadd.xlane.f32.xlu0 %v765
      %v777 = vpop.xlane.xlu0 %776
      %778 = vadd.xlane.f32.xlu0 %v766
      %v779 = vpop.xlane.xlu0 %778
      %780 = vadd.xlane.f32.xlu0 %v767
      %v781 = vpop.xlane.xlu0 %780
      %v782 = vmul.f32 %v769, %v746
      %v783 = vmul.f32 %v771, %v746
      %v784 = vmul.f32 %v773, %v746
      %v785 = vmul.f32 %v775, %v746
      %v786 = vmul.f32 %v777, %v746
      %v787 = vmul.f32 %v779, %v746
      %v788 = vmul.f32 %v781, %v746
      %v789 = vadd.f32 %v782, 1e-06
      %v790 = vadd.f32 %v783, 1e-06
      %v791 = vadd.f32 %v784, 1e-06
      %v792 = vadd.f32 %v785, 1e-06
      %v793 = vadd.f32 %v786, 1e-06
      %v794 = vadd.f32 %v787, 1e-06
      %v795 = vadd.f32 %v788, 1e-06
      %v796 = vrsqrt.pop %v789
      %v797 = vrsqrt.pop %v790
      %v798 = vrsqrt.pop %v791
      %v799 = vrsqrt.pop %v792
      %v800 = vrsqrt.pop %v793
      %v801 = vrsqrt.pop %v794
      %v802 = vrsqrt.pop %v795
      %v803 = vmul.f32 %v754, %v796
      %v804 = vmul.f32 %v755, %v797
      %v805 = vmul.f32 %v756, %v798
      %v806 = vmul.f32 %v757, %v799
      %v807 = vmul.f32 %v758, %v800
      %v808 = vmul.f32 %v759, %v801
      %v809 = vmul.f32 %v760, %v802
      %v811 = vlaneseq
      %v812 = vshrl.u32 %v811, 7
      %v813 = vsub.s32 0, %v812
      %v814 = vrot.slane %v730, %v813
      %v816 = vmul.f32 %v803, %v814
      %v817 = vmul.f32 %v804, %v814
      %v818 = vmul.f32 %v805, %v814
      %v819 = vmul.f32 %v806, %v814
      %v820 = vmul.f32 %v807, %v814
      %v821 = vmul.f32 %v808, %v814
      %v822 = vmul.f32 %v809, %v814
      %v824 = vlaneseq
      %v825 = vshrl.u32 %v824, 7
      %v826 = vsub.s32 0, %v825
      %v827 = vrot.slane %v731, %v826
      %v829 = vadd.f32 %v816, %v827
      %v830 = vadd.f32 %v817, %v827
      %v831 = vadd.f32 %v818, %v827
      %v832 = vadd.f32 %v819, %v827
      %v833 = vadd.f32 %v820, %v827
      %v834 = vadd.f32 %v821, %v827
      %v835 = vadd.f32 %v822, %v827
      %v836 = vpack.c.bf16 %v830, %v829
      %v837 = vpack.c.bf16 %v832, %v831
      %v838 = vpack.c.bf16 %v831, %v833
      %v839 = vpack.c.bf16 %v835, %v834
      %v840 = vpack.c.bf16 %v831, %v831
      %v841 = vld [vmem:[%s5] sm:$0xff]
      %v842 = vld [vmem:[%s5 + $0x8] sm:$0xf]
      %v843 = vld [vmem:[%s5 + $0xc] sm:$0xff]
      %v844 = vld [vmem:[%s5 + $0x14] sm:$0xf]
      %v845 = vld [vmem:[%s5 + $0x18] sm:$0xff]
      %v846 = vld [vmem:[%s5 + $0x20] sm:$0xf]
      %v847 = vld [vmem:[%s5 + $0x24] sm:$0xff]
      %v848 = vld [vmem:[%s5 + $0x2c] sm:$0xf]
      %v849 = vld [vmem:[%s5 + $0x30] sm:$0xff]
      %v850 = vld [vmem:[%s5 + $0x38] sm:$0xf]
      %v851 = vld [vmem:[%s5 + $0x3c] sm:$0xff]
      %v852 = vld [vmem:[%s5 + $0x44] sm:$0xf]
      %v853 = vld [vmem:[%s5 + $0x48] sm:$0xff]
      %v854 = vld [vmem:[%s5 + $0x50] sm:$0xf]
      %v855 = vld [vmem:[%s5 + $0x54] sm:$0xff]
      %v856 = vld [vmem:[%s5 + $0x5c] sm:$0xf]
      %v857 = vld [vmem:[%s5 + $0x60] sm:$0xff]
      %v858 = vld [vmem:[%s5 + $0x68] sm:$0xf]
      %v859 = vld [vmem:[%s5 + $0x6c] sm:$0xff]
      %v860 = vld [vmem:[%s5 + $0x74] sm:$0xf]
      %v861 = vld [vmem:[%s5 + $0x78] sm:$0xff]
      %v862 = vld [vmem:[%s5 + $0x80] sm:$0xf]
      %v863 = vld [vmem:[%s5 + $0x84] sm:$0xff]
      %v864 = vld [vmem:[%s5 + $0x8c] sm:$0xf]
      %v865 = vld [vmem:[%s5 + $0x90] sm:$0xff]
      %v866 = vld [vmem:[%s5 + $0x98] sm:$0xf]
      %v867 = vld [vmem:[%s5 + $0x9c] sm:$0xff]
      %v868 = vld [vmem:[%s5 + $0xa4] sm:$0xf]
      %v869 = vld [vmem:[%s5 + $0xa8] sm:$0xff]
      %v870 = vld [vmem:[%s5 + $0xb0] sm:$0xf]
      %v871 = vld [vmem:[%s5 + $0xb4] sm:$0xff]
      %v872 = vld [vmem:[%s5 + $0xbc] sm:$0xf]
      %v873 = vld [vmem:[%s6] sm:$0x7]
      %v875 = vlaneseq
      %v876 = vshrl.u32 %v875, 7
      %v877 = vsub.s32 0, %v876
      %v878 = vrot.slane %v873, %v877
      %v879 = vlaneseq
      %v880 = vshrl.u32 %v879, 7
      %v881 = vsub.s32 1, %v880
      %v882 = vrot.slane %v873, %v881
      %v883 = vlaneseq
      %v884 = vshrl.u32 %v883, 7
      %v885 = vsub.s32 2, %v884
      %v886 = vrot.slane %v873, %v885
      %v922 = vunpack.c.l.b16 %v841
      %v923 = vunpack.c.h.b16 %v841
      %v924 = vunpack.c.l.b16 %v842
      %v925 = vunpack.c.l.b16 %v843
      %v926 = vunpack.c.h.b16 %v843
      %v927 = vunpack.c.l.b16 %v844
      %v928 = vunpack.c.l.b16 %v845
      %v929 = vunpack.c.h.b16 %v845
      %v930 = vunpack.c.l.b16 %v846
      %v931 = vunpack.c.l.b16 %v847
      %v932 = vunpack.c.h.b16 %v847
      %v933 = vunpack.c.l.b16 %v848
      %v934 = vunpack.c.l.b16 %v849
      %v935 = vunpack.c.h.b16 %v849
      %v936 = vunpack.c.l.b16 %v850
      %v937 = vunpack.c.l.b16 %v851
      %v938 = vunpack.c.h.b16 %v851
      %v939 = vunpack.c.l.b16 %v852
      %v940 = vunpack.c.l.b16 %v853
      %v941 = vunpack.c.h.b16 %v853
      %v942 = vunpack.c.l.b16 %v854
      %v943 = vunpack.c.l.b16 %v855
      %v944 = vunpack.c.h.b16 %v855
      %v945 = vunpack.c.l.b16 %v856
      %v946 = vunpack.c.l.b16 %v857
      %v947 = vunpack.c.h.b16 %v857
      %v948 = vunpack.c.l.b16 %v858
      %v949 = vunpack.c.l.b16 %v859
      %v950 = vunpack.c.h.b16 %v859
      %v951 = vunpack.c.l.b16 %v860
      %v952 = vunpack.c.l.b16 %v861
      %v953 = vunpack.c.h.b16 %v861
      %v954 = vunpack.c.l.b16 %v862
      %v955 = vunpack.c.l.b16 %v863
      %v956 = vunpack.c.h.b16 %v863
      %v957 = vunpack.c.l.b16 %v864
      %v958 = vunpack.c.l.b16 %v865
      %v959 = vunpack.c.h.b16 %v865
      %v960 = vunpack.c.l.b16 %v866
      %v961 = vunpack.c.l.b16 %v867
      %v962 = vunpack.c.h.b16 %v867
      %v963 = vunpack.c.l.b16 %v868
      %v964 = vunpack.c.l.b16 %v869
      %v965 = vunpack.c.h.b16 %v869
      %v966 = vunpack.c.l.b16 %v870
      %v967 = vunpack.c.l.b16 %v871
      %v968 = vunpack.c.h.b16 %v871
      %v969 = vunpack.c.l.b16 %v872
      %v970 = vpack.c.b16 %v925, %v922
      %v971 = vpack.c.b16 %v926, %v923
      %v972 = vpack.c.b16 %v927, %v924
      %v973 = vpack.c.b16 %v931, %v928
      %v974 = vpack.c.b16 %v932, %v929
      %v975 = vpack.c.b16 %v933, %v930
      %v976 = vpack.c.b16 %v937, %v934
      %v977 = vpack.c.b16 %v938, %v935
      %v978 = vpack.c.b16 %v939, %v936
      %v979 = vpack.c.b16 %v943, %v940
      %v980 = vpack.c.b16 %v944, %v941
      %v981 = vpack.c.b16 %v945, %v942
      %v982 = vpack.c.b16 %v949, %v946
      %v983 = vpack.c.b16 %v950, %v947
      %v984 = vpack.c.b16 %v951, %v948
      %v985 = vpack.c.b16 %v955, %v952
      %v986 = vpack.c.b16 %v956, %v953
      %v987 = vpack.c.b16 %v957, %v954
      %v988 = vpack.c.b16 %v961, %v958
      %v989 = vpack.c.b16 %v962, %v959
      %v990 = vpack.c.b16 %v963, %v960
      %v991 = vpack.c.b16 %v967, %v964
      %v992 = vpack.c.b16 %v968, %v965
      %v993 = vpack.c.b16 %v969, %v966
      %1018 = vmatprep.subr.bf16.mxu0 %v971
      %1019 = vmatpush1.bf16.msra.mxu0 %v970
      %1020 = vmatprep.subr.bf16.mxu0 %v974
      %1021 = vmatpush1.bf16.msra.mxu0 %v973
      %1022 = vmatprep.subr.bf16.mxu0 %v977
      %1023 = vmatpush1.bf16.msra.mxu0 %v976
      %1024 = vmatprep.subr.bf16.mxu0 %v980
      %1025 = vmatpush1.bf16.msra.mxu0 %v979
      %1026 = vmatprep.subr.bf16.mxu0 %v983
      %1027 = vmatpush1.bf16.msra.mxu0 %v982
      %1028 = vmatprep.subr.bf16.mxu0 %v986
      %1029 = vmatpush1.bf16.msra.mxu0 %v985
      %1030 = vmatprep.subr.bf16.mxu0 %v989
      %1031 = vmatpush1.bf16.msra.mxu0 %v988
      %1032 = vmatprep.subr.bf16.mxu0 %v992
      %1033 = vmatpush1.bf16.msra.mxu0 %v991
      %1034 = vmatprep.subr.bf16.mxu0 0
      %1035 = vmatpush1.bf16.msra.mxu0 0
      %1036 = vmatprep.subr.bf16.mxu0 0
      %1037 = vmatpush1.bf16.msra.mxu0 0
      %1038 = vmatprep.subr.bf16.mxu0 0
      %1039 = vmatpush1.bf16.msra.mxu0 0
      %1040 = vmatprep.subr.bf16.mxu0 0
      %1041 = vmatpush1.bf16.msra.mxu0 0
      %1042 = vmatprep.subr.bf16.mxu0 0
      %1043 = vmatpush1.bf16.msra.mxu0 0
      %1044 = vmatprep.subr.bf16.mxu0 0
      %1045 = vmatpush1.bf16.msra.mxu0 0
      %1046 = vmatprep.subr.bf16.mxu0 0
      %1047 = vmatpush1.bf16.msra.mxu0 0
      %1048 = vmatprep.subr.bf16.mxu0 0
      %1049 = vmatpush1.bf16.msra.mxu0 0
      %1050 = vmatprep.mubr.bf16.mxu0 0
      %1051 = vmatmul.mubr.bf16.gmra.mrb[0].mxu0 %v836
      %v1052 = vpop.f32.mrb[0].mxu0
      %v1053 = vadd.f32 %v878, %v1052
      %v1054 = vpop.f32.mrb[0].mxu0
      %v1055 = vadd.f32 %v882, %v1054
      %v1056 = vpop.f32.mrb[0].mxu0
      %v1057 = vadd.f32 %v878, %v1056
      %v1058 = vpop.f32.mrb[0].mxu0
      %v1059 = vadd.f32 %v882, %v1058
      %1060 = vmatprep.mubr.bf16.mxu0 0
      %1061 = vmatmul.mubr.bf16.gmra.mrb[0].mxu0 %v837
      %v1062 = vpop.f32.mrb[0].mxu0
      %v1063 = vadd.f32 %v878, %v1062
      %v1064 = vpop.f32.mrb[0].mxu0
      %v1065 = vadd.f32 %v882, %v1064
      %v1066 = vpop.f32.mrb[0].mxu0
      %v1067 = vadd.f32 %v878, %v1066
      %v1068 = vpop.f32.mrb[0].mxu0
      %v1069 = vadd.f32 %v882, %v1068
      %1070 = vmatprep.mubr.bf16.mxu0 0
      %1071 = vmatmul.mubr.bf16.gmra.mrb[0].mxu0 %v838
      %v1072 = vpop.f32.mrb[0].mxu0
      %v1073 = vadd.f32 %v878, %v1072
      %v1074 = vpop.f32.mrb[0].mxu0
      %v1075 = vadd.f32 %v882, %v1074
      %v1076 = vpop.f32.mrb[0].mxu0
      %v1077 = vadd.f32 %v878, %v1076
      %v1078 = vpop.f32.mrb[0].mxu0
      %v1079 = vadd.f32 %v882, %v1078
      %1080 = vmatprep.mubr.bf16.mxu0 0
      %1081 = vmatmul.mubr.bf16.gmra.mrb[0].mxu0 %v839
      %v1082 = vpop.f32.mrb[0].mxu0
      %v1083 = vadd.f32 %v878, %v1082
      %v1084 = vpop.f32.mrb[0].mxu0
      %v1085 = vadd.f32 %v882, %v1084
      %v1086 = vpop.f32.mrb[0].mxu0
      %v1087 = vadd.f32 %v878, %v1086
      %v1088 = vpop.f32.mrb[0].mxu0
      %v1089 = vadd.f32 %v882, %v1088
      %1090 = vmatprep.mubr.bf16.mxu0 0
      %1091 = vmatmul.mubr.bf16.gmra.mrb[0].mxu0 %v840
      %v1092 = vpop.f32.mrb[0].mxu0
      %v1093 = vadd.f32 %v878, %v1092
      %v1094 = vpop.f32.mrb[0].mxu0
      %v1095 = vadd.f32 %v882, %v1094
      %v1096 = vpop.f32.mrb[0].mxu0
      %v1097 = vpop.f32.mrb[0].mxu0
      %1098 = vdwg.mxu0
      %1099 = vmatprep.subr.bf16.mxu0 0
      %1100 = vmatpush1.bf16.msra.mxu0 %v972
      %1101 = vmatprep.subr.bf16.mxu0 0
      %1102 = vmatpush1.bf16.msra.mxu0 %v975
      %1103 = vmatprep.subr.bf16.mxu0 0
      %1104 = vmatpush1.bf16.msra.mxu0 %v978
      %1105 = vmatprep.subr.bf16.mxu0 0
      %1106 = vmatpush1.bf16.msra.mxu0 %v981
      %1107 = vmatprep.subr.bf16.mxu0 0
      %1108 = vmatpush1.bf16.msra.mxu0 %v984
      %1109 = vmatprep.subr.bf16.mxu0 0
      %1110 = vmatpush1.bf16.msra.mxu0 %v987
      %1111 = vmatprep.subr.bf16.mxu0 0
      %1112 = vmatpush1.bf16.msra.mxu0 %v990
      %1113 = vmatprep.subr.bf16.mxu0 0
      %1114 = vmatpush1.bf16.msra.mxu0 %v993
      %1115 = vmatprep.subr.bf16.mxu0 0
      %1116 = vmatpush1.bf16.msra.mxu0 0
      %1117 = vmatprep.subr.bf16.mxu0 0
      %1118 = vmatpush1.bf16.msra.mxu0 0
      %1119 = vmatprep.subr.bf16.mxu0 0
      %1120 = vmatpush1.bf16.msra.mxu0 0
      %1121 = vmatprep.subr.bf16.mxu0 0
      %1122 = vmatpush1.bf16.msra.mxu0 0
      %1123 = vmatprep.subr.bf16.mxu0 0
      %1124 = vmatpush1.bf16.msra.mxu0 0
      %1125 = vmatprep.subr.bf16.mxu0 0
      %1126 = vmatpush1.bf16.msra.mxu0 0
      %1127 = vmatprep.subr.bf16.mxu0 0
      %1128 = vmatpush1.bf16.msra.mxu0 0
      %1129 = vmatprep.subr.bf16.mxu0 0
      %1130 = vmatpush1.bf16.msra.mxu0 0
      %1131 = vmatprep.mubr.bf16.mxu0 0
      %1132 = vmatmul.mubr.bf16.gmra.mrb[0].mxu0 %v836
      %v1133 = vpop.f32.mrb[0].mxu0
      %v1134 = vadd.f32 %v886, %v1133
      %v1135 = vpop.f32.mrb[0].mxu0
      %v1136 = vpop.f32.mrb[0].mxu0
      %v1137 = vadd.f32 %v886, %v1136
      %v1138 = vpop.f32.mrb[0].mxu0
      %1139 = vmatprep.mubr.bf16.mxu0 0
      %1140 = vmatmul.mubr.bf16.gmra.mrb[0].mxu0 %v837
      %v1141 = vpop.f32.mrb[0].mxu0
      %v1142 = vadd.f32 %v886, %v1141
      %v1143 = vpop.f32.mrb[0].mxu0
      %v1144 = vpop.f32.mrb[0].mxu0
      %v1145 = vadd.f32 %v886, %v1144
      %v1146 = vpop.f32.mrb[0].mxu0
      %1147 = vmatprep.mubr.bf16.mxu0 0
      %1148 = vmatmul.mubr.bf16.gmra.mrb[0].mxu0 %v838
      %v1149 = vpop.f32.mrb[0].mxu0
      %v1150 = vadd.f32 %v886, %v1149
      %v1151 = vpop.f32.mrb[0].mxu0
      %v1152 = vpop.f32.mrb[0].mxu0
      %v1153 = vadd.f32 %v886, %v1152
      %v1154 = vpop.f32.mrb[0].mxu0
      %1155 = vmatprep.mubr.bf16.mxu0 0
      %1156 = vmatmul.mubr.bf16.gmra.mrb[0].mxu0 %v839
      %v1157 = vpop.f32.mrb[0].mxu0
      %v1158 = vadd.f32 %v886, %v1157
      %v1159 = vpop.f32.mrb[0].mxu0
      %v1160 = vpop.f32.mrb[0].mxu0
      %v1161 = vadd.f32 %v886, %v1160
      %v1162 = vpop.f32.mrb[0].mxu0
      %1163 = vmatprep.mubr.bf16.mxu0 0
      %1164 = vmatmul.mubr.bf16.gmra.mrb[0].mxu0 %v840
      %v1165 = vpop.f32.mrb[0].mxu0
      %v1166 = vadd.f32 %v886, %v1165
      %v1167 = vpop.f32.mrb[0].mxu0
      %v1168 = vpop.f32.mrb[0].mxu0
      %v1169 = vpop.f32.mrb[0].mxu0
      %1170 = vdwg.mxu0
      %v1171 = vpack.c.bf16 %v1057, %v1053
      %v1172 = vpack.c.bf16 %v1063, %v1063
      %v1173 = vpack.c.bf16 %v1073, %v1067
      %v1174 = vpack.c.bf16 %v1077, %v1077
      %v1175 = vpack.c.bf16 %v1087, %v1083
      %v1176 = vpack.c.bf16 %v1093, %v1093
      %v1177 = vpack.c.bf16 %v1059, %v1055
      %v1178 = vpack.c.bf16 %v1065, %v1065
      %v1179 = vpack.c.bf16 %v1075, %v1069
      %v1180 = vpack.c.bf16 %v1079, %v1079
      %v1181 = vpack.c.bf16 %v1089, %v1085
      %v1182 = vpack.c.bf16 %v1095, %v1095
      %v1183 = vpack.c.bf16 %v1137, %v1134
      %v1184 = vpack.c.bf16 %v1142, %v1142
      %v1185 = vpack.c.bf16 %v1150, %v1145
      %v1186 = vpack.c.bf16 %v1153, %v1153
      %v1187 = vpack.c.bf16 %v1161, %v1158
      %v1188 = vpack.c.bf16 %v1166, %v1166
      %vm1189 = vcmask 261120
      %v1191 = vsel %vm1189, %v1171, 0
      %v1194 = vsel %vm1189, %v1172, 0
      %v1197 = vsel %vm1189, %v1177, 0
      %v1200 = vsel %vm1189, %v1178, 0
      %1202 = vmatprep.subr.bf16.mxu0 0
      %1203 = vmatpush1.bf16.xpose.msra.mxu0 %v1197
      %1204 = vmatprep.subr.bf16.mxu0 0
      %1205 = vmatpush1.bf16.xpose.msra.mxu0 %v1200
      %1206 = vmatprep.subr.bf16.mxu0 0
      %1207 = vmatpush1.bf16.xpose.msra.mxu0 0
      %1208 = vmatprep.subr.bf16.mxu0 0
      %1209 = vmatpush1.bf16.xpose.msra.mxu0 0
      %1210 = vmatprep.subr.bf16.mxu0 0
      %1211 = vmatpush1.bf16.xpose.msra.mxu0 0
      %1212 = vmatprep.subr.bf16.mxu0 0
      %1213 = vmatpush1.bf16.xpose.msra.mxu0 0
      %1214 = vmatprep.subr.bf16.mxu0 0
      %1215 = vmatpush1.bf16.xpose.msra.mxu0 0
      %1216 = vmatprep.subr.bf16.mxu0 0
      %1217 = vmatpush1.bf16.xpose.msra.mxu0 0
      %1218 = vmatprep.subr.bf16.mxu0 0
      %1219 = vmatpush1.bf16.xpose.msra.mxu0 0
      %1220 = vmatprep.subr.bf16.mxu0 0
      %1221 = vmatpush1.bf16.xpose.msra.mxu0 0
      %1222 = vmatprep.subr.bf16.mxu0 0
      %1223 = vmatpush1.bf16.xpose.msra.mxu0 0
      %1224 = vmatprep.subr.bf16.mxu0 0
      %1225 = vmatpush1.bf16.xpose.msra.mxu0 0
      %1226 = vmatprep.subr.bf16.mxu0 0
      %1227 = vmatpush1.bf16.xpose.msra.mxu0 0
      %1228 = vmatprep.subr.bf16.mxu0 0
      %1229 = vmatpush1.bf16.xpose.msra.mxu0 0
      %1230 = vmatprep.subr.bf16.mxu0 0
      %1231 = vmatpush1.bf16.xpose.msra.mxu0 0
      %1232 = vmatprep.subr.bf16.mxu0 0
      %1233 = vmatpush1.bf16.xpose.msra.mxu0 0
      %1234 = vmatprep.mubr.bf16.mxu0 0
      %1235 = vmatmul.mubr.bf16.gmra.mrb[0].mxu0 %v1191
      %v1236 = vpop.f32.mrb[0].mxu0
      %v1237 = vadd.f32 0.0, %v1236
      %v1238 = vpop.f32.mrb[0].mxu0
      %v1239 = vpop.f32.mrb[0].mxu0
      %v1240 = vadd.f32 0.0, %v1239
      %v1241 = vpop.f32.mrb[0].mxu0
      %1242 = vmatprep.mubr.bf16.mxu0 0
      %1243 = vmatmul.mubr.bf16.gmra.mrb[0].mxu0 %v1194
      %v1244 = vpop.f32.mrb[0].mxu0
      %v1245 = vadd.f32 0.0, %v1244
      %v1246 = vpop.f32.mrb[0].mxu0
      %v1247 = vpop.f32.mrb[0].mxu0
      %v1248 = vpop.f32.mrb[0].mxu0
      %1249 = vdwg.mxu0
      %v1251 = vsel %vm1189, %v1173, 0
      %v1254 = vsel %vm1189, %v1174, 0
      %v1257 = vsel %vm1189, %v1179, 0
      %v1260 = vsel %vm1189, %v1180, 0
      %1262 = vmatprep.subr.bf16.mxu0 0
      %1263 = vmatpush1.bf16.xpose.msra.mxu0 %v1257
      %1264 = vmatprep.subr.bf16.mxu0 0
      %1265 = vmatpush1.bf16.xpose.msra.mxu0 %v1260
      %1266 = vmatprep.subr.bf16.mxu0 0
      %1267 = vmatpush1.bf16.xpose.msra.mxu0 0
      %1268 = vmatprep.subr.bf16.mxu0 0
      %1269 = vmatpush1.bf16.xpose.msra.mxu0 0
      %1270 = vmatprep.subr.bf16.mxu0 0
      %1271 = vmatpush1.bf16.xpose.msra.mxu0 0
      %1272 = vmatprep.subr.bf16.mxu0 0
      %1273 = vmatpush1.bf16.xpose.msra.mxu0 0
      %1274 = vmatprep.subr.bf16.mxu0 0
      %1275 = vmatpush1.bf16.xpose.msra.mxu0 0
      %1276 = vmatprep.subr.bf16.mxu0 0
      %1277 = vmatpush1.bf16.xpose.msra.mxu0 0
      %1278 = vmatprep.subr.bf16.mxu0 0
      %1279 = vmatpush1.bf16.xpose.msra.mxu0 0
      %1280 = vmatprep.subr.bf16.mxu0 0
      %1281 = vmatpush1.bf16.xpose.msra.mxu0 0
      %1282 = vmatprep.subr.bf16.mxu0 0
      %1283 = vmatpush1.bf16.xpose.msra.mxu0 0
      %1284 = vmatprep.subr.bf16.mxu0 0
      %1285 = vmatpush1.bf16.xpose.msra.mxu0 0
      %1286 = vmatprep.subr.bf16.mxu0 0
      %1287 = vmatpush1.bf16.xpose.msra.mxu0 0
      %1288 = vmatprep.subr.bf16.mxu0 0
      %1289 = vmatpush1.bf16.xpose.msra.mxu0 0
      %1290 = vmatprep.subr.bf16.mxu0 0
      %1291 = vmatpush1.bf16.xpose.msra.mxu0 0
      %1292 = vmatprep.subr.bf16.mxu0 0
      %1293 = vmatpush1.bf16.xpose.msra.mxu0 0
      %1294 = vmatprep.mubr.bf16.mxu0 0
      %1295 = vmatmul.mubr.bf16.gmra.mrb[0].mxu0 %v1251
      %v1296 = vpop.f32.mrb[0].mxu0
      %v1297 = vadd.f32 0.0, %v1296
      %v1298 = vpop.f32.mrb[0].mxu0
      %v1299 = vpop.f32.mrb[0].mxu0
      %v1300 = vadd.f32 0.0, %v1299
      %v1301 = vpop.f32.mrb[0].mxu0
      %1302 = vmatprep.mubr.bf16.mxu0 0
      %1303 = vmatmul.mubr.bf16.gmra.mrb[0].mxu0 %v1254
      %v1304 = vpop.f32.mrb[0].mxu0
      %v1305 = vadd.f32 0.0, %v1304
      %v1306 = vpop.f32.mrb[0].mxu0
      %v1307 = vpop.f32.mrb[0].mxu0
      %v1308 = vpop.f32.mrb[0].mxu0
      %1309 = vdwg.mxu0
      %v1311 = vsel %vm1189, %v1175, 0
      %v1314 = vsel %vm1189, %v1176, 0
      %v1317 = vsel %vm1189, %v1181, 0
      %v1320 = vsel %vm1189, %v1182, 0
      %1322 = vmatprep.subr.bf16.mxu0 0
      %1323 = vmatpush1.bf16.xpose.msra.mxu0 %v1317
      %1324 = vmatprep.subr.bf16.mxu0 0
      %1325 = vmatpush1.bf16.xpose.msra.mxu0 %v1320
      %1326 = vmatprep.subr.bf16.mxu0 0
      %1327 = vmatpush1.bf16.xpose.msra.mxu0 0
      %1328 = vmatprep.subr.bf16.mxu0 0
      %1329 = vmatpush1.bf16.xpose.msra.mxu0 0
      %1330 = vmatprep.subr.bf16.mxu0 0
      %1331 = vmatpush1.bf16.xpose.msra.mxu0 0
      %1332 = vmatprep.subr.bf16.mxu0 0
      %1333 = vmatpush1.bf16.xpose.msra.mxu0 0
      %1334 = vmatprep.subr.bf16.mxu0 0
      %1335 = vmatpush1.bf16.xpose.msra.mxu0 0
      %1336 = vmatprep.subr.bf16.mxu0 0
      %1337 = vmatpush1.bf16.xpose.msra.mxu0 0
      %1338 = vmatprep.subr.bf16.mxu0 0
      %1339 = vmatpush1.bf16.xpose.msra.mxu0 0
      %1340 = vmatprep.subr.bf16.mxu0 0
      %1341 = vmatpush1.bf16.xpose.msra.mxu0 0
      %1342 = vmatprep.subr.bf16.mxu0 0
      %1343 = vmatpush1.bf16.xpose.msra.mxu0 0
      %1344 = vmatprep.subr.bf16.mxu0 0
      %1345 = vmatpush1.bf16.xpose.msra.mxu0 0
      %1346 = vmatprep.subr.bf16.mxu0 0
      %1347 = vmatpush1.bf16.xpose.msra.mxu0 0
      %1348 = vmatprep.subr.bf16.mxu0 0
      %1349 = vmatpush1.bf16.xpose.msra.mxu0 0
      %1350 = vmatprep.subr.bf16.mxu0 0
      %1351 = vmatpush1.bf16.xpose.msra.mxu0 0
      %1352 = vmatprep.subr.bf16.mxu0 0
      %1353 = vmatpush1.bf16.xpose.msra.mxu0 0
      %1354 = vmatprep.mubr.bf16.mxu0 0
      %1355 = vmatmul.mubr.bf16.gmra.mrb[0].mxu0 %v1311
      %v1356 = vpop.f32.mrb[0].mxu0
      %v1357 = vadd.f32 0.0, %v1356
      %v1358 = vpop.f32.mrb[0].mxu0
      %v1359 = vpop.f32.mrb[0].mxu0
      %v1360 = vadd.f32 0.0, %v1359
      %v1361 = vpop.f32.mrb[0].mxu0
      %1362 = vmatprep.mubr.bf16.mxu0 0
      %1363 = vmatmul.mubr.bf16.gmra.mrb[0].mxu0 %v1314
      %v1364 = vpop.f32.mrb[0].mxu0
      %v1365 = vadd.f32 0.0, %v1364
      %v1366 = vpop.f32.mrb[0].mxu0
      %v1367 = vpop.f32.mrb[0].mxu0
      %v1368 = vpop.f32.mrb[0].mxu0
      %1369 = vdwg.mxu0
      %v1370 = vmul.f32 %v1237, 0.17677669
      %v1371 = vmul.f32 %v1240, 0.17677669
      %v1372 = vmul.f32 %v1245, 0.17677669
      %v1373 = vmul.f32 %v1297, 0.17677669
      %v1374 = vmul.f32 %v1300, 0.17677669
      %v1375 = vmul.f32 %v1305, 0.17677669
      %v1376 = vmul.f32 %v1357, 0.17677669
      %v1377 = vmul.f32 %v1360, 0.17677669
      %v1378 = vmul.f32 %v1365, 0.17677669
      %v1379 = vadd.f32 %v1370, %v729
      %v1380 = vadd.f32 %v1371, %v729
      %v1381 = vadd.f32 %v1372, %v729
      %v1382 = vadd.f32 %v1373, %v729
      %v1383 = vadd.f32 %v1374, %v729
      %v1384 = vadd.f32 %v1375, %v729
      %v1385 = vadd.f32 %v1376, %v729
      %v1386 = vadd.f32 %v1377, %v729
      %v1387 = vadd.f32 %v1378, %v729
      %vm1388 = vcmask 195584
      %v1389 = vsel %vm1388, %v1379, -inf
      %1390 = vmax.xlane.f32.xlu0 %v1389
      %v1391 = vpop.xlane.xlu0 %1390
      %v1392 = vsel %vm1388, %v1380, -inf
      %1393 = vmax.xlane.f32.xlu0 %v1392
      %v1394 = vpop.xlane.xlu0 %1393
      %v1395 = vsel %vm1388, %v1381, -inf
      %1396 = vmax.xlane.f32.xlu0 %v1395
      %v1397 = vpop.xlane.xlu0 %1396
      %v1398 = vsel %vm1388, %v1382, -inf
      %1399 = vmax.xlane.f32.xlu0 %v1398
      %v1400 = vpop.xlane.xlu0 %1399
      %v1401 = vsel %vm1388, %v1383, -inf
      %1402 = vmax.xlane.f32.xlu0 %v1401
      %v1403 = vpop.xlane.xlu0 %1402
      %v1404 = vsel %vm1388, %v1384, -inf
      %1405 = vmax.xlane.f32.xlu0 %v1404
      %v1406 = vpop.xlane.xlu0 %1405
      %v1407 = vsel %vm1388, %v1385, -inf
      %1408 = vmax.xlane.f32.xlu0 %v1407
      %v1409 = vpop.xlane.xlu0 %1408
      %v1410 = vsel %vm1388, %v1386, -inf
      %1411 = vmax.xlane.f32.xlu0 %v1410
      %v1412 = vpop.xlane.xlu0 %1411
      %v1413 = vsel %vm1388, %v1387, -inf
      %1414 = vmax.xlane.f32.xlu0 %v1413
      %v1415 = vpop.xlane.xlu0 %1414
      %v1416 = vsub.f32 %v1379, %v1391
      %v1417 = vsub.f32 %v1380, %v1394
      %v1418 = vsub.f32 %v1381, %v1397
      %v1419 = vsub.f32 %v1382, %v1400
      %v1420 = vsub.f32 %v1383, %v1403
      %v1421 = vsub.f32 %v1384, %v1406
      %v1422 = vsub.f32 %v1385, %v1409
      %v1423 = vsub.f32 %v1386, %v1412
      %v1424 = vsub.f32 %v1387, %v1415
      %v1425 = vmul.f32 %v1416, 1.442695
      %v1426 = vpow.pop %v1425
      %v1427 = vmul.f32 %v1417, 1.442695
      %v1428 = vpow.pop %v1427
      %v1429 = vmul.f32 %v1418, 1.442695
      %v1430 = vpow.pop %v1429
      %v1431 = vmul.f32 %v1419, 1.442695
      %v1432 = vpow.pop %v1431
      %v1433 = vmul.f32 %v1420, 1.442695
      %v1434 = vpow.pop %v1433
      %v1435 = vmul.f32 %v1421, 1.442695
      %v1436 = vpow.pop %v1435
      %v1437 = vmul.f32 %v1422, 1.442695
      %v1438 = vpow.pop %v1437
      %v1439 = vmul.f32 %v1423, 1.442695
      %v1440 = vpow.pop %v1439
      %v1441 = vmul.f32 %v1424, 1.442695
      %v1442 = vpow.pop %v1441
      %v1443 = vsel %vm1388, %v1426, 0.0
      %1444 = vadd.xlane.f32.xlu0 %v1443
      %v1445 = vpop.xlane.xlu0 %1444
      %v1446 = vsel %vm1388, %v1428, 0.0
      %1447 = vadd.xlane.f32.xlu0 %v1446
      %v1448 = vpop.xlane.xlu0 %1447
      %v1449 = vsel %vm1388, %v1430, 0.0
      %1450 = vadd.xlane.f32.xlu0 %v1449
      %v1451 = vpop.xlane.xlu0 %1450
      %v1452 = vsel %vm1388, %v1432, 0.0
      %1453 = vadd.xlane.f32.xlu0 %v1452
      %v1454 = vpop.xlane.xlu0 %1453
      %v1455 = vsel %vm1388, %v1434, 0.0
      %1456 = vadd.xlane.f32.xlu0 %v1455
      %v1457 = vpop.xlane.xlu0 %1456
      %v1458 = vsel %vm1388, %v1436, 0.0
      %1459 = vadd.xlane.f32.xlu0 %v1458
      %v1460 = vpop.xlane.xlu0 %1459
      %v1461 = vsel %vm1388, %v1438, 0.0
      %1462 = vadd.xlane.f32.xlu0 %v1461
      %v1463 = vpop.xlane.xlu0 %1462
      %v1464 = vsel %vm1388, %v1440, 0.0
      %1465 = vadd.xlane.f32.xlu0 %v1464
      %v1466 = vpop.xlane.xlu0 %1465
      %v1467 = vsel %vm1388, %v1442, 0.0
      %1468 = vadd.xlane.f32.xlu0 %v1467
      %v1469 = vpop.xlane.xlu0 %1468
      %v1470 = vrcp.pop %v1445
      %v1471 = vrcp.pop %v1448
      %v1472 = vrcp.pop %v1451
      %v1473 = vrcp.pop %v1454
      %v1474 = vrcp.pop %v1457
      %v1475 = vrcp.pop %v1460
      %v1476 = vrcp.pop %v1463
      %v1477 = vrcp.pop %v1466
      %v1478 = vrcp.pop %v1469
      %v1479 = vmul.f32 %v1426, %v1470
      %v1480 = vmul.f32 %v1428, %v1471
      %v1481 = vmul.f32 %v1430, %v1472
      %v1482 = vmul.f32 %v1432, %v1473
      %v1483 = vmul.f32 %v1434, %v1474
      %v1484 = vmul.f32 %v1436, %v1475
      %v1485 = vmul.f32 %v1438, %v1476
      %v1486 = vmul.f32 %v1440, %v1477
      %v1487 = vmul.f32 %v1442, %v1478
      %v1488 = vpack.c.bf16 %v1480, %v1479
      %v1489 = vpack.c.bf16 %v1481, %v1481
      %v1490 = vpack.c.bf16 %v1483, %v1482
      %v1491 = vpack.c.bf16 %v1484, %v1484
      %v1492 = vpack.c.bf16 %v1486, %v1485
      %v1493 = vpack.c.bf16 %v1487, %v1487
      %v1495 = vsel %vm1388, %v1488, 0
      %v1498 = vsel %vm1388, %v1489, 0
      %vm1500 = vcmask 1043456
      %v1502 = vsel %vm1500, %v1184, 0
      %1504 = vmatprep.subr.bf16.mxu0 0
      %1505 = vmatpush1.bf16.msra.mxu0 %v1183
      %1506 = vmatprep.subr.bf16.mxu0 0
      %1507 = vmatpush1.bf16.msra.mxu0 %v1502
      %1508 = vmatprep.subr.bf16.mxu0 0
      %1509 = vmatpush1.bf16.msra.mxu0 0
      %1510 = vmatprep.subr.bf16.mxu0 0
      %1511 = vmatpush1.bf16.msra.mxu0 0
      %1512 = vmatprep.subr.bf16.mxu0 0
      %1513 = vmatpush1.bf16.msra.mxu0 0
      %1514 = vmatprep.subr.bf16.mxu0 0
      %1515 = vmatpush1.bf16.msra.mxu0 0
      %1516 = vmatprep.subr.bf16.mxu0 0
      %1517 = vmatpush1.bf16.msra.mxu0 0
      %1518 = vmatprep.subr.bf16.mxu0 0
      %1519 = vmatpush1.bf16.msra.mxu0 0
      %1520 = vmatprep.subr.bf16.mxu0 0
      %1521 = vmatpush1.bf16.msra.mxu0 0
      %1522 = vmatprep.subr.bf16.mxu0 0
      %1523 = vmatpush1.bf16.msra.mxu0 0
      %1524 = vmatprep.subr.bf16.mxu0 0
      %1525 = vmatpush1.bf16.msra.mxu0 0
      %1526 = vmatprep.subr.bf16.mxu0 0
      %1527 = vmatpush1.bf16.msra.mxu0 0
      %1528 = vmatprep.subr.bf16.mxu0 0
      %1529 = vmatpush1.bf16.msra.mxu0 0
      %1530 = vmatprep.subr.bf16.mxu0 0
      %1531 = vmatpush1.bf16.msra.mxu0 0
      %1532 = vmatprep.subr.bf16.mxu0 0
      %1533 = vmatpush1.bf16.msra.mxu0 0
      %1534 = vmatprep.subr.bf16.mxu0 0
      %1535 = vmatpush1.bf16.msra.mxu0 0
      %1536 = vmatprep.mubr.bf16.mxu0 0
      %1537 = vmatmul.mubr.bf16.gmra.mrb[0].mxu0 %v1495
      %v1538 = vpop.f32.mrb[0].mxu0
      %v1539 = vadd.f32 0.0, %v1538
      %v1540 = vpop.f32.mrb[0].mxu0
      %v1541 = vpop.f32.mrb[0].mxu0
      %v1542 = vadd.f32 0.0, %v1541
      %v1543 = vpop.f32.mrb[0].mxu0
      %1544 = vmatprep.mubr.bf16.mxu0 0
      %1545 = vmatmul.mubr.bf16.gmra.mrb[0].mxu0 %v1498
      %v1546 = vpop.f32.mrb[0].mxu0
      %v1547 = vadd.f32 0.0, %v1546
      %v1548 = vpop.f32.mrb[0].mxu0
      %v1549 = vpop.f32.mrb[0].mxu0
      %v1550 = vpop.f32.mrb[0].mxu0
      %1551 = vdwg.mxu0
      %v1553 = vsel %vm1388, %v1490, 0
      %v1556 = vsel %vm1388, %v1491, 0
      %v1559 = vsel %vm1500, %v1186, 0
      %1561 = vmatprep.subr.bf16.mxu0 0
      %1562 = vmatpush1.bf16.msra.mxu0 %v1185
      %1563 = vmatprep.subr.bf16.mxu0 0
      %1564 = vmatpush1.bf16.msra.mxu0 %v1559
      %1565 = vmatprep.subr.bf16.mxu0 0
      %1566 = vmatpush1.bf16.msra.mxu0 0
      %1567 = vmatprep.subr.bf16.mxu0 0
      %1568 = vmatpush1.bf16.msra.mxu0 0
      %1569 = vmatprep.subr.bf16.mxu0 0
      %1570 = vmatpush1.bf16.msra.mxu0 0
      %1571 = vmatprep.subr.bf16.mxu0 0
      %1572 = vmatpush1.bf16.msra.mxu0 0
      %1573 = vmatprep.subr.bf16.mxu0 0
      %1574 = vmatpush1.bf16.msra.mxu0 0
      %1575 = vmatprep.subr.bf16.mxu0 0
      %1576 = vmatpush1.bf16.msra.mxu0 0
      %1577 = vmatprep.subr.bf16.mxu0 0
      %1578 = vmatpush1.bf16.msra.mxu0 0
      %1579 = vmatprep.subr.bf16.mxu0 0
      %1580 = vmatpush1.bf16.msra.mxu0 0
      %1581 = vmatprep.subr.bf16.mxu0 0
      %1582 = vmatpush1.bf16.msra.mxu0 0
      %1583 = vmatprep.subr.bf16.mxu0 0
      %1584 = vmatpush1.bf16.msra.mxu0 0
      %1585 = vmatprep.subr.bf16.mxu0 0
      %1586 = vmatpush1.bf16.msra.mxu0 0
      %1587 = vmatprep.subr.bf16.mxu0 0
      %1588 = vmatpush1.bf16.msra.mxu0 0
      %1589 = vmatprep.subr.bf16.mxu0 0
      %1590 = vmatpush1.bf16.msra.mxu0 0
      %1591 = vmatprep.subr.bf16.mxu0 0
      %1592 = vmatpush1.bf16.msra.mxu0 0
      %1593 = vmatprep.mubr.bf16.mxu0 0
      %1594 = vmatmul.mubr.bf16.gmra.mrb[0].mxu0 %v1553
      %v1595 = vpop.f32.mrb[0].mxu0
      %v1596 = vadd.f32 0.0, %v1595
      %v1597 = vpop.f32.mrb[0].mxu0
      %v1598 = vpop.f32.mrb[0].mxu0
      %v1599 = vadd.f32 0.0, %v1598
      %v1600 = vpop.f32.mrb[0].mxu0
      %1601 = vmatprep.mubr.bf16.mxu0 0
      %1602 = vmatmul.mubr.bf16.gmra.mrb[0].mxu0 %v1556
      %v1603 = vpop.f32.mrb[0].mxu0
      %v1604 = vadd.f32 0.0, %v1603
      %v1605 = vpop.f32.mrb[0].mxu0
      %v1606 = vpop.f32.mrb[0].mxu0
      %v1607 = vpop.f32.mrb[0].mxu0
      %1608 = vdwg.mxu0
      %v1610 = vsel %vm1388, %v1492, 0
      %v1613 = vsel %vm1388, %v1493, 0
      %v1616 = vsel %vm1500, %v1188, 0
      %1618 = vmatprep.subr.bf16.mxu0 0
      %1619 = vmatpush1.bf16.msra.mxu0 %v1187
      %1620 = vmatprep.subr.bf16.mxu0 0
      %1621 = vmatpush1.bf16.msra.mxu0 %v1616
      %1622 = vmatprep.subr.bf16.mxu0 0
      %1623 = vmatpush1.bf16.msra.mxu0 0
      %1624 = vmatprep.subr.bf16.mxu0 0
      %1625 = vmatpush1.bf16.msra.mxu0 0
      %1626 = vmatprep.subr.bf16.mxu0 0
      %1627 = vmatpush1.bf16.msra.mxu0 0
      %1628 = vmatprep.subr.bf16.mxu0 0
      %1629 = vmatpush1.bf16.msra.mxu0 0
      %1630 = vmatprep.subr.bf16.mxu0 0
      %1631 = vmatpush1.bf16.msra.mxu0 0
      %1632 = vmatprep.subr.bf16.mxu0 0
      %1633 = vmatpush1.bf16.msra.mxu0 0
      %1634 = vmatprep.subr.bf16.mxu0 0
      %1635 = vmatpush1.bf16.msra.mxu0 0
      %1636 = vmatprep.subr.bf16.mxu0 0
      %1637 = vmatpush1.bf16.msra.mxu0 0
      %1638 = vmatprep.subr.bf16.mxu0 0
      %1639 = vmatpush1.bf16.msra.mxu0 0
      %1640 = vmatprep.subr.bf16.mxu0 0
      %1641 = vmatpush1.bf16.msra.mxu0 0
      %1642 = vmatprep.subr.bf16.mxu0 0
      %1643 = vmatpush1.bf16.msra.mxu0 0
      %1644 = vmatprep.subr.bf16.mxu0 0
      %1645 = vmatpush1.bf16.msra.mxu0 0
      %1646 = vmatprep.subr.bf16.mxu0 0
      %1647 = vmatpush1.bf16.msra.mxu0 0
      %1648 = vmatprep.subr.bf16.mxu0 0
      %1649 = vmatpush1.bf16.msra.mxu0 0
      %1650 = vmatprep.mubr.bf16.mxu0 0
      %1651 = vmatmul.mubr.bf16.gmra.mrb[0].mxu0 %v1610
      %v1652 = vpop.f32.mrb[0].mxu0
      %v1653 = vadd.f32 0.0, %v1652
      %v1654 = vpop.f32.mrb[0].mxu0
      %v1655 = vpop.f32.mrb[0].mxu0
      %v1656 = vadd.f32 0.0, %v1655
      %v1657 = vpop.f32.mrb[0].mxu0
      %1658 = vmatprep.mubr.bf16.mxu0 0
      %1659 = vmatmul.mubr.bf16.gmra.mrb[0].mxu0 %v1613
      %v1660 = vpop.f32.mrb[0].mxu0
      %v1661 = vadd.f32 0.0, %v1660
      %v1662 = vpop.f32.mrb[0].mxu0
      %v1663 = vpop.f32.mrb[0].mxu0
      %v1664 = vpop.f32.mrb[0].mxu0
      %1665 = vdwg.mxu0
      %1668 = vrot.lane.b32.xlu0 %v1171, 96
      %v1669 = vpop.permute.xlu0 %1668
      %1670 = vrot.lane.b32.xlu0 %v1172, 96
      %v1671 = vpop.permute.xlu0 %1670
      %1674 = vrot.lane.b32.xlu0 %v1177, 96
      %v1675 = vpop.permute.xlu0 %1674
      %1676 = vrot.lane.b32.xlu0 %v1178, 96
      %v1677 = vpop.permute.xlu0 %1676
      %v1679 = vsel %vm1189, %v1669, 0
      %v1682 = vsel %vm1189, %v1671, 0
      %v1685 = vsel %vm1189, %v1675, 0
      %v1688 = vsel %vm1189, %v1677, 0
      %1690 = vmatprep.subr.bf16.mxu0 0
      %1691 = vmatpush1.bf16.xpose.msra.mxu0 %v1685
      %1692 = vmatprep.subr.bf16.mxu0 0
      %1693 = vmatpush1.bf16.xpose.msra.mxu0 %v1688
      %1694 = vmatprep.subr.bf16.mxu0 0
      %1695 = vmatpush1.bf16.xpose.msra.mxu0 0
      %1696 = vmatprep.subr.bf16.mxu0 0
      %1697 = vmatpush1.bf16.xpose.msra.mxu0 0
      %1698 = vmatprep.subr.bf16.mxu0 0
      %1699 = vmatpush1.bf16.xpose.msra.mxu0 0
      %1700 = vmatprep.subr.bf16.mxu0 0
      %1701 = vmatpush1.bf16.xpose.msra.mxu0 0
      %1702 = vmatprep.subr.bf16.mxu0 0
      %1703 = vmatpush1.bf16.xpose.msra.mxu0 0
      %1704 = vmatprep.subr.bf16.mxu0 0
      %1705 = vmatpush1.bf16.xpose.msra.mxu0 0
      %1706 = vmatprep.subr.bf16.mxu0 0
      %1707 = vmatpush1.bf16.xpose.msra.mxu0 0
      %1708 = vmatprep.subr.bf16.mxu0 0
      %1709 = vmatpush1.bf16.xpose.msra.mxu0 0
      %1710 = vmatprep.subr.bf16.mxu0 0
      %1711 = vmatpush1.bf16.xpose.msra.mxu0 0
      %1712 = vmatprep.subr.bf16.mxu0 0
      %1713 = vmatpush1.bf16.xpose.msra.mxu0 0
      %1714 = vmatprep.subr.bf16.mxu0 0
      %1715 = vmatpush1.bf16.xpose.msra.mxu0 0
      %1716 = vmatprep.subr.bf16.mxu0 0
      %1717 = vmatpush1.bf16.xpose.msra.mxu0 0
      %1718 = vmatprep.subr.bf16.mxu0 0
      %1719 = vmatpush1.bf16.xpose.msra.mxu0 0
      %1720 = vmatprep.subr.bf16.mxu0 0
      %1721 = vmatpush1.bf16.xpose.msra.mxu0 0
      %1722 = vmatprep.mubr.bf16.mxu0 0
      %1723 = vmatmul.mubr.bf16.gmra.mrb[0].mxu0 %v1679
      %v1724 = vpop.f32.mrb[0].mxu0
      %v1725 = vadd.f32 0.0, %v1724
      %v1726 = vpop.f32.mrb[0].mxu0
      %v1727 = vpop.f32.mrb[0].mxu0
      %v1728 = vadd.f32 0.0, %v1727
      %v1729 = vpop.f32.mrb[0].mxu0
      %1730 = vmatprep.mubr.bf16.mxu0 0
      %1731 = vmatmul.mubr.bf16.gmra.mrb[0].mxu0 %v1682
      %v1732 = vpop.f32.mrb[0].mxu0
      %v1733 = vadd.f32 0.0, %v1732
      %v1734 = vpop.f32.mrb[0].mxu0
      %v1735 = vpop.f32.mrb[0].mxu0
      %v1736 = vpop.f32.mrb[0].mxu0
      %1737 = vdwg.mxu0
      %1740 = vrot.lane.b32.xlu0 %v1173, 96
      %v1741 = vpop.permute.xlu0 %1740
      %1742 = vrot.lane.b32.xlu0 %v1174, 96
      %v1743 = vpop.permute.xlu0 %1742
      %1746 = vrot.lane.b32.xlu0 %v1179, 96
      %v1747 = vpop.permute.xlu0 %1746
      %1748 = vrot.lane.b32.xlu0 %v1180, 96
      %v1749 = vpop.permute.xlu0 %1748
      %v1751 = vsel %vm1189, %v1741, 0
      %v1754 = vsel %vm1189, %v1743, 0
      %v1757 = vsel %vm1189, %v1747, 0
      %v1760 = vsel %vm1189, %v1749, 0
      %1762 = vmatprep.subr.bf16.mxu0 0
      %1763 = vmatpush1.bf16.xpose.msra.mxu0 %v1757
      %1764 = vmatprep.subr.bf16.mxu0 0
      %1765 = vmatpush1.bf16.xpose.msra.mxu0 %v1760
      %1766 = vmatprep.subr.bf16.mxu0 0
      %1767 = vmatpush1.bf16.xpose.msra.mxu0 0
      %1768 = vmatprep.subr.bf16.mxu0 0
      %1769 = vmatpush1.bf16.xpose.msra.mxu0 0
      %1770 = vmatprep.subr.bf16.mxu0 0
      %1771 = vmatpush1.bf16.xpose.msra.mxu0 0
      %1772 = vmatprep.subr.bf16.mxu0 0
      %1773 = vmatpush1.bf16.xpose.msra.mxu0 0
      %1774 = vmatprep.subr.bf16.mxu0 0
      %1775 = vmatpush1.bf16.xpose.msra.mxu0 0
      %1776 = vmatprep.subr.bf16.mxu0 0
      %1777 = vmatpush1.bf16.xpose.msra.mxu0 0
      %1778 = vmatprep.subr.bf16.mxu0 0
      %1779 = vmatpush1.bf16.xpose.msra.mxu0 0
      %1780 = vmatprep.subr.bf16.mxu0 0
      %1781 = vmatpush1.bf16.xpose.msra.mxu0 0
      %1782 = vmatprep.subr.bf16.mxu0 0
      %1783 = vmatpush1.bf16.xpose.msra.mxu0 0
      %1784 = vmatprep.subr.bf16.mxu0 0
      %1785 = vmatpush1.bf16.xpose.msra.mxu0 0
      %1786 = vmatprep.subr.bf16.mxu0 0
      %1787 = vmatpush1.bf16.xpose.msra.mxu0 0
      %1788 = vmatprep.subr.bf16.mxu0 0
      %1789 = vmatpush1.bf16.xpose.msra.mxu0 0
      %1790 = vmatprep.subr.bf16.mxu0 0
      %1791 = vmatpush1.bf16.xpose.msra.mxu0 0
      %1792 = vmatprep.subr.bf16.mxu0 0
      %1793 = vmatpush1.bf16.xpose.msra.mxu0 0
      %1794 = vmatprep.mubr.bf16.mxu0 0
      %1795 = vmatmul.mubr.bf16.gmra.mrb[0].mxu0 %v1751
      %v1796 = vpop.f32.mrb[0].mxu0
      %v1797 = vadd.f32 0.0, %v1796
      %v1798 = vpop.f32.mrb[0].mxu0
      %v1799 = vpop.f32.mrb[0].mxu0
      %v1800 = vadd.f32 0.0, %v1799
      %v1801 = vpop.f32.mrb[0].mxu0
      %1802 = vmatprep.mubr.bf16.mxu0 0
      %1803 = vmatmul.mubr.bf16.gmra.mrb[0].mxu0 %v1754
      %v1804 = vpop.f32.mrb[0].mxu0
      %v1805 = vadd.f32 0.0, %v1804
      %v1806 = vpop.f32.mrb[0].mxu0
      %v1807 = vpop.f32.mrb[0].mxu0
      %v1808 = vpop.f32.mrb[0].mxu0
      %1809 = vdwg.mxu0
      %1812 = vrot.lane.b32.xlu0 %v1175, 96
      %v1813 = vpop.permute.xlu0 %1812
      %1814 = vrot.lane.b32.xlu0 %v1176, 96
      %v1815 = vpop.permute.xlu0 %1814
      %1818 = vrot.lane.b32.xlu0 %v1181, 96
      %v1819 = vpop.permute.xlu0 %1818
      %1820 = vrot.lane.b32.xlu0 %v1182, 96
      %v1821 = vpop.permute.xlu0 %1820
      %v1823 = vsel %vm1189, %v1813, 0
      %v1826 = vsel %vm1189, %v1815, 0
      %v1829 = vsel %vm1189, %v1819, 0
      %v1832 = vsel %vm1189, %v1821, 0
      %1834 = vmatprep.subr.bf16.mxu0 0
      %1835 = vmatpush1.bf16.xpose.msra.mxu0 %v1829
      %1836 = vmatprep.subr.bf16.mxu0 0
      %1837 = vmatpush1.bf16.xpose.msra.mxu0 %v1832
      %1838 = vmatprep.subr.bf16.mxu0 0
      %1839 = vmatpush1.bf16.xpose.msra.mxu0 0
      %1840 = vmatprep.subr.bf16.mxu0 0
      %1841 = vmatpush1.bf16.xpose.msra.mxu0 0
      %1842 = vmatprep.subr.bf16.mxu0 0
      %1843 = vmatpush1.bf16.xpose.msra.mxu0 0
      %1844 = vmatprep.subr.bf16.mxu0 0
      %1845 = vmatpush1.bf16.xpose.msra.mxu0 0
      %1846 = vmatprep.subr.bf16.mxu0 0
      %1847 = vmatpush1.bf16.xpose.msra.mxu0 0
      %1848 = vmatprep.subr.bf16.mxu0 0
      %1849 = vmatpush1.bf16.xpose.msra.mxu0 0
      %1850 = vmatprep.subr.bf16.mxu0 0
      %1851 = vmatpush1.bf16.xpose.msra.mxu0 0
      %1852 = vmatprep.subr.bf16.mxu0 0
      %1853 = vmatpush1.bf16.xpose.msra.mxu0 0
      %1854 = vmatprep.subr.bf16.mxu0 0
      %1855 = vmatpush1.bf16.xpose.msra.mxu0 0
      %1856 = vmatprep.subr.bf16.mxu0 0
      %1857 = vmatpush1.bf16.xpose.msra.mxu0 0
      %1858 = vmatprep.subr.bf16.mxu0 0
      %1859 = vmatpush1.bf16.xpose.msra.mxu0 0
      %1860 = vmatprep.subr.bf16.mxu0 0
      %1861 = vmatpush1.bf16.xpose.msra.mxu0 0
      %1862 = vmatprep.subr.bf16.mxu0 0
      %1863 = vmatpush1.bf16.xpose.msra.mxu0 0
      %1864 = vmatprep.subr.bf16.mxu0 0
      %1865 = vmatpush1.bf16.xpose.msra.mxu0 0
      %1866 = vmatprep.mubr.bf16.mxu0 0
      %1867 = vmatmul.mubr.bf16.gmra.mrb[0].mxu0 %v1823
      %v1868 = vpop.f32.mrb[0].mxu0
      %v1869 = vadd.f32 0.0, %v1868
      %v1870 = vpop.f32.mrb[0].mxu0
      %v1871 = vpop.f32.mrb[0].mxu0
      %v1872 = vadd.f32 0.0, %v1871
      %v1873 = vpop.f32.mrb[0].mxu0
      %1874 = vmatprep.mubr.bf16.mxu0 0
      %1875 = vmatmul.mubr.bf16.gmra.mrb[0].mxu0 %v1826
      %v1876 = vpop.f32.mrb[0].mxu0
      %v1877 = vadd.f32 0.0, %v1876
      %v1878 = vpop.f32.mrb[0].mxu0
      %v1879 = vpop.f32.mrb[0].mxu0
      %v1880 = vpop.f32.mrb[0].mxu0
      %1881 = vdwg.mxu0
      %v1882 = vmul.f32 %v1725, 0.17677669
      %v1883 = vmul.f32 %v1728, 0.17677669
      %v1884 = vmul.f32 %v1733, 0.17677669
      %v1885 = vmul.f32 %v1797, 0.17677669
      %v1886 = vmul.f32 %v1800, 0.17677669
      %v1887 = vmul.f32 %v1805, 0.17677669
      %v1888 = vmul.f32 %v1869, 0.17677669
      %v1889 = vmul.f32 %v1872, 0.17677669
      %v1890 = vmul.f32 %v1877, 0.17677669
      %v1891 = vadd.f32 %v1882, %v729
      %v1892 = vadd.f32 %v1883, %v729
      %v1893 = vadd.f32 %v1884, %v729
      %v1894 = vadd.f32 %v1885, %v729
      %v1895 = vadd.f32 %v1886, %v729
      %v1896 = vadd.f32 %v1887, %v729
      %v1897 = vadd.f32 %v1888, %v729
      %v1898 = vadd.f32 %v1889, %v729
      %v1899 = vadd.f32 %v1890, %v729
      %v1900 = vsel %vm1388, %v1891, -inf
      %1901 = vmax.xlane.f32.xlu0 %v1900
      %v1902 = vpop.xlane.xlu0 %1901
      %v1903 = vsel %vm1388, %v1892, -inf
      %1904 = vmax.xlane.f32.xlu0 %v1903
      %v1905 = vpop.xlane.xlu0 %1904
      %v1906 = vsel %vm1388, %v1893, -inf
      %1907 = vmax.xlane.f32.xlu0 %v1906
      %v1908 = vpop.xlane.xlu0 %1907
      %v1909 = vsel %vm1388, %v1894, -inf
      %1910 = vmax.xlane.f32.xlu0 %v1909
      %v1911 = vpop.xlane.xlu0 %1910
      %v1912 = vsel %vm1388, %v1895, -inf
      %1913 = vmax.xlane.f32.xlu0 %v1912
      %v1914 = vpop.xlane.xlu0 %1913
      %v1915 = vsel %vm1388, %v1896, -inf
      %1916 = vmax.xlane.f32.xlu0 %v1915
      %v1917 = vpop.xlane.xlu0 %1916
      %v1918 = vsel %vm1388, %v1897, -inf
      %1919 = vmax.xlane.f32.xlu0 %v1918
      %v1920 = vpop.xlane.xlu0 %1919
      %v1921 = vsel %vm1388, %v1898, -inf
      %1922 = vmax.xlane.f32.xlu0 %v1921
      %v1923 = vpop.xlane.xlu0 %1922
      %v1924 = vsel %vm1388, %v1899, -inf
      %1925 = vmax.xlane.f32.xlu0 %v1924
      %v1926 = vpop.xlane.xlu0 %1925
      %v1927 = vsub.f32 %v1891, %v1902
      %v1928 = vsub.f32 %v1892, %v1905
      %v1929 = vsub.f32 %v1893, %v1908
      %v1930 = vsub.f32 %v1894, %v1911
      %v1931 = vsub.f32 %v1895, %v1914
      %v1932 = vsub.f32 %v1896, %v1917
      %v1933 = vsub.f32 %v1897, %v1920
      %v1934 = vsub.f32 %v1898, %v1923
      %v1935 = vsub.f32 %v1899, %v1926
      %v1936 = vmul.f32 %v1927, 1.442695
      %v1937 = vpow.pop %v1936
      %v1938 = vmul.f32 %v1928, 1.442695
      %v1939 = vpow.pop %v1938
      %v1940 = vmul.f32 %v1929, 1.442695
      %v1941 = vpow.pop %v1940
      %v1942 = vmul.f32 %v1930, 1.442695
      %v1943 = vpow.pop %v1942
      %v1944 = vmul.f32 %v1931, 1.442695
      %v1945 = vpow.pop %v1944
      %v1946 = vmul.f32 %v1932, 1.442695
      %v1947 = vpow.pop %v1946
      %v1948 = vmul.f32 %v1933, 1.442695
      %v1949 = vpow.pop %v1948
      %v1950 = vmul.f32 %v1934, 1.442695
      %v1951 = vpow.pop %v1950
      %v1952 = vmul.f32 %v1935, 1.442695
      %v1953 = vpow.pop %v1952
      %v1954 = vsel %vm1388, %v1937, 0.0
      %1955 = vadd.xlane.f32.xlu0 %v1954
      %v1956 = vpop.xlane.xlu0 %1955
      %v1957 = vsel %vm1388, %v1939, 0.0
      %1958 = vadd.xlane.f32.xlu0 %v1957
      %v1959 = vpop.xlane.xlu0 %1958
      %v1960 = vsel %vm1388, %v1941, 0.0
      %1961 = vadd.xlane.f32.xlu0 %v1960
      %v1962 = vpop.xlane.xlu0 %1961
      %v1963 = vsel %vm1388, %v1943, 0.0
      %1964 = vadd.xlane.f32.xlu0 %v1963
      %v1965 = vpop.xlane.xlu0 %1964
      %v1966 = vsel %vm1388, %v1945, 0.0
      %1967 = vadd.xlane.f32.xlu0 %v1966
      %v1968 = vpop.xlane.xlu0 %1967
      %v1969 = vsel %vm1388, %v1947, 0.0
      %1970 = vadd.xlane.f32.xlu0 %v1969
      %v1971 = vpop.xlane.xlu0 %1970
      %v1972 = vsel %vm1388, %v1949, 0.0
      %1973 = vadd.xlane.f32.xlu0 %v1972
      %v1974 = vpop.xlane.xlu0 %1973
      %v1975 = vsel %vm1388, %v1951, 0.0
      %1976 = vadd.xlane.f32.xlu0 %v1975
      %v1977 = vpop.xlane.xlu0 %1976
      %v1978 = vsel %vm1388, %v1953, 0.0
      %1979 = vadd.xlane.f32.xlu0 %v1978
      %v1980 = vpop.xlane.xlu0 %1979
      %v1981 = vrcp.pop %v1956
      %v1982 = vrcp.pop %v1959
      %v1983 = vrcp.pop %v1962
      %v1984 = vrcp.pop %v1965
      %v1985 = vrcp.pop %v1968
      %v1986 = vrcp.pop %v1971
      %v1987 = vrcp.pop %v1974
      %v1988 = vrcp.pop %v1977
      %v1989 = vrcp.pop %v1980
      %v1990 = vmul.f32 %v1937, %v1981
      %v1991 = vmul.f32 %v1939, %v1982
      %v1992 = vmul.f32 %v1941, %v1983
      %v1993 = vmul.f32 %v1943, %v1984
      %v1994 = vmul.f32 %v1945, %v1985
      %v1995 = vmul.f32 %v1947, %v1986
      %v1996 = vmul.f32 %v1949, %v1987
      %v1997 = vmul.f32 %v1951, %v1988
      %v1998 = vmul.f32 %v1953, %v1989
      %v1999 = vpack.c.bf16 %v1991, %v1990
      %v2000 = vpack.c.bf16 %v1992, %v1992
      %v2001 = vpack.c.bf16 %v1994, %v1993
      %v2002 = vpack.c.bf16 %v1995, %v1995
      %v2003 = vpack.c.bf16 %v1997, %v1996
      %v2004 = vpack.c.bf16 %v1998, %v1998
      %2007 = vrot.lane.b32.xlu0 %v1183, 96
      %v2008 = vpop.permute.xlu0 %2007
      %2009 = vrot.lane.b32.xlu0 %v1184, 96
      %v2010 = vpop.permute.xlu0 %2009
      %v2013 = vsel %vm1388, %v1999, 0
      %v2016 = vsel %vm1388, %v2000, 0
      %v2019 = vsel %vm1500, %v2010, 0
      %2021 = vmatprep.subr.bf16.mxu0 0
      %2022 = vmatpush1.bf16.msra.mxu0 %v2008
      %2023 = vmatprep.subr.bf16.mxu0 0
      %2024 = vmatpush1.bf16.msra.mxu0 %v2019
      %2025 = vmatprep.subr.bf16.mxu0 0
      %2026 = vmatpush1.bf16.msra.mxu0 0
      %2027 = vmatprep.subr.bf16.mxu0 0
      %2028 = vmatpush1.bf16.msra.mxu0 0
      %2029 = vmatprep.subr.bf16.mxu0 0
      %2030 = vmatpush1.bf16.msra.mxu0 0
      %2031 = vmatprep.subr.bf16.mxu0 0
      %2032 = vmatpush1.bf16.msra.mxu0 0
      %2033 = vmatprep.subr.bf16.mxu0 0
      %2034 = vmatpush1.bf16.msra.mxu0 0
      %2035 = vmatprep.subr.bf16.mxu0 0
      %2036 = vmatpush1.bf16.msra.mxu0 0
      %2037 = vmatprep.subr.bf16.mxu0 0
      %2038 = vmatpush1.bf16.msra.mxu0 0
      %2039 = vmatprep.subr.bf16.mxu0 0
      %2040 = vmatpush1.bf16.msra.mxu0 0
      %2041 = vmatprep.subr.bf16.mxu0 0
      %2042 = vmatpush1.bf16.msra.mxu0 0
      %2043 = vmatprep.subr.bf16.mxu0 0
      %2044 = vmatpush1.bf16.msra.mxu0 0
      %2045 = vmatprep.subr.bf16.mxu0 0
      %2046 = vmatpush1.bf16.msra.mxu0 0
      %2047 = vmatprep.subr.bf16.mxu0 0
      %2048 = vmatpush1.bf16.msra.mxu0 0
      %2049 = vmatprep.subr.bf16.mxu0 0
      %2050 = vmatpush1.bf16.msra.mxu0 0
      %2051 = vmatprep.subr.bf16.mxu0 0
      %2052 = vmatpush1.bf16.msra.mxu0 0
      %2053 = vmatprep.mubr.bf16.mxu0 0
      %2054 = vmatmul.mubr.bf16.gmra.mrb[0].mxu0 %v2013
      %v2055 = vpop.f32.mrb[0].mxu0
      %v2056 = vadd.f32 0.0, %v2055
      %v2057 = vpop.f32.mrb[0].mxu0
      %v2058 = vpop.f32.mrb[0].mxu0
      %v2059 = vadd.f32 0.0, %v2058
      %v2060 = vpop.f32.mrb[0].mxu0
      %2061 = vmatprep.mubr.bf16.mxu0 0
      %2062 = vmatmul.mubr.bf16.gmra.mrb[0].mxu0 %v2016
      %v2063 = vpop.f32.mrb[0].mxu0
      %v2064 = vadd.f32 0.0, %v2063
      %v2065 = vpop.f32.mrb[0].mxu0
      %v2066 = vpop.f32.mrb[0].mxu0
      %v2067 = vpop.f32.mrb[0].mxu0
      %2068 = vdwg.mxu0
      %2071 = vrot.lane.b32.xlu0 %v1185, 96
      %v2072 = vpop.permute.xlu0 %2071
      %2073 = vrot.lane.b32.xlu0 %v1186, 96
      %v2074 = vpop.permute.xlu0 %2073
      %v2077 = vsel %vm1388, %v2001, 0
      %v2080 = vsel %vm1388, %v2002, 0
      %v2083 = vsel %vm1500, %v2074, 0
      %2085 = vmatprep.subr.bf16.mxu0 0
      %2086 = vmatpush1.bf16.msra.mxu0 %v2072
      %2087 = vmatprep.subr.bf16.mxu0 0
      %2088 = vmatpush1.bf16.msra.mxu0 %v2083
      %2089 = vmatprep.subr.bf16.mxu0 0
      %2090 = vmatpush1.bf16.msra.mxu0 0
      %2091 = vmatprep.subr.bf16.mxu0 0
      %2092 = vmatpush1.bf16.msra.mxu0 0
      %2093 = vmatprep.subr.bf16.mxu0 0
      %2094 = vmatpush1.bf16.msra.mxu0 0
      %2095 = vmatprep.subr.bf16.mxu0 0
      %2096 = vmatpush1.bf16.msra.mxu0 0
      %2097 = vmatprep.subr.bf16.mxu0 0
      %2098 = vmatpush1.bf16.msra.mxu0 0
      %2099 = vmatprep.subr.bf16.mxu0 0
      %2100 = vmatpush1.bf16.msra.mxu0 0
      %2101 = vmatprep.subr.bf16.mxu0 0
      %2102 = vmatpush1.bf16.msra.mxu0 0
      %2103 = vmatprep.subr.bf16.mxu0 0
      %2104 = vmatpush1.bf16.msra.mxu0 0
      %2105 = vmatprep.subr.bf16.mxu0 0
      %2106 = vmatpush1.bf16.msra.mxu0 0
      %2107 = vmatprep.subr.bf16.mxu0 0
      %2108 = vmatpush1.bf16.msra.mxu0 0
      %2109 = vmatprep.subr.bf16.mxu0 0
      %2110 = vmatpush1.bf16.msra.mxu0 0
      %2111 = vmatprep.subr.bf16.mxu0 0
      %2112 = vmatpush1.bf16.msra.mxu0 0
      %2113 = vmatprep.subr.bf16.mxu0 0
      %2114 = vmatpush1.bf16.msra.mxu0 0
      %2115 = vmatprep.subr.bf16.mxu0 0
      %2116 = vmatpush1.bf16.msra.mxu0 0
      %2117 = vmatprep.mubr.bf16.mxu0 0
      %2118 = vmatmul.mubr.bf16.gmra.mrb[0].mxu0 %v2077
      %v2119 = vpop.f32.mrb[0].mxu0
      %v2120 = vadd.f32 0.0, %v2119
      %v2121 = vpop.f32.mrb[0].mxu0
      %v2122 = vpop.f32.mrb[0].mxu0
      %v2123 = vadd.f32 0.0, %v2122
      %v2124 = vpop.f32.mrb[0].mxu0
      %2125 = vmatprep.mubr.bf16.mxu0 0
      %2126 = vmatmul.mubr.bf16.gmra.mrb[0].mxu0 %v2080
      %v2127 = vpop.f32.mrb[0].mxu0
      %v2128 = vadd.f32 0.0, %v2127
      %v2129 = vpop.f32.mrb[0].mxu0
      %v2130 = vpop.f32.mrb[0].mxu0
      %v2131 = vpop.f32.mrb[0].mxu0
      %2132 = vdwg.mxu0
      %2135 = vrot.lane.b32.xlu0 %v1187, 96
      %v2136 = vpop.permute.xlu0 %2135
      %2137 = vrot.lane.b32.xlu0 %v1188, 96
      %v2138 = vpop.permute.xlu0 %2137
      %v2141 = vsel %vm1388, %v2003, 0
      %v2144 = vsel %vm1388, %v2004, 0
      %v2147 = vsel %vm1500, %v2138, 0
      %2149 = vmatprep.subr.bf16.mxu0 0
      %2150 = vmatpush1.bf16.msra.mxu0 %v2136
      %2151 = vmatprep.subr.bf16.mxu0 0
      %2152 = vmatpush1.bf16.msra.mxu0 %v2147
      %2153 = vmatprep.subr.bf16.mxu0 0
      %2154 = vmatpush1.bf16.msra.mxu0 0
      %2155 = vmatprep.subr.bf16.mxu0 0
      %2156 = vmatpush1.bf16.msra.mxu0 0
      %2157 = vmatprep.subr.bf16.mxu0 0
      %2158 = vmatpush1.bf16.msra.mxu0 0
      %2159 = vmatprep.subr.bf16.mxu0 0
      %2160 = vmatpush1.bf16.msra.mxu0 0
      %2161 = vmatprep.subr.bf16.mxu0 0
      %2162 = vmatpush1.bf16.msra.mxu0 0
      %2163 = vmatprep.subr.bf16.mxu0 0
      %2164 = vmatpush1.bf16.msra.mxu0 0
      %2165 = vmatprep.subr.bf16.mxu0 0
      %2166 = vmatpush1.bf16.msra.mxu0 0
      %2167 = vmatprep.subr.bf16.mxu0 0
      %2168 = vmatpush1.bf16.msra.mxu0 0
      %2169 = vmatprep.subr.bf16.mxu0 0
      %2170 = vmatpush1.bf16.msra.mxu0 0
      %2171 = vmatprep.subr.bf16.mxu0 0
      %2172 = vmatpush1.bf16.msra.mxu0 0
      %2173 = vmatprep.subr.bf16.mxu0 0
      %2174 = vmatpush1.bf16.msra.mxu0 0
      %2175 = vmatprep.subr.bf16.mxu0 0
      %2176 = vmatpush1.bf16.msra.mxu0 0
      %2177 = vmatprep.subr.bf16.mxu0 0
      %2178 = vmatpush1.bf16.msra.mxu0 0
      %2179 = vmatprep.subr.bf16.mxu0 0
      %2180 = vmatpush1.bf16.msra.mxu0 0
      %2181 = vmatprep.mubr.bf16.mxu0 0
      %2182 = vmatmul.mubr.bf16.gmra.mrb[0].mxu0 %v2141
      %v2183 = vpop.f32.mrb[0].mxu0
      %v2184 = vadd.f32 0.0, %v2183
      %v2185 = vpop.f32.mrb[0].mxu0
      %v2186 = vpop.f32.mrb[0].mxu0
      %v2187 = vadd.f32 0.0, %v2186
      %v2188 = vpop.f32.mrb[0].mxu0
      %2189 = vmatprep.mubr.bf16.mxu0 0
      %2190 = vmatmul.mubr.bf16.gmra.mrb[0].mxu0 %v2144
      %v2191 = vpop.f32.mrb[0].mxu0
      %v2192 = vadd.f32 0.0, %v2191
      %v2193 = vpop.f32.mrb[0].mxu0
      %v2194 = vpop.f32.mrb[0].mxu0
      %v2195 = vpop.f32.mrb[0].mxu0
      %2196 = vdwg.mxu0
      %2197 = vrot.lane.b32.xlu0 %v1171, 64
      %v2198 = vpop.permute.xlu0 %2197
      %2199 = vrot.lane.b32.xlu0 %v1172, 64
      %v2200 = vpop.permute.xlu0 %2199
      %2201 = vrot.lane.b32.xlu0 %v1177, 64
      %v2202 = vpop.permute.xlu0 %2201
      %2203 = vrot.lane.b32.xlu0 %v1178, 64
      %v2204 = vpop.permute.xlu0 %2203
      %v2206 = vsel %vm1189, %v2198, 0
      %v2209 = vsel %vm1189, %v2200, 0
      %v2212 = vsel %vm1189, %v2202, 0
      %v2215 = vsel %vm1189, %v2204, 0
      %2217 = vmatprep.subr.bf16.mxu0 0
      %2218 = vmatpush1.bf16.xpose.msra.mxu0 %v2212
      %2219 = vmatprep.subr.bf16.mxu0 0
      %2220 = vmatpush1.bf16.xpose.msra.mxu0 %v2215
      %2221 = vmatprep.subr.bf16.mxu0 0
      %2222 = vmatpush1.bf16.xpose.msra.mxu0 0
      %2223 = vmatprep.subr.bf16.mxu0 0
      %2224 = vmatpush1.bf16.xpose.msra.mxu0 0
      %2225 = vmatprep.subr.bf16.mxu0 0
      %2226 = vmatpush1.bf16.xpose.msra.mxu0 0
      %2227 = vmatprep.subr.bf16.mxu0 0
      %2228 = vmatpush1.bf16.xpose.msra.mxu0 0
      %2229 = vmatprep.subr.bf16.mxu0 0
      %2230 = vmatpush1.bf16.xpose.msra.mxu0 0
      %2231 = vmatprep.subr.bf16.mxu0 0
      %2232 = vmatpush1.bf16.xpose.msra.mxu0 0
      %2233 = vmatprep.subr.bf16.mxu0 0
      %2234 = vmatpush1.bf16.xpose.msra.mxu0 0
      %2235 = vmatprep.subr.bf16.mxu0 0
      %2236 = vmatpush1.bf16.xpose.msra.mxu0 0
      %2237 = vmatprep.subr.bf16.mxu0 0
      %2238 = vmatpush1.bf16.xpose.msra.mxu0 0
      %2239 = vmatprep.subr.bf16.mxu0 0
      %2240 = vmatpush1.bf16.xpose.msra.mxu0 0
      %2241 = vmatprep.subr.bf16.mxu0 0
      %2242 = vmatpush1.bf16.xpose.msra.mxu0 0
      %2243 = vmatprep.subr.bf16.mxu0 0
      %2244 = vmatpush1.bf16.xpose.msra.mxu0 0
      %2245 = vmatprep.subr.bf16.mxu0 0
      %2246 = vmatpush1.bf16.xpose.msra.mxu0 0
      %2247 = vmatprep.subr.bf16.mxu0 0
      %2248 = vmatpush1.bf16.xpose.msra.mxu0 0
      %2249 = vmatprep.mubr.bf16.mxu0 0
      %2250 = vmatmul.mubr.bf16.gmra.mrb[0].mxu0 %v2206
      %v2251 = vpop.f32.mrb[0].mxu0
      %v2252 = vadd.f32 0.0, %v2251
      %v2253 = vpop.f32.mrb[0].mxu0
      %v2254 = vpop.f32.mrb[0].mxu0
      %v2255 = vadd.f32 0.0, %v2254
      %v2256 = vpop.f32.mrb[0].mxu0
      %2257 = vmatprep.mubr.bf16.mxu0 0
      %2258 = vmatmul.mubr.bf16.gmra.mrb[0].mxu0 %v2209
      %v2259 = vpop.f32.mrb[0].mxu0
      %v2260 = vadd.f32 0.0, %v2259
      %v2261 = vpop.f32.mrb[0].mxu0
      %v2262 = vpop.f32.mrb[0].mxu0
      %v2263 = vpop.f32.mrb[0].mxu0
      %2264 = vdwg.mxu0
      %2265 = vrot.lane.b32.xlu0 %v1173, 64
      %v2266 = vpop.permute.xlu0 %2265
      %2267 = vrot.lane.b32.xlu0 %v1174, 64
      %v2268 = vpop.permute.xlu0 %2267
      %2269 = vrot.lane.b32.xlu0 %v1179, 64
      %v2270 = vpop.permute.xlu0 %2269
      %2271 = vrot.lane.b32.xlu0 %v1180, 64
      %v2272 = vpop.permute.xlu0 %2271
      %v2274 = vsel %vm1189, %v2266, 0
      %v2277 = vsel %vm1189, %v2268, 0
      %v2280 = vsel %vm1189, %v2270, 0
      %v2283 = vsel %vm1189, %v2272, 0
      %2285 = vmatprep.subr.bf16.mxu0 0
      %2286 = vmatpush1.bf16.xpose.msra.mxu0 %v2280
      %2287 = vmatprep.subr.bf16.mxu0 0
      %2288 = vmatpush1.bf16.xpose.msra.mxu0 %v2283
      %2289 = vmatprep.subr.bf16.mxu0 0
      %2290 = vmatpush1.bf16.xpose.msra.mxu0 0
      %2291 = vmatprep.subr.bf16.mxu0 0
      %2292 = vmatpush1.bf16.xpose.msra.mxu0 0
      %2293 = vmatprep.subr.bf16.mxu0 0
      %2294 = vmatpush1.bf16.xpose.msra.mxu0 0
      %2295 = vmatprep.subr.bf16.mxu0 0
      %2296 = vmatpush1.bf16.xpose.msra.mxu0 0
      %2297 = vmatprep.subr.bf16.mxu0 0
      %2298 = vmatpush1.bf16.xpose.msra.mxu0 0
      %2299 = vmatprep.subr.bf16.mxu0 0
      %2300 = vmatpush1.bf16.xpose.msra.mxu0 0
      %2301 = vmatprep.subr.bf16.mxu0 0
      %2302 = vmatpush1.bf16.xpose.msra.mxu0 0
      %2303 = vmatprep.subr.bf16.mxu0 0
      %2304 = vmatpush1.bf16.xpose.msra.mxu0 0
      %2305 = vmatprep.subr.bf16.mxu0 0
      %2306 = vmatpush1.bf16.xpose.msra.mxu0 0
      %2307 = vmatprep.subr.bf16.mxu0 0
      %2308 = vmatpush1.bf16.xpose.msra.mxu0 0
      %2309 = vmatprep.subr.bf16.mxu0 0
      %2310 = vmatpush1.bf16.xpose.msra.mxu0 0
      %2311 = vmatprep.subr.bf16.mxu0 0
      %2312 = vmatpush1.bf16.xpose.msra.mxu0 0
      %2313 = vmatprep.subr.bf16.mxu0 0
      %2314 = vmatpush1.bf16.xpose.msra.mxu0 0
      %2315 = vmatprep.subr.bf16.mxu0 0
      %2316 = vmatpush1.bf16.xpose.msra.mxu0 0
      %2317 = vmatprep.mubr.bf16.mxu0 0
      %2318 = vmatmul.mubr.bf16.gmra.mrb[0].mxu0 %v2274
      %v2319 = vpop.f32.mrb[0].mxu0
      %v2320 = vadd.f32 0.0, %v2319
      %v2321 = vpop.f32.mrb[0].mxu0
      %v2322 = vpop.f32.mrb[0].mxu0
      %v2323 = vadd.f32 0.0, %v2322
      %v2324 = vpop.f32.mrb[0].mxu0
      %2325 = vmatprep.mubr.bf16.mxu0 0
      %2326 = vmatmul.mubr.bf16.gmra.mrb[0].mxu0 %v2277
      %v2327 = vpop.f32.mrb[0].mxu0
      %v2328 = vadd.f32 0.0, %v2327
      %v2329 = vpop.f32.mrb[0].mxu0
      %v2330 = vpop.f32.mrb[0].mxu0
      %v2331 = vpop.f32.mrb[0].mxu0
      %2332 = vdwg.mxu0
      %2333 = vrot.lane.b32.xlu0 %v1175, 64
      %v2334 = vpop.permute.xlu0 %2333
      %2335 = vrot.lane.b32.xlu0 %v1176, 64
      %v2336 = vpop.permute.xlu0 %2335
      %2337 = vrot.lane.b32.xlu0 %v1181, 64
      %v2338 = vpop.permute.xlu0 %2337
      %2339 = vrot.lane.b32.xlu0 %v1182, 64
      %v2340 = vpop.permute.xlu0 %2339
      %v2342 = vsel %vm1189, %v2334, 0
      %v2345 = vsel %vm1189, %v2336, 0
      %v2348 = vsel %vm1189, %v2338, 0
      %v2351 = vsel %vm1189, %v2340, 0
      %2353 = vmatprep.subr.bf16.mxu0 0
      %2354 = vmatpush1.bf16.xpose.msra.mxu0 %v2348
      %2355 = vmatprep.subr.bf16.mxu0 0
      %2356 = vmatpush1.bf16.xpose.msra.mxu0 %v2351
      %2357 = vmatprep.subr.bf16.mxu0 0
      %2358 = vmatpush1.bf16.xpose.msra.mxu0 0
      %2359 = vmatprep.subr.bf16.mxu0 0
      %2360 = vmatpush1.bf16.xpose.msra.mxu0 0
      %2361 = vmatprep.subr.bf16.mxu0 0
      %2362 = vmatpush1.bf16.xpose.msra.mxu0 0
      %2363 = vmatprep.subr.bf16.mxu0 0
      %2364 = vmatpush1.bf16.xpose.msra.mxu0 0
      %2365 = vmatprep.subr.bf16.mxu0 0
      %2366 = vmatpush1.bf16.xpose.msra.mxu0 0
      %2367 = vmatprep.subr.bf16.mxu0 0
      %2368 = vmatpush1.bf16.xpose.msra.mxu0 0
      %2369 = vmatprep.subr.bf16.mxu0 0
      %2370 = vmatpush1.bf16.xpose.msra.mxu0 0
      %2371 = vmatprep.subr.bf16.mxu0 0
      %2372 = vmatpush1.bf16.xpose.msra.mxu0 0
      %2373 = vmatprep.subr.bf16.mxu0 0
      %2374 = vmatpush1.bf16.xpose.msra.mxu0 0
      %2375 = vmatprep.subr.bf16.mxu0 0
      %2376 = vmatpush1.bf16.xpose.msra.mxu0 0
      %2377 = vmatprep.subr.bf16.mxu0 0
      %2378 = vmatpush1.bf16.xpose.msra.mxu0 0
      %2379 = vmatprep.subr.bf16.mxu0 0
      %2380 = vmatpush1.bf16.xpose.msra.mxu0 0
      %2381 = vmatprep.subr.bf16.mxu0 0
      %2382 = vmatpush1.bf16.xpose.msra.mxu0 0
      %2383 = vmatprep.subr.bf16.mxu0 0
      %2384 = vmatpush1.bf16.xpose.msra.mxu0 0
      %2385 = vmatprep.mubr.bf16.mxu0 0
      %2386 = vmatmul.mubr.bf16.gmra.mrb[0].mxu0 %v2342
      %v2387 = vpop.f32.mrb[0].mxu0
      %v2388 = vadd.f32 0.0, %v2387
      %v2389 = vpop.f32.mrb[0].mxu0
      %v2390 = vpop.f32.mrb[0].mxu0
      %v2391 = vadd.f32 0.0, %v2390
      %v2392 = vpop.f32.mrb[0].mxu0
      %2393 = vmatprep.mubr.bf16.mxu0 0
      %2394 = vmatmul.mubr.bf16.gmra.mrb[0].mxu0 %v2345
      %v2395 = vpop.f32.mrb[0].mxu0
      %v2396 = vadd.f32 0.0, %v2395
      %v2397 = vpop.f32.mrb[0].mxu0
      %v2398 = vpop.f32.mrb[0].mxu0
      %v2399 = vpop.f32.mrb[0].mxu0
      %2400 = vdwg.mxu0
      %v2401 = vmul.f32 %v2252, 0.17677669
      %v2402 = vmul.f32 %v2255, 0.17677669
      %v2403 = vmul.f32 %v2260, 0.17677669
      %v2404 = vmul.f32 %v2320, 0.17677669
      %v2405 = vmul.f32 %v2323, 0.17677669
      %v2406 = vmul.f32 %v2328, 0.17677669
      %v2407 = vmul.f32 %v2388, 0.17677669
      %v2408 = vmul.f32 %v2391, 0.17677669
      %v2409 = vmul.f32 %v2396, 0.17677669
      %v2410 = vadd.f32 %v2401, %v729
      %v2411 = vadd.f32 %v2402, %v729
      %v2412 = vadd.f32 %v2403, %v729
      %v2413 = vadd.f32 %v2404, %v729
      %v2414 = vadd.f32 %v2405, %v729
      %v2415 = vadd.f32 %v2406, %v729
      %v2416 = vadd.f32 %v2407, %v729
      %v2417 = vadd.f32 %v2408, %v729
      %v2418 = vadd.f32 %v2409, %v729
      %v2419 = vsel %vm1388, %v2410, -inf
      %2420 = vmax.xlane.f32.xlu0 %v2419
      %v2421 = vpop.xlane.xlu0 %2420
      %v2422 = vsel %vm1388, %v2411, -inf
      %2423 = vmax.xlane.f32.xlu0 %v2422
      %v2424 = vpop.xlane.xlu0 %2423
      %v2425 = vsel %vm1388, %v2412, -inf
      %2426 = vmax.xlane.f32.xlu0 %v2425
      %v2427 = vpop.xlane.xlu0 %2426
      %v2428 = vsel %vm1388, %v2413, -inf
      %2429 = vmax.xlane.f32.xlu0 %v2428
      %v2430 = vpop.xlane.xlu0 %2429
      %v2431 = vsel %vm1388, %v2414, -inf
      %2432 = vmax.xlane.f32.xlu0 %v2431
      %v2433 = vpop.xlane.xlu0 %2432
      %v2434 = vsel %vm1388, %v2415, -inf
      %2435 = vmax.xlane.f32.xlu0 %v2434
      %v2436 = vpop.xlane.xlu0 %2435
      %v2437 = vsel %vm1388, %v2416, -inf
      %2438 = vmax.xlane.f32.xlu0 %v2437
      %v2439 = vpop.xlane.xlu0 %2438
      %v2440 = vsel %vm1388, %v2417, -inf
      %2441 = vmax.xlane.f32.xlu0 %v2440
      %v2442 = vpop.xlane.xlu0 %2441
      %v2443 = vsel %vm1388, %v2418, -inf
      %2444 = vmax.xlane.f32.xlu0 %v2443
      %v2445 = vpop.xlane.xlu0 %2444
      %v2446 = vsub.f32 %v2410, %v2421
      %v2447 = vsub.f32 %v2411, %v2424
      %v2448 = vsub.f32 %v2412, %v2427
      %v2449 = vsub.f32 %v2413, %v2430
      %v2450 = vsub.f32 %v2414, %v2433
      %v2451 = vsub.f32 %v2415, %v2436
      %v2452 = vsub.f32 %v2416, %v2439
      %v2453 = vsub.f32 %v2417, %v2442
      %v2454 = vsub.f32 %v2418, %v2445
      %v2455 = vmul.f32 %v2446, 1.442695
      %v2456 = vpow.pop %v2455
      %v2457 = vmul.f32 %v2447, 1.442695
      %v2458 = vpow.pop %v2457
      %v2459 = vmul.f32 %v2448, 1.442695
      %v2460 = vpow.pop %v2459
      %v2461 = vmul.f32 %v2449, 1.442695
      %v2462 = vpow.pop %v2461
      %v2463 = vmul.f32 %v2450, 1.442695
      %v2464 = vpow.pop %v2463
      %v2465 = vmul.f32 %v2451, 1.442695
      %v2466 = vpow.pop %v2465
      %v2467 = vmul.f32 %v2452, 1.442695
      %v2468 = vpow.pop %v2467
      %v2469 = vmul.f32 %v2453, 1.442695
      %v2470 = vpow.pop %v2469
      %v2471 = vmul.f32 %v2454, 1.442695
      %v2472 = vpow.pop %v2471
      %v2473 = vsel %vm1388, %v2456, 0.0
      %2474 = vadd.xlane.f32.xlu0 %v2473
      %v2475 = vpop.xlane.xlu0 %2474
      %v2476 = vsel %vm1388, %v2458, 0.0
      %2477 = vadd.xlane.f32.xlu0 %v2476
      %v2478 = vpop.xlane.xlu0 %2477
      %v2479 = vsel %vm1388, %v2460, 0.0
      %2480 = vadd.xlane.f32.xlu0 %v2479
      %v2481 = vpop.xlane.xlu0 %2480
      %v2482 = vsel %vm1388, %v2462, 0.0
      %2483 = vadd.xlane.f32.xlu0 %v2482
      %v2484 = vpop.xlane.xlu0 %2483
      %v2485 = vsel %vm1388, %v2464, 0.0
      %2486 = vadd.xlane.f32.xlu0 %v2485
      %v2487 = vpop.xlane.xlu0 %2486
      %v2488 = vsel %vm1388, %v2466, 0.0
      %2489 = vadd.xlane.f32.xlu0 %v2488
      %v2490 = vpop.xlane.xlu0 %2489
      %v2491 = vsel %vm1388, %v2468, 0.0
      %2492 = vadd.xlane.f32.xlu0 %v2491
      %v2493 = vpop.xlane.xlu0 %2492
      %v2494 = vsel %vm1388, %v2470, 0.0
      %2495 = vadd.xlane.f32.xlu0 %v2494
      %v2496 = vpop.xlane.xlu0 %2495
      %v2497 = vsel %vm1388, %v2472, 0.0
      %2498 = vadd.xlane.f32.xlu0 %v2497
      %v2499 = vpop.xlane.xlu0 %2498
      %v2500 = vrcp.pop %v2475
      %v2501 = vrcp.pop %v2478
      %v2502 = vrcp.pop %v2481
      %v2503 = vrcp.pop %v2484
      %v2504 = vrcp.pop %v2487
      %v2505 = vrcp.pop %v2490
      %v2506 = vrcp.pop %v2493
      %v2507 = vrcp.pop %v2496
      %v2508 = vrcp.pop %v2499
      %v2509 = vmul.f32 %v2456, %v2500
      %v2510 = vmul.f32 %v2458, %v2501
      %v2511 = vmul.f32 %v2460, %v2502
      %v2512 = vmul.f32 %v2462, %v2503
      %v2513 = vmul.f32 %v2464, %v2504
      %v2514 = vmul.f32 %v2466, %v2505
      %v2515 = vmul.f32 %v2468, %v2506
      %v2516 = vmul.f32 %v2470, %v2507
      %v2517 = vmul.f32 %v2472, %v2508
      %v2518 = vpack.c.bf16 %v2510, %v2509
      %v2519 = vpack.c.bf16 %v2511, %v2511
      %v2520 = vpack.c.bf16 %v2513, %v2512
      %v2521 = vpack.c.bf16 %v2514, %v2514
      %v2522 = vpack.c.bf16 %v2516, %v2515
      %v2523 = vpack.c.bf16 %v2517, %v2517
      %2524 = vrot.lane.b32.xlu0 %v1183, 64
      %v2525 = vpop.permute.xlu0 %2524
      %2526 = vrot.lane.b32.xlu0 %v1184, 64
      %v2527 = vpop.permute.xlu0 %2526
      %v2530 = vsel %vm1388, %v2518, 0
      %v2533 = vsel %vm1388, %v2519, 0
      %v2536 = vsel %vm1500, %v2527, 0
      %2538 = vmatprep.subr.bf16.mxu0 0
      %2539 = vmatpush1.bf16.msra.mxu0 %v2525
      %2540 = vmatprep.subr.bf16.mxu0 0
      %2541 = vmatpush1.bf16.msra.mxu0 %v2536
      %2542 = vmatprep.subr.bf16.mxu0 0
      %2543 = vmatpush1.bf16.msra.mxu0 0
      %2544 = vmatprep.subr.bf16.mxu0 0
      %2545 = vmatpush1.bf16.msra.mxu0 0
      %2546 = vmatprep.subr.bf16.mxu0 0
      %2547 = vmatpush1.bf16.msra.mxu0 0
      %2548 = vmatprep.subr.bf16.mxu0 0
      %2549 = vmatpush1.bf16.msra.mxu0 0
      %2550 = vmatprep.subr.bf16.mxu0 0
      %2551 = vmatpush1.bf16.msra.mxu0 0
      %2552 = vmatprep.subr.bf16.mxu0 0
      %2553 = vmatpush1.bf16.msra.mxu0 0
      %2554 = vmatprep.subr.bf16.mxu0 0
      %2555 = vmatpush1.bf16.msra.mxu0 0
      %2556 = vmatprep.subr.bf16.mxu0 0
      %2557 = vmatpush1.bf16.msra.mxu0 0
      %2558 = vmatprep.subr.bf16.mxu0 0
      %2559 = vmatpush1.bf16.msra.mxu0 0
      %2560 = vmatprep.subr.bf16.mxu0 0
      %2561 = vmatpush1.bf16.msra.mxu0 0
      %2562 = vmatprep.subr.bf16.mxu0 0
      %2563 = vmatpush1.bf16.msra.mxu0 0
      %2564 = vmatprep.subr.bf16.mxu0 0
      %2565 = vmatpush1.bf16.msra.mxu0 0
      %2566 = vmatprep.subr.bf16.mxu0 0
      %2567 = vmatpush1.bf16.msra.mxu0 0
      %2568 = vmatprep.subr.bf16.mxu0 0
      %2569 = vmatpush1.bf16.msra.mxu0 0
      %2570 = vmatprep.mubr.bf16.mxu0 0
      %2571 = vmatmul.mubr.bf16.gmra.mrb[0].mxu0 %v2530
      %v2572 = vpop.f32.mrb[0].mxu0
      %v2573 = vadd.f32 0.0, %v2572
      %v2574 = vpop.f32.mrb[0].mxu0
      %v2575 = vpop.f32.mrb[0].mxu0
      %v2576 = vadd.f32 0.0, %v2575
      %v2577 = vpop.f32.mrb[0].mxu0
      %2578 = vmatprep.mubr.bf16.mxu0 0
      %2579 = vmatmul.mubr.bf16.gmra.mrb[0].mxu0 %v2533
      %v2580 = vpop.f32.mrb[0].mxu0
      %v2581 = vadd.f32 0.0, %v2580
      %v2582 = vpop.f32.mrb[0].mxu0
      %v2583 = vpop.f32.mrb[0].mxu0
      %v2584 = vpop.f32.mrb[0].mxu0
      %2585 = vdwg.mxu0
      %2586 = vrot.lane.b32.xlu0 %v1185, 64
      %v2587 = vpop.permute.xlu0 %2586
      %2588 = vrot.lane.b32.xlu0 %v1186, 64
      %v2589 = vpop.permute.xlu0 %2588
      %v2592 = vsel %vm1388, %v2520, 0
      %v2595 = vsel %vm1388, %v2521, 0
      %v2598 = vsel %vm1500, %v2589, 0
      %2600 = vmatprep.subr.bf16.mxu0 0
      %2601 = vmatpush1.bf16.msra.mxu0 %v2587
      %2602 = vmatprep.subr.bf16.mxu0 0
      %2603 = vmatpush1.bf16.msra.mxu0 %v2598
      %2604 = vmatprep.subr.bf16.mxu0 0
      %2605 = vmatpush1.bf16.msra.mxu0 0
      %2606 = vmatprep.subr.bf16.mxu0 0
      %2607 = vmatpush1.bf16.msra.mxu0 0
      %2608 = vmatprep.subr.bf16.mxu0 0
      %2609 = vmatpush1.bf16.msra.mxu0 0
      %2610 = vmatprep.subr.bf16.mxu0 0
      %2611 = vmatpush1.bf16.msra.mxu0 0
      %2612 = vmatprep.subr.bf16.mxu0 0
      %2613 = vmatpush1.bf16.msra.mxu0 0
      %2614 = vmatprep.subr.bf16.mxu0 0
      %2615 = vmatpush1.bf16.msra.mxu0 0
      %2616 = vmatprep.subr.bf16.mxu0 0
      %2617 = vmatpush1.bf16.msra.mxu0 0
      %2618 = vmatprep.subr.bf16.mxu0 0
      %2619 = vmatpush1.bf16.msra.mxu0 0
      %2620 = vmatprep.subr.bf16.mxu0 0
      %2621 = vmatpush1.bf16.msra.mxu0 0
      %2622 = vmatprep.subr.bf16.mxu0 0
      %2623 = vmatpush1.bf16.msra.mxu0 0
      %2624 = vmatprep.subr.bf16.mxu0 0
      %2625 = vmatpush1.bf16.msra.mxu0 0
      %2626 = vmatprep.subr.bf16.mxu0 0
      %2627 = vmatpush1.bf16.msra.mxu0 0
      %2628 = vmatprep.subr.bf16.mxu0 0
      %2629 = vmatpush1.bf16.msra.mxu0 0
      %2630 = vmatprep.subr.bf16.mxu0 0
      %2631 = vmatpush1.bf16.msra.mxu0 0
      %2632 = vmatprep.mubr.bf16.mxu0 0
      %2633 = vmatmul.mubr.bf16.gmra.mrb[0].mxu0 %v2592
      %v2634 = vpop.f32.mrb[0].mxu0
      %v2635 = vadd.f32 0.0, %v2634
      %v2636 = vpop.f32.mrb[0].mxu0
      %v2637 = vpop.f32.mrb[0].mxu0
      %v2638 = vadd.f32 0.0, %v2637
      %v2639 = vpop.f32.mrb[0].mxu0
      %2640 = vmatprep.mubr.bf16.mxu0 0
      %2641 = vmatmul.mubr.bf16.gmra.mrb[0].mxu0 %v2595
      %v2642 = vpop.f32.mrb[0].mxu0
      %v2643 = vadd.f32 0.0, %v2642
      %v2644 = vpop.f32.mrb[0].mxu0
      %v2645 = vpop.f32.mrb[0].mxu0
      %v2646 = vpop.f32.mrb[0].mxu0
      %2647 = vdwg.mxu0
      %2648 = vrot.lane.b32.xlu0 %v1187, 64
      %v2649 = vpop.permute.xlu0 %2648
      %2650 = vrot.lane.b32.xlu0 %v1188, 64
      %v2651 = vpop.permute.xlu0 %2650
      %v2654 = vsel %vm1388, %v2522, 0
      %v2657 = vsel %vm1388, %v2523, 0
      %v2660 = vsel %vm1500, %v2651, 0
      %2662 = vmatprep.subr.bf16.mxu0 0
      %2663 = vmatpush1.bf16.msra.mxu0 %v2649
      %2664 = vmatprep.subr.bf16.mxu0 0
      %2665 = vmatpush1.bf16.msra.mxu0 %v2660
      %2666 = vmatprep.subr.bf16.mxu0 0
      %2667 = vmatpush1.bf16.msra.mxu0 0
      %2668 = vmatprep.subr.bf16.mxu0 0
      %2669 = vmatpush1.bf16.msra.mxu0 0
      %2670 = vmatprep.subr.bf16.mxu0 0
      %2671 = vmatpush1.bf16.msra.mxu0 0
      %2672 = vmatprep.subr.bf16.mxu0 0
      %2673 = vmatpush1.bf16.msra.mxu0 0
      %2674 = vmatprep.subr.bf16.mxu0 0
      %2675 = vmatpush1.bf16.msra.mxu0 0
      %2676 = vmatprep.subr.bf16.mxu0 0
      %2677 = vmatpush1.bf16.msra.mxu0 0
      %2678 = vmatprep.subr.bf16.mxu0 0
      %2679 = vmatpush1.bf16.msra.mxu0 0
      %2680 = vmatprep.subr.bf16.mxu0 0
      %2681 = vmatpush1.bf16.msra.mxu0 0
      %2682 = vmatprep.subr.bf16.mxu0 0
      %2683 = vmatpush1.bf16.msra.mxu0 0
      %2684 = vmatprep.subr.bf16.mxu0 0
      %2685 = vmatpush1.bf16.msra.mxu0 0
      %2686 = vmatprep.subr.bf16.mxu0 0
      %2687 = vmatpush1.bf16.msra.mxu0 0
      %2688 = vmatprep.subr.bf16.mxu0 0
      %2689 = vmatpush1.bf16.msra.mxu0 0
      %2690 = vmatprep.subr.bf16.mxu0 0
      %2691 = vmatpush1.bf16.msra.mxu0 0
      %2692 = vmatprep.subr.bf16.mxu0 0
      %2693 = vmatpush1.bf16.msra.mxu0 0
      %2694 = vmatprep.mubr.bf16.mxu0 0
      %2695 = vmatmul.mubr.bf16.gmra.mrb[0].mxu0 %v2654
      %v2696 = vpop.f32.mrb[0].mxu0
      %v2697 = vadd.f32 0.0, %v2696
      %v2698 = vpop.f32.mrb[0].mxu0
      %v2699 = vpop.f32.mrb[0].mxu0
      %v2700 = vadd.f32 0.0, %v2699
      %v2701 = vpop.f32.mrb[0].mxu0
      %2702 = vmatprep.mubr.bf16.mxu0 0
      %2703 = vmatmul.mubr.bf16.gmra.mrb[0].mxu0 %v2657
      %v2704 = vpop.f32.mrb[0].mxu0
      %v2705 = vadd.f32 0.0, %v2704
      %v2706 = vpop.f32.mrb[0].mxu0
      %v2707 = vpop.f32.mrb[0].mxu0
      %v2708 = vpop.f32.mrb[0].mxu0
      %2709 = vdwg.mxu0
      %2710 = vrot.lane.b32.xlu0 %v1171, 32
      %v2711 = vpop.permute.xlu0 %2710
      %2712 = vrot.lane.b32.xlu0 %v1172, 32
      %v2713 = vpop.permute.xlu0 %2712
      %2714 = vrot.lane.b32.xlu0 %v1177, 32
      %v2715 = vpop.permute.xlu0 %2714
      %2716 = vrot.lane.b32.xlu0 %v1178, 32
      %v2717 = vpop.permute.xlu0 %2716
      %v2719 = vsel %vm1189, %v2711, 0
      %v2722 = vsel %vm1189, %v2713, 0
      %v2725 = vsel %vm1189, %v2715, 0
      %v2728 = vsel %vm1189, %v2717, 0
      %2730 = vmatprep.subr.bf16.mxu0 0
      %2731 = vmatpush1.bf16.xpose.msra.mxu0 %v2725
      %2732 = vmatprep.subr.bf16.mxu0 0
      %2733 = vmatpush1.bf16.xpose.msra.mxu0 %v2728
      %2734 = vmatprep.subr.bf16.mxu0 0
      %2735 = vmatpush1.bf16.xpose.msra.mxu0 0
      %2736 = vmatprep.subr.bf16.mxu0 0
      %2737 = vmatpush1.bf16.xpose.msra.mxu0 0
      %2738 = vmatprep.subr.bf16.mxu0 0
      %2739 = vmatpush1.bf16.xpose.msra.mxu0 0
      %2740 = vmatprep.subr.bf16.mxu0 0
      %2741 = vmatpush1.bf16.xpose.msra.mxu0 0
      %2742 = vmatprep.subr.bf16.mxu0 0
      %2743 = vmatpush1.bf16.xpose.msra.mxu0 0
      %2744 = vmatprep.subr.bf16.mxu0 0
      %2745 = vmatpush1.bf16.xpose.msra.mxu0 0
      %2746 = vmatprep.subr.bf16.mxu0 0
      %2747 = vmatpush1.bf16.xpose.msra.mxu0 0
      %2748 = vmatprep.subr.bf16.mxu0 0
      %2749 = vmatpush1.bf16.xpose.msra.mxu0 0
      %2750 = vmatprep.subr.bf16.mxu0 0
      %2751 = vmatpush1.bf16.xpose.msra.mxu0 0
      %2752 = vmatprep.subr.bf16.mxu0 0
      %2753 = vmatpush1.bf16.xpose.msra.mxu0 0
      %2754 = vmatprep.subr.bf16.mxu0 0
      %2755 = vmatpush1.bf16.xpose.msra.mxu0 0
      %2756 = vmatprep.subr.bf16.mxu0 0
      %2757 = vmatpush1.bf16.xpose.msra.mxu0 0
      %2758 = vmatprep.subr.bf16.mxu0 0
      %2759 = vmatpush1.bf16.xpose.msra.mxu0 0
      %2760 = vmatprep.subr.bf16.mxu0 0
      %2761 = vmatpush1.bf16.xpose.msra.mxu0 0
      %2762 = vmatprep.mubr.bf16.mxu0 0
      %2763 = vmatmul.mubr.bf16.gmra.mrb[0].mxu0 %v2719
      %v2764 = vpop.f32.mrb[0].mxu0
      %v2765 = vadd.f32 0.0, %v2764
      %v2766 = vpop.f32.mrb[0].mxu0
      %v2767 = vpop.f32.mrb[0].mxu0
      %v2768 = vadd.f32 0.0, %v2767
      %v2769 = vpop.f32.mrb[0].mxu0
      %2770 = vmatprep.mubr.bf16.mxu0 0
      %2771 = vmatmul.mubr.bf16.gmra.mrb[0].mxu0 %v2722
      %v2772 = vpop.f32.mrb[0].mxu0
      %v2773 = vadd.f32 0.0, %v2772
      %v2774 = vpop.f32.mrb[0].mxu0
      %v2775 = vpop.f32.mrb[0].mxu0
      %v2776 = vpop.f32.mrb[0].mxu0
      %2777 = vdwg.mxu0
      %2778 = vrot.lane.b32.xlu0 %v1173, 32
      %v2779 = vpop.permute.xlu0 %2778
      %2780 = vrot.lane.b32.xlu0 %v1174, 32
      %v2781 = vpop.permute.xlu0 %2780
      %2782 = vrot.lane.b32.xlu0 %v1179, 32
      %v2783 = vpop.permute.xlu0 %2782
      %2784 = vrot.lane.b32.xlu0 %v1180, 32
      %v2785 = vpop.permute.xlu0 %2784
      %v2787 = vsel %vm1189, %v2779, 0
      %v2790 = vsel %vm1189, %v2781, 0
      %v2793 = vsel %vm1189, %v2783, 0
      %v2796 = vsel %vm1189, %v2785, 0
      %2798 = vmatprep.subr.bf16.mxu0 0
      %2799 = vmatpush1.bf16.xpose.msra.mxu0 %v2793
      %2800 = vmatprep.subr.bf16.mxu0 0
      %2801 = vmatpush1.bf16.xpose.msra.mxu0 %v2796
      %2802 = vmatprep.subr.bf16.mxu0 0
      %2803 = vmatpush1.bf16.xpose.msra.mxu0 0
      %2804 = vmatprep.subr.bf16.mxu0 0
      %2805 = vmatpush1.bf16.xpose.msra.mxu0 0
      %2806 = vmatprep.subr.bf16.mxu0 0
      %2807 = vmatpush1.bf16.xpose.msra.mxu0 0
      %2808 = vmatprep.subr.bf16.mxu0 0
      %2809 = vmatpush1.bf16.xpose.msra.mxu0 0
      %2810 = vmatprep.subr.bf16.mxu0 0
      %2811 = vmatpush1.bf16.xpose.msra.mxu0 0
      %2812 = vmatprep.subr.bf16.mxu0 0
      %2813 = vmatpush1.bf16.xpose.msra.mxu0 0
      %2814 = vmatprep.subr.bf16.mxu0 0
      %2815 = vmatpush1.bf16.xpose.msra.mxu0 0
      %2816 = vmatprep.subr.bf16.mxu0 0
      %2817 = vmatpush1.bf16.xpose.msra.mxu0 0
      %2818 = vmatprep.subr.bf16.mxu0 0
      %2819 = vmatpush1.bf16.xpose.msra.mxu0 0
      %2820 = vmatprep.subr.bf16.mxu0 0
      %2821 = vmatpush1.bf16.xpose.msra.mxu0 0
      %2822 = vmatprep.subr.bf16.mxu0 0
      %2823 = vmatpush1.bf16.xpose.msra.mxu0 0
      %2824 = vmatprep.subr.bf16.mxu0 0
      %2825 = vmatpush1.bf16.xpose.msra.mxu0 0
      %2826 = vmatprep.subr.bf16.mxu0 0
      %2827 = vmatpush1.bf16.xpose.msra.mxu0 0
      %2828 = vmatprep.subr.bf16.mxu0 0
      %2829 = vmatpush1.bf16.xpose.msra.mxu0 0
      %2830 = vmatprep.mubr.bf16.mxu0 0
      %2831 = vmatmul.mubr.bf16.gmra.mrb[0].mxu0 %v2787
      %v2832 = vpop.f32.mrb[0].mxu0
      %v2833 = vadd.f32 0.0, %v2832
      %v2834 = vpop.f32.mrb[0].mxu0
      %v2835 = vpop.f32.mrb[0].mxu0
      %v2836 = vadd.f32 0.0, %v2835
      %v2837 = vpop.f32.mrb[0].mxu0
      %2838 = vmatprep.mubr.bf16.mxu0 0
      %2839 = vmatmul.mubr.bf16.gmra.mrb[0].mxu0 %v2790
      %v2840 = vpop.f32.mrb[0].mxu0
      %v2841 = vadd.f32 0.0, %v2840
      %v2842 = vpop.f32.mrb[0].mxu0
      %v2843 = vpop.f32.mrb[0].mxu0
      %v2844 = vpop.f32.mrb[0].mxu0
      %2845 = vdwg.mxu0
      %2846 = vrot.lane.b32.xlu0 %v1175, 32
      %v2847 = vpop.permute.xlu0 %2846
      %2848 = vrot.lane.b32.xlu0 %v1176, 32
      %v2849 = vpop.permute.xlu0 %2848
      %2850 = vrot.lane.b32.xlu0 %v1181, 32
      %v2851 = vpop.permute.xlu0 %2850
      %2852 = vrot.lane.b32.xlu0 %v1182, 32
      %v2853 = vpop.permute.xlu0 %2852
      %v2855 = vsel %vm1189, %v2847, 0
      %v2858 = vsel %vm1189, %v2849, 0
      %v2861 = vsel %vm1189, %v2851, 0
      %v2864 = vsel %vm1189, %v2853, 0
      %2866 = vmatprep.subr.bf16.mxu0 0
      %2867 = vmatpush1.bf16.xpose.msra.mxu0 %v2861
      %2868 = vmatprep.subr.bf16.mxu0 0
      %2869 = vmatpush1.bf16.xpose.msra.mxu0 %v2864
      %2870 = vmatprep.subr.bf16.mxu0 0
      %2871 = vmatpush1.bf16.xpose.msra.mxu0 0
      %2872 = vmatprep.subr.bf16.mxu0 0
      %2873 = vmatpush1.bf16.xpose.msra.mxu0 0
      %2874 = vmatprep.subr.bf16.mxu0 0
      %2875 = vmatpush1.bf16.xpose.msra.mxu0 0
      %2876 = vmatprep.subr.bf16.mxu0 0
      %2877 = vmatpush1.bf16.xpose.msra.mxu0 0
      %2878 = vmatprep.subr.bf16.mxu0 0
      %2879 = vmatpush1.bf16.xpose.msra.mxu0 0
      %2880 = vmatprep.subr.bf16.mxu0 0
      %2881 = vmatpush1.bf16.xpose.msra.mxu0 0
      %2882 = vmatprep.subr.bf16.mxu0 0
      %2883 = vmatpush1.bf16.xpose.msra.mxu0 0
      %2884 = vmatprep.subr.bf16.mxu0 0
      %2885 = vmatpush1.bf16.xpose.msra.mxu0 0
      %2886 = vmatprep.subr.bf16.mxu0 0
      %2887 = vmatpush1.bf16.xpose.msra.mxu0 0
      %2888 = vmatprep.subr.bf16.mxu0 0
      %2889 = vmatpush1.bf16.xpose.msra.mxu0 0
      %2890 = vmatprep.subr.bf16.mxu0 0
      %2891 = vmatpush1.bf16.xpose.msra.mxu0 0
      %2892 = vmatprep.subr.bf16.mxu0 0
      %2893 = vmatpush1.bf16.xpose.msra.mxu0 0
      %2894 = vmatprep.subr.bf16.mxu0 0
      %2895 = vmatpush1.bf16.xpose.msra.mxu0 0
      %2896 = vmatprep.subr.bf16.mxu0 0
      %2897 = vmatpush1.bf16.xpose.msra.mxu0 0
      %2898 = vmatprep.mubr.bf16.mxu0 0
      %2899 = vmatmul.mubr.bf16.gmra.mrb[0].mxu0 %v2855
      %v2900 = vpop.f32.mrb[0].mxu0
      %v2901 = vadd.f32 0.0, %v2900
      %v2902 = vpop.f32.mrb[0].mxu0
      %v2903 = vpop.f32.mrb[0].mxu0
      %v2904 = vadd.f32 0.0, %v2903
      %v2905 = vpop.f32.mrb[0].mxu0
      %2906 = vmatprep.mubr.bf16.mxu0 0
      %2907 = vmatmul.mubr.bf16.gmra.mrb[0].mxu0 %v2858
      %v2908 = vpop.f32.mrb[0].mxu0
      %v2909 = vadd.f32 0.0, %v2908
      %v2910 = vpop.f32.mrb[0].mxu0
      %v2911 = vpop.f32.mrb[0].mxu0
      %v2912 = vpop.f32.mrb[0].mxu0
      %2913 = vdwg.mxu0
      %v2914 = vmul.f32 %v2765, 0.17677669
      %v2915 = vmul.f32 %v2768, 0.17677669
      %v2916 = vmul.f32 %v2773, 0.17677669
      %v2917 = vmul.f32 %v2833, 0.17677669
      %v2918 = vmul.f32 %v2836, 0.17677669
      %v2919 = vmul.f32 %v2841, 0.17677669
      %v2920 = vmul.f32 %v2901, 0.17677669
      %v2921 = vmul.f32 %v2904, 0.17677669
      %v2922 = vmul.f32 %v2909, 0.17677669
      %v2923 = vadd.f32 %v2914, %v729
      %v2924 = vadd.f32 %v2915, %v729
      %v2925 = vadd.f32 %v2916, %v729
      %v2926 = vadd.f32 %v2917, %v729
      %v2927 = vadd.f32 %v2918, %v729
      %v2928 = vadd.f32 %v2919, %v729
      %v2929 = vadd.f32 %v2920, %v729
      %v2930 = vadd.f32 %v2921, %v729
      %v2931 = vadd.f32 %v2922, %v729
      %v2932 = vsel %vm1388, %v2923, -inf
      %2933 = vmax.xlane.f32.xlu0 %v2932
      %v2934 = vpop.xlane.xlu0 %2933
      %v2935 = vsel %vm1388, %v2924, -inf
      %2936 = vmax.xlane.f32.xlu0 %v2935
      %v2937 = vpop.xlane.xlu0 %2936
      %v2938 = vsel %vm1388, %v2925, -inf
      %2939 = vmax.xlane.f32.xlu0 %v2938
      %v2940 = vpop.xlane.xlu0 %2939
      %v2941 = vsel %vm1388, %v2926, -inf
      %2942 = vmax.xlane.f32.xlu0 %v2941
      %v2943 = vpop.xlane.xlu0 %2942
      %v2944 = vsel %vm1388, %v2927, -inf
      %2945 = vmax.xlane.f32.xlu0 %v2944
      %v2946 = vpop.xlane.xlu0 %2945
      %v2947 = vsel %vm1388, %v2928, -inf
      %2948 = vmax.xlane.f32.xlu0 %v2947
      %v2949 = vpop.xlane.xlu0 %2948
      %v2950 = vsel %vm1388, %v2929, -inf
      %2951 = vmax.xlane.f32.xlu0 %v2950
      %v2952 = vpop.xlane.xlu0 %2951
      %v2953 = vsel %vm1388, %v2930, -inf
      %2954 = vmax.xlane.f32.xlu0 %v2953
      %v2955 = vpop.xlane.xlu0 %2954
      %v2956 = vsel %vm1388, %v2931, -inf
      %2957 = vmax.xlane.f32.xlu0 %v2956
      %v2958 = vpop.xlane.xlu0 %2957
      %v2959 = vsub.f32 %v2923, %v2934
      %v2960 = vsub.f32 %v2924, %v2937
      %v2961 = vsub.f32 %v2925, %v2940
      %v2962 = vsub.f32 %v2926, %v2943
      %v2963 = vsub.f32 %v2927, %v2946
      %v2964 = vsub.f32 %v2928, %v2949
      %v2965 = vsub.f32 %v2929, %v2952
      %v2966 = vsub.f32 %v2930, %v2955
      %v2967 = vsub.f32 %v2931, %v2958
      %v2968 = vmul.f32 %v2959, 1.442695
      %v2969 = vpow.pop %v2968
      %v2970 = vmul.f32 %v2960, 1.442695
      %v2971 = vpow.pop %v2970
      %v2972 = vmul.f32 %v2961, 1.442695
      %v2973 = vpow.pop %v2972
      %v2974 = vmul.f32 %v2962, 1.442695
      %v2975 = vpow.pop %v2974
      %v2976 = vmul.f32 %v2963, 1.442695
      %v2977 = vpow.pop %v2976
      %v2978 = vmul.f32 %v2964, 1.442695
      %v2979 = vpow.pop %v2978
      %v2980 = vmul.f32 %v2965, 1.442695
      %v2981 = vpow.pop %v2980
      %v2982 = vmul.f32 %v2966, 1.442695
      %v2983 = vpow.pop %v2982
      %v2984 = vmul.f32 %v2967, 1.442695
      %v2985 = vpow.pop %v2984
      %v2986 = vsel %vm1388, %v2969, 0.0
      %2987 = vadd.xlane.f32.xlu0 %v2986
      %v2988 = vpop.xlane.xlu0 %2987
      %v2989 = vsel %vm1388, %v2971, 0.0
      %2990 = vadd.xlane.f32.xlu0 %v2989
      %v2991 = vpop.xlane.xlu0 %2990
      %v2992 = vsel %vm1388, %v2973, 0.0
      %2993 = vadd.xlane.f32.xlu0 %v2992
      %v2994 = vpop.xlane.xlu0 %2993
      %v2995 = vsel %vm1388, %v2975, 0.0
      %2996 = vadd.xlane.f32.xlu0 %v2995
      %v2997 = vpop.xlane.xlu0 %2996
      %v2998 = vsel %vm1388, %v2977, 0.0
      %2999 = vadd.xlane.f32.xlu0 %v2998
      %v3000 = vpop.xlane.xlu0 %2999
      %v3001 = vsel %vm1388, %v2979, 0.0
      %3002 = vadd.xlane.f32.xlu0 %v3001
      %v3003 = vpop.xlane.xlu0 %3002
      %v3004 = vsel %vm1388, %v2981, 0.0
      %3005 = vadd.xlane.f32.xlu0 %v3004
      %v3006 = vpop.xlane.xlu0 %3005
      %v3007 = vsel %vm1388, %v2983, 0.0
      %3008 = vadd.xlane.f32.xlu0 %v3007
      %v3009 = vpop.xlane.xlu0 %3008
      %v3010 = vsel %vm1388, %v2985, 0.0
      %3011 = vadd.xlane.f32.xlu0 %v3010
      %v3012 = vpop.xlane.xlu0 %3011
      %v3013 = vrcp.pop %v2988
      %v3014 = vrcp.pop %v2991
      %v3015 = vrcp.pop %v2994
      %v3016 = vrcp.pop %v2997
      %v3017 = vrcp.pop %v3000
      %v3018 = vrcp.pop %v3003
      %v3019 = vrcp.pop %v3006
      %v3020 = vrcp.pop %v3009
      %v3021 = vrcp.pop %v3012
      %v3022 = vmul.f32 %v2969, %v3013
      %v3023 = vmul.f32 %v2971, %v3014
      %v3024 = vmul.f32 %v2973, %v3015
      %v3025 = vmul.f32 %v2975, %v3016
      %v3026 = vmul.f32 %v2977, %v3017
      %v3027 = vmul.f32 %v2979, %v3018
      %v3028 = vmul.f32 %v2981, %v3019
      %v3029 = vmul.f32 %v2983, %v3020
      %v3030 = vmul.f32 %v2985, %v3021
      %v3031 = vpack.c.bf16 %v3023, %v3022
      %v3032 = vpack.c.bf16 %v3024, %v3024
      %v3033 = vpack.c.bf16 %v3026, %v3025
      %v3034 = vpack.c.bf16 %v3027, %v3027
      %v3035 = vpack.c.bf16 %v3029, %v3028
      %v3036 = vpack.c.bf16 %v3030, %v3030
      %3037 = vrot.lane.b32.xlu0 %v1183, 32
      %v3038 = vpop.permute.xlu0 %3037
      %3039 = vrot.lane.b32.xlu0 %v1184, 32
      %v3040 = vpop.permute.xlu0 %3039
      %v3043 = vsel %vm1388, %v3031, 0
      %v3046 = vsel %vm1388, %v3032, 0
      %v3049 = vsel %vm1500, %v3040, 0
      %3051 = vmatprep.subr.bf16.mxu0 0
      %3052 = vmatpush1.bf16.msra.mxu0 %v3038
      %3053 = vmatprep.subr.bf16.mxu0 0
      %3054 = vmatpush1.bf16.msra.mxu0 %v3049
      %3055 = vmatprep.subr.bf16.mxu0 0
      %3056 = vmatpush1.bf16.msra.mxu0 0
      %3057 = vmatprep.subr.bf16.mxu0 0
      %3058 = vmatpush1.bf16.msra.mxu0 0
      %3059 = vmatprep.subr.bf16.mxu0 0
      %3060 = vmatpush1.bf16.msra.mxu0 0
      %3061 = vmatprep.subr.bf16.mxu0 0
      %3062 = vmatpush1.bf16.msra.mxu0 0
      %3063 = vmatprep.subr.bf16.mxu0 0
      %3064 = vmatpush1.bf16.msra.mxu0 0
      %3065 = vmatprep.subr.bf16.mxu0 0
      %3066 = vmatpush1.bf16.msra.mxu0 0
      %3067 = vmatprep.subr.bf16.mxu0 0
      %3068 = vmatpush1.bf16.msra.mxu0 0
      %3069 = vmatprep.subr.bf16.mxu0 0
      %3070 = vmatpush1.bf16.msra.mxu0 0
      %3071 = vmatprep.subr.bf16.mxu0 0
      %3072 = vmatpush1.bf16.msra.mxu0 0
      %3073 = vmatprep.subr.bf16.mxu0 0
      %3074 = vmatpush1.bf16.msra.mxu0 0
      %3075 = vmatprep.subr.bf16.mxu0 0
      %3076 = vmatpush1.bf16.msra.mxu0 0
      %3077 = vmatprep.subr.bf16.mxu0 0
      %3078 = vmatpush1.bf16.msra.mxu0 0
      %3079 = vmatprep.subr.bf16.mxu0 0
      %3080 = vmatpush1.bf16.msra.mxu0 0
      %3081 = vmatprep.subr.bf16.mxu0 0
      %3082 = vmatpush1.bf16.msra.mxu0 0
      %3083 = vmatprep.mubr.bf16.mxu0 0
      %3084 = vmatmul.mubr.bf16.gmra.mrb[0].mxu0 %v3043
      %v3085 = vpop.f32.mrb[0].mxu0
      %v3086 = vadd.f32 0.0, %v3085
      %v3087 = vpop.f32.mrb[0].mxu0
      %v3088 = vpop.f32.mrb[0].mxu0
      %v3089 = vadd.f32 0.0, %v3088
      %v3090 = vpop.f32.mrb[0].mxu0
      %3091 = vmatprep.mubr.bf16.mxu0 0
      %3092 = vmatmul.mubr.bf16.gmra.mrb[0].mxu0 %v3046
      %v3093 = vpop.f32.mrb[0].mxu0
      %v3094 = vadd.f32 0.0, %v3093
      %v3095 = vpop.f32.mrb[0].mxu0
      %v3096 = vpop.f32.mrb[0].mxu0
      %v3097 = vpop.f32.mrb[0].mxu0
      %3098 = vdwg.mxu0
      %3099 = vrot.lane.b32.xlu0 %v1185, 32
      %v3100 = vpop.permute.xlu0 %3099
      %3101 = vrot.lane.b32.xlu0 %v1186, 32
      %v3102 = vpop.permute.xlu0 %3101
      %v3105 = vsel %vm1388, %v3033, 0
      %v3108 = vsel %vm1388, %v3034, 0
      %v3111 = vsel %vm1500, %v3102, 0
      %3113 = vmatprep.subr.bf16.mxu0 0
      %3114 = vmatpush1.bf16.msra.mxu0 %v3100
      %3115 = vmatprep.subr.bf16.mxu0 0
      %3116 = vmatpush1.bf16.msra.mxu0 %v3111
      %3117 = vmatprep.subr.bf16.mxu0 0
      %3118 = vmatpush1.bf16.msra.mxu0 0
      %3119 = vmatprep.subr.bf16.mxu0 0
      %3120 = vmatpush1.bf16.msra.mxu0 0
      %3121 = vmatprep.subr.bf16.mxu0 0
      %3122 = vmatpush1.bf16.msra.mxu0 0
      %3123 = vmatprep.subr.bf16.mxu0 0
      %3124 = vmatpush1.bf16.msra.mxu0 0
      %3125 = vmatprep.subr.bf16.mxu0 0
      %3126 = vmatpush1.bf16.msra.mxu0 0
      %3127 = vmatprep.subr.bf16.mxu0 0
      %3128 = vmatpush1.bf16.msra.mxu0 0
      %3129 = vmatprep.subr.bf16.mxu0 0
      %3130 = vmatpush1.bf16.msra.mxu0 0
      %3131 = vmatprep.subr.bf16.mxu0 0
      %3132 = vmatpush1.bf16.msra.mxu0 0
      %3133 = vmatprep.subr.bf16.mxu0 0
      %3134 = vmatpush1.bf16.msra.mxu0 0
      %3135 = vmatprep.subr.bf16.mxu0 0
      %3136 = vmatpush1.bf16.msra.mxu0 0
      %3137 = vmatprep.subr.bf16.mxu0 0
      %3138 = vmatpush1.bf16.msra.mxu0 0
      %3139 = vmatprep.subr.bf16.mxu0 0
      %3140 = vmatpush1.bf16.msra.mxu0 0
      %3141 = vmatprep.subr.bf16.mxu0 0
      %3142 = vmatpush1.bf16.msra.mxu0 0
      %3143 = vmatprep.subr.bf16.mxu0 0
      %3144 = vmatpush1.bf16.msra.mxu0 0
      %3145 = vmatprep.mubr.bf16.mxu0 0
      %3146 = vmatmul.mubr.bf16.gmra.mrb[0].mxu0 %v3105
      %v3147 = vpop.f32.mrb[0].mxu0
      %v3148 = vadd.f32 0.0, %v3147
      %v3149 = vpop.f32.mrb[0].mxu0
      %v3150 = vpop.f32.mrb[0].mxu0
      %v3151 = vadd.f32 0.0, %v3150
      %v3152 = vpop.f32.mrb[0].mxu0
      %3153 = vmatprep.mubr.bf16.mxu0 0
      %3154 = vmatmul.mubr.bf16.gmra.mrb[0].mxu0 %v3108
      %v3155 = vpop.f32.mrb[0].mxu0
      %v3156 = vadd.f32 0.0, %v3155
      %v3157 = vpop.f32.mrb[0].mxu0
      %v3158 = vpop.f32.mrb[0].mxu0
      %v3159 = vpop.f32.mrb[0].mxu0
      %3160 = vdwg.mxu0
      %3161 = vrot.lane.b32.xlu0 %v1187, 32
      %v3162 = vpop.permute.xlu0 %3161
      %3163 = vrot.lane.b32.xlu0 %v1188, 32
      %v3164 = vpop.permute.xlu0 %3163
      %v3167 = vsel %vm1388, %v3035, 0
      %v3170 = vsel %vm1388, %v3036, 0
      %v3173 = vsel %vm1500, %v3164, 0
      %3175 = vmatprep.subr.bf16.mxu0 0
      %3176 = vmatpush1.bf16.msra.mxu0 %v3162
      %3177 = vmatprep.subr.bf16.mxu0 0
      %3178 = vmatpush1.bf16.msra.mxu0 %v3173
      %3179 = vmatprep.subr.bf16.mxu0 0
      %3180 = vmatpush1.bf16.msra.mxu0 0
      %3181 = vmatprep.subr.bf16.mxu0 0
      %3182 = vmatpush1.bf16.msra.mxu0 0
      %3183 = vmatprep.subr.bf16.mxu0 0
      %3184 = vmatpush1.bf16.msra.mxu0 0
      %3185 = vmatprep.subr.bf16.mxu0 0
      %3186 = vmatpush1.bf16.msra.mxu0 0
      %3187 = vmatprep.subr.bf16.mxu0 0
      %3188 = vmatpush1.bf16.msra.mxu0 0
      %3189 = vmatprep.subr.bf16.mxu0 0
      %3190 = vmatpush1.bf16.msra.mxu0 0
      %3191 = vmatprep.subr.bf16.mxu0 0
      %3192 = vmatpush1.bf16.msra.mxu0 0
      %3193 = vmatprep.subr.bf16.mxu0 0
      %3194 = vmatpush1.bf16.msra.mxu0 0
      %3195 = vmatprep.subr.bf16.mxu0 0
      %3196 = vmatpush1.bf16.msra.mxu0 0
      %3197 = vmatprep.subr.bf16.mxu0 0
      %3198 = vmatpush1.bf16.msra.mxu0 0
      %3199 = vmatprep.subr.bf16.mxu0 0
      %3200 = vmatpush1.bf16.msra.mxu0 0
      %3201 = vmatprep.subr.bf16.mxu0 0
      %3202 = vmatpush1.bf16.msra.mxu0 0
      %3203 = vmatprep.subr.bf16.mxu0 0
      %3204 = vmatpush1.bf16.msra.mxu0 0
      %3205 = vmatprep.subr.bf16.mxu0 0
      %3206 = vmatpush1.bf16.msra.mxu0 0
      %3207 = vmatprep.mubr.bf16.mxu0 0
      %3208 = vmatmul.mubr.bf16.gmra.mrb[0].mxu0 %v3167
      %v3209 = vpop.f32.mrb[0].mxu0
      %v3210 = vadd.f32 0.0, %v3209
      %v3211 = vpop.f32.mrb[0].mxu0
      %v3212 = vpop.f32.mrb[0].mxu0
      %v3213 = vadd.f32 0.0, %v3212
      %v3214 = vpop.f32.mrb[0].mxu0
      %3215 = vmatprep.mubr.bf16.mxu0 0
      %3216 = vmatmul.mubr.bf16.gmra.mrb[0].mxu0 %v3170
      %v3217 = vpop.f32.mrb[0].mxu0
      %v3218 = vadd.f32 0.0, %v3217
      %v3219 = vpop.f32.mrb[0].mxu0
      %v3220 = vpop.f32.mrb[0].mxu0
      %v3221 = vpop.f32.mrb[0].mxu0
      %3222 = vdwg.mxu0
      %3232 = vrot.lane.b32.xlu0 %v2056, 32
      %v3233 = vpop.permute.xlu0 %3232
      %3234 = vrot.lane.b32.xlu0 %v2059, 32
      %v3235 = vpop.permute.xlu0 %3234
      %3236 = vrot.lane.b32.xlu0 %v2064, 32
      %v3237 = vpop.permute.xlu0 %3236
      %3238 = vrot.lane.b32.xlu0 %v2120, 32
      %v3239 = vpop.permute.xlu0 %3238
      %3240 = vrot.lane.b32.xlu0 %v2123, 32
      %v3241 = vpop.permute.xlu0 %3240
      %3242 = vrot.lane.b32.xlu0 %v2128, 32
      %v3243 = vpop.permute.xlu0 %3242
      %3244 = vrot.lane.b32.xlu0 %v2184, 32
      %v3245 = vpop.permute.xlu0 %3244
      %3246 = vrot.lane.b32.xlu0 %v2187, 32
      %v3247 = vpop.permute.xlu0 %3246
      %3248 = vrot.lane.b32.xlu0 %v2192, 32
      %v3249 = vpop.permute.xlu0 %3248
      %3268 = vrot.lane.b32.xlu0 %v2573, 64
      %v3269 = vpop.permute.xlu0 %3268
      %3270 = vrot.lane.b32.xlu0 %v2576, 64
      %v3271 = vpop.permute.xlu0 %3270
      %3272 = vrot.lane.b32.xlu0 %v2581, 64
      %v3273 = vpop.permute.xlu0 %3272
      %3274 = vrot.lane.b32.xlu0 %v2635, 64
      %v3275 = vpop.permute.xlu0 %3274
      %3276 = vrot.lane.b32.xlu0 %v2638, 64
      %v3277 = vpop.permute.xlu0 %3276
      %3278 = vrot.lane.b32.xlu0 %v2643, 64
      %v3279 = vpop.permute.xlu0 %3278
      %3280 = vrot.lane.b32.xlu0 %v2697, 64
      %v3281 = vpop.permute.xlu0 %3280
      %3282 = vrot.lane.b32.xlu0 %v2700, 64
      %v3283 = vpop.permute.xlu0 %3282
      %3284 = vrot.lane.b32.xlu0 %v2705, 64
      %v3285 = vpop.permute.xlu0 %3284
      %3304 = vrot.lane.b32.xlu0 %v3086, 96
      %v3305 = vpop.permute.xlu0 %3304
      %3306 = vrot.lane.b32.xlu0 %v3089, 96
      %v3307 = vpop.permute.xlu0 %3306
      %3308 = vrot.lane.b32.xlu0 %v3094, 96
      %v3309 = vpop.permute.xlu0 %3308
      %3310 = vrot.lane.b32.xlu0 %v3148, 96
      %v3311 = vpop.permute.xlu0 %3310
      %3312 = vrot.lane.b32.xlu0 %v3151, 96
      %v3313 = vpop.permute.xlu0 %3312
      %3314 = vrot.lane.b32.xlu0 %v3156, 96
      %v3315 = vpop.permute.xlu0 %3314
      %3316 = vrot.lane.b32.xlu0 %v3210, 96
      %v3317 = vpop.permute.xlu0 %3316
      %3318 = vrot.lane.b32.xlu0 %v3213, 96
      %v3319 = vpop.permute.xlu0 %3318
      %3320 = vrot.lane.b32.xlu0 %v3218, 96
      %v3321 = vpop.permute.xlu0 %3320
      %v3331 = vsel %vm1189, %v1539, %v3233
      %v3332 = vsel %vm1189, %v1542, %v3235
      %v3333 = vsel %vm1189, %v1547, %v3237
      %v3334 = vsel %vm1189, %v1596, %v3239
      %v3335 = vsel %vm1189, %v1599, %v3241
      %v3336 = vsel %vm1189, %v1604, %v3243
      %v3337 = vsel %vm1189, %v1653, %v3245
      %v3338 = vsel %vm1189, %v1656, %v3247
      %v3339 = vsel %vm1189, %v1661, %v3249
      %vm3340 = vcmask 523264
      %v3341 = vsel %vm3340, %v3331, %v3269
      %v3342 = vsel %vm3340, %v3332, %v3271
      %v3343 = vsel %vm3340, %v3333, %v3273
      %v3344 = vsel %vm3340, %v3334, %v3275
      %v3345 = vsel %vm3340, %v3335, %v3277
      %v3346 = vsel %vm3340, %v3336, %v3279
      %v3347 = vsel %vm3340, %v3337, %v3281
      %v3348 = vsel %vm3340, %v3338, %v3283
      %v3349 = vsel %vm3340, %v3339, %v3285
      %vm3350 = vcmask 785408
      %v3351 = vsel %vm3350, %v3341, %v3305
      %v3352 = vsel %vm3350, %v3342, %v3307
      %v3353 = vsel %vm3350, %v3343, %v3309
      %v3354 = vsel %vm3350, %v3344, %v3311
      %v3355 = vsel %vm3350, %v3345, %v3313
      %v3356 = vsel %vm3350, %v3346, %v3315
      %v3357 = vsel %vm3350, %v3347, %v3317
      %v3358 = vsel %vm3350, %v3348, %v3319
      %v3359 = vsel %vm3350, %v3349, %v3321
      %v3360 = vpack.c.bf16 %v3352, %v3351
      %v3361 = vpack.c.bf16 %v3354, %v3353
      %v3362 = vpack.c.bf16 %v3356, %v3355
      %v3363 = vpack.c.bf16 %v3358, %v3357
      %v3364 = vpack.c.bf16 %v3359, %v3359
      %v3365 = vld [vmem:[%s7] sm:$0xf]
      %v3366 = vld [vmem:[%s7 + $0x4] sm:$0xf]
      %v3367 = vld [vmem:[%s7 + $0x8] sm:$0xf]
      %v3368 = vld [vmem:[%s7 + $0xc] sm:$0xf]
      %v3369 = vld [vmem:[%s7 + $0x10] sm:$0xf]
      %v3370 = vld [vmem:[%s7 + $0x14] sm:$0xf]
      %v3371 = vld [vmem:[%s7 + $0x18] sm:$0xf]
      %v3372 = vld [vmem:[%s7 + $0x1c] sm:$0xf]
      %v3373 = vld [vmem:[%s7 + $0x20] sm:$0xf]
      %v3374 = vld [vmem:[%s7 + $0x24] sm:$0xf]
      %v3375 = vld [vmem:[%s7 + $0x28] sm:$0xf]
      %v3376 = vld [vmem:[%s7 + $0x2c] sm:$0xf]
      %v3377 = vld [vmem:[%s7 + $0x30] sm:$0xf]
      %v3378 = vld [vmem:[%s7 + $0x34] sm:$0xf]
      %v3379 = vld [vmem:[%s7 + $0x38] sm:$0xf]
      %v3380 = vld [vmem:[%s7 + $0x3c] sm:$0xf]
      %v3381 = vld [vmem:[%s8] sm:$0x1]
      %v3383 = vlaneseq
      %v3384 = vshrl.u32 %v3383, 7
      %v3385 = vsub.s32 0, %v3384
      %v3386 = vrot.slane %v3381, %v3385
      %v3404 = vunpack.c.l.b16 %v3365
      %v3405 = vunpack.c.l.b16 %v3366
      %v3406 = vunpack.c.l.b16 %v3367
      %v3407 = vunpack.c.l.b16 %v3368
      %v3408 = vunpack.c.l.b16 %v3369
      %v3409 = vunpack.c.l.b16 %v3370
      %v3410 = vunpack.c.l.b16 %v3371
      %v3411 = vunpack.c.l.b16 %v3372
      %v3412 = vunpack.c.l.b16 %v3373
      %v3413 = vunpack.c.l.b16 %v3374
      %v3414 = vunpack.c.l.b16 %v3375
      %v3415 = vunpack.c.l.b16 %v3376
      %v3416 = vunpack.c.l.b16 %v3377
      %v3417 = vunpack.c.l.b16 %v3378
      %v3418 = vunpack.c.l.b16 %v3379
      %v3419 = vunpack.c.l.b16 %v3380
      %v3420 = vpack.c.b16 %v3405, %v3404
      %v3421 = vpack.c.b16 %v3407, %v3406
      %v3422 = vpack.c.b16 %v3409, %v3408
      %v3423 = vpack.c.b16 %v3411, %v3410
      %v3424 = vpack.c.b16 %v3413, %v3412
      %v3425 = vpack.c.b16 %v3415, %v3414
      %v3426 = vpack.c.b16 %v3417, %v3416
      %v3427 = vpack.c.b16 %v3419, %v3418
      %3436 = vmatprep.subr.bf16.mxu0 0
      %3437 = vmatpush1.bf16.msra.mxu0 %v3420
      %3438 = vmatprep.subr.bf16.mxu0 0
      %3439 = vmatpush1.bf16.msra.mxu0 %v3421
      %3440 = vmatprep.subr.bf16.mxu0 0
      %3441 = vmatpush1.bf16.msra.mxu0 %v3422
      %3442 = vmatprep.subr.bf16.mxu0 0
      %3443 = vmatpush1.bf16.msra.mxu0 %v3423
      %3444 = vmatprep.subr.bf16.mxu0 0
      %3445 = vmatpush1.bf16.msra.mxu0 %v3424
      %3446 = vmatprep.subr.bf16.mxu0 0
      %3447 = vmatpush1.bf16.msra.mxu0 %v3425
      %3448 = vmatprep.subr.bf16.mxu0 0
      %3449 = vmatpush1.bf16.msra.mxu0 %v3426
      %3450 = vmatprep.subr.bf16.mxu0 0
      %3451 = vmatpush1.bf16.msra.mxu0 %v3427
      %3452 = vmatprep.subr.bf16.mxu0 0
      %3453 = vmatpush1.bf16.msra.mxu0 0
      %3454 = vmatprep.subr.bf16.mxu0 0
      %3455 = vmatpush1.bf16.msra.mxu0 0
      %3456 = vmatprep.subr.bf16.mxu0 0
      %3457 = vmatpush1.bf16.msra.mxu0 0
      %3458 = vmatprep.subr.bf16.mxu0 0
      %3459 = vmatpush1.bf16.msra.mxu0 0
      %3460 = vmatprep.subr.bf16.mxu0 0
      %3461 = vmatpush1.bf16.msra.mxu0 0
      %3462 = vmatprep.subr.bf16.mxu0 0
      %3463 = vmatpush1.bf16.msra.mxu0 0
      %3464 = vmatprep.subr.bf16.mxu0 0
      %3465 = vmatpush1.bf16.msra.mxu0 0
      %3466 = vmatprep.subr.bf16.mxu0 0
      %3467 = vmatpush1.bf16.msra.mxu0 0
      %3468 = vmatprep.mubr.bf16.mxu0 0
      %3469 = vmatmul.mubr.bf16.gmra.mrb[0].mxu0 %v3360
      %v3470 = vpop.f32.mrb[0].mxu0
      %v3471 = vadd.f32 %v3386, %v3470
      %v3472 = vpop.f32.mrb[0].mxu0
      %v3473 = vpop.f32.mrb[0].mxu0
      %v3474 = vadd.f32 %v3386, %v3473
      %v3475 = vpop.f32.mrb[0].mxu0
      %3476 = vmatprep.mubr.bf16.mxu0 0
      %3477 = vmatmul.mubr.bf16.gmra.mrb[0].mxu0 %v3361
      %v3478 = vpop.f32.mrb[0].mxu0
      %v3479 = vadd.f32 %v3386, %v3478
      %v3480 = vpop.f32.mrb[0].mxu0
      %v3481 = vpop.f32.mrb[0].mxu0
      %v3482 = vadd.f32 %v3386, %v3481
      %v3483 = vpop.f32.mrb[0].mxu0
      %3484 = vmatprep.mubr.bf16.mxu0 0
      %3485 = vmatmul.mubr.bf16.gmra.mrb[0].mxu0 %v3362
      %v3486 = vpop.f32.mrb[0].mxu0
      %v3487 = vadd.f32 %v3386, %v3486
      %v3488 = vpop.f32.mrb[0].mxu0
      %v3489 = vpop.f32.mrb[0].mxu0
      %v3490 = vadd.f32 %v3386, %v3489
      %v3491 = vpop.f32.mrb[0].mxu0
      %3492 = vmatprep.mubr.bf16.mxu0 0
      %3493 = vmatmul.mubr.bf16.gmra.mrb[0].mxu0 %v3363
      %v3494 = vpop.f32.mrb[0].mxu0
      %v3495 = vadd.f32 %v3386, %v3494
      %v3496 = vpop.f32.mrb[0].mxu0
      %v3497 = vpop.f32.mrb[0].mxu0
      %v3498 = vadd.f32 %v3386, %v3497
      %v3499 = vpop.f32.mrb[0].mxu0
      %3500 = vmatprep.mubr.bf16.mxu0 0
      %3501 = vmatmul.mubr.bf16.gmra.mrb[0].mxu0 %v3364
      %v3502 = vpop.f32.mrb[0].mxu0
      %v3503 = vadd.f32 %v3386, %v3502
      %v3504 = vpop.f32.mrb[0].mxu0
      %v3505 = vpop.f32.mrb[0].mxu0
      %v3506 = vpop.f32.mrb[0].mxu0
      %3507 = vdwg.mxu0
      %v3508 = vadd.f32 %v719, %v3471
      %v3509 = vadd.f32 %v720, %v3474
      %v3510 = vadd.f32 %v721, %v3479
      %v3511 = vadd.f32 %v722, %v3482
      %v3512 = vadd.f32 %v723, %v3487
      %v3513 = vadd.f32 %v721, %v3490
      %v3514 = vadd.f32 %v724, %v3495
      %v3515 = vadd.f32 %v725, %v3498
      %v3516 = vadd.f32 %v721, %v3503
      %v3517 = vld [vmem:[%s9] sm:$0x1]
      %v3518 = vld [vmem:[%s10] sm:$0x1]
      %3519 = vadd.xlane.f32.xlu0 %v3508
      %v3520 = vpop.xlane.xlu0 %3519
      %3521 = vadd.xlane.f32.xlu0 %v3509
      %v3522 = vpop.xlane.xlu0 %3521
      %3523 = vadd.xlane.f32.xlu0 %v3510
      %v3524 = vpop.xlane.xlu0 %3523
      %3525 = vadd.xlane.f32.xlu0 %v3511
      %v3526 = vpop.xlane.xlu0 %3525
      %3527 = vadd.xlane.f32.xlu0 %v3512
      %v3528 = vpop.xlane.xlu0 %3527
      %3529 = vadd.xlane.f32.xlu0 %v3513
      %v3530 = vpop.xlane.xlu0 %3529
      %3531 = vadd.xlane.f32.xlu0 %v3514
      %v3532 = vpop.xlane.xlu0 %3531
      %3533 = vadd.xlane.f32.xlu0 %v3515
      %v3534 = vpop.xlane.xlu0 %3533
      %3535 = vadd.xlane.f32.xlu0 %v3516
      %v3536 = vpop.xlane.xlu0 %3535
      %v3537 = vmul.f32 %v3520, %v746
      %v3538 = vmul.f32 %v3522, %v746
      %v3539 = vmul.f32 %v3524, %v746
      %v3540 = vmul.f32 %v3526, %v746
      %v3541 = vmul.f32 %v3528, %v746
      %v3542 = vmul.f32 %v3530, %v746
      %v3543 = vmul.f32 %v3532, %v746
      %v3544 = vmul.f32 %v3534, %v746
      %v3545 = vmul.f32 %v3536, %v746
      %v3546 = vsub.f32 %v3508, %v3537
      %v3547 = vsub.f32 %v3509, %v3538
      %v3548 = vsub.f32 %v3510, %v3539
      %v3549 = vsub.f32 %v3511, %v3540
      %v3550 = vsub.f32 %v3512, %v3541
      %v3551 = vsub.f32 %v3513, %v3542
      %v3552 = vsub.f32 %v3514, %v3543
      %v3553 = vsub.f32 %v3515, %v3544
      %v3554 = vsub.f32 %v3516, %v3545
      %v3555 = vmul.f32 %v3546, %v3546
      %v3556 = vmul.f32 %v3547, %v3547
      %v3557 = vmul.f32 %v3548, %v3548
      %v3558 = vmul.f32 %v3549, %v3549
      %v3559 = vmul.f32 %v3550, %v3550
      %v3560 = vmul.f32 %v3551, %v3551
      %v3561 = vmul.f32 %v3552, %v3552
      %v3562 = vmul.f32 %v3553, %v3553
      %v3563 = vmul.f32 %v3554, %v3554
      %3564 = vadd.xlane.f32.xlu0 %v3555
      %v3565 = vpop.xlane.xlu0 %3564
      %3566 = vadd.xlane.f32.xlu0 %v3556
      %v3567 = vpop.xlane.xlu0 %3566
      %3568 = vadd.xlane.f32.xlu0 %v3557
      %v3569 = vpop.xlane.xlu0 %3568
      %3570 = vadd.xlane.f32.xlu0 %v3558
      %v3571 = vpop.xlane.xlu0 %3570
      %3572 = vadd.xlane.f32.xlu0 %v3559
      %v3573 = vpop.xlane.xlu0 %3572
      %3574 = vadd.xlane.f32.xlu0 %v3560
      %v3575 = vpop.xlane.xlu0 %3574
      %3576 = vadd.xlane.f32.xlu0 %v3561
      %v3577 = vpop.xlane.xlu0 %3576
      %3578 = vadd.xlane.f32.xlu0 %v3562
      %v3579 = vpop.xlane.xlu0 %3578
      %3580 = vadd.xlane.f32.xlu0 %v3563
      %v3581 = vpop.xlane.xlu0 %3580
      %v3582 = vmul.f32 %v3565, %v746
      %v3583 = vmul.f32 %v3567, %v746
      %v3584 = vmul.f32 %v3569, %v746
      %v3585 = vmul.f32 %v3571, %v746
      %v3586 = vmul.f32 %v3573, %v746
      %v3587 = vmul.f32 %v3575, %v746
      %v3588 = vmul.f32 %v3577, %v746
      %v3589 = vmul.f32 %v3579, %v746
      %v3590 = vmul.f32 %v3581, %v746
      %v3591 = vadd.f32 %v3582, 1e-06
      %v3592 = vadd.f32 %v3583, 1e-06
      %v3593 = vadd.f32 %v3584, 1e-06
      %v3594 = vadd.f32 %v3585, 1e-06
      %v3595 = vadd.f32 %v3586, 1e-06
      %v3596 = vadd.f32 %v3587, 1e-06
      %v3597 = vadd.f32 %v3588, 1e-06
      %v3598 = vadd.f32 %v3589, 1e-06
      %v3599 = vadd.f32 %v3590, 1e-06
      %v3600 = vrsqrt.pop %v3591
      %v3601 = vrsqrt.pop %v3592
      %v3602 = vrsqrt.pop %v3593
      %v3603 = vrsqrt.pop %v3594
      %v3604 = vrsqrt.pop %v3595
      %v3605 = vrsqrt.pop %v3596
      %v3606 = vrsqrt.pop %v3597
      %v3607 = vrsqrt.pop %v3598
      %v3608 = vrsqrt.pop %v3599
      %v3609 = vmul.f32 %v3546, %v3600
      %v3610 = vmul.f32 %v3547, %v3601
      %v3611 = vmul.f32 %v3548, %v3602
      %v3612 = vmul.f32 %v3549, %v3603
      %v3613 = vmul.f32 %v3550, %v3604
      %v3614 = vmul.f32 %v3551, %v3605
      %v3615 = vmul.f32 %v3552, %v3606
      %v3616 = vmul.f32 %v3553, %v3607
      %v3617 = vmul.f32 %v3554, %v3608
      %v3619 = vlaneseq
      %v3620 = vshrl.u32 %v3619, 7
      %v3621 = vsub.s32 0, %v3620
      %v3622 = vrot.slane %v3517, %v3621
      %v3624 = vmul.f32 %v3609, %v3622
      %v3625 = vmul.f32 %v3610, %v3622
      %v3626 = vmul.f32 %v3611, %v3622
      %v3627 = vmul.f32 %v3612, %v3622
      %v3628 = vmul.f32 %v3613, %v3622
      %v3629 = vmul.f32 %v3614, %v3622
      %v3630 = vmul.f32 %v3615, %v3622
      %v3631 = vmul.f32 %v3616, %v3622
      %v3632 = vmul.f32 %v3617, %v3622
      %v3634 = vlaneseq
      %v3635 = vshrl.u32 %v3634, 7
      %v3636 = vsub.s32 0, %v3635
      %v3637 = vrot.slane %v3518, %v3636
      %v3639 = vadd.f32 %v3624, %v3637
      %v3640 = vadd.f32 %v3625, %v3637
      %v3641 = vadd.f32 %v3626, %v3637
      %v3642 = vadd.f32 %v3627, %v3637
      %v3643 = vadd.f32 %v3628, %v3637
      %v3644 = vadd.f32 %v3629, %v3637
      %v3645 = vadd.f32 %v3630, %v3637
      %v3646 = vadd.f32 %v3631, %v3637
      %v3647 = vadd.f32 %v3632, %v3637
      %v3648 = vpack.c.bf16 %v3640, %v3639
      %v3649 = vpack.c.bf16 %v3642, %v3641
      %v3650 = vpack.c.bf16 %v3644, %v3643
      %v3651 = vpack.c.bf16 %v3646, %v3645
      %v3652 = vpack.c.bf16 %v3647, %v3647
      %v3653 = vld [vmem:[%s11] sm:$0xff]
      %v3654 = vld [vmem:[%s11 + $0x8] sm:$0xff]
      %v3655 = vld [vmem:[%s11 + $0x10] sm:$0xff]
      %v3656 = vld [vmem:[%s11 + $0x18] sm:$0xff]
      %v3657 = vld [vmem:[%s11 + $0x20] sm:$0xff]
      %v3658 = vld [vmem:[%s11 + $0x28] sm:$0xff]
      %v3659 = vld [vmem:[%s11 + $0x30] sm:$0xff]
      %v3660 = vld [vmem:[%s11 + $0x38] sm:$0xff]
      %v3661 = vld [vmem:[%s11 + $0x40] sm:$0xff]
      %v3662 = vld [vmem:[%s11 + $0x48] sm:$0xff]
      %v3663 = vld [vmem:[%s11 + $0x50] sm:$0xff]
      %v3664 = vld [vmem:[%s11 + $0x58] sm:$0xff]
      %v3665 = vld [vmem:[%s11 + $0x60] sm:$0xff]
      %v3666 = vld [vmem:[%s11 + $0x68] sm:$0xff]
      %v3667 = vld [vmem:[%s11 + $0x70] sm:$0xff]
      %v3668 = vld [vmem:[%s11 + $0x78] sm:$0xff]
      %v3669 = vld [vmem:[%s11 + $0x80] sm:$0xff]
      %v3670 = vld [vmem:[%s11 + $0x88] sm:$0xff]
      %v3671 = vld [vmem:[%s11 + $0x90] sm:$0xff]
      %v3672 = vld [vmem:[%s11 + $0x98] sm:$0xff]
      %v3673 = vld [vmem:[%s11 + $0xa0] sm:$0xff]
      %v3674 = vld [vmem:[%s11 + $0xa8] sm:$0xff]
      %v3675 = vld [vmem:[%s11 + $0xb0] sm:$0xff]
      %v3676 = vld [vmem:[%s11 + $0xb8] sm:$0xff]
      %v3677 = vld [vmem:[%s11 + $0xc0] sm:$0xff]
      %v3678 = vld [vmem:[%s11 + $0xc8] sm:$0xff]
      %v3679 = vld [vmem:[%s11 + $0xd0] sm:$0xff]
      %v3680 = vld [vmem:[%s11 + $0xd8] sm:$0xff]
      %v3681 = vld [vmem:[%s11 + $0xe0] sm:$0xff]
      %v3682 = vld [vmem:[%s11 + $0xe8] sm:$0xff]
      %v3683 = vld [vmem:[%s11 + $0xf0] sm:$0xff]
      %v3684 = vld [vmem:[%s11 + $0xf8] sm:$0xff]
      %v3685 = vld [vmem:[%s12] sm:$0xf]
      %v3687 = vlaneseq
      %v3688 = vshrl.u32 %v3687, 7
      %v3689 = vsub.s32 0, %v3688
      %v3690 = vrot.slane %v3685, %v3689
      %v3691 = vlaneseq
      %v3692 = vshrl.u32 %v3691, 7
      %v3693 = vsub.s32 1, %v3692
      %v3694 = vrot.slane %v3685, %v3693
      %v3695 = vlaneseq
      %v3696 = vshrl.u32 %v3695, 7
      %v3697 = vsub.s32 2, %v3696
      %v3698 = vrot.slane %v3685, %v3697
      %v3699 = vlaneseq
      %v3700 = vshrl.u32 %v3699, 7
      %v3701 = vsub.s32 3, %v3700
      %v3702 = vrot.slane %v3685, %v3701
      %v3739 = vunpack.c.l.b16 %v3653
      %v3740 = vunpack.c.h.b16 %v3653
      %v3741 = vunpack.c.l.b16 %v3654
      %v3742 = vunpack.c.h.b16 %v3654
      %v3743 = vunpack.c.l.b16 %v3655
      %v3744 = vunpack.c.h.b16 %v3655
      %v3745 = vunpack.c.l.b16 %v3656
      %v3746 = vunpack.c.h.b16 %v3656
      %v3747 = vunpack.c.l.b16 %v3657
      %v3748 = vunpack.c.h.b16 %v3657
      %v3749 = vunpack.c.l.b16 %v3658
      %v3750 = vunpack.c.h.b16 %v3658
      %v3751 = vunpack.c.l.b16 %v3659
      %v3752 = vunpack.c.h.b16 %v3659
      %v3753 = vunpack.c.l.b16 %v3660
      %v3754 = vunpack.c.h.b16 %v3660
      %v3755 = vunpack.c.l.b16 %v3661
      %v3756 = vunpack.c.h.b16 %v3661
      %v3757 = vunpack.c.l.b16 %v3662
      %v3758 = vunpack.c.h.b16 %v3662
      %v3759 = vunpack.c.l.b16 %v3663
      %v3760 = vunpack.c.h.b16 %v3663
      %v3761 = vunpack.c.l.b16 %v3664
      %v3762 = vunpack.c.h.b16 %v3664
      %v3763 = vunpack.c.l.b16 %v3665
      %v3764 = vunpack.c.h.b16 %v3665
      %v3765 = vunpack.c.l.b16 %v3666
      %v3766 = vunpack.c.h.b16 %v3666
      %v3767 = vunpack.c.l.b16 %v3667
      %v3768 = vunpack.c.h.b16 %v3667
      %v3769 = vunpack.c.l.b16 %v3668
      %v3770 = vunpack.c.h.b16 %v3668
      %v3771 = vunpack.c.l.b16 %v3669
      %v3772 = vunpack.c.h.b16 %v3669
      %v3773 = vunpack.c.l.b16 %v3670
      %v3774 = vunpack.c.h.b16 %v3670
      %v3775 = vunpack.c.l.b16 %v3671
      %v3776 = vunpack.c.h.b16 %v3671
      %v3777 = vunpack.c.l.b16 %v3672
      %v3778 = vunpack.c.h.b16 %v3672
      %v3779 = vunpack.c.l.b16 %v3673
      %v3780 = vunpack.c.h.b16 %v3673
      %v3781 = vunpack.c.l.b16 %v3674
      %v3782 = vunpack.c.h.b16 %v3674
      %v3783 = vunpack.c.l.b16 %v3675
      %v3784 = vunpack.c.h.b16 %v3675
      %v3785 = vunpack.c.l.b16 %v3676
      %v3786 = vunpack.c.h.b16 %v3676
      %v3787 = vunpack.c.l.b16 %v3677
      %v3788 = vunpack.c.h.b16 %v3677
      %v3789 = vunpack.c.l.b16 %v3678
      %v3790 = vunpack.c.h.b16 %v3678
      %v3791 = vunpack.c.l.b16 %v3679
      %v3792 = vunpack.c.h.b16 %v3679
      %v3793 = vunpack.c.l.b16 %v3680
      %v3794 = vunpack.c.h.b16 %v3680
      %v3795 = vunpack.c.l.b16 %v3681
      %v3796 = vunpack.c.h.b16 %v3681
      %v3797 = vunpack.c.l.b16 %v3682
      %v3798 = vunpack.c.h.b16 %v3682
      %v3799 = vunpack.c.l.b16 %v3683
      %v3800 = vunpack.c.h.b16 %v3683
      %v3801 = vunpack.c.l.b16 %v3684
      %v3802 = vunpack.c.h.b16 %v3684
      %v3803 = vpack.c.b16 %v3743, %v3739
      %v3804 = vpack.c.b16 %v3744, %v3740
      %v3805 = vpack.c.b16 %v3745, %v3741
      %v3806 = vpack.c.b16 %v3746, %v3742
      %v3807 = vpack.c.b16 %v3751, %v3747
      %v3808 = vpack.c.b16 %v3752, %v3748
      %v3809 = vpack.c.b16 %v3753, %v3749
      %v3810 = vpack.c.b16 %v3754, %v3750
      %v3811 = vpack.c.b16 %v3759, %v3755
      %v3812 = vpack.c.b16 %v3760, %v3756
      %v3813 = vpack.c.b16 %v3761, %v3757
      %v3814 = vpack.c.b16 %v3762, %v3758
      %v3815 = vpack.c.b16 %v3767, %v3763
      %v3816 = vpack.c.b16 %v3768, %v3764
      %v3817 = vpack.c.b16 %v3769, %v3765
      %v3818 = vpack.c.b16 %v3770, %v3766
      %v3819 = vpack.c.b16 %v3775, %v3771
      %v3820 = vpack.c.b16 %v3776, %v3772
      %v3821 = vpack.c.b16 %v3777, %v3773
      %v3822 = vpack.c.b16 %v3778, %v3774
      %v3823 = vpack.c.b16 %v3783, %v3779
      %v3824 = vpack.c.b16 %v3784, %v3780
      %v3825 = vpack.c.b16 %v3785, %v3781
      %v3826 = vpack.c.b16 %v3786, %v3782
      %v3827 = vpack.c.b16 %v3791, %v3787
      %v3828 = vpack.c.b16 %v3792, %v3788
      %v3829 = vpack.c.b16 %v3793, %v3789
      %v3830 = vpack.c.b16 %v3794, %v3790
      %v3831 = vpack.c.b16 %v3799, %v3795
      %v3832 = vpack.c.b16 %v3800, %v3796
      %v3833 = vpack.c.b16 %v3801, %v3797
      %v3834 = vpack.c.b16 %v3802, %v3798
      %3867 = vmatprep.subr.bf16.mxu0 %v3804
      %3868 = vmatpush1.bf16.msra.mxu0 %v3803
      %3869 = vmatprep.subr.bf16.mxu0 %v3808
      %3870 = vmatpush1.bf16.msra.mxu0 %v3807
      %3871 = vmatprep.subr.bf16.mxu0 %v3812
      %3872 = vmatpush1.bf16.msra.mxu0 %v3811
      %3873 = vmatprep.subr.bf16.mxu0 %v3816
      %3874 = vmatpush1.bf16.msra.mxu0 %v3815
      %3875 = vmatprep.subr.bf16.mxu0 %v3820
      %3876 = vmatpush1.bf16.msra.mxu0 %v3819
      %3877 = vmatprep.subr.bf16.mxu0 %v3824
      %3878 = vmatpush1.bf16.msra.mxu0 %v3823
      %3879 = vmatprep.subr.bf16.mxu0 %v3828
      %3880 = vmatpush1.bf16.msra.mxu0 %v3827
      %3881 = vmatprep.subr.bf16.mxu0 %v3832
      %3882 = vmatpush1.bf16.msra.mxu0 %v3831
      %3883 = vmatprep.subr.bf16.mxu0 0
      %3884 = vmatpush1.bf16.msra.mxu0 0
      %3885 = vmatprep.subr.bf16.mxu0 0
      %3886 = vmatpush1.bf16.msra.mxu0 0
      %3887 = vmatprep.subr.bf16.mxu0 0
      %3888 = vmatpush1.bf16.msra.mxu0 0
      %3889 = vmatprep.subr.bf16.mxu0 0
      %3890 = vmatpush1.bf16.msra.mxu0 0
      %3891 = vmatprep.subr.bf16.mxu0 0
      %3892 = vmatpush1.bf16.msra.mxu0 0
      %3893 = vmatprep.subr.bf16.mxu0 0
      %3894 = vmatpush1.bf16.msra.mxu0 0
      %3895 = vmatprep.subr.bf16.mxu0 0
      %3896 = vmatpush1.bf16.msra.mxu0 0
      %3897 = vmatprep.subr.bf16.mxu0 0
      %3898 = vmatpush1.bf16.msra.mxu0 0
      %3899 = vmatprep.mubr.bf16.mxu0 0
      %3900 = vmatmul.mubr.bf16.gmra.mrb[0].mxu0 %v3648
      %v3901 = vpop.f32.mrb[0].mxu0
      %v3902 = vadd.f32 %v3690, %v3901
      %v3903 = vpop.f32.mrb[0].mxu0
      %v3904 = vadd.f32 %v3694, %v3903
      %v3905 = vpop.f32.mrb[0].mxu0
      %v3906 = vadd.f32 %v3690, %v3905
      %v3907 = vpop.f32.mrb[0].mxu0
      %v3908 = vadd.f32 %v3694, %v3907
      %3909 = vmatprep.mubr.bf16.mxu0 0
      %3910 = vmatmul.mubr.bf16.gmra.mrb[0].mxu0 %v3649
      %v3911 = vpop.f32.mrb[0].mxu0
      %v3912 = vadd.f32 %v3690, %v3911
      %v3913 = vpop.f32.mrb[0].mxu0
      %v3914 = vadd.f32 %v3694, %v3913
      %v3915 = vpop.f32.mrb[0].mxu0
      %v3916 = vadd.f32 %v3690, %v3915
      %v3917 = vpop.f32.mrb[0].mxu0
      %v3918 = vadd.f32 %v3694, %v3917
      %3919 = vmatprep.mubr.bf16.mxu0 0
      %3920 = vmatmul.mubr.bf16.gmra.mrb[0].mxu0 %v3650
      %v3921 = vpop.f32.mrb[0].mxu0
      %v3922 = vadd.f32 %v3690, %v3921
      %v3923 = vpop.f32.mrb[0].mxu0
      %v3924 = vadd.f32 %v3694, %v3923
      %v3925 = vpop.f32.mrb[0].mxu0
      %v3926 = vadd.f32 %v3690, %v3925
      %v3927 = vpop.f32.mrb[0].mxu0
      %v3928 = vadd.f32 %v3694, %v3927
      %3929 = vmatprep.mubr.bf16.mxu0 0
      %3930 = vmatmul.mubr.bf16.gmra.mrb[0].mxu0 %v3651
      %v3931 = vpop.f32.mrb[0].mxu0
      %v3932 = vadd.f32 %v3690, %v3931
      %v3933 = vpop.f32.mrb[0].mxu0
      %v3934 = vadd.f32 %v3694, %v3933
      %v3935 = vpop.f32.mrb[0].mxu0
      %v3936 = vadd.f32 %v3690, %v3935
      %v3937 = vpop.f32.mrb[0].mxu0
      %v3938 = vadd.f32 %v3694, %v3937
      %3939 = vmatprep.mubr.bf16.mxu0 0
      %3940 = vmatmul.mubr.bf16.gmra.mrb[0].mxu0 %v3652
      %v3941 = vpop.f32.mrb[0].mxu0
      %v3942 = vadd.f32 %v3690, %v3941
      %v3943 = vpop.f32.mrb[0].mxu0
      %v3944 = vadd.f32 %v3694, %v3943
      %v3945 = vpop.f32.mrb[0].mxu0
      %v3946 = vpop.f32.mrb[0].mxu0
      %3947 = vdwg.mxu0
      %3948 = vmatprep.subr.bf16.mxu0 %v3806
      %3949 = vmatpush1.bf16.msra.mxu0 %v3805
      %3950 = vmatprep.subr.bf16.mxu0 %v3810
      %3951 = vmatpush1.bf16.msra.mxu0 %v3809
      %3952 = vmatprep.subr.bf16.mxu0 %v3814
      %3953 = vmatpush1.bf16.msra.mxu0 %v3813
      %3954 = vmatprep.subr.bf16.mxu0 %v3818
      %3955 = vmatpush1.bf16.msra.mxu0 %v3817
      %3956 = vmatprep.subr.bf16.mxu0 %v3822
      %3957 = vmatpush1.bf16.msra.mxu0 %v3821
      %3958 = vmatprep.subr.bf16.mxu0 %v3826
      %3959 = vmatpush1.bf16.msra.mxu0 %v3825
      %3960 = vmatprep.subr.bf16.mxu0 %v3830
      %3961 = vmatpush1.bf16.msra.mxu0 %v3829
      %3962 = vmatprep.subr.bf16.mxu0 %v3834
      %3963 = vmatpush1.bf16.msra.mxu0 %v3833
      %3964 = vmatprep.subr.bf16.mxu0 0
      %3965 = vmatpush1.bf16.msra.mxu0 0
      %3966 = vmatprep.subr.bf16.mxu0 0
      %3967 = vmatpush1.bf16.msra.mxu0 0
      %3968 = vmatprep.subr.bf16.mxu0 0
      %3969 = vmatpush1.bf16.msra.mxu0 0
      %3970 = vmatprep.subr.bf16.mxu0 0
      %3971 = vmatpush1.bf16.msra.mxu0 0
      %3972 = vmatprep.subr.bf16.mxu0 0
      %3973 = vmatpush1.bf16.msra.mxu0 0
      %3974 = vmatprep.subr.bf16.mxu0 0
      %3975 = vmatpush1.bf16.msra.mxu0 0
      %3976 = vmatprep.subr.bf16.mxu0 0
      %3977 = vmatpush1.bf16.msra.mxu0 0
      %3978 = vmatprep.subr.bf16.mxu0 0
      %3979 = vmatpush1.bf16.msra.mxu0 0
      %3980 = vmatprep.mubr.bf16.mxu0 0
      %3981 = vmatmul.mubr.bf16.gmra.mrb[0].mxu0 %v3648
      %v3982 = vpop.f32.mrb[0].mxu0
      %v3983 = vadd.f32 %v3698, %v3982
      %v3984 = vpop.f32.mrb[0].mxu0
      %v3985 = vadd.f32 %v3702, %v3984
      %v3986 = vpop.f32.mrb[0].mxu0
      %v3987 = vadd.f32 %v3698, %v3986
      %v3988 = vpop.f32.mrb[0].mxu0
      %v3989 = vadd.f32 %v3702, %v3988
      %3990 = vmatprep.mubr.bf16.mxu0 0
      %3991 = vmatmul.mubr.bf16.gmra.mrb[0].mxu0 %v3649
      %v3992 = vpop.f32.mrb[0].mxu0
      %v3993 = vadd.f32 %v3698, %v3992
      %v3994 = vpop.f32.mrb[0].mxu0
      %v3995 = vadd.f32 %v3702, %v3994
      %v3996 = vpop.f32.mrb[0].mxu0
      %v3997 = vadd.f32 %v3698, %v3996
      %v3998 = vpop.f32.mrb[0].mxu0
      %v3999 = vadd.f32 %v3702, %v3998
      %4000 = vmatprep.mubr.bf16.mxu0 0
      %4001 = vmatmul.mubr.bf16.gmra.mrb[0].mxu0 %v3650
      %v4002 = vpop.f32.mrb[0].mxu0
      %v4003 = vadd.f32 %v3698, %v4002
      %v4004 = vpop.f32.mrb[0].mxu0
      %v4005 = vadd.f32 %v3702, %v4004
      %v4006 = vpop.f32.mrb[0].mxu0
      %v4007 = vadd.f32 %v3698, %v4006
      %v4008 = vpop.f32.mrb[0].mxu0
      %v4009 = vadd.f32 %v3702, %v4008
      %4010 = vmatprep.mubr.bf16.mxu0 0
      %4011 = vmatmul.mubr.bf16.gmra.mrb[0].mxu0 %v3651
      %v4012 = vpop.f32.mrb[0].mxu0
      %v4013 = vadd.f32 %v3698, %v4012
      %v4014 = vpop.f32.mrb[0].mxu0
      %v4015 = vadd.f32 %v3702, %v4014
      %v4016 = vpop.f32.mrb[0].mxu0
      %v4017 = vadd.f32 %v3698, %v4016
      %v4018 = vpop.f32.mrb[0].mxu0
      %v4019 = vadd.f32 %v3702, %v4018
      %4020 = vmatprep.mubr.bf16.mxu0 0
      %4021 = vmatmul.mubr.bf16.gmra.mrb[0].mxu0 %v3652
      %v4022 = vpop.f32.mrb[0].mxu0
      %v4023 = vadd.f32 %v3698, %v4022
      %v4024 = vpop.f32.mrb[0].mxu0
      %v4025 = vadd.f32 %v3702, %v4024
      %v4026 = vpop.f32.mrb[0].mxu0
      %v4027 = vpop.f32.mrb[0].mxu0
      %4028 = vdwg.mxu0
      %v4029 = vmul.f32 %v3902, 0.5
      %v4030 = vmul.f32 %v3904, 0.5
      %v4031 = vmul.f32 %v3983, 0.5
      %v4032 = vmul.f32 %v3985, 0.5
      %v4033 = vmul.f32 %v3906, 0.5
      %v4034 = vmul.f32 %v3908, 0.5
      %v4035 = vmul.f32 %v3987, 0.5
      %v4036 = vmul.f32 %v3989, 0.5
      %v4037 = vmul.f32 %v3912, 0.5
      %v4038 = vmul.f32 %v3914, 0.5
      %v4039 = vmul.f32 %v3993, 0.5
      %v4040 = vmul.f32 %v3995, 0.5
      %v4041 = vmul.f32 %v3916, 0.5
      %v4042 = vmul.f32 %v3918, 0.5
      %v4043 = vmul.f32 %v3997, 0.5
      %v4044 = vmul.f32 %v3999, 0.5
      %v4045 = vmul.f32 %v3922, 0.5
      %v4046 = vmul.f32 %v3924, 0.5
      %v4047 = vmul.f32 %v4003, 0.5
      %v4048 = vmul.f32 %v4005, 0.5
      %v4049 = vmul.f32 %v3926, 0.5
      %v4050 = vmul.f32 %v3928, 0.5
      %v4051 = vmul.f32 %v4007, 0.5
      %v4052 = vmul.f32 %v4009, 0.5
      %v4053 = vmul.f32 %v3932, 0.5
      %v4054 = vmul.f32 %v3934, 0.5
      %v4055 = vmul.f32 %v4013, 0.5
      %v4056 = vmul.f32 %v4015, 0.5
      %v4057 = vmul.f32 %v3936, 0.5
      %v4058 = vmul.f32 %v3938, 0.5
      %v4059 = vmul.f32 %v4017, 0.5
      %v4060 = vmul.f32 %v4019, 0.5
      %v4061 = vmul.f32 %v3942, 0.5
      %v4062 = vmul.f32 %v3944, 0.5
      %v4063 = vmul.f32 %v4023, 0.5
      %v4064 = vmul.f32 %v4025, 0.5
      %v4065 = vmul.f32 %v3902, 0.70710677
      %v4066 = vmul.f32 %v3904, 0.70710677
      %v4067 = vmul.f32 %v3983, 0.70710677
      %v4068 = vmul.f32 %v3985, 0.70710677
      %v4069 = vmul.f32 %v3906, 0.70710677
      %v4070 = vmul.f32 %v3908, 0.70710677
      %v4071 = vmul.f32 %v3987, 0.70710677
      %v4072 = vmul.f32 %v3989, 0.70710677
      %v4073 = vmul.f32 %v3912, 0.70710677
      %v4074 = vmul.f32 %v3914, 0.70710677
      %v4075 = vmul.f32 %v3993, 0.70710677
      %v4076 = vmul.f32 %v3995, 0.70710677
      %v4077 = vmul.f32 %v3916, 0.70710677
      %v4078 = vmul.f32 %v3918, 0.70710677
      %v4079 = vmul.f32 %v3997, 0.70710677
      %v4080 = vmul.f32 %v3999, 0.70710677
      %v4081 = vmul.f32 %v3922, 0.70710677
      %v4082 = vmul.f32 %v3924, 0.70710677
      %v4083 = vmul.f32 %v4003, 0.70710677
      %v4084 = vmul.f32 %v4005, 0.70710677
      %v4085 = vmul.f32 %v3926, 0.70710677
      %v4086 = vmul.f32 %v3928, 0.70710677
      %v4087 = vmul.f32 %v4007, 0.70710677
      %v4088 = vmul.f32 %v4009, 0.70710677
      %v4089 = vmul.f32 %v3932, 0.70710677
      %v4090 = vmul.f32 %v3934, 0.70710677
      %v4091 = vmul.f32 %v4013, 0.70710677
      %v4092 = vmul.f32 %v4015, 0.70710677
      %v4093 = vmul.f32 %v3936, 0.70710677
      %v4094 = vmul.f32 %v3938, 0.70710677
      %v4095 = vmul.f32 %v4017, 0.70710677
      %v4096 = vmul.f32 %v4019, 0.70710677
      %v4097 = vmul.f32 %v3942, 0.70710677
      %v4098 = vmul.f32 %v3944, 0.70710677
      %v4099 = vmul.f32 %v4023, 0.70710677
      %v4100 = vmul.f32 %v4025, 0.70710677
      %v4101 = verf.f32.pop %v4065
      %v4102 = verf.f32.pop %v4066
      %v4103 = verf.f32.pop %v4067
      %v4104 = verf.f32.pop %v4068
      %v4105 = verf.f32.pop %v4069
      %v4106 = verf.f32.pop %v4070
      %v4107 = verf.f32.pop %v4071
      %v4108 = verf.f32.pop %v4072
      %v4109 = verf.f32.pop %v4073
      %v4110 = verf.f32.pop %v4074
      %v4111 = verf.f32.pop %v4075
      %v4112 = verf.f32.pop %v4076
      %v4113 = verf.f32.pop %v4077
      %v4114 = verf.f32.pop %v4078
      %v4115 = verf.f32.pop %v4079
      %v4116 = verf.f32.pop %v4080
      %v4117 = verf.f32.pop %v4081
      %v4118 = verf.f32.pop %v4082
      %v4119 = verf.f32.pop %v4083
      %v4120 = verf.f32.pop %v4084
      %v4121 = verf.f32.pop %v4085
      %v4122 = verf.f32.pop %v4086
      %v4123 = verf.f32.pop %v4087
      %v4124 = verf.f32.pop %v4088
      %v4125 = verf.f32.pop %v4089
      %v4126 = verf.f32.pop %v4090
      %v4127 = verf.f32.pop %v4091
      %v4128 = verf.f32.pop %v4092
      %v4129 = verf.f32.pop %v4093
      %v4130 = verf.f32.pop %v4094
      %v4131 = verf.f32.pop %v4095
      %v4132 = verf.f32.pop %v4096
      %v4133 = verf.f32.pop %v4097
      %v4134 = verf.f32.pop %v4098
      %v4135 = verf.f32.pop %v4099
      %v4136 = verf.f32.pop %v4100
      %v4137 = vadd.f32 %v4101, 1.0
      %v4138 = vadd.f32 %v4102, 1.0
      %v4139 = vadd.f32 %v4103, 1.0
      %v4140 = vadd.f32 %v4104, 1.0
      %v4141 = vadd.f32 %v4105, 1.0
      %v4142 = vadd.f32 %v4106, 1.0
      %v4143 = vadd.f32 %v4107, 1.0
      %v4144 = vadd.f32 %v4108, 1.0
      %v4145 = vadd.f32 %v4109, 1.0
      %v4146 = vadd.f32 %v4110, 1.0
      %v4147 = vadd.f32 %v4111, 1.0
      %v4148 = vadd.f32 %v4112, 1.0
      %v4149 = vadd.f32 %v4113, 1.0
      %v4150 = vadd.f32 %v4114, 1.0
      %v4151 = vadd.f32 %v4115, 1.0
      %v4152 = vadd.f32 %v4116, 1.0
      %v4153 = vadd.f32 %v4117, 1.0
      %v4154 = vadd.f32 %v4118, 1.0
      %v4155 = vadd.f32 %v4119, 1.0
      %v4156 = vadd.f32 %v4120, 1.0
      %v4157 = vadd.f32 %v4121, 1.0
      %v4158 = vadd.f32 %v4122, 1.0
      %v4159 = vadd.f32 %v4123, 1.0
      %v4160 = vadd.f32 %v4124, 1.0
      %v4161 = vadd.f32 %v4125, 1.0
      %v4162 = vadd.f32 %v4126, 1.0
      %v4163 = vadd.f32 %v4127, 1.0
      %v4164 = vadd.f32 %v4128, 1.0
      %v4165 = vadd.f32 %v4129, 1.0
      %v4166 = vadd.f32 %v4130, 1.0
      %v4167 = vadd.f32 %v4131, 1.0
      %v4168 = vadd.f32 %v4132, 1.0
      %v4169 = vadd.f32 %v4133, 1.0
      %v4170 = vadd.f32 %v4134, 1.0
      %v4171 = vadd.f32 %v4135, 1.0
      %v4172 = vadd.f32 %v4136, 1.0
      %v4173 = vmul.f32 %v4029, %v4137
      %v4174 = vmul.f32 %v4030, %v4138
      %v4175 = vmul.f32 %v4031, %v4139
      %v4176 = vmul.f32 %v4032, %v4140
      %v4177 = vmul.f32 %v4033, %v4141
      %v4178 = vmul.f32 %v4034, %v4142
      %v4179 = vmul.f32 %v4035, %v4143
      %v4180 = vmul.f32 %v4036, %v4144
      %v4181 = vmul.f32 %v4037, %v4145
      %v4182 = vmul.f32 %v4038, %v4146
      %v4183 = vmul.f32 %v4039, %v4147
      %v4184 = vmul.f32 %v4040, %v4148
      %v4185 = vmul.f32 %v4041, %v4149
      %v4186 = vmul.f32 %v4042, %v4150
      %v4187 = vmul.f32 %v4043, %v4151
      %v4188 = vmul.f32 %v4044, %v4152
      %v4189 = vmul.f32 %v4045, %v4153
      %v4190 = vmul.f32 %v4046, %v4154
      %v4191 = vmul.f32 %v4047, %v4155
      %v4192 = vmul.f32 %v4048, %v4156
      %v4193 = vmul.f32 %v4049, %v4157
      %v4194 = vmul.f32 %v4050, %v4158
      %v4195 = vmul.f32 %v4051, %v4159
      %v4196 = vmul.f32 %v4052, %v4160
      %v4197 = vmul.f32 %v4053, %v4161
      %v4198 = vmul.f32 %v4054, %v4162
      %v4199 = vmul.f32 %v4055, %v4163
      %v4200 = vmul.f32 %v4056, %v4164
      %v4201 = vmul.f32 %v4057, %v4165
      %v4202 = vmul.f32 %v4058, %v4166
      %v4203 = vmul.f32 %v4059, %v4167
      %v4204 = vmul.f32 %v4060, %v4168
      %v4205 = vmul.f32 %v4061, %v4169
      %v4206 = vmul.f32 %v4062, %v4170
      %v4207 = vmul.f32 %v4063, %v4171
      %v4208 = vmul.f32 %v4064, %v4172
      %v4209 = vpack.c.bf16 %v4177, %v4173
      %v4210 = vpack.c.bf16 %v4178, %v4174
      %v4211 = vpack.c.bf16 %v4179, %v4175
      %v4212 = vpack.c.bf16 %v4180, %v4176
      %v4213 = vpack.c.bf16 %v4185, %v4181
      %v4214 = vpack.c.bf16 %v4186, %v4182
      %v4215 = vpack.c.bf16 %v4187, %v4183
      %v4216 = vpack.c.bf16 %v4188, %v4184
      %v4217 = vpack.c.bf16 %v4193, %v4189
      %v4218 = vpack.c.bf16 %v4194, %v4190
      %v4219 = vpack.c.bf16 %v4195, %v4191
      %v4220 = vpack.c.bf16 %v4196, %v4192
      %v4221 = vpack.c.bf16 %v4201, %v4197
      %v4222 = vpack.c.bf16 %v4202, %v4198
      %v4223 = vpack.c.bf16 %v4203, %v4199
      %v4224 = vpack.c.bf16 %v4204, %v4200
      %v4225 = vpack.c.bf16 %v4205, %v4205
      %v4226 = vpack.c.bf16 %v4206, %v4206
      %v4227 = vpack.c.bf16 %v4207, %v4207
      %v4228 = vpack.c.bf16 %v4208, %v4208
      %v4229 = vld [vmem:[%s13] sm:$0xf]
      %v4230 = vld [vmem:[%s13 + $0x4] sm:$0xf]
      %v4231 = vld [vmem:[%s13 + $0x8] sm:$0xf]
      %v4232 = vld [vmem:[%s13 + $0xc] sm:$0xf]
      %v4233 = vld [vmem:[%s13 + $0x10] sm:$0xf]
      %v4234 = vld [vmem:[%s13 + $0x14] sm:$0xf]
      %v4235 = vld [vmem:[%s13 + $0x18] sm:$0xf]
      %v4236 = vld [vmem:[%s13 + $0x1c] sm:$0xf]
      %v4237 = vld [vmem:[%s13 + $0x20] sm:$0xf]
      %v4238 = vld [vmem:[%s13 + $0x24] sm:$0xf]
      %v4239 = vld [vmem:[%s13 + $0x28] sm:$0xf]
      %v4240 = vld [vmem:[%s13 + $0x2c] sm:$0xf]
      %v4241 = vld [vmem:[%s13 + $0x30] sm:$0xf]
      %v4242 = vld [vmem:[%s13 + $0x34] sm:$0xf]
      %v4243 = vld [vmem:[%s13 + $0x38] sm:$0xf]
      %v4244 = vld [vmem:[%s13 + $0x3c] sm:$0xf]
      %v4245 = vld [vmem:[%s13 + $0x40] sm:$0xf]
      %v4246 = vld [vmem:[%s13 + $0x44] sm:$0xf]
      %v4247 = vld [vmem:[%s13 + $0x48] sm:$0xf]
      %v4248 = vld [vmem:[%s13 + $0x4c] sm:$0xf]
      %v4249 = vld [vmem:[%s13 + $0x50] sm:$0xf]
      %v4250 = vld [vmem:[%s13 + $0x54] sm:$0xf]
      %v4251 = vld [vmem:[%s13 + $0x58] sm:$0xf]
      %v4252 = vld [vmem:[%s13 + $0x5c] sm:$0xf]
      %v4253 = vld [vmem:[%s13 + $0x60] sm:$0xf]
      %v4254 = vld [vmem:[%s13 + $0x64] sm:$0xf]
      %v4255 = vld [vmem:[%s13 + $0x68] sm:$0xf]
      %v4256 = vld [vmem:[%s13 + $0x6c] sm:$0xf]
      %v4257 = vld [vmem:[%s13 + $0x70] sm:$0xf]
      %v4258 = vld [vmem:[%s13 + $0x74] sm:$0xf]
      %v4259 = vld [vmem:[%s13 + $0x78] sm:$0xf]
      %v4260 = vld [vmem:[%s13 + $0x7c] sm:$0xf]
      %v4261 = vld [vmem:[%s13 + $0x80] sm:$0xf]
      %v4262 = vld [vmem:[%s13 + $0x84] sm:$0xf]
      %v4263 = vld [vmem:[%s13 + $0x88] sm:$0xf]
      %v4264 = vld [vmem:[%s13 + $0x8c] sm:$0xf]
      %v4265 = vld [vmem:[%s13 + $0x90] sm:$0xf]
      %v4266 = vld [vmem:[%s13 + $0x94] sm:$0xf]
      %v4267 = vld [vmem:[%s13 + $0x98] sm:$0xf]
      %v4268 = vld [vmem:[%s13 + $0x9c] sm:$0xf]
      %v4269 = vld [vmem:[%s13 + $0xa0] sm:$0xf]
      %v4270 = vld [vmem:[%s13 + $0xa4] sm:$0xf]
      %v4271 = vld [vmem:[%s13 + $0xa8] sm:$0xf]
      %v4272 = vld [vmem:[%s13 + $0xac] sm:$0xf]
      %v4273 = vld [vmem:[%s13 + $0xb0] sm:$0xf]
      %v4274 = vld [vmem:[%s13 + $0xb4] sm:$0xf]
      %v4275 = vld [vmem:[%s13 + $0xb8] sm:$0xf]
      %v4276 = vld [vmem:[%s13 + $0xbc] sm:$0xf]
      %v4277 = vld [vmem:[%s13 + $0xc0] sm:$0xf]
      %v4278 = vld [vmem:[%s13 + $0xc4] sm:$0xf]
      %v4279 = vld [vmem:[%s13 + $0xc8] sm:$0xf]
      %v4280 = vld [vmem:[%s13 + $0xcc] sm:$0xf]
      %v4281 = vld [vmem:[%s13 + $0xd0] sm:$0xf]
      %v4282 = vld [vmem:[%s13 + $0xd4] sm:$0xf]
      %v4283 = vld [vmem:[%s13 + $0xd8] sm:$0xf]
      %v4284 = vld [vmem:[%s13 + $0xdc] sm:$0xf]
      %v4285 = vld [vmem:[%s13 + $0xe0] sm:$0xf]
      %v4286 = vld [vmem:[%s13 + $0xe4] sm:$0xf]
      %v4287 = vld [vmem:[%s13 + $0xe8] sm:$0xf]
      %v4288 = vld [vmem:[%s13 + $0xec] sm:$0xf]
      %v4289 = vld [vmem:[%s13 + $0xf0] sm:$0xf]
      %v4290 = vld [vmem:[%s13 + $0xf4] sm:$0xf]
      %v4291 = vld [vmem:[%s13 + $0xf8] sm:$0xf]
      %v4292 = vld [vmem:[%s13 + $0xfc] sm:$0xf]
      %v4293 = vld [vmem:[%s14] sm:$0x1]
      %v4295 = vlaneseq
      %v4296 = vshrl.u32 %v4295, 7
      %v4297 = vsub.s32 0, %v4296
      %v4298 = vrot.slane %v4293, %v4297
      %v4364 = vunpack.c.l.b16 %v4229
      %v4365 = vunpack.c.l.b16 %v4230
      %v4366 = vunpack.c.l.b16 %v4231
      %v4367 = vunpack.c.l.b16 %v4232
      %v4368 = vunpack.c.l.b16 %v4233
      %v4369 = vunpack.c.l.b16 %v4234
      %v4370 = vunpack.c.l.b16 %v4235
      %v4371 = vunpack.c.l.b16 %v4236
      %v4372 = vunpack.c.l.b16 %v4237
      %v4373 = vunpack.c.l.b16 %v4238
      %v4374 = vunpack.c.l.b16 %v4239
      %v4375 = vunpack.c.l.b16 %v4240
      %v4376 = vunpack.c.l.b16 %v4241
      %v4377 = vunpack.c.l.b16 %v4242
      %v4378 = vunpack.c.l.b16 %v4243
      %v4379 = vunpack.c.l.b16 %v4244
      %v4380 = vunpack.c.l.b16 %v4245
      %v4381 = vunpack.c.l.b16 %v4246
      %v4382 = vunpack.c.l.b16 %v4247
      %v4383 = vunpack.c.l.b16 %v4248
      %v4384 = vunpack.c.l.b16 %v4249
      %v4385 = vunpack.c.l.b16 %v4250
      %v4386 = vunpack.c.l.b16 %v4251
      %v4387 = vunpack.c.l.b16 %v4252
      %v4388 = vunpack.c.l.b16 %v4253
      %v4389 = vunpack.c.l.b16 %v4254
      %v4390 = vunpack.c.l.b16 %v4255
      %v4391 = vunpack.c.l.b16 %v4256
      %v4392 = vunpack.c.l.b16 %v4257
      %v4393 = vunpack.c.l.b16 %v4258
      %v4394 = vunpack.c.l.b16 %v4259
      %v4395 = vunpack.c.l.b16 %v4260
      %v4396 = vunpack.c.l.b16 %v4261
      %v4397 = vunpack.c.l.b16 %v4262
      %v4398 = vunpack.c.l.b16 %v4263
      %v4399 = vunpack.c.l.b16 %v4264
      %v4400 = vunpack.c.l.b16 %v4265
      %v4401 = vunpack.c.l.b16 %v4266
      %v4402 = vunpack.c.l.b16 %v4267
      %v4403 = vunpack.c.l.b16 %v4268
      %v4404 = vunpack.c.l.b16 %v4269
      %v4405 = vunpack.c.l.b16 %v4270
      %v4406 = vunpack.c.l.b16 %v4271
      %v4407 = vunpack.c.l.b16 %v4272
      %v4408 = vunpack.c.l.b16 %v4273
      %v4409 = vunpack.c.l.b16 %v4274
      %v4410 = vunpack.c.l.b16 %v4275
      %v4411 = vunpack.c.l.b16 %v4276
      %v4412 = vunpack.c.l.b16 %v4277
      %v4413 = vunpack.c.l.b16 %v4278
      %v4414 = vunpack.c.l.b16 %v4279
      %v4415 = vunpack.c.l.b16 %v4280
      %v4416 = vunpack.c.l.b16 %v4281
      %v4417 = vunpack.c.l.b16 %v4282
      %v4418 = vunpack.c.l.b16 %v4283
      %v4419 = vunpack.c.l.b16 %v4284
      %v4420 = vunpack.c.l.b16 %v4285
      %v4421 = vunpack.c.l.b16 %v4286
      %v4422 = vunpack.c.l.b16 %v4287
      %v4423 = vunpack.c.l.b16 %v4288
      %v4424 = vunpack.c.l.b16 %v4289
      %v4425 = vunpack.c.l.b16 %v4290
      %v4426 = vunpack.c.l.b16 %v4291
      %v4427 = vunpack.c.l.b16 %v4292
      %v4428 = vpack.c.b16 %v4365, %v4364
      %v4429 = vpack.c.b16 %v4367, %v4366
      %v4430 = vpack.c.b16 %v4369, %v4368
      %v4431 = vpack.c.b16 %v4371, %v4370
      %v4432 = vpack.c.b16 %v4373, %v4372
      %v4433 = vpack.c.b16 %v4375, %v4374
      %v4434 = vpack.c.b16 %v4377, %v4376
      %v4435 = vpack.c.b16 %v4379, %v4378
      %v4436 = vpack.c.b16 %v4381, %v4380
      %v4437 = vpack.c.b16 %v4383, %v4382
      %v4438 = vpack.c.b16 %v4385, %v4384
      %v4439 = vpack.c.b16 %v4387, %v4386
      %v4440 = vpack.c.b16 %v4389, %v4388
      %v4441 = vpack.c.b16 %v4391, %v4390
      %v4442 = vpack.c.b16 %v4393, %v4392
      %v4443 = vpack.c.b16 %v4395, %v4394
      %v4444 = vpack.c.b16 %v4397, %v4396
      %v4445 = vpack.c.b16 %v4399, %v4398
      %v4446 = vpack.c.b16 %v4401, %v4400
      %v4447 = vpack.c.b16 %v4403, %v4402
      %v4448 = vpack.c.b16 %v4405, %v4404
      %v4449 = vpack.c.b16 %v4407, %v4406
      %v4450 = vpack.c.b16 %v4409, %v4408
      %v4451 = vpack.c.b16 %v4411, %v4410
      %v4452 = vpack.c.b16 %v4413, %v4412
      %v4453 = vpack.c.b16 %v4415, %v4414
      %v4454 = vpack.c.b16 %v4417, %v4416
      %v4455 = vpack.c.b16 %v4419, %v4418
      %v4456 = vpack.c.b16 %v4421, %v4420
      %v4457 = vpack.c.b16 %v4423, %v4422
      %v4458 = vpack.c.b16 %v4425, %v4424
      %v4459 = vpack.c.b16 %v4427, %v4426
      %4492 = vmatprep.subr.bf16.mxu0 0
      %4493 = vmatpush1.bf16.msra.mxu0 %v4428
      %4494 = vmatprep.subr.bf16.mxu0 0
      %4495 = vmatpush1.bf16.msra.mxu0 %v4429
      %4496 = vmatprep.subr.bf16.mxu0 0
      %4497 = vmatpush1.bf16.msra.mxu0 %v4430
      %4498 = vmatprep.subr.bf16.mxu0 0
      %4499 = vmatpush1.bf16.msra.mxu0 %v4431
      %4500 = vmatprep.subr.bf16.mxu0 0
      %4501 = vmatpush1.bf16.msra.mxu0 %v4432
      %4502 = vmatprep.subr.bf16.mxu0 0
      %4503 = vmatpush1.bf16.msra.mxu0 %v4433
      %4504 = vmatprep.subr.bf16.mxu0 0
      %4505 = vmatpush1.bf16.msra.mxu0 %v4434
      %4506 = vmatprep.subr.bf16.mxu0 0
      %4507 = vmatpush1.bf16.msra.mxu0 %v4435
      %4508 = vmatprep.subr.bf16.mxu0 0
      %4509 = vmatpush1.bf16.msra.mxu0 %v4436
      %4510 = vmatprep.subr.bf16.mxu0 0
      %4511 = vmatpush1.bf16.msra.mxu0 %v4437
      %4512 = vmatprep.subr.bf16.mxu0 0
      %4513 = vmatpush1.bf16.msra.mxu0 %v4438
      %4514 = vmatprep.subr.bf16.mxu0 0
      %4515 = vmatpush1.bf16.msra.mxu0 %v4439
      %4516 = vmatprep.subr.bf16.mxu0 0
      %4517 = vmatpush1.bf16.msra.mxu0 %v4440
      %4518 = vmatprep.subr.bf16.mxu0 0
      %4519 = vmatpush1.bf16.msra.mxu0 %v4441
      %4520 = vmatprep.subr.bf16.mxu0 0
      %4521 = vmatpush1.bf16.msra.mxu0 %v4442
      %4522 = vmatprep.subr.bf16.mxu0 0
      %4523 = vmatpush1.bf16.msra.mxu0 %v4443
      %4524 = vmatprep.mubr.bf16.mxu0 %v4210
      %4525 = vmatmul.mubr.bf16.gmra.mrb[0].mxu0 %v4209
      %v4526 = vpop.f32.mrb[0].mxu0
      %v4527 = vadd.f32 %v4298, %v4526
      %v4528 = vpop.f32.mrb[0].mxu0
      %v4529 = vpop.f32.mrb[0].mxu0
      %v4530 = vadd.f32 %v4298, %v4529
      %v4531 = vpop.f32.mrb[0].mxu0
      %4532 = vmatprep.mubr.bf16.mxu0 %v4214
      %4533 = vmatmul.mubr.bf16.gmra.mrb[0].mxu0 %v4213
      %v4534 = vpop.f32.mrb[0].mxu0
      %v4535 = vadd.f32 %v4298, %v4534
      %v4536 = vpop.f32.mrb[0].mxu0
      %v4537 = vpop.f32.mrb[0].mxu0
      %v4538 = vadd.f32 %v4298, %v4537
      %v4539 = vpop.f32.mrb[0].mxu0
      %4540 = vmatprep.mubr.bf16.mxu0 %v4218
      %4541 = vmatmul.mubr.bf16.gmra.mrb[0].mxu0 %v4217
      %v4542 = vpop.f32.mrb[0].mxu0
      %v4543 = vadd.f32 %v4298, %v4542
      %v4544 = vpop.f32.mrb[0].mxu0
      %v4545 = vpop.f32.mrb[0].mxu0
      %v4546 = vadd.f32 %v4298, %v4545
      %v4547 = vpop.f32.mrb[0].mxu0
      %4548 = vmatprep.mubr.bf16.mxu0 %v4222
      %4549 = vmatmul.mubr.bf16.gmra.mrb[0].mxu0 %v4221
      %v4550 = vpop.f32.mrb[0].mxu0
      %v4551 = vadd.f32 %v4298, %v4550
      %v4552 = vpop.f32.mrb[0].mxu0
      %v4553 = vpop.f32.mrb[0].mxu0
      %v4554 = vadd.f32 %v4298, %v4553
      %v4555 = vpop.f32.mrb[0].mxu0
      %4556 = vmatprep.mubr.bf16.mxu0 %v4226
      %4557 = vmatmul.mubr.bf16.gmra.mrb[0].mxu0 %v4225
      %v4558 = vpop.f32.mrb[0].mxu0
      %v4559 = vadd.f32 %v4298, %v4558
      %v4560 = vpop.f32.mrb[0].mxu0
      %v4561 = vpop.f32.mrb[0].mxu0
      %v4562 = vpop.f32.mrb[0].mxu0
      %4563 = vdwg.mxu0
      %4564 = vmatprep.subr.bf16.mxu0 0
      %4565 = vmatpush1.bf16.msra.mxu0 %v4444
      %4566 = vmatprep.subr.bf16.mxu0 0
      %4567 = vmatpush1.bf16.msra.mxu0 %v4445
      %4568 = vmatprep.subr.bf16.mxu0 0
      %4569 = vmatpush1.bf16.msra.mxu0 %v4446
      %4570 = vmatprep.subr.bf16.mxu0 0
      %4571 = vmatpush1.bf16.msra.mxu0 %v4447
      %4572 = vmatprep.subr.bf16.mxu0 0
      %4573 = vmatpush1.bf16.msra.mxu0 %v4448
      %4574 = vmatprep.subr.bf16.mxu0 0
      %4575 = vmatpush1.bf16.msra.mxu0 %v4449
      %4576 = vmatprep.subr.bf16.mxu0 0
      %4577 = vmatpush1.bf16.msra.mxu0 %v4450
      %4578 = vmatprep.subr.bf16.mxu0 0
      %4579 = vmatpush1.bf16.msra.mxu0 %v4451
      %4580 = vmatprep.subr.bf16.mxu0 0
      %4581 = vmatpush1.bf16.msra.mxu0 %v4452
      %4582 = vmatprep.subr.bf16.mxu0 0
      %4583 = vmatpush1.bf16.msra.mxu0 %v4453
      %4584 = vmatprep.subr.bf16.mxu0 0
      %4585 = vmatpush1.bf16.msra.mxu0 %v4454
      %4586 = vmatprep.subr.bf16.mxu0 0
      %4587 = vmatpush1.bf16.msra.mxu0 %v4455
      %4588 = vmatprep.subr.bf16.mxu0 0
      %4589 = vmatpush1.bf16.msra.mxu0 %v4456
      %4590 = vmatprep.subr.bf16.mxu0 0
      %4591 = vmatpush1.bf16.msra.mxu0 %v4457
      %4592 = vmatprep.subr.bf16.mxu0 0
      %4593 = vmatpush1.bf16.msra.mxu0 %v4458
      %4594 = vmatprep.subr.bf16.mxu0 0
      %4595 = vmatpush1.bf16.msra.mxu0 %v4459
      %4596 = vmatprep.mubr.bf16.mxu0 %v4212
      %4597 = vmatmul.mubr.bf16.gmra.mrb[0].mxu0 %v4211
      %v4598 = vpop.f32.mrb[0].mxu0
      %v4599 = vadd.f32 %v4527, %v4598
      %v4600 = vpop.f32.mrb[0].mxu0
      %v4601 = vpop.f32.mrb[0].mxu0
      %v4602 = vadd.f32 %v4530, %v4601
      %v4603 = vpop.f32.mrb[0].mxu0
      %4604 = vmatprep.mubr.bf16.mxu0 %v4216
      %4605 = vmatmul.mubr.bf16.gmra.mrb[0].mxu0 %v4215
      %v4606 = vpop.f32.mrb[0].mxu0
      %v4607 = vadd.f32 %v4535, %v4606
      %v4608 = vpop.f32.mrb[0].mxu0
      %v4609 = vpop.f32.mrb[0].mxu0
      %v4610 = vadd.f32 %v4538, %v4609
      %v4611 = vpop.f32.mrb[0].mxu0
      %4612 = vmatprep.mubr.bf16.mxu0 %v4220
      %4613 = vmatmul.mubr.bf16.gmra.mrb[0].mxu0 %v4219
      %v4614 = vpop.f32.mrb[0].mxu0
      %v4615 = vadd.f32 %v4543, %v4614
      %v4616 = vpop.f32.mrb[0].mxu0
      %v4617 = vpop.f32.mrb[0].mxu0
      %v4618 = vadd.f32 %v4546, %v4617
      %v4619 = vpop.f32.mrb[0].mxu0
      %4620 = vmatprep.mubr.bf16.mxu0 %v4224
      %4621 = vmatmul.mubr.bf16.gmra.mrb[0].mxu0 %v4223
      %v4622 = vpop.f32.mrb[0].mxu0
      %v4623 = vadd.f32 %v4551, %v4622
      %v4624 = vpop.f32.mrb[0].mxu0
      %v4625 = vpop.f32.mrb[0].mxu0
      %v4626 = vadd.f32 %v4554, %v4625
      %v4627 = vpop.f32.mrb[0].mxu0
      %4628 = vmatprep.mubr.bf16.mxu0 %v4228
      %4629 = vmatmul.mubr.bf16.gmra.mrb[0].mxu0 %v4227
      %v4630 = vpop.f32.mrb[0].mxu0
      %v4631 = vadd.f32 %v4559, %v4630
      %v4632 = vpop.f32.mrb[0].mxu0
      %v4633 = vpop.f32.mrb[0].mxu0
      %v4634 = vpop.f32.mrb[0].mxu0
      %4635 = vdwg.mxu0
      %v4636 = vadd.f32 %v3508, %v4599
      %v4637 = vadd.f32 %v3509, %v4602
      %v4638 = vadd.f32 %v3510, %v4607
      %v4639 = vadd.f32 %v3511, %v4610
      %v4640 = vadd.f32 %v3512, %v4615
      %v4641 = vadd.f32 %v3513, %v4618
      %v4642 = vadd.f32 %v3514, %v4623
      %v4643 = vadd.f32 %v3515, %v4626
      %v4644 = vadd.f32 %v3516, %v4631
      %s4645 = scalar_lea.vmem %s3, 1
      %v4646 = vld [vmem:[%s4645] sm:$0x1]
      %s4647 = scalar_lea.vmem %s4, 1
      %v4648 = vld [vmem:[%s4647] sm:$0x1]
      %4649 = vadd.xlane.f32.xlu0 %v4636
      %v4650 = vpop.xlane.xlu0 %4649
      %4651 = vadd.xlane.f32.xlu0 %v4637
      %v4652 = vpop.xlane.xlu0 %4651
      %4653 = vadd.xlane.f32.xlu0 %v4638
      %v4654 = vpop.xlane.xlu0 %4653
      %4655 = vadd.xlane.f32.xlu0 %v4639
      %v4656 = vpop.xlane.xlu0 %4655
      %4657 = vadd.xlane.f32.xlu0 %v4640
      %v4658 = vpop.xlane.xlu0 %4657
      %4659 = vadd.xlane.f32.xlu0 %v4641
      %v4660 = vpop.xlane.xlu0 %4659
      %4661 = vadd.xlane.f32.xlu0 %v4642
      %v4662 = vpop.xlane.xlu0 %4661
      %4663 = vadd.xlane.f32.xlu0 %v4643
      %v4664 = vpop.xlane.xlu0 %4663
      %4665 = vadd.xlane.f32.xlu0 %v4644
      %v4666 = vpop.xlane.xlu0 %4665
      %v4667 = vmul.f32 %v4650, %v746
      %v4668 = vmul.f32 %v4652, %v746
      %v4669 = vmul.f32 %v4654, %v746
      %v4670 = vmul.f32 %v4656, %v746
      %v4671 = vmul.f32 %v4658, %v746
      %v4672 = vmul.f32 %v4660, %v746
      %v4673 = vmul.f32 %v4662, %v746
      %v4674 = vmul.f32 %v4664, %v746
      %v4675 = vmul.f32 %v4666, %v746
      %v4676 = vsub.f32 %v4636, %v4667
      %v4677 = vsub.f32 %v4637, %v4668
      %v4678 = vsub.f32 %v4638, %v4669
      %v4679 = vsub.f32 %v4639, %v4670
      %v4680 = vsub.f32 %v4640, %v4671
      %v4681 = vsub.f32 %v4641, %v4672
      %v4682 = vsub.f32 %v4642, %v4673
      %v4683 = vsub.f32 %v4643, %v4674
      %v4684 = vsub.f32 %v4644, %v4675
      %v4685 = vmul.f32 %v4676, %v4676
      %v4686 = vmul.f32 %v4677, %v4677
      %v4687 = vmul.f32 %v4678, %v4678
      %v4688 = vmul.f32 %v4679, %v4679
      %v4689 = vmul.f32 %v4680, %v4680
      %v4690 = vmul.f32 %v4681, %v4681
      %v4691 = vmul.f32 %v4682, %v4682
      %v4692 = vmul.f32 %v4683, %v4683
      %v4693 = vmul.f32 %v4684, %v4684
      %4694 = vadd.xlane.f32.xlu0 %v4685
      %v4695 = vpop.xlane.xlu0 %4694
      %4696 = vadd.xlane.f32.xlu0 %v4686
      %v4697 = vpop.xlane.xlu0 %4696
      %4698 = vadd.xlane.f32.xlu0 %v4687
      %v4699 = vpop.xlane.xlu0 %4698
      %4700 = vadd.xlane.f32.xlu0 %v4688
      %v4701 = vpop.xlane.xlu0 %4700
      %4702 = vadd.xlane.f32.xlu0 %v4689
      %v4703 = vpop.xlane.xlu0 %4702
      %4704 = vadd.xlane.f32.xlu0 %v4690
      %v4705 = vpop.xlane.xlu0 %4704
      %4706 = vadd.xlane.f32.xlu0 %v4691
      %v4707 = vpop.xlane.xlu0 %4706
      %4708 = vadd.xlane.f32.xlu0 %v4692
      %v4709 = vpop.xlane.xlu0 %4708
      %4710 = vadd.xlane.f32.xlu0 %v4693
      %v4711 = vpop.xlane.xlu0 %4710
      %v4712 = vmul.f32 %v4695, %v746
      %v4713 = vmul.f32 %v4697, %v746
      %v4714 = vmul.f32 %v4699, %v746
      %v4715 = vmul.f32 %v4701, %v746
      %v4716 = vmul.f32 %v4703, %v746
      %v4717 = vmul.f32 %v4705, %v746
      %v4718 = vmul.f32 %v4707, %v746
      %v4719 = vmul.f32 %v4709, %v746
      %v4720 = vmul.f32 %v4711, %v746
      %v4721 = vadd.f32 %v4712, 1e-06
      %v4722 = vadd.f32 %v4713, 1e-06
      %v4723 = vadd.f32 %v4714, 1e-06
      %v4724 = vadd.f32 %v4715, 1e-06
      %v4725 = vadd.f32 %v4716, 1e-06
      %v4726 = vadd.f32 %v4717, 1e-06
      %v4727 = vadd.f32 %v4718, 1e-06
      %v4728 = vadd.f32 %v4719, 1e-06
      %v4729 = vadd.f32 %v4720, 1e-06
      %v4730 = vrsqrt.pop %v4721
      %v4731 = vrsqrt.pop %v4722
      %v4732 = vrsqrt.pop %v4723
      %v4733 = vrsqrt.pop %v4724
      %v4734 = vrsqrt.pop %v4725
      %v4735 = vrsqrt.pop %v4726
      %v4736 = vrsqrt.pop %v4727
      %v4737 = vrsqrt.pop %v4728
      %v4738 = vrsqrt.pop %v4729
      %v4739 = vmul.f32 %v4676, %v4730
      %v4740 = vmul.f32 %v4677, %v4731
      %v4741 = vmul.f32 %v4678, %v4732
      %v4742 = vmul.f32 %v4679, %v4733
      %v4743 = vmul.f32 %v4680, %v4734
      %v4744 = vmul.f32 %v4681, %v4735
      %v4745 = vmul.f32 %v4682, %v4736
      %v4746 = vmul.f32 %v4683, %v4737
      %v4747 = vmul.f32 %v4684, %v4738
      %v4749 = vlaneseq
      %v4750 = vshrl.u32 %v4749, 7
      %v4751 = vsub.s32 0, %v4750
      %v4752 = vrot.slane %v4646, %v4751
      %v4754 = vmul.f32 %v4739, %v4752
      %v4755 = vmul.f32 %v4740, %v4752
      %v4756 = vmul.f32 %v4741, %v4752
      %v4757 = vmul.f32 %v4742, %v4752
      %v4758 = vmul.f32 %v4743, %v4752
      %v4759 = vmul.f32 %v4744, %v4752
      %v4760 = vmul.f32 %v4745, %v4752
      %v4761 = vmul.f32 %v4746, %v4752
      %v4762 = vmul.f32 %v4747, %v4752
      %v4764 = vlaneseq
      %v4765 = vshrl.u32 %v4764, 7
      %v4766 = vsub.s32 0, %v4765
      %v4767 = vrot.slane %v4648, %v4766
      %v4769 = vadd.f32 %v4754, %v4767
      %v4770 = vadd.f32 %v4755, %v4767
      %v4771 = vadd.f32 %v4756, %v4767
      %v4772 = vadd.f32 %v4757, %v4767
      %v4773 = vadd.f32 %v4758, %v4767
      %v4774 = vadd.f32 %v4759, %v4767
      %v4775 = vadd.f32 %v4760, %v4767
      %v4776 = vadd.f32 %v4761, %v4767
      %v4777 = vadd.f32 %v4762, %v4767
      %v4778 = vpack.c.bf16 %v4770, %v4769
      %v4779 = vpack.c.bf16 %v4772, %v4771
      %v4780 = vpack.c.bf16 %v4774, %v4773
      %v4781 = vpack.c.bf16 %v4776, %v4775
      %v4782 = vpack.c.bf16 %v4777, %v4777
      %s4783 = scalar_lea.vmem %s5, 192
      %v4784 = vld [vmem:[%s4783] sm:$0xff]
      %v4785 = vld [vmem:[%s4783 + $0x8] sm:$0xf]
      %v4786 = vld [vmem:[%s4783 + $0xc] sm:$0xff]
      %v4787 = vld [vmem:[%s4783 + $0x14] sm:$0xf]
      %v4788 = vld [vmem:[%s4783 + $0x18] sm:$0xff]
      %v4789 = vld [vmem:[%s4783 + $0x20] sm:$0xf]
      %v4790 = vld [vmem:[%s4783 + $0x24] sm:$0xff]
      %v4791 = vld [vmem:[%s4783 + $0x2c] sm:$0xf]
      %v4792 = vld [vmem:[%s4783 + $0x30] sm:$0xff]
      %v4793 = vld [vmem:[%s4783 + $0x38] sm:$0xf]
      %v4794 = vld [vmem:[%s4783 + $0x3c] sm:$0xff]
      %v4795 = vld [vmem:[%s4783 + $0x44] sm:$0xf]
      %v4796 = vld [vmem:[%s4783 + $0x48] sm:$0xff]
      %v4797 = vld [vmem:[%s4783 + $0x50] sm:$0xf]
      %v4798 = vld [vmem:[%s4783 + $0x54] sm:$0xff]
      %v4799 = vld [vmem:[%s4783 + $0x5c] sm:$0xf]
      %v4800 = vld [vmem:[%s4783 + $0x60] sm:$0xff]
      %v4801 = vld [vmem:[%s4783 + $0x68] sm:$0xf]
      %v4802 = vld [vmem:[%s4783 + $0x6c] sm:$0xff]
      %v4803 = vld [vmem:[%s4783 + $0x74] sm:$0xf]
      %v4804 = vld [vmem:[%s4783 + $0x78] sm:$0xff]
      %v4805 = vld [vmem:[%s4783 + $0x80] sm:$0xf]
      %v4806 = vld [vmem:[%s4783 + $0x84] sm:$0xff]
      %v4807 = vld [vmem:[%s4783 + $0x8c] sm:$0xf]
      %v4808 = vld [vmem:[%s4783 + $0x90] sm:$0xff]
      %v4809 = vld [vmem:[%s4783 + $0x98] sm:$0xf]
      %v4810 = vld [vmem:[%s4783 + $0x9c] sm:$0xff]
      %v4811 = vld [vmem:[%s4783 + $0xa4] sm:$0xf]
      %v4812 = vld [vmem:[%s4783 + $0xa8] sm:$0xff]
      %v4813 = vld [vmem:[%s4783 + $0xb0] sm:$0xf]
      %v4814 = vld [vmem:[%s4783 + $0xb4] sm:$0xff]
      %v4815 = vld [vmem:[%s4783 + $0xbc] sm:$0xf]
      %s4816 = scalar_lea.vmem %s6, 3
      %v4817 = vld [vmem:[%s4816] sm:$0x7]
      %v4819 = vlaneseq
      %v4820 = vshrl.u32 %v4819, 7
      %v4821 = vsub.s32 0, %v4820
      %v4822 = vrot.slane %v4817, %v4821
      %v4823 = vlaneseq
      %v4824 = vshrl.u32 %v4823, 7
      %v4825 = vsub.s32 1, %v4824
      %v4826 = vrot.slane %v4817, %v4825
      %v4827 = vlaneseq
      %v4828 = vshrl.u32 %v4827, 7
      %v4829 = vsub.s32 2, %v4828
      %v4830 = vrot.slane %v4817, %v4829
      %v4866 = vunpack.c.l.b16 %v4784
      %v4867 = vunpack.c.h.b16 %v4784
      %v4868 = vunpack.c.l.b16 %v4785
      %v4869 = vunpack.c.l.b16 %v4786
      %v4870 = vunpack.c.h.b16 %v4786
      %v4871 = vunpack.c.l.b16 %v4787
      %v4872 = vunpack.c.l.b16 %v4788
      %v4873 = vunpack.c.h.b16 %v4788
      %v4874 = vunpack.c.l.b16 %v4789
      %v4875 = vunpack.c.l.b16 %v4790
      %v4876 = vunpack.c.h.b16 %v4790
      %v4877 = vunpack.c.l.b16 %v4791
      %v4878 = vunpack.c.l.b16 %v4792
      %v4879 = vunpack.c.h.b16 %v4792
      %v4880 = vunpack.c.l.b16 %v4793
      %v4881 = vunpack.c.l.b16 %v4794
      %v4882 = vunpack.c.h.b16 %v4794
      %v4883 = vunpack.c.l.b16 %v4795
      %v4884 = vunpack.c.l.b16 %v4796
      %v4885 = vunpack.c.h.b16 %v4796
      %v4886 = vunpack.c.l.b16 %v4797
      %v4887 = vunpack.c.l.b16 %v4798
      %v4888 = vunpack.c.h.b16 %v4798
      %v4889 = vunpack.c.l.b16 %v4799
      %v4890 = vunpack.c.l.b16 %v4800
      %v4891 = vunpack.c.h.b16 %v4800
      %v4892 = vunpack.c.l.b16 %v4801
      %v4893 = vunpack.c.l.b16 %v4802
      %v4894 = vunpack.c.h.b16 %v4802
      %v4895 = vunpack.c.l.b16 %v4803
      %v4896 = vunpack.c.l.b16 %v4804
      %v4897 = vunpack.c.h.b16 %v4804
      %v4898 = vunpack.c.l.b16 %v4805
      %v4899 = vunpack.c.l.b16 %v4806
      %v4900 = vunpack.c.h.b16 %v4806
      %v4901 = vunpack.c.l.b16 %v4807
      %v4902 = vunpack.c.l.b16 %v4808
      %v4903 = vunpack.c.h.b16 %v4808
      %v4904 = vunpack.c.l.b16 %v4809
      %v4905 = vunpack.c.l.b16 %v4810
      %v4906 = vunpack.c.h.b16 %v4810
      %v4907 = vunpack.c.l.b16 %v4811
      %v4908 = vunpack.c.l.b16 %v4812
      %v4909 = vunpack.c.h.b16 %v4812
      %v4910 = vunpack.c.l.b16 %v4813
      %v4911 = vunpack.c.l.b16 %v4814
      %v4912 = vunpack.c.h.b16 %v4814
      %v4913 = vunpack.c.l.b16 %v4815
      %v4914 = vpack.c.b16 %v4869, %v4866
      %v4915 = vpack.c.b16 %v4870, %v4867
      %v4916 = vpack.c.b16 %v4871, %v4868
      %v4917 = vpack.c.b16 %v4875, %v4872
      %v4918 = vpack.c.b16 %v4876, %v4873
      %v4919 = vpack.c.b16 %v4877, %v4874
      %v4920 = vpack.c.b16 %v4881, %v4878
      %v4921 = vpack.c.b16 %v4882, %v4879
      %v4922 = vpack.c.b16 %v4883, %v4880
      %v4923 = vpack.c.b16 %v4887, %v4884
      %v4924 = vpack.c.b16 %v4888, %v4885
      %v4925 = vpack.c.b16 %v4889, %v4886
      %v4926 = vpack.c.b16 %v4893, %v4890
      %v4927 = vpack.c.b16 %v4894, %v4891
      %v4928 = vpack.c.b16 %v4895, %v4892
      %v4929 = vpack.c.b16 %v4899, %v4896
      %v4930 = vpack.c.b16 %v4900, %v4897
      %v4931 = vpack.c.b16 %v4901, %v4898
      %v4932 = vpack.c.b16 %v4905, %v4902
      %v4933 = vpack.c.b16 %v4906, %v4903
      %v4934 = vpack.c.b16 %v4907, %v4904
      %v4935 = vpack.c.b16 %v4911, %v4908
      %v4936 = vpack.c.b16 %v4912, %v4909
      %v4937 = vpack.c.b16 %v4913, %v4910
      %4962 = vmatprep.subr.bf16.mxu0 %v4915
      %4963 = vmatpush1.bf16.msra.mxu0 %v4914
      %4964 = vmatprep.subr.bf16.mxu0 %v4918
      %4965 = vmatpush1.bf16.msra.mxu0 %v4917
      %4966 = vmatprep.subr.bf16.mxu0 %v4921
      %4967 = vmatpush1.bf16.msra.mxu0 %v4920
      %4968 = vmatprep.subr.bf16.mxu0 %v4924
      %4969 = vmatpush1.bf16.msra.mxu0 %v4923
      %4970 = vmatprep.subr.bf16.mxu0 %v4927
      %4971 = vmatpush1.bf16.msra.mxu0 %v4926
      %4972 = vmatprep.subr.bf16.mxu0 %v4930
      %4973 = vmatpush1.bf16.msra.mxu0 %v4929
      %4974 = vmatprep.subr.bf16.mxu0 %v4933
      %4975 = vmatpush1.bf16.msra.mxu0 %v4932
      %4976 = vmatprep.subr.bf16.mxu0 %v4936
      %4977 = vmatpush1.bf16.msra.mxu0 %v4935
      %4978 = vmatprep.subr.bf16.mxu0 0
      %4979 = vmatpush1.bf16.msra.mxu0 0
      %4980 = vmatprep.subr.bf16.mxu0 0
      %4981 = vmatpush1.bf16.msra.mxu0 0
      %4982 = vmatprep.subr.bf16.mxu0 0
      %4983 = vmatpush1.bf16.msra.mxu0 0
      %4984 = vmatprep.subr.bf16.mxu0 0
      %4985 = vmatpush1.bf16.msra.mxu0 0
      %4986 = vmatprep.subr.bf16.mxu0 0
      %4987 = vmatpush1.bf16.msra.mxu0 0
      %4988 = vmatprep.subr.bf16.mxu0 0
      %4989 = vmatpush1.bf16.msra.mxu0 0
      %4990 = vmatprep.subr.bf16.mxu0 0
      %4991 = vmatpush1.bf16.msra.mxu0 0
      %4992 = vmatprep.subr.bf16.mxu0 0
      %4993 = vmatpush1.bf16.msra.mxu0 0
      %4994 = vmatprep.mubr.bf16.mxu0 0
      %4995 = vmatmul.mubr.bf16.gmra.mrb[0].mxu0 %v4778
      %v4996 = vpop.f32.mrb[0].mxu0
      %v4997 = vadd.f32 %v4822, %v4996
      %v4998 = vpop.f32.mrb[0].mxu0
      %v4999 = vadd.f32 %v4826, %v4998
      %v5000 = vpop.f32.mrb[0].mxu0
      %v5001 = vadd.f32 %v4822, %v5000
      %v5002 = vpop.f32.mrb[0].mxu0
      %v5003 = vadd.f32 %v4826, %v5002
      %5004 = vmatprep.mubr.bf16.mxu0 0
      %5005 = vmatmul.mubr.bf16.gmra.mrb[0].mxu0 %v4779
      %v5006 = vpop.f32.mrb[0].mxu0
      %v5007 = vadd.f32 %v4822, %v5006
      %v5008 = vpop.f32.mrb[0].mxu0
      %v5009 = vadd.f32 %v4826, %v5008
      %v5010 = vpop.f32.mrb[0].mxu0
      %v5011 = vadd.f32 %v4822, %v5010
      %v5012 = vpop.f32.mrb[0].mxu0
      %v5013 = vadd.f32 %v4826, %v5012
      %5014 = vmatprep.mubr.bf16.mxu0 0
      %5015 = vmatmul.mubr.bf16.gmra.mrb[0].mxu0 %v4780
      %v5016 = vpop.f32.mrb[0].mxu0
      %v5017 = vadd.f32 %v4822, %v5016
      %v5018 = vpop.f32.mrb[0].mxu0
      %v5019 = vadd.f32 %v4826, %v5018
      %v5020 = vpop.f32.mrb[0].mxu0
      %v5021 = vadd.f32 %v4822, %v5020
      %v5022 = vpop.f32.mrb[0].mxu0
      %v5023 = vadd.f32 %v4826, %v5022
      %5024 = vmatprep.mubr.bf16.mxu0 0
      %5025 = vmatmul.mubr.bf16.gmra.mrb[0].mxu0 %v4781
      %v5026 = vpop.f32.mrb[0].mxu0
      %v5027 = vadd.f32 %v4822, %v5026
      %v5028 = vpop.f32.mrb[0].mxu0
      %v5029 = vadd.f32 %v4826, %v5028
      %v5030 = vpop.f32.mrb[0].mxu0
      %v5031 = vadd.f32 %v4822, %v5030
      %v5032 = vpop.f32.mrb[0].mxu0
      %v5033 = vadd.f32 %v4826, %v5032
      %5034 = vmatprep.mubr.bf16.mxu0 0
      %5035 = vmatmul.mubr.bf16.gmra.mrb[0].mxu0 %v4782
      %v5036 = vpop.f32.mrb[0].mxu0
      %v5037 = vadd.f32 %v4822, %v5036
      %v5038 = vpop.f32.mrb[0].mxu0
      %v5039 = vadd.f32 %v4826, %v5038
      %v5040 = vpop.f32.mrb[0].mxu0
      %v5041 = vpop.f32.mrb[0].mxu0
      %5042 = vdwg.mxu0
      %5043 = vmatprep.subr.bf16.mxu0 0
      %5044 = vmatpush1.bf16.msra.mxu0 %v4916
      %5045 = vmatprep.subr.bf16.mxu0 0
      %5046 = vmatpush1.bf16.msra.mxu0 %v4919
      %5047 = vmatprep.subr.bf16.mxu0 0
      %5048 = vmatpush1.bf16.msra.mxu0 %v4922
      %5049 = vmatprep.subr.bf16.mxu0 0
      %5050 = vmatpush1.bf16.msra.mxu0 %v4925
      %5051 = vmatprep.subr.bf16.mxu0 0
      %5052 = vmatpush1.bf16.msra.mxu0 %v4928
      %5053 = vmatprep.subr.bf16.mxu0 0
      %5054 = vmatpush1.bf16.msra.mxu0 %v4931
      %5055 = vmatprep.subr.bf16.mxu0 0
      %5056 = vmatpush1.bf16.msra.mxu0 %v4934
      %5057 = vmatprep.subr.bf16.mxu0 0
      %5058 = vmatpush1.bf16.msra.mxu0 %v4937
      %5059 = vmatprep.subr.bf16.mxu0 0
      %5060 = vmatpush1.bf16.msra.mxu0 0
      %5061 = vmatprep.subr.bf16.mxu0 0
      %5062 = vmatpush1.bf16.msra.mxu0 0
      %5063 = vmatprep.subr.bf16.mxu0 0
      %5064 = vmatpush1.bf16.msra.mxu0 0
      %5065 = vmatprep.subr.bf16.mxu0 0
      %5066 = vmatpush1.bf16.msra.mxu0 0
      %5067 = vmatprep.subr.bf16.mxu0 0
      %5068 = vmatpush1.bf16.msra.mxu0 0
      %5069 = vmatprep.subr.bf16.mxu0 0
      %5070 = vmatpush1.bf16.msra.mxu0 0
      %5071 = vmatprep.subr.bf16.mxu0 0
      %5072 = vmatpush1.bf16.msra.mxu0 0
      %5073 = vmatprep.subr.bf16.mxu0 0
      %5074 = vmatpush1.bf16.msra.mxu0 0
      %5075 = vmatprep.mubr.bf16.mxu0 0
      %5076 = vmatmul.mubr.bf16.gmra.mrb[0].mxu0 %v4778
      %v5077 = vpop.f32.mrb[0].mxu0
      %v5078 = vadd.f32 %v4830, %v5077
      %v5079 = vpop.f32.mrb[0].mxu0
      %v5080 = vpop.f32.mrb[0].mxu0
      %v5081 = vadd.f32 %v4830, %v5080
      %v5082 = vpop.f32.mrb[0].mxu0
      %5083 = vmatprep.mubr.bf16.mxu0 0
      %5084 = vmatmul.mubr.bf16.gmra.mrb[0].mxu0 %v4779
      %v5085 = vpop.f32.mrb[0].mxu0
      %v5086 = vadd.f32 %v4830, %v5085
      %v5087 = vpop.f32.mrb[0].mxu0
      %v5088 = vpop.f32.mrb[0].mxu0
      %v5089 = vadd.f32 %v4830, %v5088
      %v5090 = vpop.f32.mrb[0].mxu0
      %5091 = vmatprep.mubr.bf16.mxu0 0
      %5092 = vmatmul.mubr.bf16.gmra.mrb[0].mxu0 %v4780
      %v5093 = vpop.f32.mrb[0].mxu0
      %v5094 = vadd.f32 %v4830, %v5093
      %v5095 = vpop.f32.mrb[0].mxu0
      %v5096 = vpop.f32.mrb[0].mxu0
      %v5097 = vadd.f32 %v4830, %v5096
      %v5098 = vpop.f32.mrb[0].mxu0
      %5099 = vmatprep.mubr.bf16.mxu0 0
      %5100 = vmatmul.mubr.bf16.gmra.mrb[0].mxu0 %v4781
      %v5101 = vpop.f32.mrb[0].mxu0
      %v5102 = vadd.f32 %v4830, %v5101
      %v5103 = vpop.f32.mrb[0].mxu0
      %v5104 = vpop.f32.mrb[0].mxu0
      %v5105 = vadd.f32 %v4830, %v5104
      %v5106 = vpop.f32.mrb[0].mxu0
      %5107 = vmatprep.mubr.bf16.mxu0 0
      %5108 = vmatmul.mubr.bf16.gmra.mrb[0].mxu0 %v4782
      %v5109 = vpop.f32.mrb[0].mxu0
      %v5110 = vadd.f32 %v4830, %v5109
      %v5111 = vpop.f32.mrb[0].mxu0
      %v5112 = vpop.f32.mrb[0].mxu0
      %v5113 = vpop.f32.mrb[0].mxu0
      %5114 = vdwg.mxu0
      %v5115 = vpack.c.bf16 %v5001, %v4997
      %v5116 = vpack.c.bf16 %v5007, %v5007
      %v5117 = vpack.c.bf16 %v5017, %v5011
      %v5118 = vpack.c.bf16 %v5021, %v5021
      %v5119 = vpack.c.bf16 %v5031, %v5027
      %v5120 = vpack.c.bf16 %v5037, %v5037
      %v5121 = vpack.c.bf16 %v5003, %v4999
      %v5122 = vpack.c.bf16 %v5009, %v5009
      %v5123 = vpack.c.bf16 %v5019, %v5013
      %v5124 = vpack.c.bf16 %v5023, %v5023
      %v5125 = vpack.c.bf16 %v5033, %v5029
      %v5126 = vpack.c.bf16 %v5039, %v5039
      %v5127 = vpack.c.bf16 %v5081, %v5078
      %v5128 = vpack.c.bf16 %v5086, %v5086
      %v5129 = vpack.c.bf16 %v5094, %v5089
      %v5130 = vpack.c.bf16 %v5097, %v5097
      %v5131 = vpack.c.bf16 %v5105, %v5102
      %v5132 = vpack.c.bf16 %v5110, %v5110
      %v5134 = vsel %vm1189, %v5115, 0
      %v5137 = vsel %vm1189, %v5116, 0
      %v5140 = vsel %vm1189, %v5121, 0
      %v5143 = vsel %vm1189, %v5122, 0
      %5145 = vmatprep.subr.bf16.mxu0 0
      %5146 = vmatpush1.bf16.xpose.msra.mxu0 %v5140
      %5147 = vmatprep.subr.bf16.mxu0 0
      %5148 = vmatpush1.bf16.xpose.msra.mxu0 %v5143
      %5149 = vmatprep.subr.bf16.mxu0 0
      %5150 = vmatpush1.bf16.xpose.msra.mxu0 0
      %5151 = vmatprep.subr.bf16.mxu0 0
      %5152 = vmatpush1.bf16.xpose.msra.mxu0 0
      %5153 = vmatprep.subr.bf16.mxu0 0
      %5154 = vmatpush1.bf16.xpose.msra.mxu0 0
      %5155 = vmatprep.subr.bf16.mxu0 0
      %5156 = vmatpush1.bf16.xpose.msra.mxu0 0
      %5157 = vmatprep.subr.bf16.mxu0 0
      %5158 = vmatpush1.bf16.xpose.msra.mxu0 0
      %5159 = vmatprep.subr.bf16.mxu0 0
      %5160 = vmatpush1.bf16.xpose.msra.mxu0 0
      %5161 = vmatprep.subr.bf16.mxu0 0
      %5162 = vmatpush1.bf16.xpose.msra.mxu0 0
      %5163 = vmatprep.subr.bf16.mxu0 0
      %5164 = vmatpush1.bf16.xpose.msra.mxu0 0
      %5165 = vmatprep.subr.bf16.mxu0 0
      %5166 = vmatpush1.bf16.xpose.msra.mxu0 0
      %5167 = vmatprep.subr.bf16.mxu0 0
      %5168 = vmatpush1.bf16.xpose.msra.mxu0 0
      %5169 = vmatprep.subr.bf16.mxu0 0
      %5170 = vmatpush1.bf16.xpose.msra.mxu0 0
      %5171 = vmatprep.subr.bf16.mxu0 0
      %5172 = vmatpush1.bf16.xpose.msra.mxu0 0
      %5173 = vmatprep.subr.bf16.mxu0 0
      %5174 = vmatpush1.bf16.xpose.msra.mxu0 0
      %5175 = vmatprep.subr.bf16.mxu0 0
      %5176 = vmatpush1.bf16.xpose.msra.mxu0 0
      %5177 = vmatprep.mubr.bf16.mxu0 0
      %5178 = vmatmul.mubr.bf16.gmra.mrb[0].mxu0 %v5134
      %v5179 = vpop.f32.mrb[0].mxu0
      %v5180 = vadd.f32 0.0, %v5179
      %v5181 = vpop.f32.mrb[0].mxu0
      %v5182 = vpop.f32.mrb[0].mxu0
      %v5183 = vadd.f32 0.0, %v5182
      %v5184 = vpop.f32.mrb[0].mxu0
      %5185 = vmatprep.mubr.bf16.mxu0 0
      %5186 = vmatmul.mubr.bf16.gmra.mrb[0].mxu0 %v5137
      %v5187 = vpop.f32.mrb[0].mxu0
      %v5188 = vadd.f32 0.0, %v5187
      %v5189 = vpop.f32.mrb[0].mxu0
      %v5190 = vpop.f32.mrb[0].mxu0
      %v5191 = vpop.f32.mrb[0].mxu0
      %5192 = vdwg.mxu0
      %v5194 = vsel %vm1189, %v5117, 0
      %v5197 = vsel %vm1189, %v5118, 0
      %v5200 = vsel %vm1189, %v5123, 0
      %v5203 = vsel %vm1189, %v5124, 0
      %5205 = vmatprep.subr.bf16.mxu0 0
      %5206 = vmatpush1.bf16.xpose.msra.mxu0 %v5200
      %5207 = vmatprep.subr.bf16.mxu0 0
      %5208 = vmatpush1.bf16.xpose.msra.mxu0 %v5203
      %5209 = vmatprep.subr.bf16.mxu0 0
      %5210 = vmatpush1.bf16.xpose.msra.mxu0 0
      %5211 = vmatprep.subr.bf16.mxu0 0
      %5212 = vmatpush1.bf16.xpose.msra.mxu0 0
      %5213 = vmatprep.subr.bf16.mxu0 0
      %5214 = vmatpush1.bf16.xpose.msra.mxu0 0
      %5215 = vmatprep.subr.bf16.mxu0 0
      %5216 = vmatpush1.bf16.xpose.msra.mxu0 0
      %5217 = vmatprep.subr.bf16.mxu0 0
      %5218 = vmatpush1.bf16.xpose.msra.mxu0 0
      %5219 = vmatprep.subr.bf16.mxu0 0
      %5220 = vmatpush1.bf16.xpose.msra.mxu0 0
      %5221 = vmatprep.subr.bf16.mxu0 0
      %5222 = vmatpush1.bf16.xpose.msra.mxu0 0
      %5223 = vmatprep.subr.bf16.mxu0 0
      %5224 = vmatpush1.bf16.xpose.msra.mxu0 0
      %5225 = vmatprep.subr.bf16.mxu0 0
      %5226 = vmatpush1.bf16.xpose.msra.mxu0 0
      %5227 = vmatprep.subr.bf16.mxu0 0
      %5228 = vmatpush1.bf16.xpose.msra.mxu0 0
      %5229 = vmatprep.subr.bf16.mxu0 0
      %5230 = vmatpush1.bf16.xpose.msra.mxu0 0
      %5231 = vmatprep.subr.bf16.mxu0 0
      %5232 = vmatpush1.bf16.xpose.msra.mxu0 0
      %5233 = vmatprep.subr.bf16.mxu0 0
      %5234 = vmatpush1.bf16.xpose.msra.mxu0 0
      %5235 = vmatprep.subr.bf16.mxu0 0
      %5236 = vmatpush1.bf16.xpose.msra.mxu0 0
      %5237 = vmatprep.mubr.bf16.mxu0 0
      %5238 = vmatmul.mubr.bf16.gmra.mrb[0].mxu0 %v5194
      %v5239 = vpop.f32.mrb[0].mxu0
      %v5240 = vadd.f32 0.0, %v5239
      %v5241 = vpop.f32.mrb[0].mxu0
      %v5242 = vpop.f32.mrb[0].mxu0
      %v5243 = vadd.f32 0.0, %v5242
      %v5244 = vpop.f32.mrb[0].mxu0
      %5245 = vmatprep.mubr.bf16.mxu0 0
      %5246 = vmatmul.mubr.bf16.gmra.mrb[0].mxu0 %v5197
      %v5247 = vpop.f32.mrb[0].mxu0
      %v5248 = vadd.f32 0.0, %v5247
      %v5249 = vpop.f32.mrb[0].mxu0
      %v5250 = vpop.f32.mrb[0].mxu0
      %v5251 = vpop.f32.mrb[0].mxu0
      %5252 = vdwg.mxu0
      %v5254 = vsel %vm1189, %v5119, 0
      %v5257 = vsel %vm1189, %v5120, 0
      %v5260 = vsel %vm1189, %v5125, 0
      %v5263 = vsel %vm1189, %v5126, 0
      %5265 = vmatprep.subr.bf16.mxu0 0
      %5266 = vmatpush1.bf16.xpose.msra.mxu0 %v5260
      %5267 = vmatprep.subr.bf16.mxu0 0
      %5268 = vmatpush1.bf16.xpose.msra.mxu0 %v5263
      %5269 = vmatprep.subr.bf16.mxu0 0
      %5270 = vmatpush1.bf16.xpose.msra.mxu0 0
      %5271 = vmatprep.subr.bf16.mxu0 0
      %5272 = vmatpush1.bf16.xpose.msra.mxu0 0
      %5273 = vmatprep.subr.bf16.mxu0 0
      %5274 = vmatpush1.bf16.xpose.msra.mxu0 0
      %5275 = vmatprep.subr.bf16.mxu0 0
      %5276 = vmatpush1.bf16.xpose.msra.mxu0 0
      %5277 = vmatprep.subr.bf16.mxu0 0
      %5278 = vmatpush1.bf16.xpose.msra.mxu0 0
      %5279 = vmatprep.subr.bf16.mxu0 0
      %5280 = vmatpush1.bf16.xpose.msra.mxu0 0
      %5281 = vmatprep.subr.bf16.mxu0 0
      %5282 = vmatpush1.bf16.xpose.msra.mxu0 0
      %5283 = vmatprep.subr.bf16.mxu0 0
      %5284 = vmatpush1.bf16.xpose.msra.mxu0 0
      %5285 = vmatprep.subr.bf16.mxu0 0
      %5286 = vmatpush1.bf16.xpose.msra.mxu0 0
      %5287 = vmatprep.subr.bf16.mxu0 0
      %5288 = vmatpush1.bf16.xpose.msra.mxu0 0
      %5289 = vmatprep.subr.bf16.mxu0 0
      %5290 = vmatpush1.bf16.xpose.msra.mxu0 0
      %5291 = vmatprep.subr.bf16.mxu0 0
      %5292 = vmatpush1.bf16.xpose.msra.mxu0 0
      %5293 = vmatprep.subr.bf16.mxu0 0
      %5294 = vmatpush1.bf16.xpose.msra.mxu0 0
      %5295 = vmatprep.subr.bf16.mxu0 0
      %5296 = vmatpush1.bf16.xpose.msra.mxu0 0
      %5297 = vmatprep.mubr.bf16.mxu0 0
      %5298 = vmatmul.mubr.bf16.gmra.mrb[0].mxu0 %v5254
      %v5299 = vpop.f32.mrb[0].mxu0
      %v5300 = vadd.f32 0.0, %v5299
      %v5301 = vpop.f32.mrb[0].mxu0
      %v5302 = vpop.f32.mrb[0].mxu0
      %v5303 = vadd.f32 0.0, %v5302
      %v5304 = vpop.f32.mrb[0].mxu0
      %5305 = vmatprep.mubr.bf16.mxu0 0
      %5306 = vmatmul.mubr.bf16.gmra.mrb[0].mxu0 %v5257
      %v5307 = vpop.f32.mrb[0].mxu0
      %v5308 = vadd.f32 0.0, %v5307
      %v5309 = vpop.f32.mrb[0].mxu0
      %v5310 = vpop.f32.mrb[0].mxu0
      %v5311 = vpop.f32.mrb[0].mxu0
      %5312 = vdwg.mxu0
      %v5313 = vmul.f32 %v5180, 0.17677669
      %v5314 = vmul.f32 %v5183, 0.17677669
      %v5315 = vmul.f32 %v5188, 0.17677669
      %v5316 = vmul.f32 %v5240, 0.17677669
      %v5317 = vmul.f32 %v5243, 0.17677669
      %v5318 = vmul.f32 %v5248, 0.17677669
      %v5319 = vmul.f32 %v5300, 0.17677669
      %v5320 = vmul.f32 %v5303, 0.17677669
      %v5321 = vmul.f32 %v5308, 0.17677669
      %v5322 = vadd.f32 %v5313, %v729
      %v5323 = vadd.f32 %v5314, %v729
      %v5324 = vadd.f32 %v5315, %v729
      %v5325 = vadd.f32 %v5316, %v729
      %v5326 = vadd.f32 %v5317, %v729
      %v5327 = vadd.f32 %v5318, %v729
      %v5328 = vadd.f32 %v5319, %v729
      %v5329 = vadd.f32 %v5320, %v729
      %v5330 = vadd.f32 %v5321, %v729
      %v5331 = vsel %vm1388, %v5322, -inf
      %5332 = vmax.xlane.f32.xlu0 %v5331
      %v5333 = vpop.xlane.xlu0 %5332
      %v5334 = vsel %vm1388, %v5323, -inf
      %5335 = vmax.xlane.f32.xlu0 %v5334
      %v5336 = vpop.xlane.xlu0 %5335
      %v5337 = vsel %vm1388, %v5324, -inf
      %5338 = vmax.xlane.f32.xlu0 %v5337
      %v5339 = vpop.xlane.xlu0 %5338
      %v5340 = vsel %vm1388, %v5325, -inf
      %5341 = vmax.xlane.f32.xlu0 %v5340
      %v5342 = vpop.xlane.xlu0 %5341
      %v5343 = vsel %vm1388, %v5326, -inf
      %5344 = vmax.xlane.f32.xlu0 %v5343
      %v5345 = vpop.xlane.xlu0 %5344
      %v5346 = vsel %vm1388, %v5327, -inf
      %5347 = vmax.xlane.f32.xlu0 %v5346
      %v5348 = vpop.xlane.xlu0 %5347
      %v5349 = vsel %vm1388, %v5328, -inf
      %5350 = vmax.xlane.f32.xlu0 %v5349
      %v5351 = vpop.xlane.xlu0 %5350
      %v5352 = vsel %vm1388, %v5329, -inf
      %5353 = vmax.xlane.f32.xlu0 %v5352
      %v5354 = vpop.xlane.xlu0 %5353
      %v5355 = vsel %vm1388, %v5330, -inf
      %5356 = vmax.xlane.f32.xlu0 %v5355
      %v5357 = vpop.xlane.xlu0 %5356
      %v5358 = vsub.f32 %v5322, %v5333
      %v5359 = vsub.f32 %v5323, %v5336
      %v5360 = vsub.f32 %v5324, %v5339
      %v5361 = vsub.f32 %v5325, %v5342
      %v5362 = vsub.f32 %v5326, %v5345
      %v5363 = vsub.f32 %v5327, %v5348
      %v5364 = vsub.f32 %v5328, %v5351
      %v5365 = vsub.f32 %v5329, %v5354
      %v5366 = vsub.f32 %v5330, %v5357
      %v5367 = vmul.f32 %v5358, 1.442695
      %v5368 = vpow.pop %v5367
      %v5369 = vmul.f32 %v5359, 1.442695
      %v5370 = vpow.pop %v5369
      %v5371 = vmul.f32 %v5360, 1.442695
      %v5372 = vpow.pop %v5371
      %v5373 = vmul.f32 %v5361, 1.442695
      %v5374 = vpow.pop %v5373
      %v5375 = vmul.f32 %v5362, 1.442695
      %v5376 = vpow.pop %v5375
      %v5377 = vmul.f32 %v5363, 1.442695
      %v5378 = vpow.pop %v5377
      %v5379 = vmul.f32 %v5364, 1.442695
      %v5380 = vpow.pop %v5379
      %v5381 = vmul.f32 %v5365, 1.442695
      %v5382 = vpow.pop %v5381
      %v5383 = vmul.f32 %v5366, 1.442695
      %v5384 = vpow.pop %v5383
      %v5385 = vsel %vm1388, %v5368, 0.0
      %5386 = vadd.xlane.f32.xlu0 %v5385
      %v5387 = vpop.xlane.xlu0 %5386
      %v5388 = vsel %vm1388, %v5370, 0.0
      %5389 = vadd.xlane.f32.xlu0 %v5388
      %v5390 = vpop.xlane.xlu0 %5389
      %v5391 = vsel %vm1388, %v5372, 0.0
      %5392 = vadd.xlane.f32.xlu0 %v5391
      %v5393 = vpop.xlane.xlu0 %5392
      %v5394 = vsel %vm1388, %v5374, 0.0
      %5395 = vadd.xlane.f32.xlu0 %v5394
      %v5396 = vpop.xlane.xlu0 %5395
      %v5397 = vsel %vm1388, %v5376, 0.0
      %5398 = vadd.xlane.f32.xlu0 %v5397
      %v5399 = vpop.xlane.xlu0 %5398
      %v5400 = vsel %vm1388, %v5378, 0.0
      %5401 = vadd.xlane.f32.xlu0 %v5400
      %v5402 = vpop.xlane.xlu0 %5401
      %v5403 = vsel %vm1388, %v5380, 0.0
      %5404 = vadd.xlane.f32.xlu0 %v5403
      %v5405 = vpop.xlane.xlu0 %5404
      %v5406 = vsel %vm1388, %v5382, 0.0
      %5407 = vadd.xlane.f32.xlu0 %v5406
      %v5408 = vpop.xlane.xlu0 %5407
      %v5409 = vsel %vm1388, %v5384, 0.0
      %5410 = vadd.xlane.f32.xlu0 %v5409
      %v5411 = vpop.xlane.xlu0 %5410
      %v5412 = vrcp.pop %v5387
      %v5413 = vrcp.pop %v5390
      %v5414 = vrcp.pop %v5393
      %v5415 = vrcp.pop %v5396
      %v5416 = vrcp.pop %v5399
      %v5417 = vrcp.pop %v5402
      %v5418 = vrcp.pop %v5405
      %v5419 = vrcp.pop %v5408
      %v5420 = vrcp.pop %v5411
      %v5421 = vmul.f32 %v5368, %v5412
      %v5422 = vmul.f32 %v5370, %v5413
      %v5423 = vmul.f32 %v5372, %v5414
      %v5424 = vmul.f32 %v5374, %v5415
      %v5425 = vmul.f32 %v5376, %v5416
      %v5426 = vmul.f32 %v5378, %v5417
      %v5427 = vmul.f32 %v5380, %v5418
      %v5428 = vmul.f32 %v5382, %v5419
      %v5429 = vmul.f32 %v5384, %v5420
      %v5430 = vpack.c.bf16 %v5422, %v5421
      %v5431 = vpack.c.bf16 %v5423, %v5423
      %v5432 = vpack.c.bf16 %v5425, %v5424
      %v5433 = vpack.c.bf16 %v5426, %v5426
      %v5434 = vpack.c.bf16 %v5428, %v5427
      %v5435 = vpack.c.bf16 %v5429, %v5429
      %v5437 = vsel %vm1388, %v5430, 0
      %v5440 = vsel %vm1388, %v5431, 0
      %v5443 = vsel %vm1500, %v5128, 0
      %5445 = vmatprep.subr.bf16.mxu0 0
      %5446 = vmatpush1.bf16.msra.mxu0 %v5127
      %5447 = vmatprep.subr.bf16.mxu0 0
      %5448 = vmatpush1.bf16.msra.mxu0 %v5443
      %5449 = vmatprep.subr.bf16.mxu0 0
      %5450 = vmatpush1.bf16.msra.mxu0 0
      %5451 = vmatprep.subr.bf16.mxu0 0
      %5452 = vmatpush1.bf16.msra.mxu0 0
      %5453 = vmatprep.subr.bf16.mxu0 0
      %5454 = vmatpush1.bf16.msra.mxu0 0
      %5455 = vmatprep.subr.bf16.mxu0 0
      %5456 = vmatpush1.bf16.msra.mxu0 0
      %5457 = vmatprep.subr.bf16.mxu0 0
      %5458 = vmatpush1.bf16.msra.mxu0 0
      %5459 = vmatprep.subr.bf16.mxu0 0
      %5460 = vmatpush1.bf16.msra.mxu0 0
      %5461 = vmatprep.subr.bf16.mxu0 0
      %5462 = vmatpush1.bf16.msra.mxu0 0
      %5463 = vmatprep.subr.bf16.mxu0 0
      %5464 = vmatpush1.bf16.msra.mxu0 0
      %5465 = vmatprep.subr.bf16.mxu0 0
      %5466 = vmatpush1.bf16.msra.mxu0 0
      %5467 = vmatprep.subr.bf16.mxu0 0
      %5468 = vmatpush1.bf16.msra.mxu0 0
      %5469 = vmatprep.subr.bf16.mxu0 0
      %5470 = vmatpush1.bf16.msra.mxu0 0
      %5471 = vmatprep.subr.bf16.mxu0 0
      %5472 = vmatpush1.bf16.msra.mxu0 0
      %5473 = vmatprep.subr.bf16.mxu0 0
      %5474 = vmatpush1.bf16.msra.mxu0 0
      %5475 = vmatprep.subr.bf16.mxu0 0
      %5476 = vmatpush1.bf16.msra.mxu0 0
      %5477 = vmatprep.mubr.bf16.mxu0 0
      %5478 = vmatmul.mubr.bf16.gmra.mrb[0].mxu0 %v5437
      %v5479 = vpop.f32.mrb[0].mxu0
      %v5480 = vadd.f32 0.0, %v5479
      %v5481 = vpop.f32.mrb[0].mxu0
      %v5482 = vpop.f32.mrb[0].mxu0
      %v5483 = vadd.f32 0.0, %v5482
      %v5484 = vpop.f32.mrb[0].mxu0
      %5485 = vmatprep.mubr.bf16.mxu0 0
      %5486 = vmatmul.mubr.bf16.gmra.mrb[0].mxu0 %v5440
      %v5487 = vpop.f32.mrb[0].mxu0
      %v5488 = vadd.f32 0.0, %v5487
      %v5489 = vpop.f32.mrb[0].mxu0
      %v5490 = vpop.f32.mrb[0].mxu0
      %v5491 = vpop.f32.mrb[0].mxu0
      %5492 = vdwg.mxu0
      %v5494 = vsel %vm1388, %v5432, 0
      %v5497 = vsel %vm1388, %v5433, 0
      %v5500 = vsel %vm1500, %v5130, 0
      %5502 = vmatprep.subr.bf16.mxu0 0
      %5503 = vmatpush1.bf16.msra.mxu0 %v5129
      %5504 = vmatprep.subr.bf16.mxu0 0
      %5505 = vmatpush1.bf16.msra.mxu0 %v5500
      %5506 = vmatprep.subr.bf16.mxu0 0
      %5507 = vmatpush1.bf16.msra.mxu0 0
      %5508 = vmatprep.subr.bf16.mxu0 0
      %5509 = vmatpush1.bf16.msra.mxu0 0
      %5510 = vmatprep.subr.bf16.mxu0 0
      %5511 = vmatpush1.bf16.msra.mxu0 0
      %5512 = vmatprep.subr.bf16.mxu0 0
      %5513 = vmatpush1.bf16.msra.mxu0 0
      %5514 = vmatprep.subr.bf16.mxu0 0
      %5515 = vmatpush1.bf16.msra.mxu0 0
      %5516 = vmatprep.subr.bf16.mxu0 0
      %5517 = vmatpush1.bf16.msra.mxu0 0
      %5518 = vmatprep.subr.bf16.mxu0 0
      %5519 = vmatpush1.bf16.msra.mxu0 0
      %5520 = vmatprep.subr.bf16.mxu0 0
      %5521 = vmatpush1.bf16.msra.mxu0 0
      %5522 = vmatprep.subr.bf16.mxu0 0
      %5523 = vmatpush1.bf16.msra.mxu0 0
      %5524 = vmatprep.subr.bf16.mxu0 0
      %5525 = vmatpush1.bf16.msra.mxu0 0
      %5526 = vmatprep.subr.bf16.mxu0 0
      %5527 = vmatpush1.bf16.msra.mxu0 0
      %5528 = vmatprep.subr.bf16.mxu0 0
      %5529 = vmatpush1.bf16.msra.mxu0 0
      %5530 = vmatprep.subr.bf16.mxu0 0
      %5531 = vmatpush1.bf16.msra.mxu0 0
      %5532 = vmatprep.subr.bf16.mxu0 0
      %5533 = vmatpush1.bf16.msra.mxu0 0
      %5534 = vmatprep.mubr.bf16.mxu0 0
      %5535 = vmatmul.mubr.bf16.gmra.mrb[0].mxu0 %v5494
      %v5536 = vpop.f32.mrb[0].mxu0
      %v5537 = vadd.f32 0.0, %v5536
      %v5538 = vpop.f32.mrb[0].mxu0
      %v5539 = vpop.f32.mrb[0].mxu0
      %v5540 = vadd.f32 0.0, %v5539
      %v5541 = vpop.f32.mrb[0].mxu0
      %5542 = vmatprep.mubr.bf16.mxu0 0
      %5543 = vmatmul.mubr.bf16.gmra.mrb[0].mxu0 %v5497
      %v5544 = vpop.f32.mrb[0].mxu0
      %v5545 = vadd.f32 0.0, %v5544
      %v5546 = vpop.f32.mrb[0].mxu0
      %v5547 = vpop.f32.mrb[0].mxu0
      %v5548 = vpop.f32.mrb[0].mxu0
      %5549 = vdwg.mxu0
      %v5551 = vsel %vm1388, %v5434, 0
      %v5554 = vsel %vm1388, %v5435, 0
      %v5557 = vsel %vm1500, %v5132, 0
      %5559 = vmatprep.subr.bf16.mxu0 0
      %5560 = vmatpush1.bf16.msra.mxu0 %v5131
      %5561 = vmatprep.subr.bf16.mxu0 0
      %5562 = vmatpush1.bf16.msra.mxu0 %v5557
      %5563 = vmatprep.subr.bf16.mxu0 0
      %5564 = vmatpush1.bf16.msra.mxu0 0
      %5565 = vmatprep.subr.bf16.mxu0 0
      %5566 = vmatpush1.bf16.msra.mxu0 0
      %5567 = vmatprep.subr.bf16.mxu0 0
      %5568 = vmatpush1.bf16.msra.mxu0 0
      %5569 = vmatprep.subr.bf16.mxu0 0
      %5570 = vmatpush1.bf16.msra.mxu0 0
      %5571 = vmatprep.subr.bf16.mxu0 0
      %5572 = vmatpush1.bf16.msra.mxu0 0
      %5573 = vmatprep.subr.bf16.mxu0 0
      %5574 = vmatpush1.bf16.msra.mxu0 0
      %5575 = vmatprep.subr.bf16.mxu0 0
      %5576 = vmatpush1.bf16.msra.mxu0 0
      %5577 = vmatprep.subr.bf16.mxu0 0
      %5578 = vmatpush1.bf16.msra.mxu0 0
      %5579 = vmatprep.subr.bf16.mxu0 0
      %5580 = vmatpush1.bf16.msra.mxu0 0
      %5581 = vmatprep.subr.bf16.mxu0 0
      %5582 = vmatpush1.bf16.msra.mxu0 0
      %5583 = vmatprep.subr.bf16.mxu0 0
      %5584 = vmatpush1.bf16.msra.mxu0 0
      %5585 = vmatprep.subr.bf16.mxu0 0
      %5586 = vmatpush1.bf16.msra.mxu0 0
      %5587 = vmatprep.subr.bf16.mxu0 0
      %5588 = vmatpush1.bf16.msra.mxu0 0
      %5589 = vmatprep.subr.bf16.mxu0 0
      %5590 = vmatpush1.bf16.msra.mxu0 0
      %5591 = vmatprep.mubr.bf16.mxu0 0
      %5592 = vmatmul.mubr.bf16.gmra.mrb[0].mxu0 %v5551
      %v5593 = vpop.f32.mrb[0].mxu0
      %v5594 = vadd.f32 0.0, %v5593
      %v5595 = vpop.f32.mrb[0].mxu0
      %v5596 = vpop.f32.mrb[0].mxu0
      %v5597 = vadd.f32 0.0, %v5596
      %v5598 = vpop.f32.mrb[0].mxu0
      %5599 = vmatprep.mubr.bf16.mxu0 0
      %5600 = vmatmul.mubr.bf16.gmra.mrb[0].mxu0 %v5554
      %v5601 = vpop.f32.mrb[0].mxu0
      %v5602 = vadd.f32 0.0, %v5601
      %v5603 = vpop.f32.mrb[0].mxu0
      %v5604 = vpop.f32.mrb[0].mxu0
      %v5605 = vpop.f32.mrb[0].mxu0
      %5606 = vdwg.mxu0
      %5609 = vrot.lane.b32.xlu0 %v5115, 96
      %v5610 = vpop.permute.xlu0 %5609
      %5611 = vrot.lane.b32.xlu0 %v5116, 96
      %v5612 = vpop.permute.xlu0 %5611
      %5615 = vrot.lane.b32.xlu0 %v5121, 96
      %v5616 = vpop.permute.xlu0 %5615
      %5617 = vrot.lane.b32.xlu0 %v5122, 96
      %v5618 = vpop.permute.xlu0 %5617
      %v5620 = vsel %vm1189, %v5610, 0
      %v5623 = vsel %vm1189, %v5612, 0
      %v5626 = vsel %vm1189, %v5616, 0
      %v5629 = vsel %vm1189, %v5618, 0
      %5631 = vmatprep.subr.bf16.mxu0 0
      %5632 = vmatpush1.bf16.xpose.msra.mxu0 %v5626
      %5633 = vmatprep.subr.bf16.mxu0 0
      %5634 = vmatpush1.bf16.xpose.msra.mxu0 %v5629
      %5635 = vmatprep.subr.bf16.mxu0 0
      %5636 = vmatpush1.bf16.xpose.msra.mxu0 0
      %5637 = vmatprep.subr.bf16.mxu0 0
      %5638 = vmatpush1.bf16.xpose.msra.mxu0 0
      %5639 = vmatprep.subr.bf16.mxu0 0
      %5640 = vmatpush1.bf16.xpose.msra.mxu0 0
      %5641 = vmatprep.subr.bf16.mxu0 0
      %5642 = vmatpush1.bf16.xpose.msra.mxu0 0
      %5643 = vmatprep.subr.bf16.mxu0 0
      %5644 = vmatpush1.bf16.xpose.msra.mxu0 0
      %5645 = vmatprep.subr.bf16.mxu0 0
      %5646 = vmatpush1.bf16.xpose.msra.mxu0 0
      %5647 = vmatprep.subr.bf16.mxu0 0
      %5648 = vmatpush1.bf16.xpose.msra.mxu0 0
      %5649 = vmatprep.subr.bf16.mxu0 0
      %5650 = vmatpush1.bf16.xpose.msra.mxu0 0
      %5651 = vmatprep.subr.bf16.mxu0 0
      %5652 = vmatpush1.bf16.xpose.msra.mxu0 0
      %5653 = vmatprep.subr.bf16.mxu0 0
      %5654 = vmatpush1.bf16.xpose.msra.mxu0 0
      %5655 = vmatprep.subr.bf16.mxu0 0
      %5656 = vmatpush1.bf16.xpose.msra.mxu0 0
      %5657 = vmatprep.subr.bf16.mxu0 0
      %5658 = vmatpush1.bf16.xpose.msra.mxu0 0
      %5659 = vmatprep.subr.bf16.mxu0 0
      %5660 = vmatpush1.bf16.xpose.msra.mxu0 0
      %5661 = vmatprep.subr.bf16.mxu0 0
      %5662 = vmatpush1.bf16.xpose.msra.mxu0 0
      %5663 = vmatprep.mubr.bf16.mxu0 0
      %5664 = vmatmul.mubr.bf16.gmra.mrb[0].mxu0 %v5620
      %v5665 = vpop.f32.mrb[0].mxu0
      %v5666 = vadd.f32 0.0, %v5665
      %v5667 = vpop.f32.mrb[0].mxu0
      %v5668 = vpop.f32.mrb[0].mxu0
      %v5669 = vadd.f32 0.0, %v5668
      %v5670 = vpop.f32.mrb[0].mxu0
      %5671 = vmatprep.mubr.bf16.mxu0 0
      %5672 = vmatmul.mubr.bf16.gmra.mrb[0].mxu0 %v5623
      %v5673 = vpop.f32.mrb[0].mxu0
      %v5674 = vadd.f32 0.0, %v5673
      %v5675 = vpop.f32.mrb[0].mxu0
      %v5676 = vpop.f32.mrb[0].mxu0
      %v5677 = vpop.f32.mrb[0].mxu0
      %5678 = vdwg.mxu0
      %5681 = vrot.lane.b32.xlu0 %v5117, 96
      %v5682 = vpop.permute.xlu0 %5681
      %5683 = vrot.lane.b32.xlu0 %v5118, 96
      %v5684 = vpop.permute.xlu0 %5683
      %5687 = vrot.lane.b32.xlu0 %v5123, 96
      %v5688 = vpop.permute.xlu0 %5687
      %5689 = vrot.lane.b32.xlu0 %v5124, 96
      %v5690 = vpop.permute.xlu0 %5689
      %v5692 = vsel %vm1189, %v5682, 0
      %v5695 = vsel %vm1189, %v5684, 0
      %v5698 = vsel %vm1189, %v5688, 0
      %v5701 = vsel %vm1189, %v5690, 0
      %5703 = vmatprep.subr.bf16.mxu0 0
      %5704 = vmatpush1.bf16.xpose.msra.mxu0 %v5698
      %5705 = vmatprep.subr.bf16.mxu0 0
      %5706 = vmatpush1.bf16.xpose.msra.mxu0 %v5701
      %5707 = vmatprep.subr.bf16.mxu0 0
      %5708 = vmatpush1.bf16.xpose.msra.mxu0 0
      %5709 = vmatprep.subr.bf16.mxu0 0
      %5710 = vmatpush1.bf16.xpose.msra.mxu0 0
      %5711 = vmatprep.subr.bf16.mxu0 0
      %5712 = vmatpush1.bf16.xpose.msra.mxu0 0
      %5713 = vmatprep.subr.bf16.mxu0 0
      %5714 = vmatpush1.bf16.xpose.msra.mxu0 0
      %5715 = vmatprep.subr.bf16.mxu0 0
      %5716 = vmatpush1.bf16.xpose.msra.mxu0 0
      %5717 = vmatprep.subr.bf16.mxu0 0
      %5718 = vmatpush1.bf16.xpose.msra.mxu0 0
      %5719 = vmatprep.subr.bf16.mxu0 0
      %5720 = vmatpush1.bf16.xpose.msra.mxu0 0
      %5721 = vmatprep.subr.bf16.mxu0 0
      %5722 = vmatpush1.bf16.xpose.msra.mxu0 0
      %5723 = vmatprep.subr.bf16.mxu0 0
      %5724 = vmatpush1.bf16.xpose.msra.mxu0 0
      %5725 = vmatprep.subr.bf16.mxu0 0
      %5726 = vmatpush1.bf16.xpose.msra.mxu0 0
      %5727 = vmatprep.subr.bf16.mxu0 0
      %5728 = vmatpush1.bf16.xpose.msra.mxu0 0
      %5729 = vmatprep.subr.bf16.mxu0 0
      %5730 = vmatpush1.bf16.xpose.msra.mxu0 0
      %5731 = vmatprep.subr.bf16.mxu0 0
      %5732 = vmatpush1.bf16.xpose.msra.mxu0 0
      %5733 = vmatprep.subr.bf16.mxu0 0
      %5734 = vmatpush1.bf16.xpose.msra.mxu0 0
      %5735 = vmatprep.mubr.bf16.mxu0 0
      %5736 = vmatmul.mubr.bf16.gmra.mrb[0].mxu0 %v5692
      %v5737 = vpop.f32.mrb[0].mxu0
      %v5738 = vadd.f32 0.0, %v5737
      %v5739 = vpop.f32.mrb[0].mxu0
      %v5740 = vpop.f32.mrb[0].mxu0
      %v5741 = vadd.f32 0.0, %v5740
      %v5742 = vpop.f32.mrb[0].mxu0
      %5743 = vmatprep.mubr.bf16.mxu0 0
      %5744 = vmatmul.mubr.bf16.gmra.mrb[0].mxu0 %v5695
      %v5745 = vpop.f32.mrb[0].mxu0
      %v5746 = vadd.f32 0.0, %v5745
      %v5747 = vpop.f32.mrb[0].mxu0
      %v5748 = vpop.f32.mrb[0].mxu0
      %v5749 = vpop.f32.mrb[0].mxu0
      %5750 = vdwg.mxu0
      %5753 = vrot.lane.b32.xlu0 %v5119, 96
      %v5754 = vpop.permute.xlu0 %5753
      %5755 = vrot.lane.b32.xlu0 %v5120, 96
      %v5756 = vpop.permute.xlu0 %5755
      %5759 = vrot.lane.b32.xlu0 %v5125, 96
      %v5760 = vpop.permute.xlu0 %5759
      %5761 = vrot.lane.b32.xlu0 %v5126, 96
      %v5762 = vpop.permute.xlu0 %5761
      %v5764 = vsel %vm1189, %v5754, 0
      %v5767 = vsel %vm1189, %v5756, 0
      %v5770 = vsel %vm1189, %v5760, 0
      %v5773 = vsel %vm1189, %v5762, 0
      %5775 = vmatprep.subr.bf16.mxu0 0
      %5776 = vmatpush1.bf16.xpose.msra.mxu0 %v5770
      %5777 = vmatprep.subr.bf16.mxu0 0
      %5778 = vmatpush1.bf16.xpose.msra.mxu0 %v5773
      %5779 = vmatprep.subr.bf16.mxu0 0
      %5780 = vmatpush1.bf16.xpose.msra.mxu0 0
      %5781 = vmatprep.subr.bf16.mxu0 0
      %5782 = vmatpush1.bf16.xpose.msra.mxu0 0
      %5783 = vmatprep.subr.bf16.mxu0 0
      %5784 = vmatpush1.bf16.xpose.msra.mxu0 0
      %5785 = vmatprep.subr.bf16.mxu0 0
      %5786 = vmatpush1.bf16.xpose.msra.mxu0 0
      %5787 = vmatprep.subr.bf16.mxu0 0
      %5788 = vmatpush1.bf16.xpose.msra.mxu0 0
      %5789 = vmatprep.subr.bf16.mxu0 0
      %5790 = vmatpush1.bf16.xpose.msra.mxu0 0
      %5791 = vmatprep.subr.bf16.mxu0 0
      %5792 = vmatpush1.bf16.xpose.msra.mxu0 0
      %5793 = vmatprep.subr.bf16.mxu0 0
      %5794 = vmatpush1.bf16.xpose.msra.mxu0 0
      %5795 = vmatprep.subr.bf16.mxu0 0
      %5796 = vmatpush1.bf16.xpose.msra.mxu0 0
      %5797 = vmatprep.subr.bf16.mxu0 0
      %5798 = vmatpush1.bf16.xpose.msra.mxu0 0
      %5799 = vmatprep.subr.bf16.mxu0 0
      %5800 = vmatpush1.bf16.xpose.msra.mxu0 0
      %5801 = vmatprep.subr.bf16.mxu0 0
      %5802 = vmatpush1.bf16.xpose.msra.mxu0 0
      %5803 = vmatprep.subr.bf16.mxu0 0
      %5804 = vmatpush1.bf16.xpose.msra.mxu0 0
      %5805 = vmatprep.subr.bf16.mxu0 0
      %5806 = vmatpush1.bf16.xpose.msra.mxu0 0
      %5807 = vmatprep.mubr.bf16.mxu0 0
      %5808 = vmatmul.mubr.bf16.gmra.mrb[0].mxu0 %v5764
      %v5809 = vpop.f32.mrb[0].mxu0
      %v5810 = vadd.f32 0.0, %v5809
      %v5811 = vpop.f32.mrb[0].mxu0
      %v5812 = vpop.f32.mrb[0].mxu0
      %v5813 = vadd.f32 0.0, %v5812
      %v5814 = vpop.f32.mrb[0].mxu0
      %5815 = vmatprep.mubr.bf16.mxu0 0
      %5816 = vmatmul.mubr.bf16.gmra.mrb[0].mxu0 %v5767
      %v5817 = vpop.f32.mrb[0].mxu0
      %v5818 = vadd.f32 0.0, %v5817
      %v5819 = vpop.f32.mrb[0].mxu0
      %v5820 = vpop.f32.mrb[0].mxu0
      %v5821 = vpop.f32.mrb[0].mxu0
      %5822 = vdwg.mxu0
      %v5823 = vmul.f32 %v5666, 0.17677669
      %v5824 = vmul.f32 %v5669, 0.17677669
      %v5825 = vmul.f32 %v5674, 0.17677669
      %v5826 = vmul.f32 %v5738, 0.17677669
      %v5827 = vmul.f32 %v5741, 0.17677669
      %v5828 = vmul.f32 %v5746, 0.17677669
      %v5829 = vmul.f32 %v5810, 0.17677669
      %v5830 = vmul.f32 %v5813, 0.17677669
      %v5831 = vmul.f32 %v5818, 0.17677669
      %v5832 = vadd.f32 %v5823, %v729
      %v5833 = vadd.f32 %v5824, %v729
      %v5834 = vadd.f32 %v5825, %v729
      %v5835 = vadd.f32 %v5826, %v729
      %v5836 = vadd.f32 %v5827, %v729
      %v5837 = vadd.f32 %v5828, %v729
      %v5838 = vadd.f32 %v5829, %v729
      %v5839 = vadd.f32 %v5830, %v729
      %v5840 = vadd.f32 %v5831, %v729
      %v5841 = vsel %vm1388, %v5832, -inf
      %5842 = vmax.xlane.f32.xlu0 %v5841
      %v5843 = vpop.xlane.xlu0 %5842
      %v5844 = vsel %vm1388, %v5833, -inf
      %5845 = vmax.xlane.f32.xlu0 %v5844
      %v5846 = vpop.xlane.xlu0 %5845
      %v5847 = vsel %vm1388, %v5834, -inf
      %5848 = vmax.xlane.f32.xlu0 %v5847
      %v5849 = vpop.xlane.xlu0 %5848
      %v5850 = vsel %vm1388, %v5835, -inf
      %5851 = vmax.xlane.f32.xlu0 %v5850
      %v5852 = vpop.xlane.xlu0 %5851
      %v5853 = vsel %vm1388, %v5836, -inf
      %5854 = vmax.xlane.f32.xlu0 %v5853
      %v5855 = vpop.xlane.xlu0 %5854
      %v5856 = vsel %vm1388, %v5837, -inf
      %5857 = vmax.xlane.f32.xlu0 %v5856
      %v5858 = vpop.xlane.xlu0 %5857
      %v5859 = vsel %vm1388, %v5838, -inf
      %5860 = vmax.xlane.f32.xlu0 %v5859
      %v5861 = vpop.xlane.xlu0 %5860
      %v5862 = vsel %vm1388, %v5839, -inf
      %5863 = vmax.xlane.f32.xlu0 %v5862
      %v5864 = vpop.xlane.xlu0 %5863
      %v5865 = vsel %vm1388, %v5840, -inf
      %5866 = vmax.xlane.f32.xlu0 %v5865
      %v5867 = vpop.xlane.xlu0 %5866
      %v5868 = vsub.f32 %v5832, %v5843
      %v5869 = vsub.f32 %v5833, %v5846
      %v5870 = vsub.f32 %v5834, %v5849
      %v5871 = vsub.f32 %v5835, %v5852
      %v5872 = vsub.f32 %v5836, %v5855
      %v5873 = vsub.f32 %v5837, %v5858
      %v5874 = vsub.f32 %v5838, %v5861
      %v5875 = vsub.f32 %v5839, %v5864
      %v5876 = vsub.f32 %v5840, %v5867
      %v5877 = vmul.f32 %v5868, 1.442695
      %v5878 = vpow.pop %v5877
      %v5879 = vmul.f32 %v5869, 1.442695
      %v5880 = vpow.pop %v5879
      %v5881 = vmul.f32 %v5870, 1.442695
      %v5882 = vpow.pop %v5881
      %v5883 = vmul.f32 %v5871, 1.442695
      %v5884 = vpow.pop %v5883
      %v5885 = vmul.f32 %v5872, 1.442695
      %v5886 = vpow.pop %v5885
      %v5887 = vmul.f32 %v5873, 1.442695
      %v5888 = vpow.pop %v5887
      %v5889 = vmul.f32 %v5874, 1.442695
      %v5890 = vpow.pop %v5889
      %v5891 = vmul.f32 %v5875, 1.442695
      %v5892 = vpow.pop %v5891
      %v5893 = vmul.f32 %v5876, 1.442695
      %v5894 = vpow.pop %v5893
      %v5895 = vsel %vm1388, %v5878, 0.0
      %5896 = vadd.xlane.f32.xlu0 %v5895
      %v5897 = vpop.xlane.xlu0 %5896
      %v5898 = vsel %vm1388, %v5880, 0.0
      %5899 = vadd.xlane.f32.xlu0 %v5898
      %v5900 = vpop.xlane.xlu0 %5899
      %v5901 = vsel %vm1388, %v5882, 0.0
      %5902 = vadd.xlane.f32.xlu0 %v5901
      %v5903 = vpop.xlane.xlu0 %5902
      %v5904 = vsel %vm1388, %v5884, 0.0
      %5905 = vadd.xlane.f32.xlu0 %v5904
      %v5906 = vpop.xlane.xlu0 %5905
      %v5907 = vsel %vm1388, %v5886, 0.0
      %5908 = vadd.xlane.f32.xlu0 %v5907
      %v5909 = vpop.xlane.xlu0 %5908
      %v5910 = vsel %vm1388, %v5888, 0.0
      %5911 = vadd.xlane.f32.xlu0 %v5910
      %v5912 = vpop.xlane.xlu0 %5911
      %v5913 = vsel %vm1388, %v5890, 0.0
      %5914 = vadd.xlane.f32.xlu0 %v5913
      %v5915 = vpop.xlane.xlu0 %5914
      %v5916 = vsel %vm1388, %v5892, 0.0
      %5917 = vadd.xlane.f32.xlu0 %v5916
      %v5918 = vpop.xlane.xlu0 %5917
      %v5919 = vsel %vm1388, %v5894, 0.0
      %5920 = vadd.xlane.f32.xlu0 %v5919
      %v5921 = vpop.xlane.xlu0 %5920
      %v5922 = vrcp.pop %v5897
      %v5923 = vrcp.pop %v5900
      %v5924 = vrcp.pop %v5903
      %v5925 = vrcp.pop %v5906
      %v5926 = vrcp.pop %v5909
      %v5927 = vrcp.pop %v5912
      %v5928 = vrcp.pop %v5915
      %v5929 = vrcp.pop %v5918
      %v5930 = vrcp.pop %v5921
      %v5931 = vmul.f32 %v5878, %v5922
      %v5932 = vmul.f32 %v5880, %v5923
      %v5933 = vmul.f32 %v5882, %v5924
      %v5934 = vmul.f32 %v5884, %v5925
      %v5935 = vmul.f32 %v5886, %v5926
      %v5936 = vmul.f32 %v5888, %v5927
      %v5937 = vmul.f32 %v5890, %v5928
      %v5938 = vmul.f32 %v5892, %v5929
      %v5939 = vmul.f32 %v5894, %v5930
      %v5940 = vpack.c.bf16 %v5932, %v5931
      %v5941 = vpack.c.bf16 %v5933, %v5933
      %v5942 = vpack.c.bf16 %v5935, %v5934
      %v5943 = vpack.c.bf16 %v5936, %v5936
      %v5944 = vpack.c.bf16 %v5938, %v5937
      %v5945 = vpack.c.bf16 %v5939, %v5939
      %5948 = vrot.lane.b32.xlu0 %v5127, 96
      %v5949 = vpop.permute.xlu0 %5948
      %5950 = vrot.lane.b32.xlu0 %v5128, 96
      %v5951 = vpop.permute.xlu0 %5950
      %v5954 = vsel %vm1388, %v5940, 0
      %v5957 = vsel %vm1388, %v5941, 0
      %v5960 = vsel %vm1500, %v5951, 0
      %5962 = vmatprep.subr.bf16.mxu0 0
      %5963 = vmatpush1.bf16.msra.mxu0 %v5949
      %5964 = vmatprep.subr.bf16.mxu0 0
      %5965 = vmatpush1.bf16.msra.mxu0 %v5960
      %5966 = vmatprep.subr.bf16.mxu0 0
      %5967 = vmatpush1.bf16.msra.mxu0 0
      %5968 = vmatprep.subr.bf16.mxu0 0
      %5969 = vmatpush1.bf16.msra.mxu0 0
      %5970 = vmatprep.subr.bf16.mxu0 0
      %5971 = vmatpush1.bf16.msra.mxu0 0
      %5972 = vmatprep.subr.bf16.mxu0 0
      %5973 = vmatpush1.bf16.msra.mxu0 0
      %5974 = vmatprep.subr.bf16.mxu0 0
      %5975 = vmatpush1.bf16.msra.mxu0 0
      %5976 = vmatprep.subr.bf16.mxu0 0
      %5977 = vmatpush1.bf16.msra.mxu0 0
      %5978 = vmatprep.subr.bf16.mxu0 0
      %5979 = vmatpush1.bf16.msra.mxu0 0
      %5980 = vmatprep.subr.bf16.mxu0 0
      %5981 = vmatpush1.bf16.msra.mxu0 0
      %5982 = vmatprep.subr.bf16.mxu0 0
      %5983 = vmatpush1.bf16.msra.mxu0 0
      %5984 = vmatprep.subr.bf16.mxu0 0
      %5985 = vmatpush1.bf16.msra.mxu0 0
      %5986 = vmatprep.subr.bf16.mxu0 0
      %5987 = vmatpush1.bf16.msra.mxu0 0
      %5988 = vmatprep.subr.bf16.mxu0 0
      %5989 = vmatpush1.bf16.msra.mxu0 0
      %5990 = vmatprep.subr.bf16.mxu0 0
      %5991 = vmatpush1.bf16.msra.mxu0 0
      %5992 = vmatprep.subr.bf16.mxu0 0
      %5993 = vmatpush1.bf16.msra.mxu0 0
      %5994 = vmatprep.mubr.bf16.mxu0 0
      %5995 = vmatmul.mubr.bf16.gmra.mrb[0].mxu0 %v5954
      %v5996 = vpop.f32.mrb[0].mxu0
      %v5997 = vadd.f32 0.0, %v5996
      %v5998 = vpop.f32.mrb[0].mxu0
      %v5999 = vpop.f32.mrb[0].mxu0
      %v6000 = vadd.f32 0.0, %v5999
      %v6001 = vpop.f32.mrb[0].mxu0
      %6002 = vmatprep.mubr.bf16.mxu0 0
      %6003 = vmatmul.mubr.bf16.gmra.mrb[0].mxu0 %v5957
      %v6004 = vpop.f32.mrb[0].mxu0
      %v6005 = vadd.f32 0.0, %v6004
      %v6006 = vpop.f32.mrb[0].mxu0
      %v6007 = vpop.f32.mrb[0].mxu0
      %v6008 = vpop.f32.mrb[0].mxu0
      %6009 = vdwg.mxu0
      %6012 = vrot.lane.b32.xlu0 %v5129, 96
      %v6013 = vpop.permute.xlu0 %6012
      %6014 = vrot.lane.b32.xlu0 %v5130, 96
      %v6015 = vpop.permute.xlu0 %6014
      %v6018 = vsel %vm1388, %v5942, 0
      %v6021 = vsel %vm1388, %v5943, 0
      %v6024 = vsel %vm1500, %v6015, 0
      %6026 = vmatprep.subr.bf16.mxu0 0
      %6027 = vmatpush1.bf16.msra.mxu0 %v6013
      %6028 = vmatprep.subr.bf16.mxu0 0
      %6029 = vmatpush1.bf16.msra.mxu0 %v6024
      %6030 = vmatprep.subr.bf16.mxu0 0
      %6031 = vmatpush1.bf16.msra.mxu0 0
      %6032 = vmatprep.subr.bf16.mxu0 0
      %6033 = vmatpush1.bf16.msra.mxu0 0
      %6034 = vmatprep.subr.bf16.mxu0 0
      %6035 = vmatpush1.bf16.msra.mxu0 0
      %6036 = vmatprep.subr.bf16.mxu0 0
      %6037 = vmatpush1.bf16.msra.mxu0 0
      %6038 = vmatprep.subr.bf16.mxu0 0
      %6039 = vmatpush1.bf16.msra.mxu0 0
      %6040 = vmatprep.subr.bf16.mxu0 0
      %6041 = vmatpush1.bf16.msra.mxu0 0
      %6042 = vmatprep.subr.bf16.mxu0 0
      %6043 = vmatpush1.bf16.msra.mxu0 0
      %6044 = vmatprep.subr.bf16.mxu0 0
      %6045 = vmatpush1.bf16.msra.mxu0 0
      %6046 = vmatprep.subr.bf16.mxu0 0
      %6047 = vmatpush1.bf16.msra.mxu0 0
      %6048 = vmatprep.subr.bf16.mxu0 0
      %6049 = vmatpush1.bf16.msra.mxu0 0
      %6050 = vmatprep.subr.bf16.mxu0 0
      %6051 = vmatpush1.bf16.msra.mxu0 0
      %6052 = vmatprep.subr.bf16.mxu0 0
      %6053 = vmatpush1.bf16.msra.mxu0 0
      %6054 = vmatprep.subr.bf16.mxu0 0
      %6055 = vmatpush1.bf16.msra.mxu0 0
      %6056 = vmatprep.subr.bf16.mxu0 0
      %6057 = vmatpush1.bf16.msra.mxu0 0
      %6058 = vmatprep.mubr.bf16.mxu0 0
      %6059 = vmatmul.mubr.bf16.gmra.mrb[0].mxu0 %v6018
      %v6060 = vpop.f32.mrb[0].mxu0
      %v6061 = vadd.f32 0.0, %v6060
      %v6062 = vpop.f32.mrb[0].mxu0
      %v6063 = vpop.f32.mrb[0].mxu0
      %v6064 = vadd.f32 0.0, %v6063
      %v6065 = vpop.f32.mrb[0].mxu0
      %6066 = vmatprep.mubr.bf16.mxu0 0
      %6067 = vmatmul.mubr.bf16.gmra.mrb[0].mxu0 %v6021
      %v6068 = vpop.f32.mrb[0].mxu0
      %v6069 = vadd.f32 0.0, %v6068
      %v6070 = vpop.f32.mrb[0].mxu0
      %v6071 = vpop.f32.mrb[0].mxu0
      %v6072 = vpop.f32.mrb[0].mxu0
      %6073 = vdwg.mxu0
      %6076 = vrot.lane.b32.xlu0 %v5131, 96
      %v6077 = vpop.permute.xlu0 %6076
      %6078 = vrot.lane.b32.xlu0 %v5132, 96
      %v6079 = vpop.permute.xlu0 %6078
      %v6082 = vsel %vm1388, %v5944, 0
      %v6085 = vsel %vm1388, %v5945, 0
      %v6088 = vsel %vm1500, %v6079, 0
      %6090 = vmatprep.subr.bf16.mxu0 0
      %6091 = vmatpush1.bf16.msra.mxu0 %v6077
      %6092 = vmatprep.subr.bf16.mxu0 0
      %6093 = vmatpush1.bf16.msra.mxu0 %v6088
      %6094 = vmatprep.subr.bf16.mxu0 0
      %6095 = vmatpush1.bf16.msra.mxu0 0
      %6096 = vmatprep.subr.bf16.mxu0 0
      %6097 = vmatpush1.bf16.msra.mxu0 0
      %6098 = vmatprep.subr.bf16.mxu0 0
      %6099 = vmatpush1.bf16.msra.mxu0 0
      %6100 = vmatprep.subr.bf16.mxu0 0
      %6101 = vmatpush1.bf16.msra.mxu0 0
      %6102 = vmatprep.subr.bf16.mxu0 0
      %6103 = vmatpush1.bf16.msra.mxu0 0
      %6104 = vmatprep.subr.bf16.mxu0 0
      %6105 = vmatpush1.bf16.msra.mxu0 0
      %6106 = vmatprep.subr.bf16.mxu0 0
      %6107 = vmatpush1.bf16.msra.mxu0 0
      %6108 = vmatprep.subr.bf16.mxu0 0
      %6109 = vmatpush1.bf16.msra.mxu0 0
      %6110 = vmatprep.subr.bf16.mxu0 0
      %6111 = vmatpush1.bf16.msra.mxu0 0
      %6112 = vmatprep.subr.bf16.mxu0 0
      %6113 = vmatpush1.bf16.msra.mxu0 0
      %6114 = vmatprep.subr.bf16.mxu0 0
      %6115 = vmatpush1.bf16.msra.mxu0 0
      %6116 = vmatprep.subr.bf16.mxu0 0
      %6117 = vmatpush1.bf16.msra.mxu0 0
      %6118 = vmatprep.subr.bf16.mxu0 0
      %6119 = vmatpush1.bf16.msra.mxu0 0
      %6120 = vmatprep.subr.bf16.mxu0 0
      %6121 = vmatpush1.bf16.msra.mxu0 0
      %6122 = vmatprep.mubr.bf16.mxu0 0
      %6123 = vmatmul.mubr.bf16.gmra.mrb[0].mxu0 %v6082
      %v6124 = vpop.f32.mrb[0].mxu0
      %v6125 = vadd.f32 0.0, %v6124
      %v6126 = vpop.f32.mrb[0].mxu0
      %v6127 = vpop.f32.mrb[0].mxu0
      %v6128 = vadd.f32 0.0, %v6127
      %v6129 = vpop.f32.mrb[0].mxu0
      %6130 = vmatprep.mubr.bf16.mxu0 0
      %6131 = vmatmul.mubr.bf16.gmra.mrb[0].mxu0 %v6085
      %v6132 = vpop.f32.mrb[0].mxu0
      %v6133 = vadd.f32 0.0, %v6132
      %v6134 = vpop.f32.mrb[0].mxu0
      %v6135 = vpop.f32.mrb[0].mxu0
      %v6136 = vpop.f32.mrb[0].mxu0
      %6137 = vdwg.mxu0
      %6138 = vrot.lane.b32.xlu0 %v5115, 64
      %v6139 = vpop.permute.xlu0 %6138
      %6140 = vrot.lane.b32.xlu0 %v5116, 64
      %v6141 = vpop.permute.xlu0 %6140
      %6142 = vrot.lane.b32.xlu0 %v5121, 64
      %v6143 = vpop.permute.xlu0 %6142
      %6144 = vrot.lane.b32.xlu0 %v5122, 64
      %v6145 = vpop.permute.xlu0 %6144
      %v6147 = vsel %vm1189, %v6139, 0
      %v6150 = vsel %vm1189, %v6141, 0
      %v6153 = vsel %vm1189, %v6143, 0
      %v6156 = vsel %vm1189, %v6145, 0
      %6158 = vmatprep.subr.bf16.mxu0 0
      %6159 = vmatpush1.bf16.xpose.msra.mxu0 %v6153
      %6160 = vmatprep.subr.bf16.mxu0 0
      %6161 = vmatpush1.bf16.xpose.msra.mxu0 %v6156
      %6162 = vmatprep.subr.bf16.mxu0 0
      %6163 = vmatpush1.bf16.xpose.msra.mxu0 0
      %6164 = vmatprep.subr.bf16.mxu0 0
      %6165 = vmatpush1.bf16.xpose.msra.mxu0 0
      %6166 = vmatprep.subr.bf16.mxu0 0
      %6167 = vmatpush1.bf16.xpose.msra.mxu0 0
      %6168 = vmatprep.subr.bf16.mxu0 0
      %6169 = vmatpush1.bf16.xpose.msra.mxu0 0
      %6170 = vmatprep.subr.bf16.mxu0 0
      %6171 = vmatpush1.bf16.xpose.msra.mxu0 0
      %6172 = vmatprep.subr.bf16.mxu0 0
      %6173 = vmatpush1.bf16.xpose.msra.mxu0 0
      %6174 = vmatprep.subr.bf16.mxu0 0
      %6175 = vmatpush1.bf16.xpose.msra.mxu0 0
      %6176 = vmatprep.subr.bf16.mxu0 0
      %6177 = vmatpush1.bf16.xpose.msra.mxu0 0
      %6178 = vmatprep.subr.bf16.mxu0 0
      %6179 = vmatpush1.bf16.xpose.msra.mxu0 0
      %6180 = vmatprep.subr.bf16.mxu0 0
      %6181 = vmatpush1.bf16.xpose.msra.mxu0 0
      %6182 = vmatprep.subr.bf16.mxu0 0
      %6183 = vmatpush1.bf16.xpose.msra.mxu0 0
      %6184 = vmatprep.subr.bf16.mxu0 0
      %6185 = vmatpush1.bf16.xpose.msra.mxu0 0
      %6186 = vmatprep.subr.bf16.mxu0 0
      %6187 = vmatpush1.bf16.xpose.msra.mxu0 0
      %6188 = vmatprep.subr.bf16.mxu0 0
      %6189 = vmatpush1.bf16.xpose.msra.mxu0 0
      %6190 = vmatprep.mubr.bf16.mxu0 0
      %6191 = vmatmul.mubr.bf16.gmra.mrb[0].mxu0 %v6147
      %v6192 = vpop.f32.mrb[0].mxu0
      %v6193 = vadd.f32 0.0, %v6192
      %v6194 = vpop.f32.mrb[0].mxu0
      %v6195 = vpop.f32.mrb[0].mxu0
      %v6196 = vadd.f32 0.0, %v6195
      %v6197 = vpop.f32.mrb[0].mxu0
      %6198 = vmatprep.mubr.bf16.mxu0 0
      %6199 = vmatmul.mubr.bf16.gmra.mrb[0].mxu0 %v6150
      %v6200 = vpop.f32.mrb[0].mxu0
      %v6201 = vadd.f32 0.0, %v6200
      %v6202 = vpop.f32.mrb[0].mxu0
      %v6203 = vpop.f32.mrb[0].mxu0
      %v6204 = vpop.f32.mrb[0].mxu0
      %6205 = vdwg.mxu0
      %6206 = vrot.lane.b32.xlu0 %v5117, 64
      %v6207 = vpop.permute.xlu0 %6206
      %6208 = vrot.lane.b32.xlu0 %v5118, 64
      %v6209 = vpop.permute.xlu0 %6208
      %6210 = vrot.lane.b32.xlu0 %v5123, 64
      %v6211 = vpop.permute.xlu0 %6210
      %6212 = vrot.lane.b32.xlu0 %v5124, 64
      %v6213 = vpop.permute.xlu0 %6212
      %v6215 = vsel %vm1189, %v6207, 0
      %v6218 = vsel %vm1189, %v6209, 0
      %v6221 = vsel %vm1189, %v6211, 0
      %v6224 = vsel %vm1189, %v6213, 0
      %6226 = vmatprep.subr.bf16.mxu0 0
      %6227 = vmatpush1.bf16.xpose.msra.mxu0 %v6221
      %6228 = vmatprep.subr.bf16.mxu0 0
      %6229 = vmatpush1.bf16.xpose.msra.mxu0 %v6224
      %6230 = vmatprep.subr.bf16.mxu0 0
      %6231 = vmatpush1.bf16.xpose.msra.mxu0 0
      %6232 = vmatprep.subr.bf16.mxu0 0
      %6233 = vmatpush1.bf16.xpose.msra.mxu0 0
      %6234 = vmatprep.subr.bf16.mxu0 0
      %6235 = vmatpush1.bf16.xpose.msra.mxu0 0
      %6236 = vmatprep.subr.bf16.mxu0 0
      %6237 = vmatpush1.bf16.xpose.msra.mxu0 0
      %6238 = vmatprep.subr.bf16.mxu0 0
      %6239 = vmatpush1.bf16.xpose.msra.mxu0 0
      %6240 = vmatprep.subr.bf16.mxu0 0
      %6241 = vmatpush1.bf16.xpose.msra.mxu0 0
      %6242 = vmatprep.subr.bf16.mxu0 0
      %6243 = vmatpush1.bf16.xpose.msra.mxu0 0
      %6244 = vmatprep.subr.bf16.mxu0 0
      %6245 = vmatpush1.bf16.xpose.msra.mxu0 0
      %6246 = vmatprep.subr.bf16.mxu0 0
      %6247 = vmatpush1.bf16.xpose.msra.mxu0 0
      %6248 = vmatprep.subr.bf16.mxu0 0
      %6249 = vmatpush1.bf16.xpose.msra.mxu0 0
      %6250 = vmatprep.subr.bf16.mxu0 0
      %6251 = vmatpush1.bf16.xpose.msra.mxu0 0
      %6252 = vmatprep.subr.bf16.mxu0 0
      %6253 = vmatpush1.bf16.xpose.msra.mxu0 0
      %6254 = vmatprep.subr.bf16.mxu0 0
      %6255 = vmatpush1.bf16.xpose.msra.mxu0 0
      %6256 = vmatprep.subr.bf16.mxu0 0
      %6257 = vmatpush1.bf16.xpose.msra.mxu0 0
      %6258 = vmatprep.mubr.bf16.mxu0 0
      %6259 = vmatmul.mubr.bf16.gmra.mrb[0].mxu0 %v6215
      %v6260 = vpop.f32.mrb[0].mxu0
      %v6261 = vadd.f32 0.0, %v6260
      %v6262 = vpop.f32.mrb[0].mxu0
      %v6263 = vpop.f32.mrb[0].mxu0
      %v6264 = vadd.f32 0.0, %v6263
      %v6265 = vpop.f32.mrb[0].mxu0
      %6266 = vmatprep.mubr.bf16.mxu0 0
      %6267 = vmatmul.mubr.bf16.gmra.mrb[0].mxu0 %v6218
      %v6268 = vpop.f32.mrb[0].mxu0
      %v6269 = vadd.f32 0.0, %v6268
      %v6270 = vpop.f32.mrb[0].mxu0
      %v6271 = vpop.f32.mrb[0].mxu0
      %v6272 = vpop.f32.mrb[0].mxu0
      %6273 = vdwg.mxu0
      %6274 = vrot.lane.b32.xlu0 %v5119, 64
      %v6275 = vpop.permute.xlu0 %6274
      %6276 = vrot.lane.b32.xlu0 %v5120, 64
      %v6277 = vpop.permute.xlu0 %6276
      %6278 = vrot.lane.b32.xlu0 %v5125, 64
      %v6279 = vpop.permute.xlu0 %6278
      %6280 = vrot.lane.b32.xlu0 %v5126, 64
      %v6281 = vpop.permute.xlu0 %6280
      %v6283 = vsel %vm1189, %v6275, 0
      %v6286 = vsel %vm1189, %v6277, 0
      %v6289 = vsel %vm1189, %v6279, 0
      %v6292 = vsel %vm1189, %v6281, 0
      %6294 = vmatprep.subr.bf16.mxu0 0
      %6295 = vmatpush1.bf16.xpose.msra.mxu0 %v6289
      %6296 = vmatprep.subr.bf16.mxu0 0
      %6297 = vmatpush1.bf16.xpose.msra.mxu0 %v6292
      %6298 = vmatprep.subr.bf16.mxu0 0
      %6299 = vmatpush1.bf16.xpose.msra.mxu0 0
      %6300 = vmatprep.subr.bf16.mxu0 0
      %6301 = vmatpush1.bf16.xpose.msra.mxu0 0
      %6302 = vmatprep.subr.bf16.mxu0 0
      %6303 = vmatpush1.bf16.xpose.msra.mxu0 0
      %6304 = vmatprep.subr.bf16.mxu0 0
      %6305 = vmatpush1.bf16.xpose.msra.mxu0 0
      %6306 = vmatprep.subr.bf16.mxu0 0
      %6307 = vmatpush1.bf16.xpose.msra.mxu0 0
      %6308 = vmatprep.subr.bf16.mxu0 0
      %6309 = vmatpush1.bf16.xpose.msra.mxu0 0
      %6310 = vmatprep.subr.bf16.mxu0 0
      %6311 = vmatpush1.bf16.xpose.msra.mxu0 0
      %6312 = vmatprep.subr.bf16.mxu0 0
      %6313 = vmatpush1.bf16.xpose.msra.mxu0 0
      %6314 = vmatprep.subr.bf16.mxu0 0
      %6315 = vmatpush1.bf16.xpose.msra.mxu0 0
      %6316 = vmatprep.subr.bf16.mxu0 0
      %6317 = vmatpush1.bf16.xpose.msra.mxu0 0
      %6318 = vmatprep.subr.bf16.mxu0 0
      %6319 = vmatpush1.bf16.xpose.msra.mxu0 0
      %6320 = vmatprep.subr.bf16.mxu0 0
      %6321 = vmatpush1.bf16.xpose.msra.mxu0 0
      %6322 = vmatprep.subr.bf16.mxu0 0
      %6323 = vmatpush1.bf16.xpose.msra.mxu0 0
      %6324 = vmatprep.subr.bf16.mxu0 0
      %6325 = vmatpush1.bf16.xpose.msra.mxu0 0
      %6326 = vmatprep.mubr.bf16.mxu0 0
      %6327 = vmatmul.mubr.bf16.gmra.mrb[0].mxu0 %v6283
      %v6328 = vpop.f32.mrb[0].mxu0
      %v6329 = vadd.f32 0.0, %v6328
      %v6330 = vpop.f32.mrb[0].mxu0
      %v6331 = vpop.f32.mrb[0].mxu0
      %v6332 = vadd.f32 0.0, %v6331
      %v6333 = vpop.f32.mrb[0].mxu0
      %6334 = vmatprep.mubr.bf16.mxu0 0
      %6335 = vmatmul.mubr.bf16.gmra.mrb[0].mxu0 %v6286
      %v6336 = vpop.f32.mrb[0].mxu0
      %v6337 = vadd.f32 0.0, %v6336
      %v6338 = vpop.f32.mrb[0].mxu0
      %v6339 = vpop.f32.mrb[0].mxu0
      %v6340 = vpop.f32.mrb[0].mxu0
      %6341 = vdwg.mxu0
      %v6342 = vmul.f32 %v6193, 0.17677669
      %v6343 = vmul.f32 %v6196, 0.17677669
      %v6344 = vmul.f32 %v6201, 0.17677669
      %v6345 = vmul.f32 %v6261, 0.17677669
      %v6346 = vmul.f32 %v6264, 0.17677669
      %v6347 = vmul.f32 %v6269, 0.17677669
      %v6348 = vmul.f32 %v6329, 0.17677669
      %v6349 = vmul.f32 %v6332, 0.17677669
      %v6350 = vmul.f32 %v6337, 0.17677669
      %v6351 = vadd.f32 %v6342, %v729
      %v6352 = vadd.f32 %v6343, %v729
      %v6353 = vadd.f32 %v6344, %v729
      %v6354 = vadd.f32 %v6345, %v729
      %v6355 = vadd.f32 %v6346, %v729
      %v6356 = vadd.f32 %v6347, %v729
      %v6357 = vadd.f32 %v6348, %v729
      %v6358 = vadd.f32 %v6349, %v729
      %v6359 = vadd.f32 %v6350, %v729
      %v6360 = vsel %vm1388, %v6351, -inf
      %6361 = vmax.xlane.f32.xlu0 %v6360
      %v6362 = vpop.xlane.xlu0 %6361
      %v6363 = vsel %vm1388, %v6352, -inf
      %6364 = vmax.xlane.f32.xlu0 %v6363
      %v6365 = vpop.xlane.xlu0 %6364
      %v6366 = vsel %vm1388, %v6353, -inf
      %6367 = vmax.xlane.f32.xlu0 %v6366
      %v6368 = vpop.xlane.xlu0 %6367
      %v6369 = vsel %vm1388, %v6354, -inf
      %6370 = vmax.xlane.f32.xlu0 %v6369
      %v6371 = vpop.xlane.xlu0 %6370
      %v6372 = vsel %vm1388, %v6355, -inf
      %6373 = vmax.xlane.f32.xlu0 %v6372
      %v6374 = vpop.xlane.xlu0 %6373
      %v6375 = vsel %vm1388, %v6356, -inf
      %6376 = vmax.xlane.f32.xlu0 %v6375
      %v6377 = vpop.xlane.xlu0 %6376
      %v6378 = vsel %vm1388, %v6357, -inf
      %6379 = vmax.xlane.f32.xlu0 %v6378
      %v6380 = vpop.xlane.xlu0 %6379
      %v6381 = vsel %vm1388, %v6358, -inf
      %6382 = vmax.xlane.f32.xlu0 %v6381
      %v6383 = vpop.xlane.xlu0 %6382
      %v6384 = vsel %vm1388, %v6359, -inf
      %6385 = vmax.xlane.f32.xlu0 %v6384
      %v6386 = vpop.xlane.xlu0 %6385
      %v6387 = vsub.f32 %v6351, %v6362
      %v6388 = vsub.f32 %v6352, %v6365
      %v6389 = vsub.f32 %v6353, %v6368
      %v6390 = vsub.f32 %v6354, %v6371
      %v6391 = vsub.f32 %v6355, %v6374
      %v6392 = vsub.f32 %v6356, %v6377
      %v6393 = vsub.f32 %v6357, %v6380
      %v6394 = vsub.f32 %v6358, %v6383
      %v6395 = vsub.f32 %v6359, %v6386
      %v6396 = vmul.f32 %v6387, 1.442695
      %v6397 = vpow.pop %v6396
      %v6398 = vmul.f32 %v6388, 1.442695
      %v6399 = vpow.pop %v6398
      %v6400 = vmul.f32 %v6389, 1.442695
      %v6401 = vpow.pop %v6400
      %v6402 = vmul.f32 %v6390, 1.442695
      %v6403 = vpow.pop %v6402
      %v6404 = vmul.f32 %v6391, 1.442695
      %v6405 = vpow.pop %v6404
      %v6406 = vmul.f32 %v6392, 1.442695
      %v6407 = vpow.pop %v6406
      %v6408 = vmul.f32 %v6393, 1.442695
      %v6409 = vpow.pop %v6408
      %v6410 = vmul.f32 %v6394, 1.442695
      %v6411 = vpow.pop %v6410
      %v6412 = vmul.f32 %v6395, 1.442695
      %v6413 = vpow.pop %v6412
      %v6414 = vsel %vm1388, %v6397, 0.0
      %6415 = vadd.xlane.f32.xlu0 %v6414
      %v6416 = vpop.xlane.xlu0 %6415
      %v6417 = vsel %vm1388, %v6399, 0.0
      %6418 = vadd.xlane.f32.xlu0 %v6417
      %v6419 = vpop.xlane.xlu0 %6418
      %v6420 = vsel %vm1388, %v6401, 0.0
      %6421 = vadd.xlane.f32.xlu0 %v6420
      %v6422 = vpop.xlane.xlu0 %6421
      %v6423 = vsel %vm1388, %v6403, 0.0
      %6424 = vadd.xlane.f32.xlu0 %v6423
      %v6425 = vpop.xlane.xlu0 %6424
      %v6426 = vsel %vm1388, %v6405, 0.0
      %6427 = vadd.xlane.f32.xlu0 %v6426
      %v6428 = vpop.xlane.xlu0 %6427
      %v6429 = vsel %vm1388, %v6407, 0.0
      %6430 = vadd.xlane.f32.xlu0 %v6429
      %v6431 = vpop.xlane.xlu0 %6430
      %v6432 = vsel %vm1388, %v6409, 0.0
      %6433 = vadd.xlane.f32.xlu0 %v6432
      %v6434 = vpop.xlane.xlu0 %6433
      %v6435 = vsel %vm1388, %v6411, 0.0
      %6436 = vadd.xlane.f32.xlu0 %v6435
      %v6437 = vpop.xlane.xlu0 %6436
      %v6438 = vsel %vm1388, %v6413, 0.0
      %6439 = vadd.xlane.f32.xlu0 %v6438
      %v6440 = vpop.xlane.xlu0 %6439
      %v6441 = vrcp.pop %v6416
      %v6442 = vrcp.pop %v6419
      %v6443 = vrcp.pop %v6422
      %v6444 = vrcp.pop %v6425
      %v6445 = vrcp.pop %v6428
      %v6446 = vrcp.pop %v6431
      %v6447 = vrcp.pop %v6434
      %v6448 = vrcp.pop %v6437
      %v6449 = vrcp.pop %v6440
      %v6450 = vmul.f32 %v6397, %v6441
      %v6451 = vmul.f32 %v6399, %v6442
      %v6452 = vmul.f32 %v6401, %v6443
      %v6453 = vmul.f32 %v6403, %v6444
      %v6454 = vmul.f32 %v6405, %v6445
      %v6455 = vmul.f32 %v6407, %v6446
      %v6456 = vmul.f32 %v6409, %v6447
      %v6457 = vmul.f32 %v6411, %v6448
      %v6458 = vmul.f32 %v6413, %v6449
      %v6459 = vpack.c.bf16 %v6451, %v6450
      %v6460 = vpack.c.bf16 %v6452, %v6452
      %v6461 = vpack.c.bf16 %v6454, %v6453
      %v6462 = vpack.c.bf16 %v6455, %v6455
      %v6463 = vpack.c.bf16 %v6457, %v6456
      %v6464 = vpack.c.bf16 %v6458, %v6458
      %6465 = vrot.lane.b32.xlu0 %v5127, 64
      %v6466 = vpop.permute.xlu0 %6465
      %6467 = vrot.lane.b32.xlu0 %v5128, 64
      %v6468 = vpop.permute.xlu0 %6467
      %v6471 = vsel %vm1388, %v6459, 0
      %v6474 = vsel %vm1388, %v6460, 0
      %v6477 = vsel %vm1500, %v6468, 0
      %6479 = vmatprep.subr.bf16.mxu0 0
      %6480 = vmatpush1.bf16.msra.mxu0 %v6466
      %6481 = vmatprep.subr.bf16.mxu0 0
      %6482 = vmatpush1.bf16.msra.mxu0 %v6477
      %6483 = vmatprep.subr.bf16.mxu0 0
      %6484 = vmatpush1.bf16.msra.mxu0 0
      %6485 = vmatprep.subr.bf16.mxu0 0
      %6486 = vmatpush1.bf16.msra.mxu0 0
      %6487 = vmatprep.subr.bf16.mxu0 0
      %6488 = vmatpush1.bf16.msra.mxu0 0
      %6489 = vmatprep.subr.bf16.mxu0 0
      %6490 = vmatpush1.bf16.msra.mxu0 0
      %6491 = vmatprep.subr.bf16.mxu0 0
      %6492 = vmatpush1.bf16.msra.mxu0 0
      %6493 = vmatprep.subr.bf16.mxu0 0
      %6494 = vmatpush1.bf16.msra.mxu0 0
      %6495 = vmatprep.subr.bf16.mxu0 0
      %6496 = vmatpush1.bf16.msra.mxu0 0
      %6497 = vmatprep.subr.bf16.mxu0 0
      %6498 = vmatpush1.bf16.msra.mxu0 0
      %6499 = vmatprep.subr.bf16.mxu0 0
      %6500 = vmatpush1.bf16.msra.mxu0 0
      %6501 = vmatprep.subr.bf16.mxu0 0
      %6502 = vmatpush1.bf16.msra.mxu0 0
      %6503 = vmatprep.subr.bf16.mxu0 0
      %6504 = vmatpush1.bf16.msra.mxu0 0
      %6505 = vmatprep.subr.bf16.mxu0 0
      %6506 = vmatpush1.bf16.msra.mxu0 0
      %6507 = vmatprep.subr.bf16.mxu0 0
      %6508 = vmatpush1.bf16.msra.mxu0 0
      %6509 = vmatprep.subr.bf16.mxu0 0
      %6510 = vmatpush1.bf16.msra.mxu0 0
      %6511 = vmatprep.mubr.bf16.mxu0 0
      %6512 = vmatmul.mubr.bf16.gmra.mrb[0].mxu0 %v6471
      %v6513 = vpop.f32.mrb[0].mxu0
      %v6514 = vadd.f32 0.0, %v6513
      %v6515 = vpop.f32.mrb[0].mxu0
      %v6516 = vpop.f32.mrb[0].mxu0
      %v6517 = vadd.f32 0.0, %v6516
      %v6518 = vpop.f32.mrb[0].mxu0
      %6519 = vmatprep.mubr.bf16.mxu0 0
      %6520 = vmatmul.mubr.bf16.gmra.mrb[0].mxu0 %v6474
      %v6521 = vpop.f32.mrb[0].mxu0
      %v6522 = vadd.f32 0.0, %v6521
      %v6523 = vpop.f32.mrb[0].mxu0
      %v6524 = vpop.f32.mrb[0].mxu0
      %v6525 = vpop.f32.mrb[0].mxu0
      %6526 = vdwg.mxu0
      %6527 = vrot.lane.b32.xlu0 %v5129, 64
      %v6528 = vpop.permute.xlu0 %6527
      %6529 = vrot.lane.b32.xlu0 %v5130, 64
      %v6530 = vpop.permute.xlu0 %6529
      %v6533 = vsel %vm1388, %v6461, 0
      %v6536 = vsel %vm1388, %v6462, 0
      %v6539 = vsel %vm1500, %v6530, 0
      %6541 = vmatprep.subr.bf16.mxu0 0
      %6542 = vmatpush1.bf16.msra.mxu0 %v6528
      %6543 = vmatprep.subr.bf16.mxu0 0
      %6544 = vmatpush1.bf16.msra.mxu0 %v6539
      %6545 = vmatprep.subr.bf16.mxu0 0
      %6546 = vmatpush1.bf16.msra.mxu0 0
      %6547 = vmatprep.subr.bf16.mxu0 0
      %6548 = vmatpush1.bf16.msra.mxu0 0
      %6549 = vmatprep.subr.bf16.mxu0 0
      %6550 = vmatpush1.bf16.msra.mxu0 0
      %6551 = vmatprep.subr.bf16.mxu0 0
      %6552 = vmatpush1.bf16.msra.mxu0 0
      %6553 = vmatprep.subr.bf16.mxu0 0
      %6554 = vmatpush1.bf16.msra.mxu0 0
      %6555 = vmatprep.subr.bf16.mxu0 0
      %6556 = vmatpush1.bf16.msra.mxu0 0
      %6557 = vmatprep.subr.bf16.mxu0 0
      %6558 = vmatpush1.bf16.msra.mxu0 0
      %6559 = vmatprep.subr.bf16.mxu0 0
      %6560 = vmatpush1.bf16.msra.mxu0 0
      %6561 = vmatprep.subr.bf16.mxu0 0
      %6562 = vmatpush1.bf16.msra.mxu0 0
      %6563 = vmatprep.subr.bf16.mxu0 0
      %6564 = vmatpush1.bf16.msra.mxu0 0
      %6565 = vmatprep.subr.bf16.mxu0 0
      %6566 = vmatpush1.bf16.msra.mxu0 0
      %6567 = vmatprep.subr.bf16.mxu0 0
      %6568 = vmatpush1.bf16.msra.mxu0 0
      %6569 = vmatprep.subr.bf16.mxu0 0
      %6570 = vmatpush1.bf16.msra.mxu0 0
      %6571 = vmatprep.subr.bf16.mxu0 0
      %6572 = vmatpush1.bf16.msra.mxu0 0
      %6573 = vmatprep.mubr.bf16.mxu0 0
      %6574 = vmatmul.mubr.bf16.gmra.mrb[0].mxu0 %v6533
      %v6575 = vpop.f32.mrb[0].mxu0
      %v6576 = vadd.f32 0.0, %v6575
      %v6577 = vpop.f32.mrb[0].mxu0
      %v6578 = vpop.f32.mrb[0].mxu0
      %v6579 = vadd.f32 0.0, %v6578
      %v6580 = vpop.f32.mrb[0].mxu0
      %6581 = vmatprep.mubr.bf16.mxu0 0
      %6582 = vmatmul.mubr.bf16.gmra.mrb[0].mxu0 %v6536
      %v6583 = vpop.f32.mrb[0].mxu0
      %v6584 = vadd.f32 0.0, %v6583
      %v6585 = vpop.f32.mrb[0].mxu0
      %v6586 = vpop.f32.mrb[0].mxu0
      %v6587 = vpop.f32.mrb[0].mxu0
      %6588 = vdwg.mxu0
      %6589 = vrot.lane.b32.xlu0 %v5131, 64
      %v6590 = vpop.permute.xlu0 %6589
      %6591 = vrot.lane.b32.xlu0 %v5132, 64
      %v6592 = vpop.permute.xlu0 %6591
      %v6595 = vsel %vm1388, %v6463, 0
      %v6598 = vsel %vm1388, %v6464, 0
      %v6601 = vsel %vm1500, %v6592, 0
      %6603 = vmatprep.subr.bf16.mxu0 0
      %6604 = vmatpush1.bf16.msra.mxu0 %v6590
      %6605 = vmatprep.subr.bf16.mxu0 0
      %6606 = vmatpush1.bf16.msra.mxu0 %v6601
      %6607 = vmatprep.subr.bf16.mxu0 0
      %6608 = vmatpush1.bf16.msra.mxu0 0
      %6609 = vmatprep.subr.bf16.mxu0 0
      %6610 = vmatpush1.bf16.msra.mxu0 0
      %6611 = vmatprep.subr.bf16.mxu0 0
      %6612 = vmatpush1.bf16.msra.mxu0 0
      %6613 = vmatprep.subr.bf16.mxu0 0
      %6614 = vmatpush1.bf16.msra.mxu0 0
      %6615 = vmatprep.subr.bf16.mxu0 0
      %6616 = vmatpush1.bf16.msra.mxu0 0
      %6617 = vmatprep.subr.bf16.mxu0 0
      %6618 = vmatpush1.bf16.msra.mxu0 0
      %6619 = vmatprep.subr.bf16.mxu0 0
      %6620 = vmatpush1.bf16.msra.mxu0 0
      %6621 = vmatprep.subr.bf16.mxu0 0
      %6622 = vmatpush1.bf16.msra.mxu0 0
      %6623 = vmatprep.subr.bf16.mxu0 0
      %6624 = vmatpush1.bf16.msra.mxu0 0
      %6625 = vmatprep.subr.bf16.mxu0 0
      %6626 = vmatpush1.bf16.msra.mxu0 0
      %6627 = vmatprep.subr.bf16.mxu0 0
      %6628 = vmatpush1.bf16.msra.mxu0 0
      %6629 = vmatprep.subr.bf16.mxu0 0
      %6630 = vmatpush1.bf16.msra.mxu0 0
      %6631 = vmatprep.subr.bf16.mxu0 0
      %6632 = vmatpush1.bf16.msra.mxu0 0
      %6633 = vmatprep.subr.bf16.mxu0 0
      %6634 = vmatpush1.bf16.msra.mxu0 0
      %6635 = vmatprep.mubr.bf16.mxu0 0
      %6636 = vmatmul.mubr.bf16.gmra.mrb[0].mxu0 %v6595
      %v6637 = vpop.f32.mrb[0].mxu0
      %v6638 = vadd.f32 0.0, %v6637
      %v6639 = vpop.f32.mrb[0].mxu0
      %v6640 = vpop.f32.mrb[0].mxu0
      %v6641 = vadd.f32 0.0, %v6640
      %v6642 = vpop.f32.mrb[0].mxu0
      %6643 = vmatprep.mubr.bf16.mxu0 0
      %6644 = vmatmul.mubr.bf16.gmra.mrb[0].mxu0 %v6598
      %v6645 = vpop.f32.mrb[0].mxu0
      %v6646 = vadd.f32 0.0, %v6645
      %v6647 = vpop.f32.mrb[0].mxu0
      %v6648 = vpop.f32.mrb[0].mxu0
      %v6649 = vpop.f32.mrb[0].mxu0
      %6650 = vdwg.mxu0
      %6651 = vrot.lane.b32.xlu0 %v5115, 32
      %v6652 = vpop.permute.xlu0 %6651
      %6653 = vrot.lane.b32.xlu0 %v5116, 32
      %v6654 = vpop.permute.xlu0 %6653
      %6655 = vrot.lane.b32.xlu0 %v5121, 32
      %v6656 = vpop.permute.xlu0 %6655
      %6657 = vrot.lane.b32.xlu0 %v5122, 32
      %v6658 = vpop.permute.xlu0 %6657
      %v6660 = vsel %vm1189, %v6652, 0
      %v6663 = vsel %vm1189, %v6654, 0
      %v6666 = vsel %vm1189, %v6656, 0
      %v6669 = vsel %vm1189, %v6658, 0
      %6671 = vmatprep.subr.bf16.mxu0 0
      %6672 = vmatpush1.bf16.xpose.msra.mxu0 %v6666
      %6673 = vmatprep.subr.bf16.mxu0 0
      %6674 = vmatpush1.bf16.xpose.msra.mxu0 %v6669
      %6675 = vmatprep.subr.bf16.mxu0 0
      %6676 = vmatpush1.bf16.xpose.msra.mxu0 0
      %6677 = vmatprep.subr.bf16.mxu0 0
      %6678 = vmatpush1.bf16.xpose.msra.mxu0 0
      %6679 = vmatprep.subr.bf16.mxu0 0
      %6680 = vmatpush1.bf16.xpose.msra.mxu0 0
      %6681 = vmatprep.subr.bf16.mxu0 0
      %6682 = vmatpush1.bf16.xpose.msra.mxu0 0
      %6683 = vmatprep.subr.bf16.mxu0 0
      %6684 = vmatpush1.bf16.xpose.msra.mxu0 0
      %6685 = vmatprep.subr.bf16.mxu0 0
      %6686 = vmatpush1.bf16.xpose.msra.mxu0 0
      %6687 = vmatprep.subr.bf16.mxu0 0
      %6688 = vmatpush1.bf16.xpose.msra.mxu0 0
      %6689 = vmatprep.subr.bf16.mxu0 0
      %6690 = vmatpush1.bf16.xpose.msra.mxu0 0
      %6691 = vmatprep.subr.bf16.mxu0 0
      %6692 = vmatpush1.bf16.xpose.msra.mxu0 0
      %6693 = vmatprep.subr.bf16.mxu0 0
      %6694 = vmatpush1.bf16.xpose.msra.mxu0 0
      %6695 = vmatprep.subr.bf16.mxu0 0
      %6696 = vmatpush1.bf16.xpose.msra.mxu0 0
      %6697 = vmatprep.subr.bf16.mxu0 0
      %6698 = vmatpush1.bf16.xpose.msra.mxu0 0
      %6699 = vmatprep.subr.bf16.mxu0 0
      %6700 = vmatpush1.bf16.xpose.msra.mxu0 0
      %6701 = vmatprep.subr.bf16.mxu0 0
      %6702 = vmatpush1.bf16.xpose.msra.mxu0 0
      %6703 = vmatprep.mubr.bf16.mxu0 0
      %6704 = vmatmul.mubr.bf16.gmra.mrb[0].mxu0 %v6660
      %v6705 = vpop.f32.mrb[0].mxu0
      %v6706 = vadd.f32 0.0, %v6705
      %v6707 = vpop.f32.mrb[0].mxu0
      %v6708 = vpop.f32.mrb[0].mxu0
      %v6709 = vadd.f32 0.0, %v6708
      %v6710 = vpop.f32.mrb[0].mxu0
      %6711 = vmatprep.mubr.bf16.mxu0 0
      %6712 = vmatmul.mubr.bf16.gmra.mrb[0].mxu0 %v6663
      %v6713 = vpop.f32.mrb[0].mxu0
      %v6714 = vadd.f32 0.0, %v6713
      %v6715 = vpop.f32.mrb[0].mxu0
      %v6716 = vpop.f32.mrb[0].mxu0
      %v6717 = vpop.f32.mrb[0].mxu0
      %6718 = vdwg.mxu0
      %6719 = vrot.lane.b32.xlu0 %v5117, 32
      %v6720 = vpop.permute.xlu0 %6719
      %6721 = vrot.lane.b32.xlu0 %v5118, 32
      %v6722 = vpop.permute.xlu0 %6721
      %6723 = vrot.lane.b32.xlu0 %v5123, 32
      %v6724 = vpop.permute.xlu0 %6723
      %6725 = vrot.lane.b32.xlu0 %v5124, 32
      %v6726 = vpop.permute.xlu0 %6725
      %v6728 = vsel %vm1189, %v6720, 0
      %v6731 = vsel %vm1189, %v6722, 0
      %v6734 = vsel %vm1189, %v6724, 0
      %v6737 = vsel %vm1189, %v6726, 0
      %6739 = vmatprep.subr.bf16.mxu0 0
      %6740 = vmatpush1.bf16.xpose.msra.mxu0 %v6734
      %6741 = vmatprep.subr.bf16.mxu0 0
      %6742 = vmatpush1.bf16.xpose.msra.mxu0 %v6737
      %6743 = vmatprep.subr.bf16.mxu0 0
      %6744 = vmatpush1.bf16.xpose.msra.mxu0 0
      %6745 = vmatprep.subr.bf16.mxu0 0
      %6746 = vmatpush1.bf16.xpose.msra.mxu0 0
      %6747 = vmatprep.subr.bf16.mxu0 0
      %6748 = vmatpush1.bf16.xpose.msra.mxu0 0
      %6749 = vmatprep.subr.bf16.mxu0 0
      %6750 = vmatpush1.bf16.xpose.msra.mxu0 0
      %6751 = vmatprep.subr.bf16.mxu0 0
      %6752 = vmatpush1.bf16.xpose.msra.mxu0 0
      %6753 = vmatprep.subr.bf16.mxu0 0
      %6754 = vmatpush1.bf16.xpose.msra.mxu0 0
      %6755 = vmatprep.subr.bf16.mxu0 0
      %6756 = vmatpush1.bf16.xpose.msra.mxu0 0
      %6757 = vmatprep.subr.bf16.mxu0 0
      %6758 = vmatpush1.bf16.xpose.msra.mxu0 0
      %6759 = vmatprep.subr.bf16.mxu0 0
      %6760 = vmatpush1.bf16.xpose.msra.mxu0 0
      %6761 = vmatprep.subr.bf16.mxu0 0
      %6762 = vmatpush1.bf16.xpose.msra.mxu0 0
      %6763 = vmatprep.subr.bf16.mxu0 0
      %6764 = vmatpush1.bf16.xpose.msra.mxu0 0
      %6765 = vmatprep.subr.bf16.mxu0 0
      %6766 = vmatpush1.bf16.xpose.msra.mxu0 0
      %6767 = vmatprep.subr.bf16.mxu0 0
      %6768 = vmatpush1.bf16.xpose.msra.mxu0 0
      %6769 = vmatprep.subr.bf16.mxu0 0
      %6770 = vmatpush1.bf16.xpose.msra.mxu0 0
      %6771 = vmatprep.mubr.bf16.mxu0 0
      %6772 = vmatmul.mubr.bf16.gmra.mrb[0].mxu0 %v6728
      %v6773 = vpop.f32.mrb[0].mxu0
      %v6774 = vadd.f32 0.0, %v6773
      %v6775 = vpop.f32.mrb[0].mxu0
      %v6776 = vpop.f32.mrb[0].mxu0
      %v6777 = vadd.f32 0.0, %v6776
      %v6778 = vpop.f32.mrb[0].mxu0
      %6779 = vmatprep.mubr.bf16.mxu0 0
      %6780 = vmatmul.mubr.bf16.gmra.mrb[0].mxu0 %v6731
      %v6781 = vpop.f32.mrb[0].mxu0
      %v6782 = vadd.f32 0.0, %v6781
      %v6783 = vpop.f32.mrb[0].mxu0
      %v6784 = vpop.f32.mrb[0].mxu0
      %v6785 = vpop.f32.mrb[0].mxu0
      %6786 = vdwg.mxu0
      %6787 = vrot.lane.b32.xlu0 %v5119, 32
      %v6788 = vpop.permute.xlu0 %6787
      %6789 = vrot.lane.b32.xlu0 %v5120, 32
      %v6790 = vpop.permute.xlu0 %6789
      %6791 = vrot.lane.b32.xlu0 %v5125, 32
      %v6792 = vpop.permute.xlu0 %6791
      %6793 = vrot.lane.b32.xlu0 %v5126, 32
      %v6794 = vpop.permute.xlu0 %6793
      %v6796 = vsel %vm1189, %v6788, 0
      %v6799 = vsel %vm1189, %v6790, 0
      %v6802 = vsel %vm1189, %v6792, 0
      %v6805 = vsel %vm1189, %v6794, 0
      %6807 = vmatprep.subr.bf16.mxu0 0
      %6808 = vmatpush1.bf16.xpose.msra.mxu0 %v6802
      %6809 = vmatprep.subr.bf16.mxu0 0
      %6810 = vmatpush1.bf16.xpose.msra.mxu0 %v6805
      %6811 = vmatprep.subr.bf16.mxu0 0
      %6812 = vmatpush1.bf16.xpose.msra.mxu0 0
      %6813 = vmatprep.subr.bf16.mxu0 0
      %6814 = vmatpush1.bf16.xpose.msra.mxu0 0
      %6815 = vmatprep.subr.bf16.mxu0 0
      %6816 = vmatpush1.bf16.xpose.msra.mxu0 0
      %6817 = vmatprep.subr.bf16.mxu0 0
      %6818 = vmatpush1.bf16.xpose.msra.mxu0 0
      %6819 = vmatprep.subr.bf16.mxu0 0
      %6820 = vmatpush1.bf16.xpose.msra.mxu0 0
      %6821 = vmatprep.subr.bf16.mxu0 0
      %6822 = vmatpush1.bf16.xpose.msra.mxu0 0
      %6823 = vmatprep.subr.bf16.mxu0 0
      %6824 = vmatpush1.bf16.xpose.msra.mxu0 0
      %6825 = vmatprep.subr.bf16.mxu0 0
      %6826 = vmatpush1.bf16.xpose.msra.mxu0 0
      %6827 = vmatprep.subr.bf16.mxu0 0
      %6828 = vmatpush1.bf16.xpose.msra.mxu0 0
      %6829 = vmatprep.subr.bf16.mxu0 0
      %6830 = vmatpush1.bf16.xpose.msra.mxu0 0
      %6831 = vmatprep.subr.bf16.mxu0 0
      %6832 = vmatpush1.bf16.xpose.msra.mxu0 0
      %6833 = vmatprep.subr.bf16.mxu0 0
      %6834 = vmatpush1.bf16.xpose.msra.mxu0 0
      %6835 = vmatprep.subr.bf16.mxu0 0
      %6836 = vmatpush1.bf16.xpose.msra.mxu0 0
      %6837 = vmatprep.subr.bf16.mxu0 0
      %6838 = vmatpush1.bf16.xpose.msra.mxu0 0
      %6839 = vmatprep.mubr.bf16.mxu0 0
      %6840 = vmatmul.mubr.bf16.gmra.mrb[0].mxu0 %v6796
      %v6841 = vpop.f32.mrb[0].mxu0
      %v6842 = vadd.f32 0.0, %v6841
      %v6843 = vpop.f32.mrb[0].mxu0
      %v6844 = vpop.f32.mrb[0].mxu0
      %v6845 = vadd.f32 0.0, %v6844
      %v6846 = vpop.f32.mrb[0].mxu0
      %6847 = vmatprep.mubr.bf16.mxu0 0
      %6848 = vmatmul.mubr.bf16.gmra.mrb[0].mxu0 %v6799
      %v6849 = vpop.f32.mrb[0].mxu0
      %v6850 = vadd.f32 0.0, %v6849
      %v6851 = vpop.f32.mrb[0].mxu0
      %v6852 = vpop.f32.mrb[0].mxu0
      %v6853 = vpop.f32.mrb[0].mxu0
      %6854 = vdwg.mxu0
      %v6855 = vmul.f32 %v6706, 0.17677669
      %v6856 = vmul.f32 %v6709, 0.17677669
      %v6857 = vmul.f32 %v6714, 0.17677669
      %v6858 = vmul.f32 %v6774, 0.17677669
      %v6859 = vmul.f32 %v6777, 0.17677669
      %v6860 = vmul.f32 %v6782, 0.17677669
      %v6861 = vmul.f32 %v6842, 0.17677669
      %v6862 = vmul.f32 %v6845, 0.17677669
      %v6863 = vmul.f32 %v6850, 0.17677669
      %v6864 = vadd.f32 %v6855, %v729
      %v6865 = vadd.f32 %v6856, %v729
      %v6866 = vadd.f32 %v6857, %v729
      %v6867 = vadd.f32 %v6858, %v729
      %v6868 = vadd.f32 %v6859, %v729
      %v6869 = vadd.f32 %v6860, %v729
      %v6870 = vadd.f32 %v6861, %v729
      %v6871 = vadd.f32 %v6862, %v729
      %v6872 = vadd.f32 %v6863, %v729
      %v6873 = vsel %vm1388, %v6864, -inf
      %6874 = vmax.xlane.f32.xlu0 %v6873
      %v6875 = vpop.xlane.xlu0 %6874
      %v6876 = vsel %vm1388, %v6865, -inf
      %6877 = vmax.xlane.f32.xlu0 %v6876
      %v6878 = vpop.xlane.xlu0 %6877
      %v6879 = vsel %vm1388, %v6866, -inf
      %6880 = vmax.xlane.f32.xlu0 %v6879
      %v6881 = vpop.xlane.xlu0 %6880
      %v6882 = vsel %vm1388, %v6867, -inf
      %6883 = vmax.xlane.f32.xlu0 %v6882
      %v6884 = vpop.xlane.xlu0 %6883
      %v6885 = vsel %vm1388, %v6868, -inf
      %6886 = vmax.xlane.f32.xlu0 %v6885
      %v6887 = vpop.xlane.xlu0 %6886
      %v6888 = vsel %vm1388, %v6869, -inf
      %6889 = vmax.xlane.f32.xlu0 %v6888
      %v6890 = vpop.xlane.xlu0 %6889
      %v6891 = vsel %vm1388, %v6870, -inf
      %6892 = vmax.xlane.f32.xlu0 %v6891
      %v6893 = vpop.xlane.xlu0 %6892
      %v6894 = vsel %vm1388, %v6871, -inf
      %6895 = vmax.xlane.f32.xlu0 %v6894
      %v6896 = vpop.xlane.xlu0 %6895
      %v6897 = vsel %vm1388, %v6872, -inf
      %6898 = vmax.xlane.f32.xlu0 %v6897
      %v6899 = vpop.xlane.xlu0 %6898
      %v6900 = vsub.f32 %v6864, %v6875
      %v6901 = vsub.f32 %v6865, %v6878
      %v6902 = vsub.f32 %v6866, %v6881
      %v6903 = vsub.f32 %v6867, %v6884
      %v6904 = vsub.f32 %v6868, %v6887
      %v6905 = vsub.f32 %v6869, %v6890
      %v6906 = vsub.f32 %v6870, %v6893
      %v6907 = vsub.f32 %v6871, %v6896
      %v6908 = vsub.f32 %v6872, %v6899
      %v6909 = vmul.f32 %v6900, 1.442695
      %v6910 = vpow.pop %v6909
      %v6911 = vmul.f32 %v6901, 1.442695
      %v6912 = vpow.pop %v6911
      %v6913 = vmul.f32 %v6902, 1.442695
      %v6914 = vpow.pop %v6913
      %v6915 = vmul.f32 %v6903, 1.442695
      %v6916 = vpow.pop %v6915
      %v6917 = vmul.f32 %v6904, 1.442695
      %v6918 = vpow.pop %v6917
      %v6919 = vmul.f32 %v6905, 1.442695
      %v6920 = vpow.pop %v6919
      %v6921 = vmul.f32 %v6906, 1.442695
      %v6922 = vpow.pop %v6921
      %v6923 = vmul.f32 %v6907, 1.442695
      %v6924 = vpow.pop %v6923
      %v6925 = vmul.f32 %v6908, 1.442695
      %v6926 = vpow.pop %v6925
      %v6927 = vsel %vm1388, %v6910, 0.0
      %6928 = vadd.xlane.f32.xlu0 %v6927
      %v6929 = vpop.xlane.xlu0 %6928
      %v6930 = vsel %vm1388, %v6912, 0.0
      %6931 = vadd.xlane.f32.xlu0 %v6930
      %v6932 = vpop.xlane.xlu0 %6931
      %v6933 = vsel %vm1388, %v6914, 0.0
      %6934 = vadd.xlane.f32.xlu0 %v6933
      %v6935 = vpop.xlane.xlu0 %6934
      %v6936 = vsel %vm1388, %v6916, 0.0
      %6937 = vadd.xlane.f32.xlu0 %v6936
      %v6938 = vpop.xlane.xlu0 %6937
      %v6939 = vsel %vm1388, %v6918, 0.0
      %6940 = vadd.xlane.f32.xlu0 %v6939
      %v6941 = vpop.xlane.xlu0 %6940
      %v6942 = vsel %vm1388, %v6920, 0.0
      %6943 = vadd.xlane.f32.xlu0 %v6942
      %v6944 = vpop.xlane.xlu0 %6943
      %v6945 = vsel %vm1388, %v6922, 0.0
      %6946 = vadd.xlane.f32.xlu0 %v6945
      %v6947 = vpop.xlane.xlu0 %6946
      %v6948 = vsel %vm1388, %v6924, 0.0
      %6949 = vadd.xlane.f32.xlu0 %v6948
      %v6950 = vpop.xlane.xlu0 %6949
      %v6951 = vsel %vm1388, %v6926, 0.0
      %6952 = vadd.xlane.f32.xlu0 %v6951
      %v6953 = vpop.xlane.xlu0 %6952
      %v6954 = vrcp.pop %v6929
      %v6955 = vrcp.pop %v6932
      %v6956 = vrcp.pop %v6935
      %v6957 = vrcp.pop %v6938
      %v6958 = vrcp.pop %v6941
      %v6959 = vrcp.pop %v6944
      %v6960 = vrcp.pop %v6947
      %v6961 = vrcp.pop %v6950
      %v6962 = vrcp.pop %v6953
      %v6963 = vmul.f32 %v6910, %v6954
      %v6964 = vmul.f32 %v6912, %v6955
      %v6965 = vmul.f32 %v6914, %v6956
      %v6966 = vmul.f32 %v6916, %v6957
      %v6967 = vmul.f32 %v6918, %v6958
      %v6968 = vmul.f32 %v6920, %v6959
      %v6969 = vmul.f32 %v6922, %v6960
      %v6970 = vmul.f32 %v6924, %v6961
      %v6971 = vmul.f32 %v6926, %v6962
      %v6972 = vpack.c.bf16 %v6964, %v6963
      %v6973 = vpack.c.bf16 %v6965, %v6965
      %v6974 = vpack.c.bf16 %v6967, %v6966
      %v6975 = vpack.c.bf16 %v6968, %v6968
      %v6976 = vpack.c.bf16 %v6970, %v6969
      %v6977 = vpack.c.bf16 %v6971, %v6971
      %6978 = vrot.lane.b32.xlu0 %v5127, 32
      %v6979 = vpop.permute.xlu0 %6978
      %6980 = vrot.lane.b32.xlu0 %v5128, 32
      %v6981 = vpop.permute.xlu0 %6980
      %v6984 = vsel %vm1388, %v6972, 0
      %v6987 = vsel %vm1388, %v6973, 0
      %v6990 = vsel %vm1500, %v6981, 0
      %6992 = vmatprep.subr.bf16.mxu0 0
      %6993 = vmatpush1.bf16.msra.mxu0 %v6979
      %6994 = vmatprep.subr.bf16.mxu0 0
      %6995 = vmatpush1.bf16.msra.mxu0 %v6990
      %6996 = vmatprep.subr.bf16.mxu0 0
      %6997 = vmatpush1.bf16.msra.mxu0 0
      %6998 = vmatprep.subr.bf16.mxu0 0
      %6999 = vmatpush1.bf16.msra.mxu0 0
      %7000 = vmatprep.subr.bf16.mxu0 0
      %7001 = vmatpush1.bf16.msra.mxu0 0
      %7002 = vmatprep.subr.bf16.mxu0 0
      %7003 = vmatpush1.bf16.msra.mxu0 0
      %7004 = vmatprep.subr.bf16.mxu0 0
      %7005 = vmatpush1.bf16.msra.mxu0 0
      %7006 = vmatprep.subr.bf16.mxu0 0
      %7007 = vmatpush1.bf16.msra.mxu0 0
      %7008 = vmatprep.subr.bf16.mxu0 0
      %7009 = vmatpush1.bf16.msra.mxu0 0
      %7010 = vmatprep.subr.bf16.mxu0 0
      %7011 = vmatpush1.bf16.msra.mxu0 0
      %7012 = vmatprep.subr.bf16.mxu0 0
      %7013 = vmatpush1.bf16.msra.mxu0 0
      %7014 = vmatprep.subr.bf16.mxu0 0
      %7015 = vmatpush1.bf16.msra.mxu0 0
      %7016 = vmatprep.subr.bf16.mxu0 0
      %7017 = vmatpush1.bf16.msra.mxu0 0
      %7018 = vmatprep.subr.bf16.mxu0 0
      %7019 = vmatpush1.bf16.msra.mxu0 0
      %7020 = vmatprep.subr.bf16.mxu0 0
      %7021 = vmatpush1.bf16.msra.mxu0 0
      %7022 = vmatprep.subr.bf16.mxu0 0
      %7023 = vmatpush1.bf16.msra.mxu0 0
      %7024 = vmatprep.mubr.bf16.mxu0 0
      %7025 = vmatmul.mubr.bf16.gmra.mrb[0].mxu0 %v6984
      %v7026 = vpop.f32.mrb[0].mxu0
      %v7027 = vadd.f32 0.0, %v7026
      %v7028 = vpop.f32.mrb[0].mxu0
      %v7029 = vpop.f32.mrb[0].mxu0
      %v7030 = vadd.f32 0.0, %v7029
      %v7031 = vpop.f32.mrb[0].mxu0
      %7032 = vmatprep.mubr.bf16.mxu0 0
      %7033 = vmatmul.mubr.bf16.gmra.mrb[0].mxu0 %v6987
      %v7034 = vpop.f32.mrb[0].mxu0
      %v7035 = vadd.f32 0.0, %v7034
      %v7036 = vpop.f32.mrb[0].mxu0
      %v7037 = vpop.f32.mrb[0].mxu0
      %v7038 = vpop.f32.mrb[0].mxu0
      %7039 = vdwg.mxu0
      %7040 = vrot.lane.b32.xlu0 %v5129, 32
      %v7041 = vpop.permute.xlu0 %7040
      %7042 = vrot.lane.b32.xlu0 %v5130, 32
      %v7043 = vpop.permute.xlu0 %7042
      %v7046 = vsel %vm1388, %v6974, 0
      %v7049 = vsel %vm1388, %v6975, 0
      %v7052 = vsel %vm1500, %v7043, 0
      %7054 = vmatprep.subr.bf16.mxu0 0
      %7055 = vmatpush1.bf16.msra.mxu0 %v7041
      %7056 = vmatprep.subr.bf16.mxu0 0
      %7057 = vmatpush1.bf16.msra.mxu0 %v7052
      %7058 = vmatprep.subr.bf16.mxu0 0
      %7059 = vmatpush1.bf16.msra.mxu0 0
      %7060 = vmatprep.subr.bf16.mxu0 0
      %7061 = vmatpush1.bf16.msra.mxu0 0
      %7062 = vmatprep.subr.bf16.mxu0 0
      %7063 = vmatpush1.bf16.msra.mxu0 0
      %7064 = vmatprep.subr.bf16.mxu0 0
      %7065 = vmatpush1.bf16.msra.mxu0 0
      %7066 = vmatprep.subr.bf16.mxu0 0
      %7067 = vmatpush1.bf16.msra.mxu0 0
      %7068 = vmatprep.subr.bf16.mxu0 0
      %7069 = vmatpush1.bf16.msra.mxu0 0
      %7070 = vmatprep.subr.bf16.mxu0 0
      %7071 = vmatpush1.bf16.msra.mxu0 0
      %7072 = vmatprep.subr.bf16.mxu0 0
      %7073 = vmatpush1.bf16.msra.mxu0 0
      %7074 = vmatprep.subr.bf16.mxu0 0
      %7075 = vmatpush1.bf16.msra.mxu0 0
      %7076 = vmatprep.subr.bf16.mxu0 0
      %7077 = vmatpush1.bf16.msra.mxu0 0
      %7078 = vmatprep.subr.bf16.mxu0 0
      %7079 = vmatpush1.bf16.msra.mxu0 0
      %7080 = vmatprep.subr.bf16.mxu0 0
      %7081 = vmatpush1.bf16.msra.mxu0 0
      %7082 = vmatprep.subr.bf16.mxu0 0
      %7083 = vmatpush1.bf16.msra.mxu0 0
      %7084 = vmatprep.subr.bf16.mxu0 0
      %7085 = vmatpush1.bf16.msra.mxu0 0
      %7086 = vmatprep.mubr.bf16.mxu0 0
      %7087 = vmatmul.mubr.bf16.gmra.mrb[0].mxu0 %v7046
      %v7088 = vpop.f32.mrb[0].mxu0
      %v7089 = vadd.f32 0.0, %v7088
      %v7090 = vpop.f32.mrb[0].mxu0
      %v7091 = vpop.f32.mrb[0].mxu0
      %v7092 = vadd.f32 0.0, %v7091
      %v7093 = vpop.f32.mrb[0].mxu0
      %7094 = vmatprep.mubr.bf16.mxu0 0
      %7095 = vmatmul.mubr.bf16.gmra.mrb[0].mxu0 %v7049
      %v7096 = vpop.f32.mrb[0].mxu0
      %v7097 = vadd.f32 0.0, %v7096
      %v7098 = vpop.f32.mrb[0].mxu0
      %v7099 = vpop.f32.mrb[0].mxu0
      %v7100 = vpop.f32.mrb[0].mxu0
      %7101 = vdwg.mxu0
      %7102 = vrot.lane.b32.xlu0 %v5131, 32
      %v7103 = vpop.permute.xlu0 %7102
      %7104 = vrot.lane.b32.xlu0 %v5132, 32
      %v7105 = vpop.permute.xlu0 %7104
      %v7108 = vsel %vm1388, %v6976, 0
      %v7111 = vsel %vm1388, %v6977, 0
      %v7114 = vsel %vm1500, %v7105, 0
      %7116 = vmatprep.subr.bf16.mxu0 0
      %7117 = vmatpush1.bf16.msra.mxu0 %v7103
      %7118 = vmatprep.subr.bf16.mxu0 0
      %7119 = vmatpush1.bf16.msra.mxu0 %v7114
      %7120 = vmatprep.subr.bf16.mxu0 0
      %7121 = vmatpush1.bf16.msra.mxu0 0
      %7122 = vmatprep.subr.bf16.mxu0 0
      %7123 = vmatpush1.bf16.msra.mxu0 0
      %7124 = vmatprep.subr.bf16.mxu0 0
      %7125 = vmatpush1.bf16.msra.mxu0 0
      %7126 = vmatprep.subr.bf16.mxu0 0
      %7127 = vmatpush1.bf16.msra.mxu0 0
      %7128 = vmatprep.subr.bf16.mxu0 0
      %7129 = vmatpush1.bf16.msra.mxu0 0
      %7130 = vmatprep.subr.bf16.mxu0 0
      %7131 = vmatpush1.bf16.msra.mxu0 0
      %7132 = vmatprep.subr.bf16.mxu0 0
      %7133 = vmatpush1.bf16.msra.mxu0 0
      %7134 = vmatprep.subr.bf16.mxu0 0
      %7135 = vmatpush1.bf16.msra.mxu0 0
      %7136 = vmatprep.subr.bf16.mxu0 0
      %7137 = vmatpush1.bf16.msra.mxu0 0
      %7138 = vmatprep.subr.bf16.mxu0 0
      %7139 = vmatpush1.bf16.msra.mxu0 0
      %7140 = vmatprep.subr.bf16.mxu0 0
      %7141 = vmatpush1.bf16.msra.mxu0 0
      %7142 = vmatprep.subr.bf16.mxu0 0
      %7143 = vmatpush1.bf16.msra.mxu0 0
      %7144 = vmatprep.subr.bf16.mxu0 0
      %7145 = vmatpush1.bf16.msra.mxu0 0
      %7146 = vmatprep.subr.bf16.mxu0 0
      %7147 = vmatpush1.bf16.msra.mxu0 0
      %7148 = vmatprep.mubr.bf16.mxu0 0
      %7149 = vmatmul.mubr.bf16.gmra.mrb[0].mxu0 %v7108
      %v7150 = vpop.f32.mrb[0].mxu0
      %v7151 = vadd.f32 0.0, %v7150
      %v7152 = vpop.f32.mrb[0].mxu0
      %v7153 = vpop.f32.mrb[0].mxu0
      %v7154 = vadd.f32 0.0, %v7153
      %v7155 = vpop.f32.mrb[0].mxu0
      %7156 = vmatprep.mubr.bf16.mxu0 0
      %7157 = vmatmul.mubr.bf16.gmra.mrb[0].mxu0 %v7111
      %v7158 = vpop.f32.mrb[0].mxu0
      %v7159 = vadd.f32 0.0, %v7158
      %v7160 = vpop.f32.mrb[0].mxu0
      %v7161 = vpop.f32.mrb[0].mxu0
      %v7162 = vpop.f32.mrb[0].mxu0
      %7163 = vdwg.mxu0
      %7173 = vrot.lane.b32.xlu0 %v5997, 32
      %v7174 = vpop.permute.xlu0 %7173
      %7175 = vrot.lane.b32.xlu0 %v6000, 32
      %v7176 = vpop.permute.xlu0 %7175
      %7177 = vrot.lane.b32.xlu0 %v6005, 32
      %v7178 = vpop.permute.xlu0 %7177
      %7179 = vrot.lane.b32.xlu0 %v6061, 32
      %v7180 = vpop.permute.xlu0 %7179
      %7181 = vrot.lane.b32.xlu0 %v6064, 32
      %v7182 = vpop.permute.xlu0 %7181
      %7183 = vrot.lane.b32.xlu0 %v6069, 32
      %v7184 = vpop.permute.xlu0 %7183
      %7185 = vrot.lane.b32.xlu0 %v6125, 32
      %v7186 = vpop.permute.xlu0 %7185
      %7187 = vrot.lane.b32.xlu0 %v6128, 32
      %v7188 = vpop.permute.xlu0 %7187
      %7189 = vrot.lane.b32.xlu0 %v6133, 32
      %v7190 = vpop.permute.xlu0 %7189
      %7209 = vrot.lane.b32.xlu0 %v6514, 64
      %v7210 = vpop.permute.xlu0 %7209
      %7211 = vrot.lane.b32.xlu0 %v6517, 64
      %v7212 = vpop.permute.xlu0 %7211
      %7213 = vrot.lane.b32.xlu0 %v6522, 64
      %v7214 = vpop.permute.xlu0 %7213
      %7215 = vrot.lane.b32.xlu0 %v6576, 64
      %v7216 = vpop.permute.xlu0 %7215
      %7217 = vrot.lane.b32.xlu0 %v6579, 64
      %v7218 = vpop.permute.xlu0 %7217
      %7219 = vrot.lane.b32.xlu0 %v6584, 64
      %v7220 = vpop.permute.xlu0 %7219
      %7221 = vrot.lane.b32.xlu0 %v6638, 64
      %v7222 = vpop.permute.xlu0 %7221
      %7223 = vrot.lane.b32.xlu0 %v6641, 64
      %v7224 = vpop.permute.xlu0 %7223
      %7225 = vrot.lane.b32.xlu0 %v6646, 64
      %v7226 = vpop.permute.xlu0 %7225
      %7245 = vrot.lane.b32.xlu0 %v7027, 96
      %v7246 = vpop.permute.xlu0 %7245
      %7247 = vrot.lane.b32.xlu0 %v7030, 96
      %v7248 = vpop.permute.xlu0 %7247
      %7249 = vrot.lane.b32.xlu0 %v7035, 96
      %v7250 = vpop.permute.xlu0 %7249
      %7251 = vrot.lane.b32.xlu0 %v7089, 96
      %v7252 = vpop.permute.xlu0 %7251
      %7253 = vrot.lane.b32.xlu0 %v7092, 96
      %v7254 = vpop.permute.xlu0 %7253
      %7255 = vrot.lane.b32.xlu0 %v7097, 96
      %v7256 = vpop.permute.xlu0 %7255
      %7257 = vrot.lane.b32.xlu0 %v7151, 96
      %v7258 = vpop.permute.xlu0 %7257
      %7259 = vrot.lane.b32.xlu0 %v7154, 96
      %v7260 = vpop.permute.xlu0 %7259
      %7261 = vrot.lane.b32.xlu0 %v7159, 96
      %v7262 = vpop.permute.xlu0 %7261
      %v7272 = vsel %vm1189, %v5480, %v7174
      %v7273 = vsel %vm1189, %v5483, %v7176
      %v7274 = vsel %vm1189, %v5488, %v7178
      %v7275 = vsel %vm1189, %v5537, %v7180
      %v7276 = vsel %vm1189, %v5540, %v7182
      %v7277 = vsel %vm1189, %v5545, %v7184
      %v7278 = vsel %vm1189, %v5594, %v7186
      %v7279 = vsel %vm1189, %v5597, %v7188
      %v7280 = vsel %vm1189, %v5602, %v7190
      %v7281 = vsel %vm3340, %v7272, %v7210
      %v7282 = vsel %vm3340, %v7273, %v7212
      %v7283 = vsel %vm3340, %v7274, %v7214
      %v7284 = vsel %vm3340, %v7275, %v7216
      %v7285 = vsel %vm3340, %v7276, %v7218
      %v7286 = vsel %vm3340, %v7277, %v7220
      %v7287 = vsel %vm3340, %v7278, %v7222
      %v7288 = vsel %vm3340, %v7279, %v7224
      %v7289 = vsel %vm3340, %v7280, %v7226
      %v7290 = vsel %vm3350, %v7281, %v7246
      %v7291 = vsel %vm3350, %v7282, %v7248
      %v7292 = vsel %vm3350, %v7283, %v7250
      %v7293 = vsel %vm3350, %v7284, %v7252
      %v7294 = vsel %vm3350, %v7285, %v7254
      %v7295 = vsel %vm3350, %v7286, %v7256
      %v7296 = vsel %vm3350, %v7287, %v7258
      %v7297 = vsel %vm3350, %v7288, %v7260
      %v7298 = vsel %vm3350, %v7289, %v7262
      %v7299 = vpack.c.bf16 %v7291, %v7290
      %v7300 = vpack.c.bf16 %v7293, %v7292
      %v7301 = vpack.c.bf16 %v7295, %v7294
      %v7302 = vpack.c.bf16 %v7297, %v7296
      %v7303 = vpack.c.bf16 %v7298, %v7298
      %s7304 = scalar_lea.vmem %s7, 64
      %v7305 = vld [vmem:[%s7304] sm:$0xf]
      %v7306 = vld [vmem:[%s7304 + $0x4] sm:$0xf]
      %v7307 = vld [vmem:[%s7304 + $0x8] sm:$0xf]
      %v7308 = vld [vmem:[%s7304 + $0xc] sm:$0xf]
      %v7309 = vld [vmem:[%s7304 + $0x10] sm:$0xf]
      %v7310 = vld [vmem:[%s7304 + $0x14] sm:$0xf]
      %v7311 = vld [vmem:[%s7304 + $0x18] sm:$0xf]
      %v7312 = vld [vmem:[%s7304 + $0x1c] sm:$0xf]
      %v7313 = vld [vmem:[%s7304 + $0x20] sm:$0xf]
      %v7314 = vld [vmem:[%s7304 + $0x24] sm:$0xf]
      %v7315 = vld [vmem:[%s7304 + $0x28] sm:$0xf]
      %v7316 = vld [vmem:[%s7304 + $0x2c] sm:$0xf]
      %v7317 = vld [vmem:[%s7304 + $0x30] sm:$0xf]
      %v7318 = vld [vmem:[%s7304 + $0x34] sm:$0xf]
      %v7319 = vld [vmem:[%s7304 + $0x38] sm:$0xf]
      %v7320 = vld [vmem:[%s7304 + $0x3c] sm:$0xf]
      %s7321 = scalar_lea.vmem %s8, 1
      %v7322 = vld [vmem:[%s7321] sm:$0x1]
      %v7324 = vlaneseq
      %v7325 = vshrl.u32 %v7324, 7
      %v7326 = vsub.s32 0, %v7325
      %v7327 = vrot.slane %v7322, %v7326
      %v7345 = vunpack.c.l.b16 %v7305
      %v7346 = vunpack.c.l.b16 %v7306
      %v7347 = vunpack.c.l.b16 %v7307
      %v7348 = vunpack.c.l.b16 %v7308
      %v7349 = vunpack.c.l.b16 %v7309
      %v7350 = vunpack.c.l.b16 %v7310
      %v7351 = vunpack.c.l.b16 %v7311
      %v7352 = vunpack.c.l.b16 %v7312
      %v7353 = vunpack.c.l.b16 %v7313
      %v7354 = vunpack.c.l.b16 %v7314
      %v7355 = vunpack.c.l.b16 %v7315
      %v7356 = vunpack.c.l.b16 %v7316
      %v7357 = vunpack.c.l.b16 %v7317
      %v7358 = vunpack.c.l.b16 %v7318
      %v7359 = vunpack.c.l.b16 %v7319
      %v7360 = vunpack.c.l.b16 %v7320
      %v7361 = vpack.c.b16 %v7346, %v7345
      %v7362 = vpack.c.b16 %v7348, %v7347
      %v7363 = vpack.c.b16 %v7350, %v7349
      %v7364 = vpack.c.b16 %v7352, %v7351
      %v7365 = vpack.c.b16 %v7354, %v7353
      %v7366 = vpack.c.b16 %v7356, %v7355
      %v7367 = vpack.c.b16 %v7358, %v7357
      %v7368 = vpack.c.b16 %v7360, %v7359
      %7377 = vmatprep.subr.bf16.mxu0 0
      %7378 = vmatpush1.bf16.msra.mxu0 %v7361
      %7379 = vmatprep.subr.bf16.mxu0 0
      %7380 = vmatpush1.bf16.msra.mxu0 %v7362
      %7381 = vmatprep.subr.bf16.mxu0 0
      %7382 = vmatpush1.bf16.msra.mxu0 %v7363
      %7383 = vmatprep.subr.bf16.mxu0 0
      %7384 = vmatpush1.bf16.msra.mxu0 %v7364
      %7385 = vmatprep.subr.bf16.mxu0 0
      %7386 = vmatpush1.bf16.msra.mxu0 %v7365
      %7387 = vmatprep.subr.bf16.mxu0 0
      %7388 = vmatpush1.bf16.msra.mxu0 %v7366
      %7389 = vmatprep.subr.bf16.mxu0 0
      %7390 = vmatpush1.bf16.msra.mxu0 %v7367
      %7391 = vmatprep.subr.bf16.mxu0 0
      %7392 = vmatpush1.bf16.msra.mxu0 %v7368
      %7393 = vmatprep.subr.bf16.mxu0 0
      %7394 = vmatpush1.bf16.msra.mxu0 0
      %7395 = vmatprep.subr.bf16.mxu0 0
      %7396 = vmatpush1.bf16.msra.mxu0 0
      %7397 = vmatprep.subr.bf16.mxu0 0
      %7398 = vmatpush1.bf16.msra.mxu0 0
      %7399 = vmatprep.subr.bf16.mxu0 0
      %7400 = vmatpush1.bf16.msra.mxu0 0
      %7401 = vmatprep.subr.bf16.mxu0 0
      %7402 = vmatpush1.bf16.msra.mxu0 0
      %7403 = vmatprep.subr.bf16.mxu0 0
      %7404 = vmatpush1.bf16.msra.mxu0 0
      %7405 = vmatprep.subr.bf16.mxu0 0
      %7406 = vmatpush1.bf16.msra.mxu0 0
      %7407 = vmatprep.subr.bf16.mxu0 0
      %7408 = vmatpush1.bf16.msra.mxu0 0
      %7409 = vmatprep.mubr.bf16.mxu0 0
      %7410 = vmatmul.mubr.bf16.gmra.mrb[0].mxu0 %v7299
      %v7411 = vpop.f32.mrb[0].mxu0
      %v7412 = vadd.f32 %v7327, %v7411
      %v7413 = vpop.f32.mrb[0].mxu0
      %v7414 = vpop.f32.mrb[0].mxu0
      %v7415 = vadd.f32 %v7327, %v7414
      %v7416 = vpop.f32.mrb[0].mxu0
      %7417 = vmatprep.mubr.bf16.mxu0 0
      %7418 = vmatmul.mubr.bf16.gmra.mrb[0].mxu0 %v7300
      %v7419 = vpop.f32.mrb[0].mxu0
      %v7420 = vadd.f32 %v7327, %v7419
      %v7421 = vpop.f32.mrb[0].mxu0
      %v7422 = vpop.f32.mrb[0].mxu0
      %v7423 = vadd.f32 %v7327, %v7422
      %v7424 = vpop.f32.mrb[0].mxu0
      %7425 = vmatprep.mubr.bf16.mxu0 0
      %7426 = vmatmul.mubr.bf16.gmra.mrb[0].mxu0 %v7301
      %v7427 = vpop.f32.mrb[0].mxu0
      %v7428 = vadd.f32 %v7327, %v7427
      %v7429 = vpop.f32.mrb[0].mxu0
      %v7430 = vpop.f32.mrb[0].mxu0
      %v7431 = vadd.f32 %v7327, %v7430
      %v7432 = vpop.f32.mrb[0].mxu0
      %7433 = vmatprep.mubr.bf16.mxu0 0
      %7434 = vmatmul.mubr.bf16.gmra.mrb[0].mxu0 %v7302
      %v7435 = vpop.f32.mrb[0].mxu0
      %v7436 = vadd.f32 %v7327, %v7435
      %v7437 = vpop.f32.mrb[0].mxu0
      %v7438 = vpop.f32.mrb[0].mxu0
      %v7439 = vadd.f32 %v7327, %v7438
      %v7440 = vpop.f32.mrb[0].mxu0
      %7441 = vmatprep.mubr.bf16.mxu0 0
      %7442 = vmatmul.mubr.bf16.gmra.mrb[0].mxu0 %v7303
      %v7443 = vpop.f32.mrb[0].mxu0
      %v7444 = vadd.f32 %v7327, %v7443
      %v7445 = vpop.f32.mrb[0].mxu0
      %v7446 = vpop.f32.mrb[0].mxu0
      %v7447 = vpop.f32.mrb[0].mxu0
      %7448 = vdwg.mxu0
      %v7449 = vadd.f32 %v4636, %v7412
      %v7450 = vadd.f32 %v4637, %v7415
      %v7451 = vadd.f32 %v4638, %v7420
      %v7452 = vadd.f32 %v4639, %v7423
      %v7453 = vadd.f32 %v4640, %v7428
      %v7454 = vadd.f32 %v4641, %v7431
      %v7455 = vadd.f32 %v4642, %v7436
      %v7456 = vadd.f32 %v4643, %v7439
      %v7457 = vadd.f32 %v4644, %v7444
      %s7458 = scalar_lea.vmem %s9, 1
      %v7459 = vld [vmem:[%s7458] sm:$0x1]
      %s7460 = scalar_lea.vmem %s10, 1
      %v7461 = vld [vmem:[%s7460] sm:$0x1]
      %7462 = vadd.xlane.f32.xlu0 %v7449
      %v7463 = vpop.xlane.xlu0 %7462
      %7464 = vadd.xlane.f32.xlu0 %v7450
      %v7465 = vpop.xlane.xlu0 %7464
      %7466 = vadd.xlane.f32.xlu0 %v7451
      %v7467 = vpop.xlane.xlu0 %7466
      %7468 = vadd.xlane.f32.xlu0 %v7452
      %v7469 = vpop.xlane.xlu0 %7468
      %7470 = vadd.xlane.f32.xlu0 %v7453
      %v7471 = vpop.xlane.xlu0 %7470
      %7472 = vadd.xlane.f32.xlu0 %v7454
      %v7473 = vpop.xlane.xlu0 %7472
      %7474 = vadd.xlane.f32.xlu0 %v7455
      %v7475 = vpop.xlane.xlu0 %7474
      %7476 = vadd.xlane.f32.xlu0 %v7456
      %v7477 = vpop.xlane.xlu0 %7476
      %7478 = vadd.xlane.f32.xlu0 %v7457
      %v7479 = vpop.xlane.xlu0 %7478
      %v7480 = vmul.f32 %v7463, %v746
      %v7481 = vmul.f32 %v7465, %v746
      %v7482 = vmul.f32 %v7467, %v746
      %v7483 = vmul.f32 %v7469, %v746
      %v7484 = vmul.f32 %v7471, %v746
      %v7485 = vmul.f32 %v7473, %v746
      %v7486 = vmul.f32 %v7475, %v746
      %v7487 = vmul.f32 %v7477, %v746
      %v7488 = vmul.f32 %v7479, %v746
      %v7489 = vsub.f32 %v7449, %v7480
      %v7490 = vsub.f32 %v7450, %v7481
      %v7491 = vsub.f32 %v7451, %v7482
      %v7492 = vsub.f32 %v7452, %v7483
      %v7493 = vsub.f32 %v7453, %v7484
      %v7494 = vsub.f32 %v7454, %v7485
      %v7495 = vsub.f32 %v7455, %v7486
      %v7496 = vsub.f32 %v7456, %v7487
      %v7497 = vsub.f32 %v7457, %v7488
      %v7498 = vmul.f32 %v7489, %v7489
      %v7499 = vmul.f32 %v7490, %v7490
      %v7500 = vmul.f32 %v7491, %v7491
      %v7501 = vmul.f32 %v7492, %v7492
      %v7502 = vmul.f32 %v7493, %v7493
      %v7503 = vmul.f32 %v7494, %v7494
      %v7504 = vmul.f32 %v7495, %v7495
      %v7505 = vmul.f32 %v7496, %v7496
      %v7506 = vmul.f32 %v7497, %v7497
      %7507 = vadd.xlane.f32.xlu0 %v7498
      %v7508 = vpop.xlane.xlu0 %7507
      %7509 = vadd.xlane.f32.xlu0 %v7499
      %v7510 = vpop.xlane.xlu0 %7509
      %7511 = vadd.xlane.f32.xlu0 %v7500
      %v7512 = vpop.xlane.xlu0 %7511
      %7513 = vadd.xlane.f32.xlu0 %v7501
      %v7514 = vpop.xlane.xlu0 %7513
      %7515 = vadd.xlane.f32.xlu0 %v7502
      %v7516 = vpop.xlane.xlu0 %7515
      %7517 = vadd.xlane.f32.xlu0 %v7503
      %v7518 = vpop.xlane.xlu0 %7517
      %7519 = vadd.xlane.f32.xlu0 %v7504
      %v7520 = vpop.xlane.xlu0 %7519
      %7521 = vadd.xlane.f32.xlu0 %v7505
      %v7522 = vpop.xlane.xlu0 %7521
      %7523 = vadd.xlane.f32.xlu0 %v7506
      %v7524 = vpop.xlane.xlu0 %7523
      %v7525 = vmul.f32 %v7508, %v746
      %v7526 = vmul.f32 %v7510, %v746
      %v7527 = vmul.f32 %v7512, %v746
      %v7528 = vmul.f32 %v7514, %v746
      %v7529 = vmul.f32 %v7516, %v746
      %v7530 = vmul.f32 %v7518, %v746
      %v7531 = vmul.f32 %v7520, %v746
      %v7532 = vmul.f32 %v7522, %v746
      %v7533 = vmul.f32 %v7524, %v746
      %v7534 = vadd.f32 %v7525, 1e-06
      %v7535 = vadd.f32 %v7526, 1e-06
      %v7536 = vadd.f32 %v7527, 1e-06
      %v7537 = vadd.f32 %v7528, 1e-06
      %v7538 = vadd.f32 %v7529, 1e-06
      %v7539 = vadd.f32 %v7530, 1e-06
      %v7540 = vadd.f32 %v7531, 1e-06
      %v7541 = vadd.f32 %v7532, 1e-06
      %v7542 = vadd.f32 %v7533, 1e-06
      %v7543 = vrsqrt.pop %v7534
      %v7544 = vrsqrt.pop %v7535
      %v7545 = vrsqrt.pop %v7536
      %v7546 = vrsqrt.pop %v7537
      %v7547 = vrsqrt.pop %v7538
      %v7548 = vrsqrt.pop %v7539
      %v7549 = vrsqrt.pop %v7540
      %v7550 = vrsqrt.pop %v7541
      %v7551 = vrsqrt.pop %v7542
      %v7552 = vmul.f32 %v7489, %v7543
      %v7553 = vmul.f32 %v7490, %v7544
      %v7554 = vmul.f32 %v7491, %v7545
      %v7555 = vmul.f32 %v7492, %v7546
      %v7556 = vmul.f32 %v7493, %v7547
      %v7557 = vmul.f32 %v7494, %v7548
      %v7558 = vmul.f32 %v7495, %v7549
      %v7559 = vmul.f32 %v7496, %v7550
      %v7560 = vmul.f32 %v7497, %v7551
      %v7562 = vlaneseq
      %v7563 = vshrl.u32 %v7562, 7
      %v7564 = vsub.s32 0, %v7563
      %v7565 = vrot.slane %v7459, %v7564
      %v7567 = vmul.f32 %v7552, %v7565
      %v7568 = vmul.f32 %v7553, %v7565
      %v7569 = vmul.f32 %v7554, %v7565
      %v7570 = vmul.f32 %v7555, %v7565
      %v7571 = vmul.f32 %v7556, %v7565
      %v7572 = vmul.f32 %v7557, %v7565
      %v7573 = vmul.f32 %v7558, %v7565
      %v7574 = vmul.f32 %v7559, %v7565
      %v7575 = vmul.f32 %v7560, %v7565
      %v7577 = vlaneseq
      %v7578 = vshrl.u32 %v7577, 7
      %v7579 = vsub.s32 0, %v7578
      %v7580 = vrot.slane %v7461, %v7579
      %v7582 = vadd.f32 %v7567, %v7580
      %v7583 = vadd.f32 %v7568, %v7580
      %v7584 = vadd.f32 %v7569, %v7580
      %v7585 = vadd.f32 %v7570, %v7580
      %v7586 = vadd.f32 %v7571, %v7580
      %v7587 = vadd.f32 %v7572, %v7580
      %v7588 = vadd.f32 %v7573, %v7580
      %v7589 = vadd.f32 %v7574, %v7580
      %v7590 = vadd.f32 %v7575, %v7580
      %v7591 = vpack.c.bf16 %v7583, %v7582
      %v7592 = vpack.c.bf16 %v7585, %v7584
      %v7593 = vpack.c.bf16 %v7587, %v7586
      %v7594 = vpack.c.bf16 %v7589, %v7588
      %v7595 = vpack.c.bf16 %v7590, %v7590
      %s7596 = scalar_lea.vmem %s11, 256
      %v7597 = vld [vmem:[%s7596] sm:$0xff]
      %v7598 = vld [vmem:[%s7596 + $0x8] sm:$0xff]
      %v7599 = vld [vmem:[%s7596 + $0x10] sm:$0xff]
      %v7600 = vld [vmem:[%s7596 + $0x18] sm:$0xff]
      %v7601 = vld [vmem:[%s7596 + $0x20] sm:$0xff]
      %v7602 = vld [vmem:[%s7596 + $0x28] sm:$0xff]
      %v7603 = vld [vmem:[%s7596 + $0x30] sm:$0xff]
      %v7604 = vld [vmem:[%s7596 + $0x38] sm:$0xff]
      %v7605 = vld [vmem:[%s7596 + $0x40] sm:$0xff]
      %v7606 = vld [vmem:[%s7596 + $0x48] sm:$0xff]
      %v7607 = vld [vmem:[%s7596 + $0x50] sm:$0xff]
      %v7608 = vld [vmem:[%s7596 + $0x58] sm:$0xff]
      %v7609 = vld [vmem:[%s7596 + $0x60] sm:$0xff]
      %v7610 = vld [vmem:[%s7596 + $0x68] sm:$0xff]
      %v7611 = vld [vmem:[%s7596 + $0x70] sm:$0xff]
      %v7612 = vld [vmem:[%s7596 + $0x78] sm:$0xff]
      %v7613 = vld [vmem:[%s7596 + $0x80] sm:$0xff]
      %v7614 = vld [vmem:[%s7596 + $0x88] sm:$0xff]
      %v7615 = vld [vmem:[%s7596 + $0x90] sm:$0xff]
      %v7616 = vld [vmem:[%s7596 + $0x98] sm:$0xff]
      %v7617 = vld [vmem:[%s7596 + $0xa0] sm:$0xff]
      %v7618 = vld [vmem:[%s7596 + $0xa8] sm:$0xff]
      %v7619 = vld [vmem:[%s7596 + $0xb0] sm:$0xff]
      %v7620 = vld [vmem:[%s7596 + $0xb8] sm:$0xff]
      %v7621 = vld [vmem:[%s7596 + $0xc0] sm:$0xff]
      %v7622 = vld [vmem:[%s7596 + $0xc8] sm:$0xff]
      %v7623 = vld [vmem:[%s7596 + $0xd0] sm:$0xff]
      %v7624 = vld [vmem:[%s7596 + $0xd8] sm:$0xff]
      %v7625 = vld [vmem:[%s7596 + $0xe0] sm:$0xff]
      %v7626 = vld [vmem:[%s7596 + $0xe8] sm:$0xff]
      %v7627 = vld [vmem:[%s7596 + $0xf0] sm:$0xff]
      %v7628 = vld [vmem:[%s7596 + $0xf8] sm:$0xff]
      %s7629 = scalar_lea.vmem %s12, 4
      %v7630 = vld [vmem:[%s7629] sm:$0xf]
      %v7632 = vlaneseq
      %v7633 = vshrl.u32 %v7632, 7
      %v7634 = vsub.s32 0, %v7633
      %v7635 = vrot.slane %v7630, %v7634
      %v7636 = vlaneseq
      %v7637 = vshrl.u32 %v7636, 7
      %v7638 = vsub.s32 1, %v7637
      %v7639 = vrot.slane %v7630, %v7638
      %v7640 = vlaneseq
      %v7641 = vshrl.u32 %v7640, 7
      %v7642 = vsub.s32 2, %v7641
      %v7643 = vrot.slane %v7630, %v7642
      %v7644 = vlaneseq
      %v7645 = vshrl.u32 %v7644, 7
      %v7646 = vsub.s32 3, %v7645
      %v7647 = vrot.slane %v7630, %v7646
      %v7684 = vunpack.c.l.b16 %v7597
      %v7685 = vunpack.c.h.b16 %v7597
      %v7686 = vunpack.c.l.b16 %v7598
      %v7687 = vunpack.c.h.b16 %v7598
      %v7688 = vunpack.c.l.b16 %v7599
      %v7689 = vunpack.c.h.b16 %v7599
      %v7690 = vunpack.c.l.b16 %v7600
      %v7691 = vunpack.c.h.b16 %v7600
      %v7692 = vunpack.c.l.b16 %v7601
      %v7693 = vunpack.c.h.b16 %v7601
      %v7694 = vunpack.c.l.b16 %v7602
      %v7695 = vunpack.c.h.b16 %v7602
      %v7696 = vunpack.c.l.b16 %v7603
      %v7697 = vunpack.c.h.b16 %v7603
      %v7698 = vunpack.c.l.b16 %v7604
      %v7699 = vunpack.c.h.b16 %v7604
      %v7700 = vunpack.c.l.b16 %v7605
      %v7701 = vunpack.c.h.b16 %v7605
      %v7702 = vunpack.c.l.b16 %v7606
      %v7703 = vunpack.c.h.b16 %v7606
      %v7704 = vunpack.c.l.b16 %v7607
      %v7705 = vunpack.c.h.b16 %v7607
      %v7706 = vunpack.c.l.b16 %v7608
      %v7707 = vunpack.c.h.b16 %v7608
      %v7708 = vunpack.c.l.b16 %v7609
      %v7709 = vunpack.c.h.b16 %v7609
      %v7710 = vunpack.c.l.b16 %v7610
      %v7711 = vunpack.c.h.b16 %v7610
      %v7712 = vunpack.c.l.b16 %v7611
      %v7713 = vunpack.c.h.b16 %v7611
      %v7714 = vunpack.c.l.b16 %v7612
      %v7715 = vunpack.c.h.b16 %v7612
      %v7716 = vunpack.c.l.b16 %v7613
      %v7717 = vunpack.c.h.b16 %v7613
      %v7718 = vunpack.c.l.b16 %v7614
      %v7719 = vunpack.c.h.b16 %v7614
      %v7720 = vunpack.c.l.b16 %v7615
      %v7721 = vunpack.c.h.b16 %v7615
      %v7722 = vunpack.c.l.b16 %v7616
      %v7723 = vunpack.c.h.b16 %v7616
      %v7724 = vunpack.c.l.b16 %v7617
      %v7725 = vunpack.c.h.b16 %v7617
      %v7726 = vunpack.c.l.b16 %v7618
      %v7727 = vunpack.c.h.b16 %v7618
      %v7728 = vunpack.c.l.b16 %v7619
      %v7729 = vunpack.c.h.b16 %v7619
      %v7730 = vunpack.c.l.b16 %v7620
      %v7731 = vunpack.c.h.b16 %v7620
      %v7732 = vunpack.c.l.b16 %v7621
      %v7733 = vunpack.c.h.b16 %v7621
      %v7734 = vunpack.c.l.b16 %v7622
      %v7735 = vunpack.c.h.b16 %v7622
      %v7736 = vunpack.c.l.b16 %v7623
      %v7737 = vunpack.c.h.b16 %v7623
      %v7738 = vunpack.c.l.b16 %v7624
      %v7739 = vunpack.c.h.b16 %v7624
      %v7740 = vunpack.c.l.b16 %v7625
      %v7741 = vunpack.c.h.b16 %v7625
      %v7742 = vunpack.c.l.b16 %v7626
      %v7743 = vunpack.c.h.b16 %v7626
      %v7744 = vunpack.c.l.b16 %v7627
      %v7745 = vunpack.c.h.b16 %v7627
      %v7746 = vunpack.c.l.b16 %v7628
      %v7747 = vunpack.c.h.b16 %v7628
      %v7748 = vpack.c.b16 %v7688, %v7684
      %v7749 = vpack.c.b16 %v7689, %v7685
      %v7750 = vpack.c.b16 %v7690, %v7686
      %v7751 = vpack.c.b16 %v7691, %v7687
      %v7752 = vpack.c.b16 %v7696, %v7692
      %v7753 = vpack.c.b16 %v7697, %v7693
      %v7754 = vpack.c.b16 %v7698, %v7694
      %v7755 = vpack.c.b16 %v7699, %v7695
      %v7756 = vpack.c.b16 %v7704, %v7700
      %v7757 = vpack.c.b16 %v7705, %v7701
      %v7758 = vpack.c.b16 %v7706, %v7702
      %v7759 = vpack.c.b16 %v7707, %v7703
      %v7760 = vpack.c.b16 %v7712, %v7708
      %v7761 = vpack.c.b16 %v7713, %v7709
      %v7762 = vpack.c.b16 %v7714, %v7710
      %v7763 = vpack.c.b16 %v7715, %v7711
      %v7764 = vpack.c.b16 %v7720, %v7716
      %v7765 = vpack.c.b16 %v7721, %v7717
      %v7766 = vpack.c.b16 %v7722, %v7718
      %v7767 = vpack.c.b16 %v7723, %v7719
      %v7768 = vpack.c.b16 %v7728, %v7724
      %v7769 = vpack.c.b16 %v7729, %v7725
      %v7770 = vpack.c.b16 %v7730, %v7726
      %v7771 = vpack.c.b16 %v7731, %v7727
      %v7772 = vpack.c.b16 %v7736, %v7732
      %v7773 = vpack.c.b16 %v7737, %v7733
      %v7774 = vpack.c.b16 %v7738, %v7734
      %v7775 = vpack.c.b16 %v7739, %v7735
      %v7776 = vpack.c.b16 %v7744, %v7740
      %v7777 = vpack.c.b16 %v7745, %v7741
      %v7778 = vpack.c.b16 %v7746, %v7742
      %v7779 = vpack.c.b16 %v7747, %v7743
      %7812 = vmatprep.subr.bf16.mxu0 %v7749
      %7813 = vmatpush1.bf16.msra.mxu0 %v7748
      %7814 = vmatprep.subr.bf16.mxu0 %v7753
      %7815 = vmatpush1.bf16.msra.mxu0 %v7752
      %7816 = vmatprep.subr.bf16.mxu0 %v7757
      %7817 = vmatpush1.bf16.msra.mxu0 %v7756
      %7818 = vmatprep.subr.bf16.mxu0 %v7761
      %7819 = vmatpush1.bf16.msra.mxu0 %v7760
      %7820 = vmatprep.subr.bf16.mxu0 %v7765
      %7821 = vmatpush1.bf16.msra.mxu0 %v7764
      %7822 = vmatprep.subr.bf16.mxu0 %v7769
      %7823 = vmatpush1.bf16.msra.mxu0 %v7768
      %7824 = vmatprep.subr.bf16.mxu0 %v7773
      %7825 = vmatpush1.bf16.msra.mxu0 %v7772
      %7826 = vmatprep.subr.bf16.mxu0 %v7777
      %7827 = vmatpush1.bf16.msra.mxu0 %v7776
      %7828 = vmatprep.subr.bf16.mxu0 0
      %7829 = vmatpush1.bf16.msra.mxu0 0
      %7830 = vmatprep.subr.bf16.mxu0 0
      %7831 = vmatpush1.bf16.msra.mxu0 0
      %7832 = vmatprep.subr.bf16.mxu0 0
      %7833 = vmatpush1.bf16.msra.mxu0 0
      %7834 = vmatprep.subr.bf16.mxu0 0
      %7835 = vmatpush1.bf16.msra.mxu0 0
      %7836 = vmatprep.subr.bf16.mxu0 0
      %7837 = vmatpush1.bf16.msra.mxu0 0
      %7838 = vmatprep.subr.bf16.mxu0 0
      %7839 = vmatpush1.bf16.msra.mxu0 0
      %7840 = vmatprep.subr.bf16.mxu0 0
      %7841 = vmatpush1.bf16.msra.mxu0 0
      %7842 = vmatprep.subr.bf16.mxu0 0
      %7843 = vmatpush1.bf16.msra.mxu0 0
      %7844 = vmatprep.mubr.bf16.mxu0 0
      %7845 = vmatmul.mubr.bf16.gmra.mrb[0].mxu0 %v7591
      %v7846 = vpop.f32.mrb[0].mxu0
      %v7847 = vadd.f32 %v7635, %v7846
      %v7848 = vpop.f32.mrb[0].mxu0
      %v7849 = vadd.f32 %v7639, %v7848
      %v7850 = vpop.f32.mrb[0].mxu0
      %v7851 = vadd.f32 %v7635, %v7850
      %v7852 = vpop.f32.mrb[0].mxu0
      %v7853 = vadd.f32 %v7639, %v7852
      %7854 = vmatprep.mubr.bf16.mxu0 0
      %7855 = vmatmul.mubr.bf16.gmra.mrb[0].mxu0 %v7592
      %v7856 = vpop.f32.mrb[0].mxu0
      %v7857 = vadd.f32 %v7635, %v7856
      %v7858 = vpop.f32.mrb[0].mxu0
      %v7859 = vadd.f32 %v7639, %v7858
      %v7860 = vpop.f32.mrb[0].mxu0
      %v7861 = vadd.f32 %v7635, %v7860
      %v7862 = vpop.f32.mrb[0].mxu0
      %v7863 = vadd.f32 %v7639, %v7862
      %7864 = vmatprep.mubr.bf16.mxu0 0
      %7865 = vmatmul.mubr.bf16.gmra.mrb[0].mxu0 %v7593
      %v7866 = vpop.f32.mrb[0].mxu0
      %v7867 = vadd.f32 %v7635, %v7866
      %v7868 = vpop.f32.mrb[0].mxu0
      %v7869 = vadd.f32 %v7639, %v7868
      %v7870 = vpop.f32.mrb[0].mxu0
      %v7871 = vadd.f32 %v7635, %v7870
      %v7872 = vpop.f32.mrb[0].mxu0
      %v7873 = vadd.f32 %v7639, %v7872
      %7874 = vmatprep.mubr.bf16.mxu0 0
      %7875 = vmatmul.mubr.bf16.gmra.mrb[0].mxu0 %v7594
      %v7876 = vpop.f32.mrb[0].mxu0
      %v7877 = vadd.f32 %v7635, %v7876
      %v7878 = vpop.f32.mrb[0].mxu0
      %v7879 = vadd.f32 %v7639, %v7878
      %v7880 = vpop.f32.mrb[0].mxu0
      %v7881 = vadd.f32 %v7635, %v7880
      %v7882 = vpop.f32.mrb[0].mxu0
      %v7883 = vadd.f32 %v7639, %v7882
      %7884 = vmatprep.mubr.bf16.mxu0 0
      %7885 = vmatmul.mubr.bf16.gmra.mrb[0].mxu0 %v7595
      %v7886 = vpop.f32.mrb[0].mxu0
      %v7887 = vadd.f32 %v7635, %v7886
      %v7888 = vpop.f32.mrb[0].mxu0
      %v7889 = vadd.f32 %v7639, %v7888
      %v7890 = vpop.f32.mrb[0].mxu0
      %v7891 = vpop.f32.mrb[0].mxu0
      %7892 = vdwg.mxu0
      %7893 = vmatprep.subr.bf16.mxu0 %v7751
      %7894 = vmatpush1.bf16.msra.mxu0 %v7750
      %7895 = vmatprep.subr.bf16.mxu0 %v7755
      %7896 = vmatpush1.bf16.msra.mxu0 %v7754
      %7897 = vmatprep.subr.bf16.mxu0 %v7759
      %7898 = vmatpush1.bf16.msra.mxu0 %v7758
      %7899 = vmatprep.subr.bf16.mxu0 %v7763
      %7900 = vmatpush1.bf16.msra.mxu0 %v7762
      %7901 = vmatprep.subr.bf16.mxu0 %v7767
      %7902 = vmatpush1.bf16.msra.mxu0 %v7766
      %7903 = vmatprep.subr.bf16.mxu0 %v7771
      %7904 = vmatpush1.bf16.msra.mxu0 %v7770
      %7905 = vmatprep.subr.bf16.mxu0 %v7775
      %7906 = vmatpush1.bf16.msra.mxu0 %v7774
      %7907 = vmatprep.subr.bf16.mxu0 %v7779
      %7908 = vmatpush1.bf16.msra.mxu0 %v7778
      %7909 = vmatprep.subr.bf16.mxu0 0
      %7910 = vmatpush1.bf16.msra.mxu0 0
      %7911 = vmatprep.subr.bf16.mxu0 0
      %7912 = vmatpush1.bf16.msra.mxu0 0
      %7913 = vmatprep.subr.bf16.mxu0 0
      %7914 = vmatpush1.bf16.msra.mxu0 0
      %7915 = vmatprep.subr.bf16.mxu0 0
      %7916 = vmatpush1.bf16.msra.mxu0 0
      %7917 = vmatprep.subr.bf16.mxu0 0
      %7918 = vmatpush1.bf16.msra.mxu0 0
      %7919 = vmatprep.subr.bf16.mxu0 0
      %7920 = vmatpush1.bf16.msra.mxu0 0
      %7921 = vmatprep.subr.bf16.mxu0 0
      %7922 = vmatpush1.bf16.msra.mxu0 0
      %7923 = vmatprep.subr.bf16.mxu0 0
      %7924 = vmatpush1.bf16.msra.mxu0 0
      %7925 = vmatprep.mubr.bf16.mxu0 0
      %7926 = vmatmul.mubr.bf16.gmra.mrb[0].mxu0 %v7591
      %v7927 = vpop.f32.mrb[0].mxu0
      %v7928 = vadd.f32 %v7643, %v7927
      %v7929 = vpop.f32.mrb[0].mxu0
      %v7930 = vadd.f32 %v7647, %v7929
      %v7931 = vpop.f32.mrb[0].mxu0
      %v7932 = vadd.f32 %v7643, %v7931
      %v7933 = vpop.f32.mrb[0].mxu0
      %v7934 = vadd.f32 %v7647, %v7933
      %7935 = vmatprep.mubr.bf16.mxu0 0
      %7936 = vmatmul.mubr.bf16.gmra.mrb[0].mxu0 %v7592
      %v7937 = vpop.f32.mrb[0].mxu0
      %v7938 = vadd.f32 %v7643, %v7937
      %v7939 = vpop.f32.mrb[0].mxu0
      %v7940 = vadd.f32 %v7647, %v7939
      %v7941 = vpop.f32.mrb[0].mxu0
      %v7942 = vadd.f32 %v7643, %v7941
      %v7943 = vpop.f32.mrb[0].mxu0
      %v7944 = vadd.f32 %v7647, %v7943
      %7945 = vmatprep.mubr.bf16.mxu0 0
      %7946 = vmatmul.mubr.bf16.gmra.mrb[0].mxu0 %v7593
      %v7947 = vpop.f32.mrb[0].mxu0
      %v7948 = vadd.f32 %v7643, %v7947
      %v7949 = vpop.f32.mrb[0].mxu0
      %v7950 = vadd.f32 %v7647, %v7949
      %v7951 = vpop.f32.mrb[0].mxu0
      %v7952 = vadd.f32 %v7643, %v7951
      %v7953 = vpop.f32.mrb[0].mxu0
      %v7954 = vadd.f32 %v7647, %v7953
      %7955 = vmatprep.mubr.bf16.mxu0 0
      %7956 = vmatmul.mubr.bf16.gmra.mrb[0].mxu0 %v7594
      %v7957 = vpop.f32.mrb[0].mxu0
      %v7958 = vadd.f32 %v7643, %v7957
      %v7959 = vpop.f32.mrb[0].mxu0
      %v7960 = vadd.f32 %v7647, %v7959
      %v7961 = vpop.f32.mrb[0].mxu0
      %v7962 = vadd.f32 %v7643, %v7961
      %v7963 = vpop.f32.mrb[0].mxu0
      %v7964 = vadd.f32 %v7647, %v7963
      %7965 = vmatprep.mubr.bf16.mxu0 0
      %7966 = vmatmul.mubr.bf16.gmra.mrb[0].mxu0 %v7595
      %v7967 = vpop.f32.mrb[0].mxu0
      %v7968 = vadd.f32 %v7643, %v7967
      %v7969 = vpop.f32.mrb[0].mxu0
      %v7970 = vadd.f32 %v7647, %v7969
      %v7971 = vpop.f32.mrb[0].mxu0
      %v7972 = vpop.f32.mrb[0].mxu0
      %7973 = vdwg.mxu0
      %v7974 = vmul.f32 %v7847, 0.5
      %v7975 = vmul.f32 %v7849, 0.5
      %v7976 = vmul.f32 %v7928, 0.5
      %v7977 = vmul.f32 %v7930, 0.5
      %v7978 = vmul.f32 %v7851, 0.5
      %v7979 = vmul.f32 %v7853, 0.5
      %v7980 = vmul.f32 %v7932, 0.5
      %v7981 = vmul.f32 %v7934, 0.5
      %v7982 = vmul.f32 %v7857, 0.5
      %v7983 = vmul.f32 %v7859, 0.5
      %v7984 = vmul.f32 %v7938, 0.5
      %v7985 = vmul.f32 %v7940, 0.5
      %v7986 = vmul.f32 %v7861, 0.5
      %v7987 = vmul.f32 %v7863, 0.5
      %v7988 = vmul.f32 %v7942, 0.5
      %v7989 = vmul.f32 %v7944, 0.5
      %v7990 = vmul.f32 %v7867, 0.5
      %v7991 = vmul.f32 %v7869, 0.5
      %v7992 = vmul.f32 %v7948, 0.5
      %v7993 = vmul.f32 %v7950, 0.5
      %v7994 = vmul.f32 %v7871, 0.5
      %v7995 = vmul.f32 %v7873, 0.5
      %v7996 = vmul.f32 %v7952, 0.5
      %v7997 = vmul.f32 %v7954, 0.5
      %v7998 = vmul.f32 %v7877, 0.5
      %v7999 = vmul.f32 %v7879, 0.5
      %v8000 = vmul.f32 %v7958, 0.5
      %v8001 = vmul.f32 %v7960, 0.5
      %v8002 = vmul.f32 %v7881, 0.5
      %v8003 = vmul.f32 %v7883, 0.5
      %v8004 = vmul.f32 %v7962, 0.5
      %v8005 = vmul.f32 %v7964, 0.5
      %v8006 = vmul.f32 %v7887, 0.5
      %v8007 = vmul.f32 %v7889, 0.5
      %v8008 = vmul.f32 %v7968, 0.5
      %v8009 = vmul.f32 %v7970, 0.5
      %v8010 = vmul.f32 %v7847, 0.70710677
      %v8011 = vmul.f32 %v7849, 0.70710677
      %v8012 = vmul.f32 %v7928, 0.70710677
      %v8013 = vmul.f32 %v7930, 0.70710677
      %v8014 = vmul.f32 %v7851, 0.70710677
      %v8015 = vmul.f32 %v7853, 0.70710677
      %v8016 = vmul.f32 %v7932, 0.70710677
      %v8017 = vmul.f32 %v7934, 0.70710677
      %v8018 = vmul.f32 %v7857, 0.70710677
      %v8019 = vmul.f32 %v7859, 0.70710677
      %v8020 = vmul.f32 %v7938, 0.70710677
      %v8021 = vmul.f32 %v7940, 0.70710677
      %v8022 = vmul.f32 %v7861, 0.70710677
      %v8023 = vmul.f32 %v7863, 0.70710677
      %v8024 = vmul.f32 %v7942, 0.70710677
      %v8025 = vmul.f32 %v7944, 0.70710677
      %v8026 = vmul.f32 %v7867, 0.70710677
      %v8027 = vmul.f32 %v7869, 0.70710677
      %v8028 = vmul.f32 %v7948, 0.70710677
      %v8029 = vmul.f32 %v7950, 0.70710677
      %v8030 = vmul.f32 %v7871, 0.70710677
      %v8031 = vmul.f32 %v7873, 0.70710677
      %v8032 = vmul.f32 %v7952, 0.70710677
      %v8033 = vmul.f32 %v7954, 0.70710677
      %v8034 = vmul.f32 %v7877, 0.70710677
      %v8035 = vmul.f32 %v7879, 0.70710677
      %v8036 = vmul.f32 %v7958, 0.70710677
      %v8037 = vmul.f32 %v7960, 0.70710677
      %v8038 = vmul.f32 %v7881, 0.70710677
      %v8039 = vmul.f32 %v7883, 0.70710677
      %v8040 = vmul.f32 %v7962, 0.70710677
      %v8041 = vmul.f32 %v7964, 0.70710677
      %v8042 = vmul.f32 %v7887, 0.70710677
      %v8043 = vmul.f32 %v7889, 0.70710677
      %v8044 = vmul.f32 %v7968, 0.70710677
      %v8045 = vmul.f32 %v7970, 0.70710677
      %v8046 = verf.f32.pop %v8010
      %v8047 = verf.f32.pop %v8011
      %v8048 = verf.f32.pop %v8012
      %v8049 = verf.f32.pop %v8013
      %v8050 = verf.f32.pop %v8014
      %v8051 = verf.f32.pop %v8015
      %v8052 = verf.f32.pop %v8016
      %v8053 = verf.f32.pop %v8017
      %v8054 = verf.f32.pop %v8018
      %v8055 = verf.f32.pop %v8019
      %v8056 = verf.f32.pop %v8020
      %v8057 = verf.f32.pop %v8021
      %v8058 = verf.f32.pop %v8022
      %v8059 = verf.f32.pop %v8023
      %v8060 = verf.f32.pop %v8024
      %v8061 = verf.f32.pop %v8025
      %v8062 = verf.f32.pop %v8026
      %v8063 = verf.f32.pop %v8027
      %v8064 = verf.f32.pop %v8028
      %v8065 = verf.f32.pop %v8029
      %v8066 = verf.f32.pop %v8030
      %v8067 = verf.f32.pop %v8031
      %v8068 = verf.f32.pop %v8032
      %v8069 = verf.f32.pop %v8033
      %v8070 = verf.f32.pop %v8034
      %v8071 = verf.f32.pop %v8035
      %v8072 = verf.f32.pop %v8036
      %v8073 = verf.f32.pop %v8037
      %v8074 = verf.f32.pop %v8038
      %v8075 = verf.f32.pop %v8039
      %v8076 = verf.f32.pop %v8040
      %v8077 = verf.f32.pop %v8041
      %v8078 = verf.f32.pop %v8042
      %v8079 = verf.f32.pop %v8043
      %v8080 = verf.f32.pop %v8044
      %v8081 = verf.f32.pop %v8045
      %v8082 = vadd.f32 %v8046, 1.0
      %v8083 = vadd.f32 %v8047, 1.0
      %v8084 = vadd.f32 %v8048, 1.0
      %v8085 = vadd.f32 %v8049, 1.0
      %v8086 = vadd.f32 %v8050, 1.0
      %v8087 = vadd.f32 %v8051, 1.0
      %v8088 = vadd.f32 %v8052, 1.0
      %v8089 = vadd.f32 %v8053, 1.0
      %v8090 = vadd.f32 %v8054, 1.0
      %v8091 = vadd.f32 %v8055, 1.0
      %v8092 = vadd.f32 %v8056, 1.0
      %v8093 = vadd.f32 %v8057, 1.0
      %v8094 = vadd.f32 %v8058, 1.0
      %v8095 = vadd.f32 %v8059, 1.0
      %v8096 = vadd.f32 %v8060, 1.0
      %v8097 = vadd.f32 %v8061, 1.0
      %v8098 = vadd.f32 %v8062, 1.0
      %v8099 = vadd.f32 %v8063, 1.0
      %v8100 = vadd.f32 %v8064, 1.0
      %v8101 = vadd.f32 %v8065, 1.0
      %v8102 = vadd.f32 %v8066, 1.0
      %v8103 = vadd.f32 %v8067, 1.0
      %v8104 = vadd.f32 %v8068, 1.0
      %v8105 = vadd.f32 %v8069, 1.0
      %v8106 = vadd.f32 %v8070, 1.0
      %v8107 = vadd.f32 %v8071, 1.0
      %v8108 = vadd.f32 %v8072, 1.0
      %v8109 = vadd.f32 %v8073, 1.0
      %v8110 = vadd.f32 %v8074, 1.0
      %v8111 = vadd.f32 %v8075, 1.0
      %v8112 = vadd.f32 %v8076, 1.0
      %v8113 = vadd.f32 %v8077, 1.0
      %v8114 = vadd.f32 %v8078, 1.0
      %v8115 = vadd.f32 %v8079, 1.0
      %v8116 = vadd.f32 %v8080, 1.0
      %v8117 = vadd.f32 %v8081, 1.0
      %v8118 = vmul.f32 %v7974, %v8082
      %v8119 = vmul.f32 %v7975, %v8083
      %v8120 = vmul.f32 %v7976, %v8084
      %v8121 = vmul.f32 %v7977, %v8085
      %v8122 = vmul.f32 %v7978, %v8086
      %v8123 = vmul.f32 %v7979, %v8087
      %v8124 = vmul.f32 %v7980, %v8088
      %v8125 = vmul.f32 %v7981, %v8089
      %v8126 = vmul.f32 %v7982, %v8090
      %v8127 = vmul.f32 %v7983, %v8091
      %v8128 = vmul.f32 %v7984, %v8092
      %v8129 = vmul.f32 %v7985, %v8093
      %v8130 = vmul.f32 %v7986, %v8094
      %v8131 = vmul.f32 %v7987, %v8095
      %v8132 = vmul.f32 %v7988, %v8096
      %v8133 = vmul.f32 %v7989, %v8097
      %v8134 = vmul.f32 %v7990, %v8098
      %v8135 = vmul.f32 %v7991, %v8099
      %v8136 = vmul.f32 %v7992, %v8100
      %v8137 = vmul.f32 %v7993, %v8101
      %v8138 = vmul.f32 %v7994, %v8102
      %v8139 = vmul.f32 %v7995, %v8103
      %v8140 = vmul.f32 %v7996, %v8104
      %v8141 = vmul.f32 %v7997, %v8105
      %v8142 = vmul.f32 %v7998, %v8106
      %v8143 = vmul.f32 %v7999, %v8107
      %v8144 = vmul.f32 %v8000, %v8108
      %v8145 = vmul.f32 %v8001, %v8109
      %v8146 = vmul.f32 %v8002, %v8110
      %v8147 = vmul.f32 %v8003, %v8111
      %v8148 = vmul.f32 %v8004, %v8112
      %v8149 = vmul.f32 %v8005, %v8113
      %v8150 = vmul.f32 %v8006, %v8114
      %v8151 = vmul.f32 %v8007, %v8115
      %v8152 = vmul.f32 %v8008, %v8116
      %v8153 = vmul.f32 %v8009, %v8117
      %v8154 = vpack.c.bf16 %v8122, %v8118
      %v8155 = vpack.c.bf16 %v8123, %v8119
      %v8156 = vpack.c.bf16 %v8124, %v8120
      %v8157 = vpack.c.bf16 %v8125, %v8121
      %v8158 = vpack.c.bf16 %v8130, %v8126
      %v8159 = vpack.c.bf16 %v8131, %v8127
      %v8160 = vpack.c.bf16 %v8132, %v8128
      %v8161 = vpack.c.bf16 %v8133, %v8129
      %v8162 = vpack.c.bf16 %v8138, %v8134
      %v8163 = vpack.c.bf16 %v8139, %v8135
      %v8164 = vpack.c.bf16 %v8140, %v8136
      %v8165 = vpack.c.bf16 %v8141, %v8137
      %v8166 = vpack.c.bf16 %v8146, %v8142
      %v8167 = vpack.c.bf16 %v8147, %v8143
      %v8168 = vpack.c.bf16 %v8148, %v8144
      %v8169 = vpack.c.bf16 %v8149, %v8145
      %v8170 = vpack.c.bf16 %v8150, %v8150
      %v8171 = vpack.c.bf16 %v8151, %v8151
      %v8172 = vpack.c.bf16 %v8152, %v8152
      %v8173 = vpack.c.bf16 %v8153, %v8153
      %s8174 = scalar_lea.vmem %s13, 256
      %v8175 = vld [vmem:[%s8174] sm:$0xf]
      %v8176 = vld [vmem:[%s8174 + $0x4] sm:$0xf]
      %v8177 = vld [vmem:[%s8174 + $0x8] sm:$0xf]
      %v8178 = vld [vmem:[%s8174 + $0xc] sm:$0xf]
      %v8179 = vld [vmem:[%s8174 + $0x10] sm:$0xf]
      %v8180 = vld [vmem:[%s8174 + $0x14] sm:$0xf]
      %v8181 = vld [vmem:[%s8174 + $0x18] sm:$0xf]
      %v8182 = vld [vmem:[%s8174 + $0x1c] sm:$0xf]
      %v8183 = vld [vmem:[%s8174 + $0x20] sm:$0xf]
      %v8184 = vld [vmem:[%s8174 + $0x24] sm:$0xf]
      %v8185 = vld [vmem:[%s8174 + $0x28] sm:$0xf]
      %v8186 = vld [vmem:[%s8174 + $0x2c] sm:$0xf]
      %v8187 = vld [vmem:[%s8174 + $0x30] sm:$0xf]
      %v8188 = vld [vmem:[%s8174 + $0x34] sm:$0xf]
      %v8189 = vld [vmem:[%s8174 + $0x38] sm:$0xf]
      %v8190 = vld [vmem:[%s8174 + $0x3c] sm:$0xf]
      %v8191 = vld [vmem:[%s8174 + $0x40] sm:$0xf]
      %v8192 = vld [vmem:[%s8174 + $0x44] sm:$0xf]
      %v8193 = vld [vmem:[%s8174 + $0x48] sm:$0xf]
      %v8194 = vld [vmem:[%s8174 + $0x4c] sm:$0xf]
      %v8195 = vld [vmem:[%s8174 + $0x50] sm:$0xf]
      %v8196 = vld [vmem:[%s8174 + $0x54] sm:$0xf]
      %v8197 = vld [vmem:[%s8174 + $0x58] sm:$0xf]
      %v8198 = vld [vmem:[%s8174 + $0x5c] sm:$0xf]
      %v8199 = vld [vmem:[%s8174 + $0x60] sm:$0xf]
      %v8200 = vld [vmem:[%s8174 + $0x64] sm:$0xf]
      %v8201 = vld [vmem:[%s8174 + $0x68] sm:$0xf]
      %v8202 = vld [vmem:[%s8174 + $0x6c] sm:$0xf]
      %v8203 = vld [vmem:[%s8174 + $0x70] sm:$0xf]
      %v8204 = vld [vmem:[%s8174 + $0x74] sm:$0xf]
      %v8205 = vld [vmem:[%s8174 + $0x78] sm:$0xf]
      %v8206 = vld [vmem:[%s8174 + $0x7c] sm:$0xf]
      %v8207 = vld [vmem:[%s8174 + $0x80] sm:$0xf]
      %v8208 = vld [vmem:[%s8174 + $0x84] sm:$0xf]
      %v8209 = vld [vmem:[%s8174 + $0x88] sm:$0xf]
      %v8210 = vld [vmem:[%s8174 + $0x8c] sm:$0xf]
      %v8211 = vld [vmem:[%s8174 + $0x90] sm:$0xf]
      %v8212 = vld [vmem:[%s8174 + $0x94] sm:$0xf]
      %v8213 = vld [vmem:[%s8174 + $0x98] sm:$0xf]
      %v8214 = vld [vmem:[%s8174 + $0x9c] sm:$0xf]
      %v8215 = vld [vmem:[%s8174 + $0xa0] sm:$0xf]
      %v8216 = vld [vmem:[%s8174 + $0xa4] sm:$0xf]
      %v8217 = vld [vmem:[%s8174 + $0xa8] sm:$0xf]
      %v8218 = vld [vmem:[%s8174 + $0xac] sm:$0xf]
      %v8219 = vld [vmem:[%s8174 + $0xb0] sm:$0xf]
      %v8220 = vld [vmem:[%s8174 + $0xb4] sm:$0xf]
      %v8221 = vld [vmem:[%s8174 + $0xb8] sm:$0xf]
      %v8222 = vld [vmem:[%s8174 + $0xbc] sm:$0xf]
      %v8223 = vld [vmem:[%s8174 + $0xc0] sm:$0xf]
      %v8224 = vld [vmem:[%s8174 + $0xc4] sm:$0xf]
      %v8225 = vld [vmem:[%s8174 + $0xc8] sm:$0xf]
      %v8226 = vld [vmem:[%s8174 + $0xcc] sm:$0xf]
      %v8227 = vld [vmem:[%s8174 + $0xd0] sm:$0xf]
      %v8228 = vld [vmem:[%s8174 + $0xd4] sm:$0xf]
      %v8229 = vld [vmem:[%s8174 + $0xd8] sm:$0xf]
      %v8230 = vld [vmem:[%s8174 + $0xdc] sm:$0xf]
      %v8231 = vld [vmem:[%s8174 + $0xe0] sm:$0xf]
      %v8232 = vld [vmem:[%s8174 + $0xe4] sm:$0xf]
      %v8233 = vld [vmem:[%s8174 + $0xe8] sm:$0xf]
      %v8234 = vld [vmem:[%s8174 + $0xec] sm:$0xf]
      %v8235 = vld [vmem:[%s8174 + $0xf0] sm:$0xf]
      %v8236 = vld [vmem:[%s8174 + $0xf4] sm:$0xf]
      %v8237 = vld [vmem:[%s8174 + $0xf8] sm:$0xf]
      %v8238 = vld [vmem:[%s8174 + $0xfc] sm:$0xf]
      %s8239 = scalar_lea.vmem %s14, 1
      %v8240 = vld [vmem:[%s8239] sm:$0x1]
      %v8242 = vlaneseq
      %v8243 = vshrl.u32 %v8242, 7
      %v8244 = vsub.s32 0, %v8243
      %v8245 = vrot.slane %v8240, %v8244
      %v8311 = vunpack.c.l.b16 %v8175
      %v8312 = vunpack.c.l.b16 %v8176
      %v8313 = vunpack.c.l.b16 %v8177
      %v8314 = vunpack.c.l.b16 %v8178
      %v8315 = vunpack.c.l.b16 %v8179
      %v8316 = vunpack.c.l.b16 %v8180
      %v8317 = vunpack.c.l.b16 %v8181
      %v8318 = vunpack.c.l.b16 %v8182
      %v8319 = vunpack.c.l.b16 %v8183
      %v8320 = vunpack.c.l.b16 %v8184
      %v8321 = vunpack.c.l.b16 %v8185
      %v8322 = vunpack.c.l.b16 %v8186
      %v8323 = vunpack.c.l.b16 %v8187
      %v8324 = vunpack.c.l.b16 %v8188
      %v8325 = vunpack.c.l.b16 %v8189
      %v8326 = vunpack.c.l.b16 %v8190
      %v8327 = vunpack.c.l.b16 %v8191
      %v8328 = vunpack.c.l.b16 %v8192
      %v8329 = vunpack.c.l.b16 %v8193
      %v8330 = vunpack.c.l.b16 %v8194
      %v8331 = vunpack.c.l.b16 %v8195
      %v8332 = vunpack.c.l.b16 %v8196
      %v8333 = vunpack.c.l.b16 %v8197
      %v8334 = vunpack.c.l.b16 %v8198
      %v8335 = vunpack.c.l.b16 %v8199
      %v8336 = vunpack.c.l.b16 %v8200
      %v8337 = vunpack.c.l.b16 %v8201
      %v8338 = vunpack.c.l.b16 %v8202
      %v8339 = vunpack.c.l.b16 %v8203
      %v8340 = vunpack.c.l.b16 %v8204
      %v8341 = vunpack.c.l.b16 %v8205
      %v8342 = vunpack.c.l.b16 %v8206
      %v8343 = vunpack.c.l.b16 %v8207
      %v8344 = vunpack.c.l.b16 %v8208
      %v8345 = vunpack.c.l.b16 %v8209
      %v8346 = vunpack.c.l.b16 %v8210
      %v8347 = vunpack.c.l.b16 %v8211
      %v8348 = vunpack.c.l.b16 %v8212
      %v8349 = vunpack.c.l.b16 %v8213
      %v8350 = vunpack.c.l.b16 %v8214
      %v8351 = vunpack.c.l.b16 %v8215
      %v8352 = vunpack.c.l.b16 %v8216
      %v8353 = vunpack.c.l.b16 %v8217
      %v8354 = vunpack.c.l.b16 %v8218
      %v8355 = vunpack.c.l.b16 %v8219
      %v8356 = vunpack.c.l.b16 %v8220
      %v8357 = vunpack.c.l.b16 %v8221
      %v8358 = vunpack.c.l.b16 %v8222
      %v8359 = vunpack.c.l.b16 %v8223
      %v8360 = vunpack.c.l.b16 %v8224
      %v8361 = vunpack.c.l.b16 %v8225
      %v8362 = vunpack.c.l.b16 %v8226
      %v8363 = vunpack.c.l.b16 %v8227
      %v8364 = vunpack.c.l.b16 %v8228
      %v8365 = vunpack.c.l.b16 %v8229
      %v8366 = vunpack.c.l.b16 %v8230
      %v8367 = vunpack.c.l.b16 %v8231
      %v8368 = vunpack.c.l.b16 %v8232
      %v8369 = vunpack.c.l.b16 %v8233
      %v8370 = vunpack.c.l.b16 %v8234
      %v8371 = vunpack.c.l.b16 %v8235
      %v8372 = vunpack.c.l.b16 %v8236
      %v8373 = vunpack.c.l.b16 %v8237
      %v8374 = vunpack.c.l.b16 %v8238
      %v8375 = vpack.c.b16 %v8312, %v8311
      %v8376 = vpack.c.b16 %v8314, %v8313
      %v8377 = vpack.c.b16 %v8316, %v8315
      %v8378 = vpack.c.b16 %v8318, %v8317
      %v8379 = vpack.c.b16 %v8320, %v8319
      %v8380 = vpack.c.b16 %v8322, %v8321
      %v8381 = vpack.c.b16 %v8324, %v8323
      %v8382 = vpack.c.b16 %v8326, %v8325
      %v8383 = vpack.c.b16 %v8328, %v8327
      %v8384 = vpack.c.b16 %v8330, %v8329
      %v8385 = vpack.c.b16 %v8332, %v8331
      %v8386 = vpack.c.b16 %v8334, %v8333
      %v8387 = vpack.c.b16 %v8336, %v8335
      %v8388 = vpack.c.b16 %v8338, %v8337
      %v8389 = vpack.c.b16 %v8340, %v8339
      %v8390 = vpack.c.b16 %v8342, %v8341
      %v8391 = vpack.c.b16 %v8344, %v8343
      %v8392 = vpack.c.b16 %v8346, %v8345
      %v8393 = vpack.c.b16 %v8348, %v8347
      %v8394 = vpack.c.b16 %v8350, %v8349
      %v8395 = vpack.c.b16 %v8352, %v8351
      %v8396 = vpack.c.b16 %v8354, %v8353
      %v8397 = vpack.c.b16 %v8356, %v8355
      %v8398 = vpack.c.b16 %v8358, %v8357
      %v8399 = vpack.c.b16 %v8360, %v8359
      %v8400 = vpack.c.b16 %v8362, %v8361
      %v8401 = vpack.c.b16 %v8364, %v8363
      %v8402 = vpack.c.b16 %v8366, %v8365
      %v8403 = vpack.c.b16 %v8368, %v8367
      %v8404 = vpack.c.b16 %v8370, %v8369
      %v8405 = vpack.c.b16 %v8372, %v8371
      %v8406 = vpack.c.b16 %v8374, %v8373
      %8439 = vmatprep.subr.bf16.mxu0 0
      %8440 = vmatpush1.bf16.msra.mxu0 %v8375
      %8441 = vmatprep.subr.bf16.mxu0 0
      %8442 = vmatpush1.bf16.msra.mxu0 %v8376
      %8443 = vmatprep.subr.bf16.mxu0 0
      %8444 = vmatpush1.bf16.msra.mxu0 %v8377
      %8445 = vmatprep.subr.bf16.mxu0 0
      %8446 = vmatpush1.bf16.msra.mxu0 %v8378
      %8447 = vmatprep.subr.bf16.mxu0 0
      %8448 = vmatpush1.bf16.msra.mxu0 %v8379
      %8449 = vmatprep.subr.bf16.mxu0 0
      %8450 = vmatpush1.bf16.msra.mxu0 %v8380
      %8451 = vmatprep.subr.bf16.mxu0 0
      %8452 = vmatpush1.bf16.msra.mxu0 %v8381
      %8453 = vmatprep.subr.bf16.mxu0 0
      %8454 = vmatpush1.bf16.msra.mxu0 %v8382
      %8455 = vmatprep.subr.bf16.mxu0 0
      %8456 = vmatpush1.bf16.msra.mxu0 %v8383
      %8457 = vmatprep.subr.bf16.mxu0 0
      %8458 = vmatpush1.bf16.msra.mxu0 %v8384
      %8459 = vmatprep.subr.bf16.mxu0 0
      %8460 = vmatpush1.bf16.msra.mxu0 %v8385
      %8461 = vmatprep.subr.bf16.mxu0 0
      %8462 = vmatpush1.bf16.msra.mxu0 %v8386
      %8463 = vmatprep.subr.bf16.mxu0 0
      %8464 = vmatpush1.bf16.msra.mxu0 %v8387
      %8465 = vmatprep.subr.bf16.mxu0 0
      %8466 = vmatpush1.bf16.msra.mxu0 %v8388
      %8467 = vmatprep.subr.bf16.mxu0 0
      %8468 = vmatpush1.bf16.msra.mxu0 %v8389
      %8469 = vmatprep.subr.bf16.mxu0 0
      %8470 = vmatpush1.bf16.msra.mxu0 %v8390
      %8471 = vmatprep.mubr.bf16.mxu0 %v8155
      %8472 = vmatmul.mubr.bf16.gmra.mrb[0].mxu0 %v8154
      %v8473 = vpop.f32.mrb[0].mxu0
      %v8474 = vpop.f32.mrb[0].mxu0
      %v8475 = vpop.f32.mrb[0].mxu0
      %v8476 = vpop.f32.mrb[0].mxu0
      %8477 = vmatprep.mubr.bf16.mxu0 %v8159
      %8478 = vmatmul.mubr.bf16.gmra.mrb[0].mxu0 %v8158
      %v8479 = vpop.f32.mrb[0].mxu0
      %v8480 = vadd.f32 %v8245, %v8479
      %v8481 = vpop.f32.mrb[0].mxu0
      %v8482 = vpop.f32.mrb[0].mxu0
      %v8483 = vpop.f32.mrb[0].mxu0
      %8484 = vmatprep.mubr.bf16.mxu0 %v8163
      %8485 = vmatmul.mubr.bf16.gmra.mrb[0].mxu0 %v8162
      %v8486 = vpop.f32.mrb[0].mxu0
      %v8487 = vpop.f32.mrb[0].mxu0
      %v8488 = vpop.f32.mrb[0].mxu0
      %v8489 = vadd.f32 %v8245, %v8488
      %v8490 = vpop.f32.mrb[0].mxu0
      %8491 = vmatprep.mubr.bf16.mxu0 %v8167
      %8492 = vmatmul.mubr.bf16.gmra.mrb[0].mxu0 %v8166
      %v8493 = vpop.f32.mrb[0].mxu0
      %v8494 = vpop.f32.mrb[0].mxu0
      %v8495 = vpop.f32.mrb[0].mxu0
      %v8496 = vpop.f32.mrb[0].mxu0
      %8497 = vmatprep.mubr.bf16.mxu0 %v8171
      %8498 = vmatmul.mubr.bf16.gmra.mrb[0].mxu0 %v8170
      %v8499 = vpop.f32.mrb[0].mxu0
      %v8500 = vadd.f32 %v8245, %v8499
      %v8501 = vpop.f32.mrb[0].mxu0
      %v8502 = vpop.f32.mrb[0].mxu0
      %v8503 = vpop.f32.mrb[0].mxu0
      %8504 = vdwg.mxu0
      %8505 = vmatprep.subr.bf16.mxu0 0
      %8506 = vmatpush1.bf16.msra.mxu0 %v8391
      %8507 = vmatprep.subr.bf16.mxu0 0
      %8508 = vmatpush1.bf16.msra.mxu0 %v8392
      %8509 = vmatprep.subr.bf16.mxu0 0
      %8510 = vmatpush1.bf16.msra.mxu0 %v8393
      %8511 = vmatprep.subr.bf16.mxu0 0
      %8512 = vmatpush1.bf16.msra.mxu0 %v8394
      %8513 = vmatprep.subr.bf16.mxu0 0
      %8514 = vmatpush1.bf16.msra.mxu0 %v8395
      %8515 = vmatprep.subr.bf16.mxu0 0
      %8516 = vmatpush1.bf16.msra.mxu0 %v8396
      %8517 = vmatprep.subr.bf16.mxu0 0
      %8518 = vmatpush1.bf16.msra.mxu0 %v8397
      %8519 = vmatprep.subr.bf16.mxu0 0
      %8520 = vmatpush1.bf16.msra.mxu0 %v8398
      %8521 = vmatprep.subr.bf16.mxu0 0
      %8522 = vmatpush1.bf16.msra.mxu0 %v8399
      %8523 = vmatprep.subr.bf16.mxu0 0
      %8524 = vmatpush1.bf16.msra.mxu0 %v8400
      %8525 = vmatprep.subr.bf16.mxu0 0
      %8526 = vmatpush1.bf16.msra.mxu0 %v8401
      %8527 = vmatprep.subr.bf16.mxu0 0
      %8528 = vmatpush1.bf16.msra.mxu0 %v8402
      %8529 = vmatprep.subr.bf16.mxu0 0
      %8530 = vmatpush1.bf16.msra.mxu0 %v8403
      %8531 = vmatprep.subr.bf16.mxu0 0
      %8532 = vmatpush1.bf16.msra.mxu0 %v8404
      %8533 = vmatprep.subr.bf16.mxu0 0
      %8534 = vmatpush1.bf16.msra.mxu0 %v8405
      %8535 = vmatprep.subr.bf16.mxu0 0
      %8536 = vmatpush1.bf16.msra.mxu0 %v8406
      %8537 = vmatprep.mubr.bf16.mxu0 %v8157
      %8538 = vmatmul.mubr.bf16.gmra.mrb[0].mxu0 %v8156
      %v8539 = vpop.f32.mrb[0].mxu0
      %v8540 = vpop.f32.mrb[0].mxu0
      %v8541 = vpop.f32.mrb[0].mxu0
      %v8542 = vpop.f32.mrb[0].mxu0
      %8543 = vmatprep.mubr.bf16.mxu0 %v8161
      %8544 = vmatmul.mubr.bf16.gmra.mrb[0].mxu0 %v8160
      %v8545 = vpop.f32.mrb[0].mxu0
      %v8546 = vadd.f32 %v8480, %v8545
      %v8547 = vpop.f32.mrb[0].mxu0
      %v8548 = vpop.f32.mrb[0].mxu0
      %v8549 = vpop.f32.mrb[0].mxu0
      %8550 = vmatprep.mubr.bf16.mxu0 %v8165
      %8551 = vmatmul.mubr.bf16.gmra.mrb[0].mxu0 %v8164
      %v8552 = vpop.f32.mrb[0].mxu0
      %v8553 = vpop.f32.mrb[0].mxu0
      %v8554 = vpop.f32.mrb[0].mxu0
      %v8555 = vadd.f32 %v8489, %v8554
      %v8556 = vpop.f32.mrb[0].mxu0
      %8557 = vmatprep.mubr.bf16.mxu0 %v8169
      %8558 = vmatmul.mubr.bf16.gmra.mrb[0].mxu0 %v8168
      %v8559 = vpop.f32.mrb[0].mxu0
      %v8560 = vpop.f32.mrb[0].mxu0
      %v8561 = vpop.f32.mrb[0].mxu0
      %v8562 = vpop.f32.mrb[0].mxu0
      %8563 = vmatprep.mubr.bf16.mxu0 %v8173
      %8564 = vmatmul.mubr.bf16.gmra.mrb[0].mxu0 %v8172
      %v8565 = vpop.f32.mrb[0].mxu0
      %v8566 = vadd.f32 %v8500, %v8565
      %v8567 = vpop.f32.mrb[0].mxu0
      %v8568 = vpop.f32.mrb[0].mxu0
      %v8569 = vpop.f32.mrb[0].mxu0
      %8570 = vdwg.mxu0
      %v8571 = vadd.f32 %v7451, %v8546
      %v8572 = vadd.f32 %v7454, %v8555
      %v8573 = vadd.f32 %v7457, %v8566
      %v8575 = vrot.slane %v8572, 7
      %v8578 = vrot.slane %v8573, 6
      %vm8580 = vcmask 1040384
      %v8581 = vsel %vm8580, %v8571, %v8575
      %vm8582 = vcmask 1041408
      %v8583 = vsel %vm8582, %v8581, %v8578
      %v8584 = vld [vmem:[%s15] sm:$0x1]
      %v8585 = vld [vmem:[%s16] sm:$0x1]
      %vm8586 = vcmask 1042432
      %v8587 = vsel %vm8586, %v8583, 0.0
      %8588 = vadd.xlane.f32.xlu0 %v8587
      %v8589 = vpop.xlane.xlu0 %8588
      %v8590 = vmul.f32 %v8589, %v746
      %v8591 = vsub.f32 %v8583, %v8590
      %v8592 = vmul.f32 %v8591, %v8591
      %v8593 = vsel %vm8586, %v8592, 0.0
      %8594 = vadd.xlane.f32.xlu0 %v8593
      %v8595 = vpop.xlane.xlu0 %8594
      %v8596 = vmul.f32 %v8595, %v746
      %v8597 = vadd.f32 %v8596, 1e-06
      %v8598 = vrsqrt.pop %v8597
      %v8599 = vmul.f32 %v8591, %v8598
      %v8601 = vlaneseq
      %v8602 = vshrl.u32 %v8601, 7
      %v8603 = vsub.s32 0, %v8602
      %v8604 = vrot.slane %v8584, %v8603
      %v8606 = vmul.f32 %v8599, %v8604
      %v8608 = vlaneseq
      %v8609 = vshrl.u32 %v8608, 7
      %v8610 = vsub.s32 0, %v8609
      %v8611 = vrot.slane %v8585, %v8610
      %v8613 = vadd.f32 %v8606, %v8611
      %v8614 = vpack.c.bf16 %v8613, %v8613
      %v8615 = vld [vmem:[%s17] sm:$0xf]
      %v8616 = vld [vmem:[%s17 + $0x4] sm:$0xf]
      %v8617 = vld [vmem:[%s17 + $0x8] sm:$0xf]
      %v8618 = vld [vmem:[%s17 + $0xc] sm:$0xf]
      %v8619 = vld [vmem:[%s17 + $0x10] sm:$0xf]
      %v8620 = vld [vmem:[%s17 + $0x14] sm:$0xf]
      %v8621 = vld [vmem:[%s17 + $0x18] sm:$0xf]
      %v8622 = vld [vmem:[%s17 + $0x1c] sm:$0xf]
      %v8623 = vld [vmem:[%s17 + $0x20] sm:$0xf]
      %v8624 = vld [vmem:[%s17 + $0x24] sm:$0xf]
      %v8625 = vld [vmem:[%s17 + $0x28] sm:$0xf]
      %v8626 = vld [vmem:[%s17 + $0x2c] sm:$0xf]
      %v8627 = vld [vmem:[%s17 + $0x30] sm:$0xf]
      %v8628 = vld [vmem:[%s17 + $0x34] sm:$0xf]
      %v8629 = vld [vmem:[%s17 + $0x38] sm:$0xf]
      %v8630 = vld [vmem:[%s17 + $0x3c] sm:$0xf]
      %v8631 = vld [vmem:[%s18] sm:$0x1]
      %v8633 = vlaneseq
      %v8634 = vshrl.u32 %v8633, 7
      %v8635 = vsub.s32 0, %v8634
      %v8636 = vrot.slane %v8631, %v8635
      %v8654 = vunpack.c.l.b16 %v8615
      %v8655 = vunpack.c.l.b16 %v8616
      %v8656 = vunpack.c.l.b16 %v8617
      %v8657 = vunpack.c.l.b16 %v8618
      %v8658 = vunpack.c.l.b16 %v8619
      %v8659 = vunpack.c.l.b16 %v8620
      %v8660 = vunpack.c.l.b16 %v8621
      %v8661 = vunpack.c.l.b16 %v8622
      %v8662 = vunpack.c.l.b16 %v8623
      %v8663 = vunpack.c.l.b16 %v8624
      %v8664 = vunpack.c.l.b16 %v8625
      %v8665 = vunpack.c.l.b16 %v8626
      %v8666 = vunpack.c.l.b16 %v8627
      %v8667 = vunpack.c.l.b16 %v8628
      %v8668 = vunpack.c.l.b16 %v8629
      %v8669 = vunpack.c.l.b16 %v8630
      %v8670 = vpack.c.b16 %v8655, %v8654
      %v8671 = vpack.c.b16 %v8657, %v8656
      %v8672 = vpack.c.b16 %v8659, %v8658
      %v8673 = vpack.c.b16 %v8661, %v8660
      %v8674 = vpack.c.b16 %v8663, %v8662
      %v8675 = vpack.c.b16 %v8665, %v8664
      %v8676 = vpack.c.b16 %v8667, %v8666
      %v8677 = vpack.c.b16 %v8669, %v8668
      %8686 = vmatprep.subr.bf16.mxu0 0
      %8687 = vmatpush1.bf16.msra.mxu0 %v8670
      %8688 = vmatprep.subr.bf16.mxu0 0
      %8689 = vmatpush1.bf16.msra.mxu0 %v8671
      %8690 = vmatprep.subr.bf16.mxu0 0
      %8691 = vmatpush1.bf16.msra.mxu0 %v8672
      %8692 = vmatprep.subr.bf16.mxu0 0
      %8693 = vmatpush1.bf16.msra.mxu0 %v8673
      %8694 = vmatprep.subr.bf16.mxu0 0
      %8695 = vmatpush1.bf16.msra.mxu0 %v8674
      %8696 = vmatprep.subr.bf16.mxu0 0
      %8697 = vmatpush1.bf16.msra.mxu0 %v8675
      %8698 = vmatprep.subr.bf16.mxu0 0
      %8699 = vmatpush1.bf16.msra.mxu0 %v8676
      %8700 = vmatprep.subr.bf16.mxu0 0
      %8701 = vmatpush1.bf16.msra.mxu0 %v8677
      %8702 = vmatprep.subr.bf16.mxu0 0
      %8703 = vmatpush1.bf16.msra.mxu0 0
      %8704 = vmatprep.subr.bf16.mxu0 0
      %8705 = vmatpush1.bf16.msra.mxu0 0
      %8706 = vmatprep.subr.bf16.mxu0 0
      %8707 = vmatpush1.bf16.msra.mxu0 0
      %8708 = vmatprep.subr.bf16.mxu0 0
      %8709 = vmatpush1.bf16.msra.mxu0 0
      %8710 = vmatprep.subr.bf16.mxu0 0
      %8711 = vmatpush1.bf16.msra.mxu0 0
      %8712 = vmatprep.subr.bf16.mxu0 0
      %8713 = vmatpush1.bf16.msra.mxu0 0
      %8714 = vmatprep.subr.bf16.mxu0 0
      %8715 = vmatpush1.bf16.msra.mxu0 0
      %8716 = vmatprep.subr.bf16.mxu0 0
      %8717 = vmatpush1.bf16.msra.mxu0 0
      %8718 = vmatprep.mubr.bf16.mxu0 0
      %8719 = vmatmul.mubr.bf16.gmra.mrb[0].mxu0 %v8614
      %v8720 = vpop.f32.mrb[0].mxu0
      %v8721 = vadd.f32 %v8636, %v8720
      %v8722 = vpop.f32.mrb[0].mxu0
      %v8723 = vpop.f32.mrb[0].mxu0
      %v8724 = vpop.f32.mrb[0].mxu0
      %8725 = vdwg.mxu0
      %8726 = vst [vmem:[%s602] sm:$0x7] %v8721
      %p8727 = scmp.lt.s32.totalorder %s30, 1
      %s8728 = scalar_select %p8727, %s30, 1
      %s8729 = smul.addr %s8728, 4
      %s8730 = scalar_lea.vmem %s19, %s8729
      // Predicated region
      $region97: #{vit_forward.1} parent=95 // pred_check
        %p8731 = pneg %p452
      $region98: #{vit_forward.1} parent=95 // pred_check_branch
        %8733 = sbr.rel (%p8731) target = $region100
      $region99: #{vit_forward.1} parent=95 // pred_region
        _
      $region100: #{vit_forward.1} parent=95 // pred_fallthru
        _
    $region96: #{vit_forward.1} parent=5 // pred_fallthru
      _
    %p8734 = scmp.le.s32.totalorder 2, %s25
    // Predicated region
    $region101: #{vit_forward.1} parent=5 // pred_check
      %p8735 = pneg %p8734
    $region102: #{vit_forward.1} parent=5 // pred_check_branch
      %8737 = sbr.rel (%p8735) target = $region104
    $region103: #{vit_forward.1} parent=5 // pred_region
      %s8738 = ssub.s32 %s25, 2
      // Predicated region
      $region105: #{vit_forward.1} parent=103 // pred_check
        %p8739 = pneg %p458
      $region106: #{vit_forward.1} parent=103 // pred_check_branch
        %8741 = sbr.rel (%p8739) target = $region108
      $region107: #{vit_forward.1} parent=103 // pred_region
        %p8742 = scmp.lt.s32.totalorder %s31, 1
        %s8743 = scalar_select %p8742, %s31, 1
        %s8744 = smul.addr %s8743, 4
        %s8745 = scalar_lea.vmem %s19, %s8744
      $region108: #{vit_forward.1} parent=103 // pred_fallthru
        _
    $region104: #{vit_forward.1} parent=5 // pred_fallthru
      _
  $region6: #{vit_forward.1} parent=0 // loop_footer
    %s29 = sadd.s32 1, %s25
  $region7: #{vit_forward.1} parent=0 // loop_footer_branch
    %24 = sbr.rel target = $region3
  $region8: #{vit_forward.1} parent=0 // loop_exit
    _

</llo_original>
